<compile_context>
chip_gen: v7x
topology: tpu7x:2x2x1
jax: 0.10.0
libtpu: 0.0.40
codegen_flags: <defaults>
</compile_context>

<pallas_src>
import functools
import math

import jax
import jax.numpy as jnp
from jax import lax
from jax.experimental import pallas as pl
from jax.experimental.pallas import tpu as pltpu

# bf16 operands for the conv MXU matmul (f32 accumulation). Set to jnp.float32 for an
# exact match with the f32 reference.
_CONV_MXU_DTYPE = jnp.bfloat16


def _largest_divisor(n, candidates):
    for c in candidates:
        if n % c == 0:
            return c
    return n


# ----------------------------------------------------------------------------------
# Pallas kernel 1: fused 3x3 reflect-pad conv as a pure MXU matmul.
# im2col and the bf16 cast happen in the wrapper; the output is (Cout, B*H*W) so the
# last dim is lane-dense (multiple of 128) -> no masked partial stores.
# ----------------------------------------------------------------------------------
def _conv_matmul_kernel(w_ref, x_ref, o_ref):
    """w_ref: (Cout, K*K*Cin) bf16; x_ref: (K*K*Cin, TN) bf16; o_ref: (Cout, TN) f32."""
    o_ref[...] = jnp.dot(w_ref[...], x_ref[...], preferred_element_type=jnp.float32)


def conv3x3_reflect_pallas(x_nchw, w_oihw):
    """3x3 conv, reflect padding 1, no bias.  x: (B, Cin, H, W), w: (Cout, Cin, 3, 3)."""
    B, Cin, H, W = x_nchw.shape
    Cout, _, K, _ = w_oihw.shape
    p = K // 2
    kkc = K * K * Cin
    n_total = B * H * W

    # Reflect-pad + im2col in the wrapper (XLA), cast to bf16 before the HBM->VMEM DMA.
    x_pad = jnp.pad(jnp.transpose(x_nchw, (0, 2, 3, 1)),
                    ((0, 0), (p, p), (p, p), (0, 0)), mode="reflect")
    cols = [x_pad[:, dy:dy + H, dx:dx + W, :] for dy in range(K) for dx in range(K)]
    rhs = jnp.stack(cols, axis=0)                               # (K*K, B, H, W, Cin)
    rhs = jnp.transpose(rhs, (0, 4, 1, 2, 3)).reshape(kkc, n_total)
    rhs = rhs.astype(_CONV_MXU_DTYPE)
    w_mat = jnp.transpose(w_oihw, (0, 2, 3, 1)).reshape(Cout, kkc).astype(_CONV_MXU_DTYPE)

    # Lane-dense column tiles; keep >= 2 tiles when possible so v7x megacore can split.
    tn = _largest_divisor(n_total, (2048, 1024, 512, 256, 128))
    if tn == n_total and n_total >= 256 and (n_total // 2) % 128 == 0:
        tn = n_total // 2
    grid_n = n_total // tn

    out = pl.pallas_call(
        _conv_matmul_kernel,
        out_shape=jax.ShapeDtypeStruct((Cout, n_total), jnp.float32),
        grid=(grid_n,),
        in_specs=[
            pl.BlockSpec((Cout, kkc), lambda n: (0, 0)),
            pl.BlockSpec((kkc, tn), lambda n: (0, n)),
        ],
        out_specs=pl.BlockSpec((Cout, tn), lambda n: (0, n)),
        compiler_params=pltpu.CompilerParams(dimension_semantics=("parallel",)),
    )(w_mat, rhs)

    return jnp.transpose(out.reshape(Cout, B, H, W), (1, 0, 2, 3))


def conv3x3_reflect_ref(x_nchw, w_oihw):
    p = w_oihw.shape[2] // 2
    xp = jnp.pad(x_nchw, ((0, 0), (0, 0), (p, p), (p, p)), mode="reflect")
    return lax.conv_general_dilated(
        xp, w_oihw, (1, 1), "VALID",
        dimension_numbers=("NCHW", "OIHW", "NCHW"))


# ----------------------------------------------------------------------------------
# Pallas kernel 2: selective scan (Mamba SSM recurrence), 4 directions + batch on lanes.
# ----------------------------------------------------------------------------------
def _selective_scan_kernel(u_ref, dt_ref, a_ref, b_ref, c_ref, y_ref,
                           h_ref, da_ref, db_ref, *, unroll):
    """One (TL, M) chunk of the length-L scan per grid step.
    u_ref, dt_ref, y_ref: (TL, M); a_ref: (N, M); b_ref, c_ref: (TL, N, M).
    M = padded B*4*d_inner lanes (multiple of 128), N = d_state sublanes.
    State h is carried across grid steps in the (N, M) VMEM scratch h_ref."""
    @pl.when(pl.program_id(0) == 0)
    def _init():
        h_ref[...] = jnp.zeros_like(h_ref)

    tl = u_ref.shape[0]
    dt = dt_ref[...]                                            # (TL, M)

    # Vectorized prologue: EUP exp and the dt*u*B products are hoisted off the serial
    # recurrence chain and computed for the whole chunk at once.
    da_ref[...] = jnp.exp(dt[:, None, :] * a_ref[...][None])    # (TL, N, M)
    db_ref[...] = (dt * u_ref[...])[:, None, :] * b_ref[...]    # (TL, N, M)

    def outer(t, h):
        base = pl.multiple_of(t * unroll, unroll)
        da = da_ref[pl.ds(base, unroll)]                        # (unroll, N, M) block load
        db = db_ref[pl.ds(base, unroll)]
        cc = c_ref[pl.ds(base, unroll)]
        ys = []
        for j in range(unroll):                                 # manual unroll
            h = da[j] * h + db[j]                               # (N, M)
            ys.append(jnp.sum(h * cc[j], axis=0, keepdims=True))
        # Full-sublane (unroll, M) store instead of `unroll` masked single-row stores.
        y_ref[pl.ds(base, unroll), :] = jnp.concatenate(ys, axis=0)
        return h

    h_ref[...] = lax.fori_loop(0, tl // unroll, outer, h_ref[...])


def selective_scan_pallas(u, delta, A, Bs, Cs):
    """u, delta: (B, K*D, L); A: (K*D, N); Bs, Cs: (B, K, N, L) -> y: (B, K*D, L)."""
    nb, k4, nst, L = Bs.shape
    kd = u.shape[1]
    d = kd // k4
    m = nb * kd
    m_pad = ((m + 127) // 128) * 128

    u_t = jnp.transpose(u, (2, 0, 1)).reshape(L, m)
    dt_t = jnp.transpose(delta, (2, 0, 1)).reshape(L, m)
    a_t = jnp.transpose(jnp.broadcast_to(A.T[None], (nb, nst, kd)),
                        (1, 0, 2)).reshape(nst, m)

    def _expand(g):   # (B, K, N, L) -> (L, N, B*K*D), broadcast over D within each group
        gg = jnp.broadcast_to(g[:, :, None], (nb, k4, d, nst, L)).reshape(nb, kd, nst, L)
        return jnp.transpose(gg, (3, 2, 0, 1)).reshape(L, nst, m)

    b_t = _expand(Bs)
    c_t = _expand(Cs)

    pad = m_pad - m
    if pad:
        # Zero padding keeps the dummy lanes finite: da = exp(0) = 1, db = 0, h stays 0.
        u_t = jnp.pad(u_t, ((0, 0), (0, pad)))
        dt_t = jnp.pad(dt_t, ((0, 0), (0, pad)))
        a_t = jnp.pad(a_t, ((0, 0), (0, pad)))
        b_t = jnp.pad(b_t, ((0, 0), (0, 0), (0, pad)))
        c_t = jnp.pad(c_t, ((0, 0), (0, 0), (0, pad)))

    # Tile L over an "arbitrary" grid so the u/dt/b/c DMAs pipeline under the scan and
    # VMEM stays bounded at large L (v7x's 64 MiB / v5e's 16 MiB scoped budgets).
    tl = _largest_divisor(L, (512, 256, 128, 64, 32, 16, 8))
    if tl == L and L % 16 == 0:
        tl = L // 2
    unroll = _largest_divisor(tl, (8, 4, 2, 1))
    grid_l = L // tl

    y_t = pl.pallas_call(
        functools.partial(_selective_scan_kernel, unroll=unroll),
        out_shape=jax.ShapeDtypeStruct((L, m_pad), jnp.float32),
        grid=(grid_l,),
        in_specs=[
            pl.BlockSpec((tl, m_pad), lambda t: (t, 0)),
            pl.BlockSpec((tl, m_pad), lambda t: (t, 0)),
            pl.BlockSpec((nst, m_pad), lambda t: (0, 0)),
            pl.BlockSpec((tl, nst, m_pad), lambda t: (t, 0, 0)),
            pl.BlockSpec((tl, nst, m_pad), lambda t: (t, 0, 0)),
        ],
        out_specs=pl.BlockSpec((tl, m_pad), lambda t: (t, 0)),
        scratch_shapes=[
            pltpu.VMEM((nst, m_pad), jnp.float32),       # carried scan state h
            pltpu.VMEM((tl, nst, m_pad), jnp.float32),   # da = exp(dt*A) for the chunk
            pltpu.VMEM((tl, nst, m_pad), jnp.float32),   # db = dt*u*B for the chunk
        ],
        compiler_params=pltpu.CompilerParams(dimension_semantics=("arbitrary",)),
    )(u_t, dt_t, a_t, b_t, c_t)

    return jnp.transpose(y_t[:, :m].reshape(L, nb, kd), (1, 2, 0))


def selective_scan_ref(u, delta, A, Bs, Cs):
    """Pure-JAX reference of the same recurrence."""
    nb, k4, nst, L = Bs.shape
    kd = u.shape[1]
    d = kd // k4
    Bf = jnp.broadcast_to(Bs[:, :, None], (nb, k4, d, nst, L)).reshape(nb, kd, nst, L)
    Cf = jnp.broadcast_to(Cs[:, :, None], (nb, k4, d, nst, L)).reshape(nb, kd, nst, L)

    def step(h, xs):
        u_l, dt_l, b_l, c_l = xs
        da = jnp.exp(dt_l[..., None] * A[None])
        h = da * h + (dt_l * u_l)[..., None] * b_l
        y = jnp.sum(h * c_l, axis=-1)
        return h, y

    h0 = jnp.zeros((nb, kd, nst), jnp.float32)
    xs = (jnp.transpose(u, (2, 0, 1)),
          jnp.transpose(delta, (2, 0, 1)),
          jnp.transpose(Bf, (3, 0, 1, 2)),
          jnp.transpose(Cf, (3, 0, 1, 2)))
    _, ys = lax.scan(step, h0, xs)                   # (L, B, K*D)
    return jnp.transpose(ys, (1, 2, 0))


# ----------------------------------------------------------------------------------
# Plain-JAX building blocks (norms, pointwise ops).
# ----------------------------------------------------------------------------------
def batch_norm(x, p, eps=1e-5):
    g, b, rm, rv = p
    return ((x - rm[None, :, None, None]) / jnp.sqrt(rv[None, :, None, None] + eps)
            * g[None, :, None, None] + b[None, :, None, None])


def group_norm(x, g, b, groups, eps=1e-5):
    nb, c, h, w = x.shape
    xg = x.reshape(nb, groups, c // groups, h, w)
    mu = jnp.mean(xg, axis=(2, 3, 4), keepdims=True)
    var = jnp.var(xg, axis=(2, 3, 4), keepdims=True)
    xn = ((xg - mu) / jnp.sqrt(var + eps)).reshape(nb, c, h, w)
    return xn * g[None, :, None, None] + b[None, :, None, None]


def layer_norm(x, g, b, eps=1e-5):
    mu = jnp.mean(x, axis=-1, keepdims=True)
    var = jnp.var(x, axis=-1, keepdims=True)
    return (x - mu) / jnp.sqrt(var + eps) * g + b


# ----------------------------------------------------------------------------------
# SS2D / FeatureEnhancementSS2DConv / unit / block forward.
# ----------------------------------------------------------------------------------
def forward_corev0(p, x, scan_fn):
    nb, d_inner, H, W = x.shape
    L = H * W
    K = 4

    x_flat = x.reshape(nb, d_inner, L)
    x_wh = jnp.transpose(x, (0, 1, 3, 2)).reshape(nb, d_inner, L)
    x_hwwh = jnp.stack([x_flat, x_wh], axis=1)
    xs = jnp.concatenate([x_hwwh, jnp.flip(x_hwwh, axis=-1)], axis=1)      # (B,4,D,L)

    x_dbl = jnp.einsum("bkdl,kcd->bkcl", xs, p["x_proj_w"])
    R = p["dt_proj_w"].shape[2]
    nst = p["A_logs"].shape[1]
    dts = x_dbl[:, :, :R, :]
    Bs = x_dbl[:, :, R:R + nst, :]
    Cs = x_dbl[:, :, R + nst:, :]
    dts = jnp.einsum("bkrl,kdr->bkdl", dts, p["dt_proj_w"])

    As = -jnp.exp(p["A_logs"])                      # (4*D, N)
    Ds = p["Ds"]                                    # (4*D,)
    dt_bias = p["dt_proj_b"].reshape(-1)            # (4*D,)

    u = xs.reshape(nb, K * d_inner, L)
    delta = jax.nn.softplus(dts.reshape(nb, K * d_inner, L) + dt_bias[None, :, None])

    y = scan_fn(u, delta, As, Bs, Cs) + u * Ds[None, :, None]
    out_y = y.reshape(nb, K, d_inner, L)

    inv_y = jnp.flip(out_y[:, 2:4], axis=-1)
    wh_y = jnp.transpose(out_y[:, 1].reshape(nb, d_inner, W, H),
                         (0, 1, 3, 2)).reshape(nb, d_inner, L)
    invwh_y = jnp.transpose(inv_y[:, 1].reshape(nb, d_inner, W, H),
                            (0, 1, 3, 2)).reshape(nb, d_inner, L)
    return out_y[:, 0], inv_y[:, 0], wh_y, invwh_y


def ss2d_forward(p, x_seq, H, W, scan_fn):
    nb, nn, c = x_seq.shape
    d_inner = p["dw_w"].shape[0]

    # NB: this permute+reshape mirrors the (quirky) reference code exactly.
    x = jnp.transpose(x_seq, (0, 2, 1)).reshape(nb, H, W, c)
    xz = jnp.einsum("bhwc,oc->bhwo", x, p["in_proj_w"])
    x, z = jnp.split(xz, 2, axis=-1)
    x = jnp.transpose(x, (0, 3, 1, 2))                                   # (B, d_inner, H, W)
    x = lax.conv_general_dilated(x, p["dw_w"], (1, 1), ((1, 1), (1, 1)),
                                 dimension_numbers=("NCHW", "OIHW", "NCHW"),
                                 feature_group_count=d_inner)
    x = jax.nn.silu(x + p["dw_b"][None, :, None, None])

    y1, y2, y3, y4 = forward_corev0(p, x, scan_fn)
    y = y1 + y2 + y3 + y4                                                # (B, d_inner, L)
    y = jnp.transpose(y, (0, 2, 1)).reshape(nb, H, W, d_inner)
    y = layer_norm(y, p["ln_g"], p["ln_b"])
    y = y * jax.nn.silu(z)
    out = jnp.einsum("bhwd,od->bhwo", y, p["out_proj_w"])
    return out.reshape(nb, nn, c)


def fe_ss2d_forward(p, x_g, scan_fn):
    h = jnp.einsum("bchw,mc->bmhw", x_g, p["conv1_w"])
    h = jax.nn.relu(group_norm(h, p["gn_g"], p["gn_b"], groups=3))
    nb, m, H, W = h.shape
    seq = jnp.transpose(h, (0, 2, 3, 1)).reshape(nb, H * W, m)
    ss = ss2d_forward(p["ss2d"], seq, H, W, scan_fn)
    rec = jnp.transpose(ss.reshape(nb, H, W, m), (0, 3, 1, 2))
    return jnp.einsum("bmhw,om->bohw", h + rec, p["conv3_w"])


def refinement_unit_forward(p, x_l, x_g, scan_fn, conv_fn, use_fused_conv):
    c_l = x_l.shape[1]
    if use_fused_conv:
        # One fused 3x3 conv covers convl2l, convg2l and convl2g (block weight matrix).
        dense = conv_fn(jnp.concatenate([x_l, x_g], axis=1), p["w_fused"])
        out_xl = dense[:, :c_l]
        part_xg = dense[:, c_l:]
    else:
        out_xl = conv_fn(x_l, p["w_l2l"]) + conv_fn(x_g, p["w_g2l"])
        part_xg = conv_fn(x_l, p["w_l2g"])
    out_xg = part_xg + fe_ss2d_forward(p["g2g"], x_g, scan_fn)
    x_l = jax.nn.relu(batch_norm(out_xl, p["bn_l"]))
    x_g = jax.nn.relu(batch_norm(out_xg, p["bn_g"]))
    return x_l, x_g


def dual_resnet_block_forward(params, x_l, x_g, *, use_pallas):
    conv_fn = conv3x3_reflect_pallas if use_pallas else conv3x3_reflect_ref
    scan_fn = selective_scan_pallas if use_pallas else selective_scan_ref
    id_l, id_g = x_l, x_g
    x_l, x_g = refinement_unit_forward(params["unit1"], x_l, x_g, scan_fn, conv_fn, use_pallas)
    x_l, x_g = refinement_unit_forward(params["unit2"], x_l, x_g, scan_fn, conv_fn, use_pallas)
    return id_l + x_l, id_g + x_g


# ----------------------------------------------------------------------------------
# Parameter construction (deterministic, PyTorch-shaped weights).
# ----------------------------------------------------------------------------------
def init_unit_params(key, dim, ratio=0.75, d_state=16):
    c_g = int(dim * ratio)
    c_l = dim - c_g
    m = c_g // 2                       # FE mid channels == SS2D d_model
    d_model = m
    d_inner = 2 * d_model
    dt_rank = max(1, math.ceil(d_model / 16))
    ks = list(jax.random.split(key, 24))

    def nrm(k, shape, s=0.1):
        return jax.random.normal(k, shape, jnp.float32) * s

    w_l2l = nrm(ks[0], (c_l, c_l, 3, 3))
    w_g2l = nrm(ks[1], (c_l, c_g, 3, 3))
    w_l2g = nrm(ks[2], (c_g, c_l, 3, 3))
    w_fused = jnp.zeros((dim, dim, 3, 3), jnp.float32)
    w_fused = w_fused.at[:c_l, :c_l].set(w_l2l)
    w_fused = w_fused.at[:c_l, c_l:].set(w_g2l)
    w_fused = w_fused.at[c_l:, :c_l].set(w_l2g)

    ss2d = dict(
        in_proj_w=nrm(ks[3], (2 * d_inner, d_model), 0.2),
        dw_w=nrm(ks[4], (d_inner, 1, 3, 3), 0.2),
        dw_b=nrm(ks[5], (d_inner,), 0.2),
        x_proj_w=nrm(ks[6], (4, dt_rank + 2 * d_state, d_inner), 0.2),
        dt_proj_w=nrm(ks[7], (4, d_inner, dt_rank), 0.5),
        dt_proj_b=nrm(ks[8], (4, d_inner), 0.5) - 2.0,
        A_logs=jnp.log(jnp.broadcast_to(
            jnp.arange(1, d_state + 1, dtype=jnp.float32)[None, :],
            (4 * d_inner, d_state))),
        Ds=jnp.ones((4 * d_inner,), jnp.float32),
        ln_g=1.0 + nrm(ks[9], (d_inner,)),
        ln_b=nrm(ks[10], (d_inner,)),
        out_proj_w=nrm(ks[11], (d_model, d_inner), 0.2),
    )
    g2g = dict(
        conv1_w=nrm(ks[12], (m, c_g), 0.2),
        gn_g=1.0 + nrm(ks[13], (m,)),
        gn_b=nrm(ks[14], (m,)),
        ss2d=ss2d,
        conv3_w=nrm(ks[15], (c_g, m), 0.2),
    )
    bn_l = (1.0 + nrm(ks[16], (c_l,)), nrm(ks[17], (c_l,)),
            nrm(ks[18], (c_l,)), 1.0 + jnp.abs(nrm(ks[19], (c_l,))))
    bn_g = (1.0 + nrm(ks[20], (c_g,)), nrm(ks[21], (c_g,)),
            nrm(ks[22], (c_g,)), 1.0 + jnp.abs(nrm(ks[23], (c_g,))))

    return dict(w_l2l=w_l2l, w_g2l=w_g2l, w_l2g=w_l2g, w_fused=w_fused,
                g2g=g2g, bn_l=bn_l, bn_g=bn_g)


if __name__ == "__main__":
    dim, B, H, W = 16, 2, 16, 16                      # -> C_l = 4, C_g = 12, d_inner = 12
    c_g = int(dim * 0.75)
    c_l = dim - c_g

    key = jax.random.PRNGKey(0)
    k_xl, k_xg, k_u1, k_u2 = jax.random.split(key, 4)
    x_l = jax.random.normal(k_xl, (B, c_l, H, W), jnp.float32)
    x_g = jax.random.normal(k_xg, (B, c_g, H, W), jnp.float32)
    params = dict(unit1=init_unit_params(k_u1, dim), unit2=init_unit_params(k_u2, dim))

    fwd_pallas = jax.jit(functools.partial(dual_resnet_block_forward, use_pallas=True))
    fwd_ref = jax.jit(functools.partial(dual_resnet_block_forward, use_pallas=False))

    out_l, out_g = jax.block_until_ready(fwd_pallas(params, x_l, x_g))
    ref_l, ref_g = jax.block_until_ready(fwd_ref(params, x_l, x_g))

    assert out_l.shape == (B, c_l, H, W) and out_g.shape == (B, c_g, H, W)

    def rel_err(a, b):
        return float(jnp.max(jnp.abs(a - b) / (1.0 + jnp.abs(b))))

    err_l, err_g = rel_err(out_l, ref_l), rel_err(out_g, ref_g)
    # bf16 MXU operands in the conv kernel -> modest tolerance vs the f32 reference.
    assert err_l < 3e-2 and err_g < 3e-2, (err_l, err_g)

    print("KERNEL_OK")
</pallas_src>

<mosaic_0001>
module attributes {stable_mosaic.version = 11 : i64} {
  func.func @_conv_matmul_kernel(%arg0: i32, %arg1: memref<16x144xbf16, #tpu.memory_space<vmem>>, %arg2: memref<144x256xbf16, #tpu.memory_space<vmem>>, %arg3: memref<16x256xf32, #tpu.memory_space<vmem>>) attributes {dimension_semantics = [#tpu.dimension_semantics<parallel>], iteration_bounds = array<i64: 2>, scalar_prefetch = 0 : i64, scratch_operands = 0 : i64, tpu.core_type = #tpu.core_type<tc>, window_params = [{pipeline_mode = #tpu.pipeline_mode<synchronous>, transform_indices = @transform_0, window_bounds = array<i64: 16, 144>}, {transform_indices = @transform_1, window_bounds = array<i64: 144, 256>}, {transform_indices = @transform_2, window_bounds = array<i64: 16, 256>}]} {
    %c0 = arith.constant 0 : index
    %c0_0 = arith.constant 0 : index
    %0 = vector.load %arg1[%c0, %c0_0] : memref<16x144xbf16, #tpu.memory_space<vmem>>, vector<16x144xbf16>
    %c0_1 = arith.constant 0 : index
    %c0_2 = arith.constant 0 : index
    %1 = vector.load %arg2[%c0_1, %c0_2] : memref<144x256xbf16, #tpu.memory_space<vmem>>, vector<144x256xbf16>
    %cst = arith.constant dense<0.000000e+00> : vector<16x256xf32>
    %2 = tpu.matmul %0, %1, %cst {dimension_numbers = #tpu.dot_dimension_numbers<[1], [0], [0], [1], [0, 0, 1, 1], [], []>} : vector<16x144xbf16>, vector<144x256xbf16>, vector<16x256xf32> -> vector<16x256xf32>
    %c0_3 = arith.constant 0 : index
    %c0_4 = arith.constant 0 : index
    %3 = vector.load %arg3[%c0_3, %c0_4] : memref<16x256xf32, #tpu.memory_space<vmem>>, vector<16x256xf32>
    tpu.vector_store %arg3[%c0_3, %c0_4], %2 {strides = array<i32>} : memref<16x256xf32, #tpu.memory_space<vmem>>, vector<16x256xf32>,
    return
  }
  func.func @transform_0(%arg0: i32) -> (i32, i32) {
    %c0_i32 = arith.constant 0 : i32
    %c0_i32_0 = arith.constant 0 : i32
    %c0_i32_1 = arith.constant 0 : i32
    return %c0_i32, %c0_i32_0 : i32, i32
  }
  func.func @transform_1(%arg0: i32) -> (i32, i32) {
    %c0_i32 = arith.constant 0 : i32
    %c0_i32_0 = arith.constant 0 : i32
    return %c0_i32, %arg0 : i32, i32
  }
  func.func @transform_2(%arg0: i32) -> (i32, i32) {
    %c0_i32 = arith.constant 0 : i32
    %c0_i32_0 = arith.constant 0 : i32
    return %c0_i32, %arg0 : i32, i32
  }
}

module attributes {stable_mosaic.version = 11 : i64} {
  func.func @_selective_scan_kernel(%arg0: i32, %arg1: memref<128x128xf32, #tpu.memory_space<vmem>>, %arg2: memref<128x128xf32, #tpu.memory_space<vmem>>, %arg3: memref<16x128xf32, #tpu.memory_space<vmem>>, %arg4: memref<128x16x128xf32, #tpu.memory_space<vmem>>, %arg5: memref<128x16x128xf32, #tpu.memory_space<vmem>>, %arg6: memref<128x128xf32, #tpu.memory_space<vmem>>, %arg7: memref<16x128xf32, #tpu.memory_space<vmem>>, %arg8: memref<128x16x128xf32, #tpu.memory_space<vmem>>, %arg9: memref<128x16x128xf32, #tpu.memory_space<vmem>>) attributes {dimension_semantics = [#tpu.dimension_semantics<arbitrary>], iteration_bounds = array<i64: 2>, scalar_prefetch = 0 : i64, scratch_operands = 3 : i64, tpu.core_type = #tpu.core_type<tc>, window_params = [{transform_indices = @transform_0, window_bounds = array<i64: 128, 128>}, {transform_indices = @transform_1, window_bounds = array<i64: 128, 128>}, {pipeline_mode = #tpu.pipeline_mode<synchronous>, transform_indices = @transform_2, window_bounds = array<i64: 16, 128>}, {transform_indices = @transform_3, window_bounds = array<i64: 128, 16, 128>}, {transform_indices = @transform_4, window_bounds = array<i64: 128, 16, 128>}, {transform_indices = @transform_5, window_bounds = array<i64: 128, 128>}]} {
    %c0_i32 = arith.constant 0 : i32
    %0 = arith.cmpi eq, %arg0, %c0_i32 : i32
    %1 = arith.extui %0 : i1 to i32
    %c0_i32_0 = arith.constant 0 : i32
    %2 = arith.cmpi ne, %1, %c0_i32_0 : i32
    scf.if %2 {
      %cst = arith.constant 0.000000e+00 : f32
      %23 = vector.broadcast %cst : f32 to vector<16x128xf32>
      %c0_21 = arith.constant 0 : index
      %c0_22 = arith.constant 0 : index
      %24 = vector.load %arg7[%c0_21, %c0_22] : memref<16x128xf32, #tpu.memory_space<vmem>>, vector<16x128xf32>
      tpu.vector_store %arg7[%c0_21, %c0_22], %23 {strides = array<i32>} : memref<16x128xf32, #tpu.memory_space<vmem>>, vector<16x128xf32>,
    } else {
    }
    %c0 = arith.constant 0 : index
    %c0_1 = arith.constant 0 : index
    %3 = vector.load %arg2[%c0, %c0_1] : memref<128x128xf32, #tpu.memory_space<vmem>>, vector<128x128xf32>
    %4 = vector.shape_cast %3 : vector<128x128xf32> to vector<128x1x128xf32>
    %c0_2 = arith.constant 0 : index
    %c0_3 = arith.constant 0 : index
    %5 = vector.load %arg3[%c0_2, %c0_3] : memref<16x128xf32, #tpu.memory_space<vmem>>, vector<16x128xf32>
    %6 = vector.shape_cast %5 : vector<16x128xf32> to vector<1x16x128xf32>
    %7 = vector.broadcast %4 : vector<128x1x128xf32> to vector<128x16x128xf32>
    %8 = vector.broadcast %6 : vector<1x16x128xf32> to vector<128x16x128xf32>
    %9 = arith.mulf %7, %8 : vector<128x16x128xf32>
    %10 = math.exp %9 : vector<128x16x128xf32>
    %c0_4 = arith.constant 0 : index
    %c0_5 = arith.constant 0 : index
    %c0_6 = arith.constant 0 : index
    %11 = vector.load %arg8[%c0_4, %c0_5, %c0_6] : memref<128x16x128xf32, #tpu.memory_space<vmem>>, vector<128x16x128xf32>
    tpu.vector_store %arg8[%c0_4, %c0_5, %c0_6], %10 {strides = array<i32>} : memref<128x16x128xf32, #tpu.memory_space<vmem>>, vector<128x16x128xf32>,
    %c0_7 = arith.constant 0 : index
    %c0_8 = arith.constant 0 : index
    %12 = vector.load %arg1[%c0_7, %c0_8] : memref<128x128xf32, #tpu.memory_space<vmem>>, vector<128x128xf32>
    %13 = arith.mulf %3, %12 : vector<128x128xf32>
    %14 = vector.shape_cast %13 : vector<128x128xf32> to vector<128x1x128xf32>
    %c0_9 = arith.constant 0 : index
    %c0_10 = arith.constant 0 : index
    %c0_11 = arith.constant 0 : index
    %15 = vector.load %arg4[%c0_9, %c0_10, %c0_11] : memref<128x16x128xf32, #tpu.memory_space<vmem>>, vector<128x16x128xf32>
    %16 = vector.broadcast %14 : vector<128x1x128xf32> to vector<128x16x128xf32>
    %17 = arith.mulf %16, %15 : vector<128x16x128xf32>
    %c0_12 = arith.constant 0 : index
    %c0_13 = arith.constant 0 : index
    %c0_14 = arith.constant 0 : index
    %18 = vector.load %arg9[%c0_12, %c0_13, %c0_14] : memref<128x16x128xf32, #tpu.memory_space<vmem>>, vector<128x16x128xf32>
    tpu.vector_store %arg9[%c0_12, %c0_13, %c0_14], %17 {strides = array<i32>} : memref<128x16x128xf32, #tpu.memory_space<vmem>>, vector<128x16x128xf32>,
    %c0_15 = arith.constant 0 : index
    %c0_16 = arith.constant 0 : index
    %19 = vector.load %arg7[%c0_15, %c0_16] : memref<16x128xf32, #tpu.memory_space<vmem>>, vector<16x128xf32>
    %c0_i32_17 = arith.constant 0 : i32
    %c16_i32 = arith.constant 16 : i32
    %20 = arith.addi %c0_i32_17, %c16_i32 : i32
    %c1_i32 = arith.constant 1 : i32
    %21 = scf.for %arg10 = %c0_i32_17 to %20 step %c1_i32 iter_args(%arg11 = %19) -> (vector<16x128xf32>)  : i32 {
      %c8_i32 = arith.constant 8 : i32
      %23 = arith.muli %arg10, %c8_i32 : i32
      %24 = tpu.assume_multiple %23, 8 : i32
      %25 = arith.index_cast %24 : i32 to index
      %c0_21 = arith.constant 0 : index
      %c0_22 = arith.constant 0 : index
      %26 = vector.load %arg8[%25, %c0_21, %c0_22] : memref<128x16x128xf32, #tpu.memory_space<vmem>>, vector<8x16x128xf32>
      %27 = arith.index_cast %24 : i32 to index
      %c0_23 = arith.constant 0 : index
      %c0_24 = arith.constant 0 : index
      %28 = vector.load %arg9[%27, %c0_23, %c0_24] : memref<128x16x128xf32, #tpu.memory_space<vmem>>, vector<8x16x128xf32>
      %29 = arith.index_cast %24 : i32 to index
      %c0_25 = arith.constant 0 : index
      %c0_26 = arith.constant 0 : index
      %30 = vector.load %arg5[%29, %c0_25, %c0_26] : memref<128x16x128xf32, #tpu.memory_space<vmem>>, vector<8x16x128xf32>
      %31 = vector.extract_strided_slice %26 {offsets = [0, 0, 0], sizes = [1, 16, 128], strides = [1, 1, 1]} : vector<8x16x128xf32> to vector<1x16x128xf32>
      %32 = vector.shape_cast %31 : vector<1x16x128xf32> to vector<16x128xf32>
      %33 = arith.mulf %32, %arg11 : vector<16x128xf32>
      %34 = vector.extract_strided_slice %28 {offsets = [0, 0, 0], sizes = [1, 16, 128], strides = [1, 1, 1]} : vector<8x16x128xf32> to vector<1x16x128xf32>
      %35 = vector.shape_cast %34 : vector<1x16x128xf32> to vector<16x128xf32>
      %36 = arith.addf %33, %35 : vector<16x128xf32>
      %37 = vector.extract_strided_slice %30 {offsets = [0, 0, 0], sizes = [1, 16, 128], strides = [1, 1, 1]} : vector<8x16x128xf32> to vector<1x16x128xf32>
      %38 = vector.shape_cast %37 : vector<1x16x128xf32> to vector<16x128xf32>
      %39 = arith.mulf %36, %38 : vector<16x128xf32>
      %cst = arith.constant dense<0.000000e+00> : vector<128xf32>
      %40 = vector.multi_reduction <add>, %39, %cst [0] : vector<16x128xf32> to vector<128xf32>
      %41 = vector.shape_cast %40 : vector<128xf32> to vector<1x128xf32>
      %42 = vector.extract_strided_slice %26 {offsets = [1, 0, 0], sizes = [1, 16, 128], strides = [1, 1, 1]} : vector<8x16x128xf32> to vector<1x16x128xf32>
      %43 = vector.shape_cast %42 : vector<1x16x128xf32> to vector<16x128xf32>
      %44 = arith.mulf %43, %36 : vector<16x128xf32>
      %45 = vector.extract_strided_slice %28 {offsets = [1, 0, 0], sizes = [1, 16, 128], strides = [1, 1, 1]} : vector<8x16x128xf32> to vector<1x16x128xf32>
      %46 = vector.shape_cast %45 : vector<1x16x128xf32> to vector<16x128xf32>
      %47 = arith.addf %44, %46 : vector<16x128xf32>
      %48 = vector.extract_strided_slice %30 {offsets = [1, 0, 0], sizes = [1, 16, 128], strides = [1, 1, 1]} : vector<8x16x128xf32> to vector<1x16x128xf32>
      %49 = vector.shape_cast %48 : vector<1x16x128xf32> to vector<16x128xf32>
      %50 = arith.mulf %47, %49 : vector<16x128xf32>
      %cst_27 = arith.constant dense<0.000000e+00> : vector<128xf32>
      %51 = vector.multi_reduction <add>, %50, %cst_27 [0] : vector<16x128xf32> to vector<128xf32>
      %52 = vector.shape_cast %51 : vector<128xf32> to vector<1x128xf32>
      %53 = vector.extract_strided_slice %26 {offsets = [2, 0, 0], sizes = [1, 16, 128], strides = [1, 1, 1]} : vector<8x16x128xf32> to vector<1x16x128xf32>
      %54 = vector.shape_cast %53 : vector<1x16x128xf32> to vector<16x128xf32>
      %55 = arith.mulf %54, %47 : vector<16x128xf32>
      %56 = vector.extract_strided_slice %28 {offsets = [2, 0, 0], sizes = [1, 16, 128], strides = [1, 1, 1]} : vector<8x16x128xf32> to vector<1x16x128xf32>
      %57 = vector.shape_cast %56 : vector<1x16x128xf32> to vector<16x128xf32>
      %58 = arith.addf %55, %57 : vector<16x128xf32>
      %59 = vector.extract_strided_slice %30 {offsets = [2, 0, 0], sizes = [1, 16, 128], strides = [1, 1, 1]} : vector<8x16x128xf32> to vector<1x16x128xf32>
      %60 = vector.shape_cast %59 : vector<1x16x128xf32> to vector<16x128xf32>
      %61 = arith.mulf %58, %60 : vector<16x128xf32>
      %cst_28 = arith.constant dense<0.000000e+00> : vector<128xf32>
      %62 = vector.multi_reduction <add>, %61, %cst_28 [0] : vector<16x128xf32> to vector<128xf32>
      %63 = vector.shape_cast %62 : vector<128xf32> to vector<1x128xf32>
      %64 = vector.extract_strided_slice %26 {offsets = [3, 0, 0], sizes = [1, 16, 128], strides = [1, 1, 1]} : vector<8x16x128xf32> to vector<1x16x128xf32>
      %65 = vector.shape_cast %64 : vector<1x16x128xf32> to vector<16x128xf32>
      %66 = arith.mulf %65, %58 : vector<16x128xf32>
      %67 = vector.extract_strided_slice %28 {offsets = [3, 0, 0], sizes = [1, 16, 128], strides = [1, 1, 1]} : vector<8x16x128xf32> to vector<1x16x128xf32>
      %68 = vector.shape_cast %67 : vector<1x16x128xf32> to vector<16x128xf32>
      %69 = arith.addf %66, %68 : vector<16x128xf32>
      %70 = vector.extract_strided_slice %30 {offsets = [3, 0, 0], sizes = [1, 16, 128], strides = [1, 1, 1]} : vector<8x16x128xf32> to vector<1x16x128xf32>
      %71 = vector.shape_cast %70 : vector<1x16x128xf32> to vector<16x128xf32>
      %72 = arith.mulf %69, %71 : vector<16x128xf32>
      %cst_29 = arith.constant dense<0.000000e+00> : vector<128xf32>
      %73 = vector.multi_reduction <add>, %72, %cst_29 [0] : vector<16x128xf32> to vector<128xf32>
      %74 = vector.shape_cast %73 : vector<128xf32> to vector<1x128xf32>
      %75 = vector.extract_strided_slice %26 {offsets = [4, 0, 0], sizes = [1, 16, 128], strides = [1, 1, 1]} : vector<8x16x128xf32> to vector<1x16x128xf32>
      %76 = vector.shape_cast %75 : vector<1x16x128xf32> to vector<16x128xf32>
      %77 = arith.mulf %76, %69 : vector<16x128xf32>
      %78 = vector.extract_strided_slice %28 {offsets = [4, 0, 0], sizes = [1, 16, 128], strides = [1, 1, 1]} : vector<8x16x128xf32> to vector<1x16x128xf32>
      %79 = vector.shape_cast %78 : vector<1x16x128xf32> to vector<16x128xf32>
      %80 = arith.addf %77, %79 : vector<16x128xf32>
      %81 = vector.extract_strided_slice %30 {offsets = [4, 0, 0], sizes = [1, 16, 128], strides = [1, 1, 1]} : vector<8x16x128xf32> to vector<1x16x128xf32>
      %82 = vector.shape_cast %81 : vector<1x16x128xf32> to vector<16x128xf32>
      %83 = arith.mulf %80, %82 : vector<16x128xf32>
      %cst_30 = arith.constant dense<0.000000e+00> : vector<128xf32>
      %84 = vector.multi_reduction <add>, %83, %cst_30 [0] : vector<16x128xf32> to vector<128xf32>
      %85 = vector.shape_cast %84 : vector<128xf32> to vector<1x128xf32>
      %86 = vector.extract_strided_slice %26 {offsets = [5, 0, 0], sizes = [1, 16, 128], strides = [1, 1, 1]} : vector<8x16x128xf32> to vector<1x16x128xf32>
      %87 = vector.shape_cast %86 : vector<1x16x128xf32> to vector<16x128xf32>
      %88 = arith.mulf %87, %80 : vector<16x128xf32>
      %89 = vector.extract_strided_slice %28 {offsets = [5, 0, 0], sizes = [1, 16, 128], strides = [1, 1, 1]} : vector<8x16x128xf32> to vector<1x16x128xf32>
      %90 = vector.shape_cast %89 : vector<1x16x128xf32> to vector<16x128xf32>
      %91 = arith.addf %88, %90 : vector<16x128xf32>
      %92 = vector.extract_strided_slice %30 {offsets = [5, 0, 0], sizes = [1, 16, 128], strides = [1, 1, 1]} : vector<8x16x128xf32> to vector<1x16x128xf32>
      %93 = vector.shape_cast %92 : vector<1x16x128xf32> to vector<16x128xf32>
      %94 = arith.mulf %91, %93 : vector<16x128xf32>
      %cst_31 = arith.constant dense<0.000000e+00> : vector<128xf32>
      %95 = vector.multi_reduction <add>, %94, %cst_31 [0] : vector<16x128xf32> to vector<128xf32>
      %96 = vector.shape_cast %95 : vector<128xf32> to vector<1x128xf32>
      %97 = vector.extract_strided_slice %26 {offsets = [6, 0, 0], sizes = [1, 16, 128], strides = [1, 1, 1]} : vector<8x16x128xf32> to vector<1x16x128xf32>
      %98 = vector.shape_cast %97 : vector<1x16x128xf32> to vector<16x128xf32>
      %99 = arith.mulf %98, %91 : vector<16x128xf32>
      %100 = vector.extract_strided_slice %28 {offsets = [6, 0, 0], sizes = [1, 16, 128], strides = [1, 1, 1]} : vector<8x16x128xf32> to vector<1x16x128xf32>
      %101 = vector.shape_cast %100 : vector<1x16x128xf32> to vector<16x128xf32>
      %102 = arith.addf %99, %101 : vector<16x128xf32>
      %103 = vector.extract_strided_slice %30 {offsets = [6, 0, 0], sizes = [1, 16, 128], strides = [1, 1, 1]} : vector<8x16x128xf32> to vector<1x16x128xf32>
      %104 = vector.shape_cast %103 : vector<1x16x128xf32> to vector<16x128xf32>
      %105 = arith.mulf %102, %104 : vector<16x128xf32>
      %cst_32 = arith.constant dense<0.000000e+00> : vector<128xf32>
      %106 = vector.multi_reduction <add>, %105, %cst_32 [0] : vector<16x128xf32> to vector<128xf32>
      %107 = vector.shape_cast %106 : vector<128xf32> to vector<1x128xf32>
      %108 = vector.extract_strided_slice %26 {offsets = [7, 0, 0], sizes = [1, 16, 128], strides = [1, 1, 1]} : vector<8x16x128xf32> to vector<1x16x128xf32>
      %109 = vector.shape_cast %108 : vector<1x16x128xf32> to vector<16x128xf32>
      %110 = arith.mulf %109, %102 : vector<16x128xf32>
      %111 = vector.extract_strided_slice %28 {offsets = [7, 0, 0], sizes = [1, 16, 128], strides = [1, 1, 1]} : vector<8x16x128xf32> to vector<1x16x128xf32>
      %112 = vector.shape_cast %111 : vector<1x16x128xf32> to vector<16x128xf32>
      %113 = arith.addf %110, %112 : vector<16x128xf32>
      %114 = vector.extract_strided_slice %30 {offsets = [7, 0, 0], sizes = [1, 16, 128], strides = [1, 1, 1]} : vector<8x16x128xf32> to vector<1x16x128xf32>
      %115 = vector.shape_cast %114 : vector<1x16x128xf32> to vector<16x128xf32>
      %116 = arith.mulf %113, %115 : vector<16x128xf32>
      %cst_33 = arith.constant dense<0.000000e+00> : vector<128xf32>
      %117 = vector.multi_reduction <add>, %116, %cst_33 [0] : vector<16x128xf32> to vector<128xf32>
      %118 = vector.shape_cast %117 : vector<128xf32> to vector<1x128xf32>
      %119 = tpu.concatenate %41, %52, %63, %74, %85, %96, %107, %118 in 0 : vector<1x128xf32>, vector<1x128xf32>, vector<1x128xf32>, vector<1x128xf32>, vector<1x128xf32>, vector<1x128xf32>, vector<1x128xf32>, vector<1x128xf32> -> vector<8x128xf32>
      %120 = arith.index_cast %24 : i32 to index
      %c0_34 = arith.constant 0 : index
      %121 = vector.load %arg6[%120, %c0_34] : memref<128x128xf32, #tpu.memory_space<vmem>>, vector<8x128xf32>
      tpu.vector_store %arg6[%120, %c0_34], %119 {strides = array<i32>} : memref<128x128xf32, #tpu.memory_space<vmem>>, vector<8x128xf32>,
      scf.yield %113 : vector<16x128xf32>
    }
    %c16_i32_18 = arith.constant 16 : i32
    %c0_19 = arith.constant 0 : index
    %c0_20 = arith.constant 0 : index
    %22 = vector.load %arg7[%c0_19, %c0_20] : memref<16x128xf32, #tpu.memory_space<vmem>>, vector<16x128xf32>
    tpu.vector_store %arg7[%c0_19, %c0_20], %21 {strides = array<i32>} : memref<16x128xf32, #tpu.memory_space<vmem>>, vector<16x128xf32>,
    return
  }
  func.func @transform_0(%arg0: i32) -> (i32, i32) {
    %c0_i32 = arith.constant 0 : i32
    %c0_i32_0 = arith.constant 0 : i32
    return %arg0, %c0_i32 : i32, i32
  }
  func.func @transform_1(%arg0: i32) -> (i32, i32) {
    %c0_i32 = arith.constant 0 : i32
    %c0_i32_0 = arith.constant 0 : i32
    return %arg0, %c0_i32 : i32, i32
  }
  func.func @transform_2(%arg0: i32) -> (i32, i32) {
    %c0_i32 = arith.constant 0 : i32
    %c0_i32_0 = arith.constant 0 : i32
    %c0_i32_1 = arith.constant 0 : i32
    return %c0_i32, %c0_i32_0 : i32, i32
  }
  func.func @transform_3(%arg0: i32) -> (i32, i32, i32) {
    %c0_i32 = arith.constant 0 : i32
    %c0_i32_0 = arith.constant 0 : i32
    %c0_i32_1 = arith.constant 0 : i32
    return %arg0, %c0_i32, %c0_i32_0 : i32, i32, i32
  }
  func.func @transform_4(%arg0: i32) -> (i32, i32, i32) {
    %c0_i32 = arith.constant 0 : i32
    %c0_i32_0 = arith.constant 0 : i32
    %c0_i32_1 = arith.constant 0 : i32
    return %arg0, %c0_i32, %c0_i32_0 : i32, i32, i32
  }
  func.func @transform_5(%arg0: i32) -> (i32, i32) {
    %c0_i32 = arith.constant 0 : i32
    %c0_i32_0 = arith.constant 0 : i32
    return %arg0, %c0_i32 : i32, i32
  }
}

</mosaic_0001>

<llo_original>
// kernel: dual_resnet_block_forward.4
$region0: #{dual_resnet_block_forward.4}
  #allocation0 [shape = 'u32[]', space=smem, size = 0x4, offset = 0x4, fixed_abs, tag = 'smem constant byte address 0x4 - core index']
  #allocation1 [shape = 'u32[144,128]{1,0:T(1,128)}', space=vmem, size = 0x12000, scoped, tag = 'internal scratch']
  %s0 = inlined_call_operand.vmem [shape: bf16[16,144], index: 0, kind: input, shape index: {}]
  %s1 = inlined_call_operand.vmem [shape: bf16[144,512], index: 1, kind: input, shape index: {}]
  %s2 = inlined_call_operand.vmem [shape: f32[16,512], index: 2, kind: output, shape index: {}]
  %s3 = sld [smem:[#allocation0]]
  $region98: #{dual_resnet_block_forward.4} parent=0
    _
  %s5 = ssub.s32 1, %s3
  %s6 = scalar_select 0, %s5, %s3
  $region1: #{dual_resnet_block_forward.4} parent=0
    #allocation2 [shape = 'u8[147456]{0}', space=vmem, size = 0x24000, scoped, tag = 'input window, operand 1']
    #allocation3 [shape = 'u8[32768]{0}', space=vmem, size = 0x8000, scoped, tag = 'output window, operand 0']
    loop: start=0, step=1, limit=4
    $region2: #{dual_resnet_block_forward.4} parent=1 // loop_pre_header
      _
    $region3: #{dual_resnet_block_forward.4} parent=1 // loop_header
      %s8 = sphi 0, %s12
      %p9 = scmp.ge.s32.totalorder %s8, 4
      %s16 = sphi 0, %s16
      %s18 = sphi 0, %s16
      %s19 = sphi 0, %s18
      %s33 = sphi 0, %s19
      %s39 = sphi 0, %s41
      %s42 = sphi 0, %s39
      %s43 = sphi 0, %s42
      %s59 = sphi 0, %s43
      %s65 = sphi 0, %s67
      %s68 = sphi 0, %s65
      %s69 = sphi 0, %s68
      %s85 = sphi 0, %s69
    $region4: #{dual_resnet_block_forward.4} parent=1 // loop_header_branch
      %11 = sbr.rel (%p9) target = $region8
    $region5: #{dual_resnet_block_forward.4} parent=1 // loop_body
      %s13 = ssub.s32 %s8, 1
      %s14 = ssub.s32 %s8, 2
      %s15 = sadd.s32 %s8, 1
      %s17 = sadd.s32 %s16, 1
      %p20 = scmp.eq.s32.totalorder %s8, 1
      %p21 = scmp.ne.s32.totalorder %s16, %s18
      %p22 = scmp.eq.s32.totalorder %s8, 0
      %p23 = por %p21, %p22
      %p24 = scmp.ne.s32.totalorder %s16, %s18
      %p25 = scmp.eq.s32.totalorder %s13, 1
      %p26 = por %p24, %p25
      %p27 = scmp.ne.s32.totalorder %s18, %s19
      %p28 = scmp.eq.s32.totalorder %s13, 0
      %p29 = por %p27, %p28
      %p30 = scmp.ne.s32.totalorder %s18, %s19
      %p31 = scmp.eq.s32.totalorder %s14, 1
      %p32 = por %p30, %p31
      %p34 = scmp.ne.s32.totalorder %s19, %s33
      %p35 = scmp.eq.s32.totalorder %s14, 0
      %p36 = por %p34, %p35
      %s37 = ssub.s32 %s8, %s15
      %p38 = scmp.eq.s32.totalorder %s37, 0
      %s40 = sadd.s32 %s39, 1
      %s41 = scalar_select %p38, %s39, %s40
      %p44 = pneg %p38
      %p45 = scmp.eq.s32.totalorder %s8, 1
      %p46 = por %p44, %p45
      %p47 = scmp.ne.s32.totalorder %s39, %s42
      %p48 = scmp.eq.s32.totalorder %s8, 0
      %p49 = por %p47, %p48
      %p50 = scmp.ne.s32.totalorder %s39, %s42
      %p51 = scmp.eq.s32.totalorder %s13, 1
      %p52 = por %p50, %p51
      %p53 = scmp.ne.s32.totalorder %s42, %s43
      %p54 = scmp.eq.s32.totalorder %s13, 0
      %p55 = por %p53, %p54
      %p56 = scmp.ne.s32.totalorder %s42, %s43
      %p57 = scmp.eq.s32.totalorder %s14, 1
      %p58 = por %p56, %p57
      %p60 = scmp.ne.s32.totalorder %s43, %s59
      %p61 = scmp.eq.s32.totalorder %s14, 0
      %p62 = por %p60, %p61
      %s63 = ssub.s32 %s8, %s15
      %p64 = scmp.eq.s32.totalorder %s63, 0
      %s66 = sadd.s32 %s65, 1
      %s67 = scalar_select %p64, %s65, %s66
      %p70 = pneg %p64
      %p71 = scmp.eq.s32.totalorder %s8, 1
      %p72 = por %p70, %p71
      %p73 = scmp.ne.s32.totalorder %s65, %s68
      %p74 = scmp.eq.s32.totalorder %s8, 0
      %p75 = por %p73, %p74
      %p76 = scmp.ne.s32.totalorder %s65, %s68
      %p77 = scmp.eq.s32.totalorder %s13, 1
      %p78 = por %p76, %p77
      %p79 = scmp.ne.s32.totalorder %s68, %s69
      %p80 = scmp.eq.s32.totalorder %s13, 0
      %p81 = por %p79, %p80
      %p82 = scmp.ne.s32.totalorder %s68, %s69
      %p83 = scmp.eq.s32.totalorder %s14, 1
      %p84 = por %p82, %p83
      %p86 = scmp.ne.s32.totalorder %s69, %s85
      %p87 = scmp.eq.s32.totalorder %s14, 0
      %p88 = por %p86, %p87
      %p89 = scmp.le.s32.totalorder 1, %s8
      %p90 = scmp.lt.s32.totalorder %s8, 3
      %p91 = pnand %p89, %p90
      %p92 = pneg %p91
      // Predicated region
      $region9: #{dual_resnet_block_forward.4} parent=5 // pred_check
        _
      $region10: #{dual_resnet_block_forward.4} parent=5 // pred_check_branch
        %94 = sbr.rel (%p91) target = $region12
      $region11: #{dual_resnet_block_forward.4} parent=5 // pred_region
        %s95 = ssub.s32 %s8, 1
        // Predicated region
        $region13: #{dual_resnet_block_forward.4} parent=11 // pred_check
          %p96 = pneg %p29
        $region14: #{dual_resnet_block_forward.4} parent=11 // pred_check_branch
          %98 = sbr.rel (%p96) target = $region16
        $region15: #{dual_resnet_block_forward.4} parent=11 // pred_region
          _
        $region16: #{dual_resnet_block_forward.4} parent=11 // pred_fallthru
          _
      $region12: #{dual_resnet_block_forward.4} parent=5 // pred_fallthru
        _
      %p99 = scmp.lt.s32.totalorder %s8, 2
      // Predicated region
      $region17: #{dual_resnet_block_forward.4} parent=5 // pred_check
        %p100 = pneg %p99
      $region18: #{dual_resnet_block_forward.4} parent=5 // pred_check_branch
        %102 = sbr.rel (%p100) target = $region20
      $region19: #{dual_resnet_block_forward.4} parent=5 // pred_region
        // Predicated region
        $region21: #{dual_resnet_block_forward.4} parent=19 // pred_check
          %p103 = pneg %p49
        $region22: #{dual_resnet_block_forward.4} parent=19 // pred_check_branch
          %105 = sbr.rel (%p103) target = $region24
        $region23: #{dual_resnet_block_forward.4} parent=19 // pred_region
          %s106 = sand.u32 %s39, 1
          %s107 = sand.u32 %s39, 1
          %s108 = smul.addr %s107, 144
          %s109 = scalar_lea.vmem [#allocation2], %s108
          %s110 = smul.u32 2, %s8
          %s111 = smul.addr %s110, 4
          %s112 = scalar_lea.vmem %s1, %s111
          // Predicated region
          $region25: #{dual_resnet_block_forward.4} parent=23 // pred_check
            _
          $region26: #{dual_resnet_block_forward.4} parent=23 // pred_check_branch
            %114 = sbr.rel (0) target = $region28
          $region27: #{dual_resnet_block_forward.4} parent=23 // pred_region
            // Predicated region
            $region29: #{dual_resnet_block_forward.4} parent=27 // pred_check
              _
            $region30: #{dual_resnet_block_forward.4} parent=27 // pred_check_branch
              %116 = sbr.rel (0) target = $region32
            $region31: #{dual_resnet_block_forward.4} parent=27 // pred_region
              // Predicated region
              $region44: #{dual_resnet_block_forward.4} parent=31 // pred_check
                _
              $region45: #{dual_resnet_block_forward.4} parent=31 // pred_check_branch
                %165 = sbr.rel (0) target = $region47
              $region46: #{dual_resnet_block_forward.4} parent=31 // pred_region
                loop: start=0, step=1, limit=1
                $region48: #{dual_resnet_block_forward.4} parent=46 // loop_pre_header
                  _
                $region49: #{dual_resnet_block_forward.4} parent=46 // loop_header
                  %s167 = sphi 0, %s171
                  %p168 = scmp.ge.s32.totalorder %s167, 1
                  %s172 = sphi %s112, %s112
                  %s173 = sphi %s109, %s109
                $region50: #{dual_resnet_block_forward.4} parent=46 // loop_header_branch
                  %170 = sbr.rel (%p168) target = $region54
                $region51: #{dual_resnet_block_forward.4} parent=46 // loop_body
                  %v174 = vld [vmem:[%s172] sm:$0xff]
                  %175 = vst [vmem:[%s173] sm:$0xff] %v174
                  %v176 = vld [vmem:[%s172 + $0x10] sm:$0xff]
                  %177 = vst [vmem:[%s173 + $0x8] sm:$0xff] %v176
                  %v178 = vld [vmem:[%s172 + $0x20] sm:$0xff]
                  %179 = vst [vmem:[%s173 + $0x10] sm:$0xff] %v178
                  %v180 = vld [vmem:[%s172 + $0x30] sm:$0xff]
                  %181 = vst [vmem:[%s173 + $0x18] sm:$0xff] %v180
                  %v182 = vld [vmem:[%s172 + $0x40] sm:$0xff]
                  %183 = vst [vmem:[%s173 + $0x20] sm:$0xff] %v182
                  %v184 = vld [vmem:[%s172 + $0x50] sm:$0xff]
                  %185 = vst [vmem:[%s173 + $0x28] sm:$0xff] %v184
                  %v186 = vld [vmem:[%s172 + $0x60] sm:$0xff]
                  %187 = vst [vmem:[%s173 + $0x30] sm:$0xff] %v186
                  %v188 = vld [vmem:[%s172 + $0x70] sm:$0xff]
                  %189 = vst [vmem:[%s173 + $0x38] sm:$0xff] %v188
                  %v190 = vld [vmem:[%s172 + $0x80] sm:$0xff]
                  %191 = vst [vmem:[%s173 + $0x40] sm:$0xff] %v190
                  %v192 = vld [vmem:[%s172 + $0x90] sm:$0xff]
                  %193 = vst [vmem:[%s173 + $0x48] sm:$0xff] %v192
                  %v194 = vld [vmem:[%s172 + $0xa0] sm:$0xff]
                  %195 = vst [vmem:[%s173 + $0x50] sm:$0xff] %v194
                  %v196 = vld [vmem:[%s172 + $0xb0] sm:$0xff]
                  %197 = vst [vmem:[%s173 + $0x58] sm:$0xff] %v196
                  %v198 = vld [vmem:[%s172 + $0xc0] sm:$0xff]
                  %199 = vst [vmem:[%s173 + $0x60] sm:$0xff] %v198
                  %v200 = vld [vmem:[%s172 + $0xd0] sm:$0xff]
                  %201 = vst [vmem:[%s173 + $0x68] sm:$0xff] %v200
                  %v202 = vld [vmem:[%s172 + $0xe0] sm:$0xff]
                  %203 = vst [vmem:[%s173 + $0x70] sm:$0xff] %v202
                  %v204 = vld [vmem:[%s172 + $0xf0] sm:$0xff]
                  %205 = vst [vmem:[%s173 + $0x78] sm:$0xff] %v204
                  %v206 = vld [vmem:[%s172 + $0x100] sm:$0xff]
                  %207 = vst [vmem:[%s173 + $0x80] sm:$0xff] %v206
                  %v208 = vld [vmem:[%s172 + $0x110] sm:$0xff]
                  %209 = vst [vmem:[%s173 + $0x88] sm:$0xff] %v208
                $region52: #{dual_resnet_block_forward.4} parent=46 // loop_footer
                  %s171 = sadd.s32 1, %s167
                $region53: #{dual_resnet_block_forward.4} parent=46 // loop_footer_branch
                  %166 = sbr.rel target = $region49
                $region54: #{dual_resnet_block_forward.4} parent=46 // loop_exit
                  _
              $region47: #{dual_resnet_block_forward.4} parent=31 // pred_fallthru
                _
              // Predicated region
              $region55: #{dual_resnet_block_forward.4} parent=31 // pred_check
                _
              $region56: #{dual_resnet_block_forward.4} parent=31 // pred_check_branch
                %211 = sbr.rel target = $region58
              $region57: #{dual_resnet_block_forward.4} parent=31 // pred_region
                _
              $region58: #{dual_resnet_block_forward.4} parent=31 // pred_fallthru
                _
            $region32: #{dual_resnet_block_forward.4} parent=27 // pred_fallthru
              _
            // Predicated region
            $region33: #{dual_resnet_block_forward.4} parent=27 // pred_check
              _
            $region34: #{dual_resnet_block_forward.4} parent=27 // pred_check_branch
              %118 = sbr.rel target = $region36
            $region35: #{dual_resnet_block_forward.4} parent=27 // pred_region
              loop: start=0, step=1, limit=1
              $region37: #{dual_resnet_block_forward.4} parent=35 // loop_pre_header
                _
              $region38: #{dual_resnet_block_forward.4} parent=35 // loop_header
                %s121 = sphi 0, %s125
                %p122 = scmp.ge.s32.totalorder %s121, 1
                %s126 = sphi %s112, %s112
                %s127 = sphi %s109, %s109
              $region39: #{dual_resnet_block_forward.4} parent=35 // loop_header_branch
                %124 = sbr.rel (%p122) target = $region43
              $region40: #{dual_resnet_block_forward.4} parent=35 // loop_body
                %v128 = vld [vmem:[%s126] sm:$0xff]
                %129 = vst [vmem:[%s127] sm:$0xff] %v128
                %v130 = vld [vmem:[%s126 + $0x10] sm:$0xff]
                %131 = vst [vmem:[%s127 + $0x8] sm:$0xff] %v130
                %v132 = vld [vmem:[%s126 + $0x20] sm:$0xff]
                %133 = vst [vmem:[%s127 + $0x10] sm:$0xff] %v132
                %v134 = vld [vmem:[%s126 + $0x30] sm:$0xff]
                %135 = vst [vmem:[%s127 + $0x18] sm:$0xff] %v134
                %v136 = vld [vmem:[%s126 + $0x40] sm:$0xff]
                %137 = vst [vmem:[%s127 + $0x20] sm:$0xff] %v136
                %v138 = vld [vmem:[%s126 + $0x50] sm:$0xff]
                %139 = vst [vmem:[%s127 + $0x28] sm:$0xff] %v138
                %v140 = vld [vmem:[%s126 + $0x60] sm:$0xff]
                %141 = vst [vmem:[%s127 + $0x30] sm:$0xff] %v140
                %v142 = vld [vmem:[%s126 + $0x70] sm:$0xff]
                %143 = vst [vmem:[%s127 + $0x38] sm:$0xff] %v142
                %v144 = vld [vmem:[%s126 + $0x80] sm:$0xff]
                %145 = vst [vmem:[%s127 + $0x40] sm:$0xff] %v144
                %v146 = vld [vmem:[%s126 + $0x90] sm:$0xff]
                %147 = vst [vmem:[%s127 + $0x48] sm:$0xff] %v146
                %v148 = vld [vmem:[%s126 + $0xa0] sm:$0xff]
                %149 = vst [vmem:[%s127 + $0x50] sm:$0xff] %v148
                %v150 = vld [vmem:[%s126 + $0xb0] sm:$0xff]
                %151 = vst [vmem:[%s127 + $0x58] sm:$0xff] %v150
                %v152 = vld [vmem:[%s126 + $0xc0] sm:$0xff]
                %153 = vst [vmem:[%s127 + $0x60] sm:$0xff] %v152
                %v154 = vld [vmem:[%s126 + $0xd0] sm:$0xff]
                %155 = vst [vmem:[%s127 + $0x68] sm:$0xff] %v154
                %v156 = vld [vmem:[%s126 + $0xe0] sm:$0xff]
                %157 = vst [vmem:[%s127 + $0x70] sm:$0xff] %v156
                %v158 = vld [vmem:[%s126 + $0xf0] sm:$0xff]
                %159 = vst [vmem:[%s127 + $0x78] sm:$0xff] %v158
                %v160 = vld [vmem:[%s126 + $0x100] sm:$0xff]
                %161 = vst [vmem:[%s127 + $0x80] sm:$0xff] %v160
                %v162 = vld [vmem:[%s126 + $0x110] sm:$0xff]
                %163 = vst [vmem:[%s127 + $0x88] sm:$0xff] %v162
              $region41: #{dual_resnet_block_forward.4} parent=35 // loop_footer
                %s125 = sadd.s32 1, %s121
              $region42: #{dual_resnet_block_forward.4} parent=35 // loop_footer_branch
                %120 = sbr.rel target = $region38
              $region43: #{dual_resnet_block_forward.4} parent=35 // loop_exit
                _
            $region36: #{dual_resnet_block_forward.4} parent=27 // pred_fallthru
              _
          $region28: #{dual_resnet_block_forward.4} parent=23 // pred_fallthru
            _
          %212 = vnop
        $region24: #{dual_resnet_block_forward.4} parent=19 // pred_fallthru
          _
      $region20: #{dual_resnet_block_forward.4} parent=5 // pred_fallthru
        _
      %p213 = scmp.le.s32.totalorder 1, %s8
      %p214 = scmp.lt.s32.totalorder %s8, 3
      %p215 = pnand %p213, %p214
      %p216 = pneg %p215
      // Predicated region
      $region59: #{dual_resnet_block_forward.4} parent=5 // pred_check
        _
      $region60: #{dual_resnet_block_forward.4} parent=5 // pred_check_branch
        %218 = sbr.rel (%p215) target = $region62
      $region61: #{dual_resnet_block_forward.4} parent=5 // pred_region
        %s219 = ssub.s32 %s8, 1
        %s220 = sand.u32 %s42, 1
        %s221 = sand.u32 %s42, 1
        %s222 = smul.addr %s221, 144
        %s223 = scalar_lea.vmem [#allocation2], %s222
        // Predicated region
        $region63: #{dual_resnet_block_forward.4} parent=61 // pred_check
          %p224 = pneg %p55
        $region64: #{dual_resnet_block_forward.4} parent=61 // pred_check_branch
          %226 = sbr.rel (%p224) target = $region66
        $region65: #{dual_resnet_block_forward.4} parent=61 // pred_region
          _
        $region66: #{dual_resnet_block_forward.4} parent=61 // pred_fallthru
          _
        %p227 = pneg %p29
        %p228 = pneg %p26
        %s229 = sand.u32 %s42, 1
        %s230 = sand.u32 %s42, 1
        %s231 = smul.addr %s230, 144
        %s232 = scalar_lea.vmem [#allocation2], %s231
        %p233 = pneg %p55
        %p234 = pneg %p52
        %p235 = pneg %p81
        %p236 = pneg %p78
        %s237 = sand.u32 %s68, 1
        %s238 = sand.u32 %s68, 1
        %s239 = smul.addr %s238, 32
        %s240 = scalar_lea.vmem [#allocation3], %s239
        %s241 = smul.u32 2, %s13
        %s242 = smul.u32 2, %s13
        %v244 = vld [vmem:[%s0] sm:$0xff]
        %v245 = vld [vmem:[%s0 + $0x8] sm:$0xff]
        %v246 = vld [vmem:[%s223] sm:$0xff]
        %v247 = vld [vmem:[%s223 + $0x8] sm:$0xff]
        %v248 = vld [vmem:[%s223 + $0x10] sm:$0xff]
        %v249 = vld [vmem:[%s223 + $0x18] sm:$0xff]
        %v250 = vld [vmem:[%s223 + $0x20] sm:$0xff]
        %v251 = vld [vmem:[%s223 + $0x28] sm:$0xff]
        %v252 = vld [vmem:[%s223 + $0x30] sm:$0xff]
        %v253 = vld [vmem:[%s223 + $0x38] sm:$0xff]
        %v254 = vld [vmem:[%s223 + $0x40] sm:$0xff]
        %v255 = vld [vmem:[%s223 + $0x48] sm:$0xff]
        %v256 = vld [vmem:[%s223 + $0x50] sm:$0xff]
        %v257 = vld [vmem:[%s223 + $0x58] sm:$0xff]
        %v258 = vld [vmem:[%s223 + $0x60] sm:$0xff]
        %v259 = vld [vmem:[%s223 + $0x68] sm:$0xff]
        %v260 = vld [vmem:[%s223 + $0x70] sm:$0xff]
        %v261 = vld [vmem:[%s223 + $0x78] sm:$0xff]
        %v262 = vld [vmem:[%s223 + $0x80] sm:$0xff]
        %v263 = vld [vmem:[%s223 + $0x88] sm:$0xff]
        %v266 = vunpack.c.l.b16 %v244
        %v267 = vunpack.c.h.b16 %v244
        %v268 = vunpack.c.l.b16 %v245
        %v269 = vunpack.c.h.b16 %v245
        %v270 = vpack.c.b16 %v268, %v266
        %v271 = vpack.c.b16 %v269, %v267
        %v291 = vunpack.c.l.b16 %v246
        %v292 = vunpack.c.h.b16 %v246
        %v293 = vunpack.c.l.b16 %v247
        %v294 = vunpack.c.h.b16 %v247
        %v295 = vunpack.c.l.b16 %v248
        %v296 = vunpack.c.h.b16 %v248
        %v297 = vunpack.c.l.b16 %v249
        %v298 = vunpack.c.h.b16 %v249
        %v299 = vunpack.c.l.b16 %v250
        %v300 = vunpack.c.h.b16 %v250
        %v301 = vunpack.c.l.b16 %v251
        %v302 = vunpack.c.h.b16 %v251
        %v303 = vunpack.c.l.b16 %v252
        %v304 = vunpack.c.h.b16 %v252
        %v305 = vunpack.c.l.b16 %v253
        %v306 = vunpack.c.h.b16 %v253
        %v307 = vunpack.c.l.b16 %v254
        %v308 = vunpack.c.h.b16 %v254
        %v309 = vunpack.c.l.b16 %v255
        %v310 = vunpack.c.h.b16 %v255
        %v311 = vunpack.c.l.b16 %v256
        %v312 = vunpack.c.h.b16 %v256
        %v313 = vunpack.c.l.b16 %v257
        %v314 = vunpack.c.h.b16 %v257
        %v315 = vunpack.c.l.b16 %v258
        %v316 = vunpack.c.h.b16 %v258
        %v317 = vunpack.c.l.b16 %v259
        %v318 = vunpack.c.h.b16 %v259
        %v319 = vunpack.c.l.b16 %v260
        %v320 = vunpack.c.h.b16 %v260
        %v321 = vunpack.c.l.b16 %v261
        %v322 = vunpack.c.h.b16 %v261
        %v323 = vunpack.c.l.b16 %v262
        %v324 = vunpack.c.h.b16 %v262
        %v325 = vunpack.c.l.b16 %v263
        %v326 = vunpack.c.h.b16 %v263
        %v327 = vpack.c.b16 %v293, %v291
        %v328 = vpack.c.b16 %v294, %v292
        %v329 = vpack.c.b16 %v297, %v295
        %v330 = vpack.c.b16 %v298, %v296
        %v331 = vpack.c.b16 %v301, %v299
        %v332 = vpack.c.b16 %v302, %v300
        %v333 = vpack.c.b16 %v305, %v303
        %v334 = vpack.c.b16 %v306, %v304
        %v335 = vpack.c.b16 %v309, %v307
        %v336 = vpack.c.b16 %v310, %v308
        %v337 = vpack.c.b16 %v313, %v311
        %v338 = vpack.c.b16 %v314, %v312
        %v339 = vpack.c.b16 %v317, %v315
        %v340 = vpack.c.b16 %v318, %v316
        %v341 = vpack.c.b16 %v321, %v319
        %v342 = vpack.c.b16 %v322, %v320
        %v343 = vpack.c.b16 %v325, %v323
        %v344 = vpack.c.b16 %v326, %v324
        %vm363 = vcmask 130048
        %v365 = vsel %vm363, %v271, 0
        %367 = vmatprep.subr.bf16.mxu0 %v328
        %368 = vmatpush1.bf16.msra.mxu0 %v327
        %369 = vmatprep.subr.bf16.mxu0 %v330
        %370 = vmatpush1.bf16.msra.mxu0 %v329
        %371 = vmatprep.subr.bf16.mxu0 %v332
        %372 = vmatpush1.bf16.msra.mxu0 %v331
        %373 = vmatprep.subr.bf16.mxu0 %v334
        %374 = vmatpush1.bf16.msra.mxu0 %v333
        %375 = vmatprep.subr.bf16.mxu0 %v336
        %376 = vmatpush1.bf16.msra.mxu0 %v335
        %377 = vmatprep.subr.bf16.mxu0 %v338
        %378 = vmatpush1.bf16.msra.mxu0 %v337
        %379 = vmatprep.subr.bf16.mxu0 %v340
        %380 = vmatpush1.bf16.msra.mxu0 %v339
        %381 = vmatprep.subr.bf16.mxu0 %v342
        %382 = vmatpush1.bf16.msra.mxu0 %v341
        %383 = vmatprep.subr.bf16.mxu0 %v344
        %384 = vmatpush1.bf16.msra.mxu0 %v343
        %385 = vmatprep.subr.bf16.mxu0 0
        %386 = vmatpush1.bf16.msra.mxu0 0
        %387 = vmatprep.subr.bf16.mxu0 0
        %388 = vmatpush1.bf16.msra.mxu0 0
        %389 = vmatprep.subr.bf16.mxu0 0
        %390 = vmatpush1.bf16.msra.mxu0 0
        %391 = vmatprep.subr.bf16.mxu0 0
        %392 = vmatpush1.bf16.msra.mxu0 0
        %393 = vmatprep.subr.bf16.mxu0 0
        %394 = vmatpush1.bf16.msra.mxu0 0
        %395 = vmatprep.subr.bf16.mxu0 0
        %396 = vmatpush1.bf16.msra.mxu0 0
        %397 = vmatprep.subr.bf16.mxu0 0
        %398 = vmatpush1.bf16.msra.mxu0 0
        %399 = vmatprep.mubr.bf16.mxu0 %v365
        %400 = vmatmul.mubr.bf16.gmra.mrb[0].mxu0 %v270
        %v401 = vpop.f32.mrb[0].mxu0
        %v402 = vadd.f32 0.0, %v401
        %v403 = vpop.f32.mrb[0].mxu0
        %v404 = vadd.f32 0.0, %v403
        %v405 = vpop.f32.mrb[0].mxu0
        %v406 = vadd.f32 0.0, %v405
        %v407 = vpop.f32.mrb[0].mxu0
        %v408 = vadd.f32 0.0, %v407
        %409 = vdwg.mxu0
        %410 = vst [vmem:[%s240] sm:$0xff] %v402
        %411 = vst [vmem:[%s240 + $0x8] sm:$0xff] %v404
        %412 = vst [vmem:[%s240 + $0x10] sm:$0xff] %v406
        %413 = vst [vmem:[%s240 + $0x18] sm:$0xff] %v408
        %s414 = sand.u32 %s68, 1
        %s415 = sand.u32 %s68, 1
        %s416 = smul.addr %s415, 32
        %s417 = scalar_lea.vmem [#allocation3], %s416
        // Predicated region
        $region67: #{dual_resnet_block_forward.4} parent=61 // pred_check
          %p418 = pneg %p78
        $region68: #{dual_resnet_block_forward.4} parent=61 // pred_check_branch
          %420 = sbr.rel (%p418) target = $region70
        $region69: #{dual_resnet_block_forward.4} parent=61 // pred_region
          %s421 = smul.u32 2, %s13
          %s422 = smul.addr %s421, 8
          %s423 = scalar_lea.vmem %s2, %s422
          // Predicated region
          $region71: #{dual_resnet_block_forward.4} parent=69 // pred_check
            _
          $region72: #{dual_resnet_block_forward.4} parent=69 // pred_check_branch
            %425 = sbr.rel (0) target = $region74
          $region73: #{dual_resnet_block_forward.4} parent=69 // pred_region
            // Predicated region
            $region75: #{dual_resnet_block_forward.4} parent=73 // pred_check
              _
            $region76: #{dual_resnet_block_forward.4} parent=73 // pred_check_branch
              %427 = sbr.rel (0) target = $region78
            $region77: #{dual_resnet_block_forward.4} parent=73 // pred_region
              loop: start=0, step=1, limit=1
              $region79: #{dual_resnet_block_forward.4} parent=77 // loop_pre_header
                _
              $region80: #{dual_resnet_block_forward.4} parent=77 // loop_header
                %s429 = sphi 0, %s433
                %p430 = scmp.ge.s32.totalorder %s429, 1
                %s434 = sphi %s417, %s417
                %s435 = sphi %s423, %s423
              $region81: #{dual_resnet_block_forward.4} parent=77 // loop_header_branch
                %432 = sbr.rel (%p430) target = $region85
              $region82: #{dual_resnet_block_forward.4} parent=77 // loop_body
                %v436 = vld [vmem:[%s434] sm:$0xff]
                %437 = vst [vmem:[%s435] sm:$0xff] %v436
                %v438 = vld [vmem:[%s434 + $0x8] sm:$0xff]
                %439 = vst [vmem:[%s435 + $0x8] sm:$0xff] %v438
                %v440 = vld [vmem:[%s434 + $0x10] sm:$0xff]
                %441 = vst [vmem:[%s435 + $0x20] sm:$0xff] %v440
                %v442 = vld [vmem:[%s434 + $0x18] sm:$0xff]
                %443 = vst [vmem:[%s435 + $0x28] sm:$0xff] %v442
              $region83: #{dual_resnet_block_forward.4} parent=77 // loop_footer
                %s433 = sadd.s32 1, %s429
              $region84: #{dual_resnet_block_forward.4} parent=77 // loop_footer_branch
                %428 = sbr.rel target = $region80
              $region85: #{dual_resnet_block_forward.4} parent=77 // loop_exit
                _
            $region78: #{dual_resnet_block_forward.4} parent=73 // pred_fallthru
              _
            // Predicated region
            $region86: #{dual_resnet_block_forward.4} parent=73 // pred_check
              _
            $region87: #{dual_resnet_block_forward.4} parent=73 // pred_check_branch
              %445 = sbr.rel target = $region89
            $region88: #{dual_resnet_block_forward.4} parent=73 // pred_region
              _
            $region89: #{dual_resnet_block_forward.4} parent=73 // pred_fallthru
              _
          $region74: #{dual_resnet_block_forward.4} parent=69 // pred_fallthru
            _
          %446 = vnop
        $region70: #{dual_resnet_block_forward.4} parent=61 // pred_fallthru
          _
      $region62: #{dual_resnet_block_forward.4} parent=5 // pred_fallthru
        _
      %p447 = scmp.le.s32.totalorder 2, %s8
      // Predicated region
      $region90: #{dual_resnet_block_forward.4} parent=5 // pred_check
        %p448 = pneg %p447
      $region91: #{dual_resnet_block_forward.4} parent=5 // pred_check_branch
        %450 = sbr.rel (%p448) target = $region93
      $region92: #{dual_resnet_block_forward.4} parent=5 // pred_region
        %s451 = ssub.s32 %s8, 2
        // Predicated region
        $region94: #{dual_resnet_block_forward.4} parent=92 // pred_check
          %p452 = pneg %p84
        $region95: #{dual_resnet_block_forward.4} parent=92 // pred_check_branch
          %454 = sbr.rel (%p452) target = $region97
        $region96: #{dual_resnet_block_forward.4} parent=92 // pred_region
          %s455 = sand.u32 %s69, 1
          %s456 = sand.u32 %s69, 1
          %s457 = smul.addr %s456, 32
          %s458 = scalar_lea.vmem [#allocation3], %s457
        $region97: #{dual_resnet_block_forward.4} parent=92 // pred_fallthru
          _
      $region93: #{dual_resnet_block_forward.4} parent=5 // pred_fallthru
        _
    $region6: #{dual_resnet_block_forward.4} parent=1 // loop_footer
      %s12 = sadd.s32 1, %s8
    $region7: #{dual_resnet_block_forward.4} parent=1 // loop_footer_branch
      %7 = sbr.rel target = $region3
    $region8: #{dual_resnet_block_forward.4} parent=1 // loop_exit
      _

// kernel: split.0
$region0: #{split.0}
  #allocation0 [shape = 'u32[2048]{0}', space=vmem, size = 0x2000, scoped, tag = 'scoped memory for split.0']
  #allocation1 [shape = 'u32[2048]{0}', space=vmem, size = 0x2000, scoped, tag = 'scoped memory for split.0']
  #allocation2 [shape = 'u32[2048]{0}', space=vmem, size = 0x2000, scoped, tag = 'scoped memory for split.0']
  #allocation3 [shape = 'u32[2048]{0}', space=vmem, size = 0x2000, scoped, tag = 'scoped memory for split.0']
  #allocation4 [shape = 'u32[2048]{0}', space=vmem, size = 0x2000, scoped, tag = 'scoped memory for split.0']
  #allocation5 [shape = 's32[1]{0}', space=sflag, size = 0x4, scoped, tag = 'scoped memory for split.0']
  %s0 = inlined_call_operand.vmem [shape: f32[2,16,16,24], index: 0, kind: input, shape index: {}]
  %s1 = inlined_call_operand.vmem [shape: bf16[2,16,16,12], index: 1, kind: output, shape index: {}]
  %v2 = vld [vmem:[%s0] sm:$0xff]
  %v3 = vpack.c.bf16 0.0, %v2
  %4 = vst [vmem:[%s1] sm:$0xf] %v3
  %s5 = scalar_lea.vmem %s0, 256
  %v6 = vld [vmem:[%s5] sm:$0xff]
  %s7 = scalar_lea.vmem %s1, 128
  %v8 = vpack.c.bf16 0.0, %v6
  %9 = vst [vmem:[%s7] sm:$0xf] %v8
  %s10 = scalar_lea.vmem %s0, 16
  %v11 = vld [vmem:[%s10] sm:$0xff]
  %s12 = scalar_lea.vmem %s1, 8
  %v13 = vpack.c.bf16 0.0, %v11
  %14 = vst [vmem:[%s12] sm:$0xf] %v13
  %s15 = scalar_lea.vmem %s0, 272
  %v16 = vld [vmem:[%s15] sm:$0xff]
  %s17 = scalar_lea.vmem %s1, 136
  %v18 = vpack.c.bf16 0.0, %v16
  %19 = vst [vmem:[%s17] sm:$0xf] %v18
  %s20 = scalar_lea.vmem %s0, 32
  %v21 = vld [vmem:[%s20] sm:$0xff]
  %s22 = scalar_lea.vmem %s1, 16
  %v23 = vpack.c.bf16 0.0, %v21
  %24 = vst [vmem:[%s22] sm:$0xf] %v23
  %s25 = scalar_lea.vmem %s0, 288
  %v26 = vld [vmem:[%s25] sm:$0xff]
  %s27 = scalar_lea.vmem %s1, 144
  %v28 = vpack.c.bf16 0.0, %v26
  %29 = vst [vmem:[%s27] sm:$0xf] %v28
  %s30 = scalar_lea.vmem %s0, 48
  %v31 = vld [vmem:[%s30] sm:$0xff]
  %s32 = scalar_lea.vmem %s1, 24
  %v33 = vpack.c.bf16 0.0, %v31
  %34 = vst [vmem:[%s32] sm:$0xf] %v33
  %s35 = scalar_lea.vmem %s0, 304
  %v36 = vld [vmem:[%s35] sm:$0xff]
  %s37 = scalar_lea.vmem %s1, 152
  %v38 = vpack.c.bf16 0.0, %v36
  %39 = vst [vmem:[%s37] sm:$0xf] %v38
  %s40 = scalar_lea.vmem %s0, 64
  %v41 = vld [vmem:[%s40] sm:$0xff]
  %s42 = scalar_lea.vmem %s1, 32
  %v43 = vpack.c.bf16 0.0, %v41
  %44 = vst [vmem:[%s42] sm:$0xf] %v43
  %s45 = scalar_lea.vmem %s0, 320
  %v46 = vld [vmem:[%s45] sm:$0xff]
  %s47 = scalar_lea.vmem %s1, 160
  %v48 = vpack.c.bf16 0.0, %v46
  %49 = vst [vmem:[%s47] sm:$0xf] %v48
  %s50 = scalar_lea.vmem %s0, 80
  %v51 = vld [vmem:[%s50] sm:$0xff]
  %s52 = scalar_lea.vmem %s1, 40
  %v53 = vpack.c.bf16 0.0, %v51
  %54 = vst [vmem:[%s52] sm:$0xf] %v53
  %s55 = scalar_lea.vmem %s0, 336
  %v56 = vld [vmem:[%s55] sm:$0xff]
  %s57 = scalar_lea.vmem %s1, 168
  %v58 = vpack.c.bf16 0.0, %v56
  %59 = vst [vmem:[%s57] sm:$0xf] %v58
  %s60 = scalar_lea.vmem %s0, 96
  %v61 = vld [vmem:[%s60] sm:$0xff]
  %s62 = scalar_lea.vmem %s1, 48
  %v63 = vpack.c.bf16 0.0, %v61
  %64 = vst [vmem:[%s62] sm:$0xf] %v63
  %s65 = scalar_lea.vmem %s0, 352
  %v66 = vld [vmem:[%s65] sm:$0xff]
  %s67 = scalar_lea.vmem %s1, 176
  %v68 = vpack.c.bf16 0.0, %v66
  %69 = vst [vmem:[%s67] sm:$0xf] %v68
  %s70 = scalar_lea.vmem %s0, 112
  %v71 = vld [vmem:[%s70] sm:$0xff]
  %s72 = scalar_lea.vmem %s1, 56
  %v73 = vpack.c.bf16 0.0, %v71
  %74 = vst [vmem:[%s72] sm:$0xf] %v73
  %s75 = scalar_lea.vmem %s0, 368
  %v76 = vld [vmem:[%s75] sm:$0xff]
  %s77 = scalar_lea.vmem %s1, 184
  %v78 = vpack.c.bf16 0.0, %v76
  %79 = vst [vmem:[%s77] sm:$0xf] %v78
  %s80 = scalar_lea.vmem %s0, 128
  %v81 = vld [vmem:[%s80] sm:$0xff]
  %s82 = scalar_lea.vmem %s1, 64
  %v83 = vpack.c.bf16 0.0, %v81
  %84 = vst [vmem:[%s82] sm:$0xf] %v83
  %s85 = scalar_lea.vmem %s0, 384
  %v86 = vld [vmem:[%s85] sm:$0xff]
  %s87 = scalar_lea.vmem %s1, 192
  %v88 = vpack.c.bf16 0.0, %v86
  %89 = vst [vmem:[%s87] sm:$0xf] %v88
  %s90 = scalar_lea.vmem %s0, 144
  %v91 = vld [vmem:[%s90] sm:$0xff]
  %s92 = scalar_lea.vmem %s1, 72
  %v93 = vpack.c.bf16 0.0, %v91
  %94 = vst [vmem:[%s92] sm:$0xf] %v93
  %s95 = scalar_lea.vmem %s0, 400
  %v96 = vld [vmem:[%s95] sm:$0xff]
  %s97 = scalar_lea.vmem %s1, 200
  %v98 = vpack.c.bf16 0.0, %v96
  %99 = vst [vmem:[%s97] sm:$0xf] %v98
  %s100 = scalar_lea.vmem %s0, 160
  %v101 = vld [vmem:[%s100] sm:$0xff]
  %s102 = scalar_lea.vmem %s1, 80
  %v103 = vpack.c.bf16 0.0, %v101
  %104 = vst [vmem:[%s102] sm:$0xf] %v103
  %s105 = scalar_lea.vmem %s0, 416
  %v106 = vld [vmem:[%s105] sm:$0xff]
  %s107 = scalar_lea.vmem %s1, 208
  %v108 = vpack.c.bf16 0.0, %v106
  %109 = vst [vmem:[%s107] sm:$0xf] %v108
  %s110 = scalar_lea.vmem %s0, 176
  %v111 = vld [vmem:[%s110] sm:$0xff]
  %s112 = scalar_lea.vmem %s1, 88
  %v113 = vpack.c.bf16 0.0, %v111
  %114 = vst [vmem:[%s112] sm:$0xf] %v113
  %s115 = scalar_lea.vmem %s0, 432
  %v116 = vld [vmem:[%s115] sm:$0xff]
  %s117 = scalar_lea.vmem %s1, 216
  %v118 = vpack.c.bf16 0.0, %v116
  %119 = vst [vmem:[%s117] sm:$0xf] %v118
  %s120 = scalar_lea.vmem %s0, 192
  %v121 = vld [vmem:[%s120] sm:$0xff]
  %s122 = scalar_lea.vmem %s1, 96
  %v123 = vpack.c.bf16 0.0, %v121
  %124 = vst [vmem:[%s122] sm:$0xf] %v123
  %s125 = scalar_lea.vmem %s0, 448
  %v126 = vld [vmem:[%s125] sm:$0xff]
  %s127 = scalar_lea.vmem %s1, 224
  %v128 = vpack.c.bf16 0.0, %v126
  %129 = vst [vmem:[%s127] sm:$0xf] %v128
  %s130 = scalar_lea.vmem %s0, 208
  %v131 = vld [vmem:[%s130] sm:$0xff]
  %s132 = scalar_lea.vmem %s1, 104
  %v133 = vpack.c.bf16 0.0, %v131
  %134 = vst [vmem:[%s132] sm:$0xf] %v133
  %s135 = scalar_lea.vmem %s0, 464
  %v136 = vld [vmem:[%s135] sm:$0xff]
  %s137 = scalar_lea.vmem %s1, 232
  %v138 = vpack.c.bf16 0.0, %v136
  %139 = vst [vmem:[%s137] sm:$0xf] %v138
  %s140 = scalar_lea.vmem %s0, 224
  %v141 = vld [vmem:[%s140] sm:$0xff]
  %s142 = scalar_lea.vmem %s1, 112
  %v143 = vpack.c.bf16 0.0, %v141
  %144 = vst [vmem:[%s142] sm:$0xf] %v143
  %s145 = scalar_lea.vmem %s0, 480
  %v146 = vld [vmem:[%s145] sm:$0xff]
  %s147 = scalar_lea.vmem %s1, 240
  %v148 = vpack.c.bf16 0.0, %v146
  %149 = vst [vmem:[%s147] sm:$0xf] %v148
  %s150 = scalar_lea.vmem %s0, 240
  %v151 = vld [vmem:[%s150] sm:$0xff]
  %s152 = scalar_lea.vmem %s1, 120
  %v153 = vpack.c.bf16 0.0, %v151
  %154 = vst [vmem:[%s152] sm:$0xf] %v153
  %s155 = scalar_lea.vmem %s0, 496
  %v156 = vld [vmem:[%s155] sm:$0xff]
  %s157 = scalar_lea.vmem %s1, 248
  %v158 = vpack.c.bf16 0.0, %v156
  %159 = vst [vmem:[%s157] sm:$0xf] %v158
  %s160 = scalar_lea.vmem %s0, 8
  %v161 = vld [vmem:[%s160] sm:$0xff]
  %s162 = scalar_lea.vmem %s1, 4
  %v163 = vpack.c.bf16 0.0, %v161
  %164 = vst [vmem:[%s162] sm:$0xf] %v163
  %s165 = scalar_lea.vmem %s0, 264
  %v166 = vld [vmem:[%s165] sm:$0xff]
  %s167 = scalar_lea.vmem %s1, 132
  %v168 = vpack.c.bf16 0.0, %v166
  %169 = vst [vmem:[%s167] sm:$0xf] %v168
  %s170 = scalar_lea.vmem %s0, 24
  %v171 = vld [vmem:[%s170] sm:$0xff]
  %s172 = scalar_lea.vmem %s1, 12
  %v173 = vpack.c.bf16 0.0, %v171
  %174 = vst [vmem:[%s172] sm:$0xf] %v173
  %s175 = scalar_lea.vmem %s0, 280
  %v176 = vld [vmem:[%s175] sm:$0xff]
  %s177 = scalar_lea.vmem %s1, 140
  %v178 = vpack.c.bf16 0.0, %v176
  %179 = vst [vmem:[%s177] sm:$0xf] %v178
  %s180 = scalar_lea.vmem %s0, 40
  %v181 = vld [vmem:[%s180] sm:$0xff]
  %s182 = scalar_lea.vmem %s1, 20
  %v183 = vpack.c.bf16 0.0, %v181
  %184 = vst [vmem:[%s182] sm:$0xf] %v183
  %s185 = scalar_lea.vmem %s0, 296
  %v186 = vld [vmem:[%s185] sm:$0xff]
  %s187 = scalar_lea.vmem %s1, 148
  %v188 = vpack.c.bf16 0.0, %v186
  %189 = vst [vmem:[%s187] sm:$0xf] %v188
  %s190 = scalar_lea.vmem %s0, 56
  %v191 = vld [vmem:[%s190] sm:$0xff]
  %s192 = scalar_lea.vmem %s1, 28
  %v193 = vpack.c.bf16 0.0, %v191
  %194 = vst [vmem:[%s192] sm:$0xf] %v193
  %s195 = scalar_lea.vmem %s0, 312
  %v196 = vld [vmem:[%s195] sm:$0xff]
  %s197 = scalar_lea.vmem %s1, 156
  %v198 = vpack.c.bf16 0.0, %v196
  %199 = vst [vmem:[%s197] sm:$0xf] %v198
  %s200 = scalar_lea.vmem %s0, 72
  %v201 = vld [vmem:[%s200] sm:$0xff]
  %s202 = scalar_lea.vmem %s1, 36
  %v203 = vpack.c.bf16 0.0, %v201
  %204 = vst [vmem:[%s202] sm:$0xf] %v203
  %s205 = scalar_lea.vmem %s0, 328
  %v206 = vld [vmem:[%s205] sm:$0xff]
  %s207 = scalar_lea.vmem %s1, 164
  %v208 = vpack.c.bf16 0.0, %v206
  %209 = vst [vmem:[%s207] sm:$0xf] %v208
  %s210 = scalar_lea.vmem %s0, 88
  %v211 = vld [vmem:[%s210] sm:$0xff]
  %s212 = scalar_lea.vmem %s1, 44
  %v213 = vpack.c.bf16 0.0, %v211
  %214 = vst [vmem:[%s212] sm:$0xf] %v213
  %s215 = scalar_lea.vmem %s0, 344
  %v216 = vld [vmem:[%s215] sm:$0xff]
  %s217 = scalar_lea.vmem %s1, 172
  %v218 = vpack.c.bf16 0.0, %v216
  %219 = vst [vmem:[%s217] sm:$0xf] %v218
  %s220 = scalar_lea.vmem %s0, 104
  %v221 = vld [vmem:[%s220] sm:$0xff]
  %s222 = scalar_lea.vmem %s1, 52
  %v223 = vpack.c.bf16 0.0, %v221
  %224 = vst [vmem:[%s222] sm:$0xf] %v223
  %s225 = scalar_lea.vmem %s0, 360
  %v226 = vld [vmem:[%s225] sm:$0xff]
  %s227 = scalar_lea.vmem %s1, 180
  %v228 = vpack.c.bf16 0.0, %v226
  %229 = vst [vmem:[%s227] sm:$0xf] %v228
  %s230 = scalar_lea.vmem %s0, 120
  %v231 = vld [vmem:[%s230] sm:$0xff]
  %s232 = scalar_lea.vmem %s1, 60
  %v233 = vpack.c.bf16 0.0, %v231
  %234 = vst [vmem:[%s232] sm:$0xf] %v233
  %s235 = scalar_lea.vmem %s0, 376
  %v236 = vld [vmem:[%s235] sm:$0xff]
  %s237 = scalar_lea.vmem %s1, 188
  %v238 = vpack.c.bf16 0.0, %v236
  %239 = vst [vmem:[%s237] sm:$0xf] %v238
  %s240 = scalar_lea.vmem %s0, 136
  %v241 = vld [vmem:[%s240] sm:$0xff]
  %s242 = scalar_lea.vmem %s1, 68
  %v243 = vpack.c.bf16 0.0, %v241
  %244 = vst [vmem:[%s242] sm:$0xf] %v243
  %s245 = scalar_lea.vmem %s0, 392
  %v246 = vld [vmem:[%s245] sm:$0xff]
  %s247 = scalar_lea.vmem %s1, 196
  %v248 = vpack.c.bf16 0.0, %v246
  %249 = vst [vmem:[%s247] sm:$0xf] %v248
  %s250 = scalar_lea.vmem %s0, 152
  %v251 = vld [vmem:[%s250] sm:$0xff]
  %s252 = scalar_lea.vmem %s1, 76
  %v253 = vpack.c.bf16 0.0, %v251
  %254 = vst [vmem:[%s252] sm:$0xf] %v253
  %s255 = scalar_lea.vmem %s0, 408
  %v256 = vld [vmem:[%s255] sm:$0xff]
  %s257 = scalar_lea.vmem %s1, 204
  %v258 = vpack.c.bf16 0.0, %v256
  %259 = vst [vmem:[%s257] sm:$0xf] %v258
  %s260 = scalar_lea.vmem %s0, 168
  %v261 = vld [vmem:[%s260] sm:$0xff]
  %s262 = scalar_lea.vmem %s1, 84
  %v263 = vpack.c.bf16 0.0, %v261
  %264 = vst [vmem:[%s262] sm:$0xf] %v263
  %s265 = scalar_lea.vmem %s0, 424
  %v266 = vld [vmem:[%s265] sm:$0xff]
  %s267 = scalar_lea.vmem %s1, 212
  %v268 = vpack.c.bf16 0.0, %v266
  %269 = vst [vmem:[%s267] sm:$0xf] %v268
  %s270 = scalar_lea.vmem %s0, 184
  %v271 = vld [vmem:[%s270] sm:$0xff]
  %s272 = scalar_lea.vmem %s1, 92
  %v273 = vpack.c.bf16 0.0, %v271
  %274 = vst [vmem:[%s272] sm:$0xf] %v273
  %s275 = scalar_lea.vmem %s0, 440
  %v276 = vld [vmem:[%s275] sm:$0xff]
  %s277 = scalar_lea.vmem %s1, 220
  %v278 = vpack.c.bf16 0.0, %v276
  %279 = vst [vmem:[%s277] sm:$0xf] %v278
  %s280 = scalar_lea.vmem %s0, 200
  %v281 = vld [vmem:[%s280] sm:$0xff]
  %s282 = scalar_lea.vmem %s1, 100
  %v283 = vpack.c.bf16 0.0, %v281
  %284 = vst [vmem:[%s282] sm:$0xf] %v283
  %s285 = scalar_lea.vmem %s0, 456
  %v286 = vld [vmem:[%s285] sm:$0xff]
  %s287 = scalar_lea.vmem %s1, 228
  %v288 = vpack.c.bf16 0.0, %v286
  %289 = vst [vmem:[%s287] sm:$0xf] %v288
  %s290 = scalar_lea.vmem %s0, 216
  %v291 = vld [vmem:[%s290] sm:$0xff]
  %s292 = scalar_lea.vmem %s1, 108
  %v293 = vpack.c.bf16 0.0, %v291
  %294 = vst [vmem:[%s292] sm:$0xf] %v293
  %s295 = scalar_lea.vmem %s0, 472
  %v296 = vld [vmem:[%s295] sm:$0xff]
  %s297 = scalar_lea.vmem %s1, 236
  %v298 = vpack.c.bf16 0.0, %v296
  %299 = vst [vmem:[%s297] sm:$0xf] %v298
  %s300 = scalar_lea.vmem %s0, 232
  %v301 = vld [vmem:[%s300] sm:$0xff]
  %s302 = scalar_lea.vmem %s1, 116
  %v303 = vpack.c.bf16 0.0, %v301
  %304 = vst [vmem:[%s302] sm:$0xf] %v303
  %s305 = scalar_lea.vmem %s0, 488
  %v306 = vld [vmem:[%s305] sm:$0xff]
  %s307 = scalar_lea.vmem %s1, 244
  %v308 = vpack.c.bf16 0.0, %v306
  %309 = vst [vmem:[%s307] sm:$0xf] %v308
  %s310 = scalar_lea.vmem %s0, 248
  %v311 = vld [vmem:[%s310] sm:$0xff]
  %s312 = scalar_lea.vmem %s1, 124
  %v313 = vpack.c.bf16 0.0, %v311
  %314 = vst [vmem:[%s312] sm:$0xf] %v313
  %s315 = scalar_lea.vmem %s0, 504
  %v316 = vld [vmem:[%s315] sm:$0xff]
  %s317 = scalar_lea.vmem %s1, 252
  %v318 = vpack.c.bf16 0.0, %v316
  %319 = vst [vmem:[%s317] sm:$0xf] %v318

// kernel: dual_resnet_block_forward.5
$region0: #{dual_resnet_block_forward.5}
  #allocation0 [shape = 'u32[]', space=smem, size = 0x4, offset = 0x4, fixed_abs, tag = 'smem constant byte address 0x4 - core index']
  #allocation1 [shape = 'u32[144,128]{1,0:T(1,128)}', space=vmem, size = 0x12000, scoped, tag = 'internal scratch']
  #allocation2 [shape = 'f32[16,128]{1,0:T(8,128)}', space=vmem, size = 0x2000, scoped, tag = 'scratch operand']
  #allocation3 [shape = 'f32[128,16,128]{2,1,0:T(8,128)}', space=vmem, size = 0x100000, scoped, tag = 'scratch operand']
  #allocation4 [shape = 'f32[128,16,128]{2,1,0:T(8,128)}', space=vmem, size = 0x100000, scoped, tag = 'scratch operand']
  %s0 = inlined_call_operand.vmem [shape: f32[256,128], index: 0, kind: input, shape index: {}]
  %s1 = inlined_call_operand.vmem [shape: f32[256,128], index: 1, kind: input, shape index: {}]
  %s2 = inlined_call_operand.vmem [shape: f32[16,128], index: 2, kind: input, shape index: {}]
  %s3 = inlined_call_operand.vmem [shape: f32[256,16,128], index: 3, kind: input, shape index: {}]
  %s4 = inlined_call_operand.vmem [shape: f32[256,16,128], index: 4, kind: input, shape index: {}]
  %s5 = inlined_call_operand.vmem [shape: f32[256,128], index: 5, kind: output, shape index: {}]
  %s6 = sld [smem:[#allocation0]]
  $region64: #{dual_resnet_block_forward.5} parent=0
    _
  %s8 = ssub.s32 1, %s6
  %s9 = scalar_select 0, %s8, %s6
  loop: start=0, step=1, limit=4
  $region2: #{dual_resnet_block_forward.5} parent=0 // loop_pre_header
    _
  $region3: #{dual_resnet_block_forward.5} parent=0 // loop_header
    %s11 = sphi 0, %s15
    %p12 = scmp.ge.s32.totalorder %s11, 4
    %s21 = sphi 0, %s23
    %s24 = sphi 0, %s21
    %s25 = sphi 0, %s24
    %s41 = sphi 0, %s25
    %s47 = sphi 0, %s49
    %s50 = sphi 0, %s47
    %s51 = sphi 0, %s50
    %s67 = sphi 0, %s51
    %s71 = sphi 0, %s71
    %s73 = sphi 0, %s71
    %s74 = sphi 0, %s73
    %s88 = sphi 0, %s74
    %s94 = sphi 0, %s96
    %s97 = sphi 0, %s94
    %s98 = sphi 0, %s97
    %s114 = sphi 0, %s98
    %s120 = sphi 0, %s122
    %s123 = sphi 0, %s120
    %s124 = sphi 0, %s123
    %s140 = sphi 0, %s124
    %s146 = sphi 0, %s148
    %s149 = sphi 0, %s146
    %s150 = sphi 0, %s149
    %s166 = sphi 0, %s150
  $region4: #{dual_resnet_block_forward.5} parent=0 // loop_header_branch
    %14 = sbr.rel (%p12) target = $region8
  $region5: #{dual_resnet_block_forward.5} parent=0 // loop_body
    %s16 = ssub.s32 %s11, 1
    %s17 = ssub.s32 %s11, 2
    %s18 = sadd.s32 %s11, 1
    %s19 = ssub.s32 %s11, %s18
    %p20 = scmp.eq.s32.totalorder %s19, 0
    %s22 = sadd.s32 %s21, 1
    %s23 = scalar_select %p20, %s21, %s22
    %p26 = pneg %p20
    %p27 = scmp.eq.s32.totalorder %s11, 1
    %p28 = por %p26, %p27
    %p29 = scmp.ne.s32.totalorder %s21, %s24
    %p30 = scmp.eq.s32.totalorder %s11, 0
    %p31 = por %p29, %p30
    %p32 = scmp.ne.s32.totalorder %s21, %s24
    %p33 = scmp.eq.s32.totalorder %s16, 1
    %p34 = por %p32, %p33
    %p35 = scmp.ne.s32.totalorder %s24, %s25
    %p36 = scmp.eq.s32.totalorder %s16, 0
    %p37 = por %p35, %p36
    %p38 = scmp.ne.s32.totalorder %s24, %s25
    %p39 = scmp.eq.s32.totalorder %s17, 1
    %p40 = por %p38, %p39
    %p42 = scmp.ne.s32.totalorder %s25, %s41
    %p43 = scmp.eq.s32.totalorder %s17, 0
    %p44 = por %p42, %p43
    %s45 = ssub.s32 %s11, %s18
    %p46 = scmp.eq.s32.totalorder %s45, 0
    %s48 = sadd.s32 %s47, 1
    %s49 = scalar_select %p46, %s47, %s48
    %p52 = pneg %p46
    %p53 = scmp.eq.s32.totalorder %s11, 1
    %p54 = por %p52, %p53
    %p55 = scmp.ne.s32.totalorder %s47, %s50
    %p56 = scmp.eq.s32.totalorder %s11, 0
    %p57 = por %p55, %p56
    %p58 = scmp.ne.s32.totalorder %s47, %s50
    %p59 = scmp.eq.s32.totalorder %s16, 1
    %p60 = por %p58, %p59
    %p61 = scmp.ne.s32.totalorder %s50, %s51
    %p62 = scmp.eq.s32.totalorder %s16, 0
    %p63 = por %p61, %p62
    %p64 = scmp.ne.s32.totalorder %s50, %s51
    %p65 = scmp.eq.s32.totalorder %s17, 1
    %p66 = por %p64, %p65
    %p68 = scmp.ne.s32.totalorder %s51, %s67
    %p69 = scmp.eq.s32.totalorder %s17, 0
    %p70 = por %p68, %p69
    %s72 = sadd.s32 %s71, 1
    %p75 = scmp.eq.s32.totalorder %s11, 1
    %p76 = scmp.ne.s32.totalorder %s71, %s73
    %p77 = scmp.eq.s32.totalorder %s11, 0
    %p78 = por %p76, %p77
    %p79 = scmp.ne.s32.totalorder %s71, %s73
    %p80 = scmp.eq.s32.totalorder %s16, 1
    %p81 = por %p79, %p80
    %p82 = scmp.ne.s32.totalorder %s73, %s74
    %p83 = scmp.eq.s32.totalorder %s16, 0
    %p84 = por %p82, %p83
    %p85 = scmp.ne.s32.totalorder %s73, %s74
    %p86 = scmp.eq.s32.totalorder %s17, 1
    %p87 = por %p85, %p86
    %p89 = scmp.ne.s32.totalorder %s74, %s88
    %p90 = scmp.eq.s32.totalorder %s17, 0
    %p91 = por %p89, %p90
    %s92 = ssub.s32 %s11, %s18
    %p93 = scmp.eq.s32.totalorder %s92, 0
    %s95 = sadd.s32 %s94, 1
    %s96 = scalar_select %p93, %s94, %s95
    %p99 = pneg %p93
    %p100 = scmp.eq.s32.totalorder %s11, 1
    %p101 = por %p99, %p100
    %p102 = scmp.ne.s32.totalorder %s94, %s97
    %p103 = scmp.eq.s32.totalorder %s11, 0
    %p104 = por %p102, %p103
    %p105 = scmp.ne.s32.totalorder %s94, %s97
    %p106 = scmp.eq.s32.totalorder %s16, 1
    %p107 = por %p105, %p106
    %p108 = scmp.ne.s32.totalorder %s97, %s98
    %p109 = scmp.eq.s32.totalorder %s16, 0
    %p110 = por %p108, %p109
    %p111 = scmp.ne.s32.totalorder %s97, %s98
    %p112 = scmp.eq.s32.totalorder %s17, 1
    %p113 = por %p111, %p112
    %p115 = scmp.ne.s32.totalorder %s98, %s114
    %p116 = scmp.eq.s32.totalorder %s17, 0
    %p117 = por %p115, %p116
    %s118 = ssub.s32 %s11, %s18
    %p119 = scmp.eq.s32.totalorder %s118, 0
    %s121 = sadd.s32 %s120, 1
    %s122 = scalar_select %p119, %s120, %s121
    %p125 = pneg %p119
    %p126 = scmp.eq.s32.totalorder %s11, 1
    %p127 = por %p125, %p126
    %p128 = scmp.ne.s32.totalorder %s120, %s123
    %p129 = scmp.eq.s32.totalorder %s11, 0
    %p130 = por %p128, %p129
    %p131 = scmp.ne.s32.totalorder %s120, %s123
    %p132 = scmp.eq.s32.totalorder %s16, 1
    %p133 = por %p131, %p132
    %p134 = scmp.ne.s32.totalorder %s123, %s124
    %p135 = scmp.eq.s32.totalorder %s16, 0
    %p136 = por %p134, %p135
    %p137 = scmp.ne.s32.totalorder %s123, %s124
    %p138 = scmp.eq.s32.totalorder %s17, 1
    %p139 = por %p137, %p138
    %p141 = scmp.ne.s32.totalorder %s124, %s140
    %p142 = scmp.eq.s32.totalorder %s17, 0
    %p143 = por %p141, %p142
    %s144 = ssub.s32 %s11, %s18
    %p145 = scmp.eq.s32.totalorder %s144, 0
    %s147 = sadd.s32 %s146, 1
    %s148 = scalar_select %p145, %s146, %s147
    %p151 = pneg %p145
    %p152 = scmp.eq.s32.totalorder %s11, 1
    %p153 = por %p151, %p152
    %p154 = scmp.ne.s32.totalorder %s146, %s149
    %p155 = scmp.eq.s32.totalorder %s11, 0
    %p156 = por %p154, %p155
    %p157 = scmp.ne.s32.totalorder %s146, %s149
    %p158 = scmp.eq.s32.totalorder %s16, 1
    %p159 = por %p157, %p158
    %p160 = scmp.ne.s32.totalorder %s149, %s150
    %p161 = scmp.eq.s32.totalorder %s16, 0
    %p162 = por %p160, %p161
    %p163 = scmp.ne.s32.totalorder %s149, %s150
    %p164 = scmp.eq.s32.totalorder %s17, 1
    %p165 = por %p163, %p164
    %p167 = scmp.ne.s32.totalorder %s150, %s166
    %p168 = scmp.eq.s32.totalorder %s17, 0
    %p169 = por %p167, %p168
    %p170 = scmp.le.s32.totalorder 1, %s11
    %p171 = scmp.lt.s32.totalorder %s11, 3
    %p172 = pnand %p170, %p171
    %p173 = pneg %p172
    // Predicated region
    $region9: #{dual_resnet_block_forward.5} parent=5 // pred_check
      _
    $region10: #{dual_resnet_block_forward.5} parent=5 // pred_check_branch
      %175 = sbr.rel (%p172) target = $region12
    $region11: #{dual_resnet_block_forward.5} parent=5 // pred_region
      %s176 = ssub.s32 %s11, 1
      // Predicated region
      $region13: #{dual_resnet_block_forward.5} parent=11 // pred_check
        %p177 = pneg %p84
      $region14: #{dual_resnet_block_forward.5} parent=11 // pred_check_branch
        %179 = sbr.rel (%p177) target = $region16
      $region15: #{dual_resnet_block_forward.5} parent=11 // pred_region
        _
      $region16: #{dual_resnet_block_forward.5} parent=11 // pred_fallthru
        _
    $region12: #{dual_resnet_block_forward.5} parent=5 // pred_fallthru
      _
    %p180 = scmp.lt.s32.totalorder %s11, 2
    // Predicated region
    $region17: #{dual_resnet_block_forward.5} parent=5 // pred_check
      %p181 = pneg %p180
    $region18: #{dual_resnet_block_forward.5} parent=5 // pred_check_branch
      %183 = sbr.rel (%p181) target = $region20
    $region19: #{dual_resnet_block_forward.5} parent=5 // pred_region
      // Predicated region
      $region21: #{dual_resnet_block_forward.5} parent=19 // pred_check
        %p184 = pneg %p31
      $region22: #{dual_resnet_block_forward.5} parent=19 // pred_check_branch
        %186 = sbr.rel (%p184) target = $region24
      $region23: #{dual_resnet_block_forward.5} parent=19 // pred_region
        %s187 = smul.u32 16, %s11
        %p188 = scmp.lt.s32.totalorder %s187, 31
        %s189 = scalar_select %p188, %s187, 31
        %s190 = smul.addr %s189, 8
        %s191 = scalar_lea.vmem %s0, %s190
        %s192 = smul.u32 16, %s11
      $region24: #{dual_resnet_block_forward.5} parent=19 // pred_fallthru
        _
      // Predicated region
      $region25: #{dual_resnet_block_forward.5} parent=19 // pred_check
        %p193 = pneg %p57
      $region26: #{dual_resnet_block_forward.5} parent=19 // pred_check_branch
        %195 = sbr.rel (%p193) target = $region28
      $region27: #{dual_resnet_block_forward.5} parent=19 // pred_region
        %s196 = smul.u32 16, %s11
        %p197 = scmp.lt.s32.totalorder %s196, 31
        %s198 = scalar_select %p197, %s196, 31
        %s199 = smul.addr %s198, 8
        %s200 = scalar_lea.vmem %s1, %s199
        %s201 = smul.u32 16, %s11
      $region28: #{dual_resnet_block_forward.5} parent=19 // pred_fallthru
        _
      // Predicated region
      $region29: #{dual_resnet_block_forward.5} parent=19 // pred_check
        %p202 = pneg %p104
      $region30: #{dual_resnet_block_forward.5} parent=19 // pred_check_branch
        %204 = sbr.rel (%p202) target = $region32
      $region31: #{dual_resnet_block_forward.5} parent=19 // pred_region
        %s205 = smul.u32 128, %s11
        %p206 = scmp.lt.s32.totalorder %s205, 255
        %s207 = scalar_select %p206, %s205, 255
        %s208 = smul.addr %s207, 2
        %s209 = smul.addr %s208, 8
        %s210 = scalar_lea.vmem %s3, %s209
        %s211 = smul.u32 128, %s11
      $region32: #{dual_resnet_block_forward.5} parent=19 // pred_fallthru
        _
      // Predicated region
      $region33: #{dual_resnet_block_forward.5} parent=19 // pred_check
        %p212 = pneg %p130
      $region34: #{dual_resnet_block_forward.5} parent=19 // pred_check_branch
        %214 = sbr.rel (%p212) target = $region36
      $region35: #{dual_resnet_block_forward.5} parent=19 // pred_region
        %s215 = smul.u32 128, %s11
        %p216 = scmp.lt.s32.totalorder %s215, 255
        %s217 = scalar_select %p216, %s215, 255
        %s218 = smul.addr %s217, 2
        %s219 = smul.addr %s218, 8
        %s220 = scalar_lea.vmem %s4, %s219
        %s221 = smul.u32 128, %s11
      $region36: #{dual_resnet_block_forward.5} parent=19 // pred_fallthru
        _
    $region20: #{dual_resnet_block_forward.5} parent=5 // pred_fallthru
      _
    %p222 = scmp.le.s32.totalorder 1, %s11
    %p223 = scmp.lt.s32.totalorder %s11, 3
    %p224 = pnand %p222, %p223
    %p225 = pneg %p224
    // Predicated region
    $region37: #{dual_resnet_block_forward.5} parent=5 // pred_check
      _
    $region38: #{dual_resnet_block_forward.5} parent=5 // pred_check_branch
      %227 = sbr.rel (%p224) target = $region40
    $region39: #{dual_resnet_block_forward.5} parent=5 // pred_region
      %s228 = ssub.s32 %s11, 1
      %s229 = smul.u32 16, %s16
      %p230 = scmp.lt.s32.totalorder %s229, 31
      %s231 = scalar_select %p230, %s229, 31
      %s232 = smul.addr %s231, 8
      %s233 = scalar_lea.vmem %s0, %s232
      %p234 = pneg %p37
      %p235 = pneg %p34
      %s236 = smul.u32 16, %s16
      %p237 = scmp.lt.s32.totalorder %s236, 31
      %s238 = scalar_select %p237, %s236, 31
      %s239 = smul.addr %s238, 8
      %s240 = scalar_lea.vmem %s1, %s239
      %p241 = pneg %p63
      %p242 = pneg %p60
      %p243 = pneg %p84
      %p244 = pneg %p81
      %s245 = smul.u32 128, %s16
      %p246 = scmp.lt.s32.totalorder %s245, 255
      %s247 = scalar_select %p246, %s245, 255
      %s248 = smul.addr %s247, 2
      %s249 = smul.addr %s248, 8
      %s250 = scalar_lea.vmem %s3, %s249
      %p251 = pneg %p110
      %p252 = pneg %p107
      %s253 = smul.u32 128, %s16
      %p254 = scmp.lt.s32.totalorder %s253, 255
      %s255 = scalar_select %p254, %s253, 255
      %s256 = smul.addr %s255, 2
      %s257 = smul.addr %s256, 8
      %s258 = scalar_lea.vmem %s4, %s257
      %p259 = pneg %p136
      %p260 = pneg %p133
      %p261 = pneg %p162
      %p262 = pneg %p159
      %s263 = smul.u32 16, %s16
      %p264 = scmp.lt.s32.totalorder %s263, 31
      %s265 = scalar_select %p264, %s263, 31
      %s266 = smul.addr %s265, 8
      %s267 = scalar_lea.vmem %s5, %s266
      %s268 = smul.u32 16, %s16
      %p269 = scmp.lt.s32.totalorder %s268, 31
      %s270 = scalar_select %p269, %s268, 31
      %s271 = smul.addr %s270, 8
      %s272 = scalar_lea.vmem %s0, %s271
      %s273 = smul.u32 16, %s16
      %s274 = smul.u32 16, %s16
      %p275 = scmp.lt.s32.totalorder %s274, 31
      %s276 = scalar_select %p275, %s274, 31
      %s277 = smul.addr %s276, 8
      %s278 = scalar_lea.vmem %s1, %s277
      %s279 = smul.u32 16, %s16
      %s280 = smul.u32 128, %s16
      %p281 = scmp.lt.s32.totalorder %s280, 255
      %s282 = scalar_select %p281, %s280, 255
      %s283 = smul.addr %s282, 2
      %s284 = smul.addr %s283, 8
      %s285 = scalar_lea.vmem %s3, %s284
      %s286 = smul.u32 128, %s16
      %s287 = smul.u32 128, %s16
      %p288 = scmp.lt.s32.totalorder %s287, 255
      %s289 = scalar_select %p288, %s287, 255
      %s290 = smul.addr %s289, 2
      %s291 = smul.addr %s290, 8
      %s292 = scalar_lea.vmem %s4, %s291
      %s293 = smul.u32 128, %s16
      %s294 = smul.u32 16, %s16
      %p295 = scmp.lt.s32.totalorder %s294, 31
      %s296 = scalar_select %p295, %s294, 31
      %s297 = smul.addr %s296, 8
      %s298 = scalar_lea.vmem %s5, %s297
      %s299 = smul.u32 16, %s16
      %p300 = scmp.eq.s32.totalorder %s16, 0
      // Predicated region
      $region41: #{dual_resnet_block_forward.5} parent=39 // pred_check
        %p301 = pneg %p300
      $region42: #{dual_resnet_block_forward.5} parent=39 // pred_check_branch
        %303 = sbr.rel (%p301) target = $region44
      $region43: #{dual_resnet_block_forward.5} parent=39 // pred_region
        %304 = vst [vmem:[#allocation2] sm:$0xff] 0.0
        %305 = vst [vmem:[#allocation2 + $0x8] sm:$0xff] 0.0
      $region44: #{dual_resnet_block_forward.5} parent=39 // pred_fallthru
        _
      %v306 = vld [vmem:[%s278] sm:$0xff]
      %v307 = vld [vmem:[%s278 + $0x8] sm:$0xff]
      %v308 = vld [vmem:[%s278 + $0x10] sm:$0xff]
      %v309 = vld [vmem:[%s278 + $0x18] sm:$0xff]
      %v310 = vld [vmem:[%s278 + $0x20] sm:$0xff]
      %v311 = vld [vmem:[%s278 + $0x28] sm:$0xff]
      %v312 = vld [vmem:[%s278 + $0x30] sm:$0xff]
      %v313 = vld [vmem:[%s278 + $0x38] sm:$0xff]
      %v314 = vld [vmem:[%s278 + $0x40] sm:$0xff]
      %v315 = vld [vmem:[%s278 + $0x48] sm:$0xff]
      %v316 = vld [vmem:[%s278 + $0x50] sm:$0xff]
      %v317 = vld [vmem:[%s278 + $0x58] sm:$0xff]
      %v318 = vld [vmem:[%s278 + $0x60] sm:$0xff]
      %v319 = vld [vmem:[%s278 + $0x68] sm:$0xff]
      %v320 = vld [vmem:[%s278 + $0x70] sm:$0xff]
      %v321 = vld [vmem:[%s278 + $0x78] sm:$0xff]
      %v338 = vcombine.high %v306, %v306
      %v340 = vunpack.c.l.s4 1966171168
      %v341 = vunpack.c.0.s8 %v340
      %v342 = vlaneseq
      %v343 = vshrl.u32 %v342, 7
      %v344 = vsub.s32 %v341, %v343
      %v345 = vrot.slane %v306, %v344
      %v347 = vunpack.c.l.s4 1966171168
      %v348 = vunpack.c.0.s8 %v347
      %v349 = vlaneseq
      %v350 = vshrl.u32 %v349, 7
      %v351 = vsub.s32 %v348, %v350
      %v352 = vrot.slane %v338, %v351
      %v353 = vcombine.high %v345, %v345
      %v354 = vcombine.high %v352, %v352
      %v356 = vunpack.c.l.s4 1966171168
      %v357 = vunpack.c.0.s8 %v356
      %v358 = vlaneseq
      %v359 = vshrl.u32 %v358, 7
      %v360 = vsub.s32 %v357, %v359
      %v361 = vrot.slane %v345, %v360
      %v363 = vunpack.c.l.s4 1966171168
      %v364 = vunpack.c.0.s8 %v363
      %v365 = vlaneseq
      %v366 = vshrl.u32 %v365, 7
      %v367 = vsub.s32 %v364, %v366
      %v368 = vrot.slane %v352, %v367
      %v370 = vunpack.c.l.s4 1966171168
      %v371 = vunpack.c.0.s8 %v370
      %v372 = vlaneseq
      %v373 = vshrl.u32 %v372, 7
      %v374 = vsub.s32 %v371, %v373
      %v375 = vrot.slane %v353, %v374
      %v377 = vunpack.c.l.s4 1966171168
      %v378 = vunpack.c.0.s8 %v377
      %v379 = vlaneseq
      %v380 = vshrl.u32 %v379, 7
      %v381 = vsub.s32 %v378, %v380
      %v382 = vrot.slane %v354, %v381
      %v383 = vcombine.high %v361, %v361
      %v384 = vcombine.high %v368, %v368
      %v385 = vcombine.high %v375, %v375
      %v386 = vcombine.high %v382, %v382
      %v387 = vcombine.high %v307, %v307
      %v389 = vunpack.c.l.s4 1966171168
      %v390 = vunpack.c.0.s8 %v389
      %v391 = vlaneseq
      %v392 = vshrl.u32 %v391, 7
      %v393 = vsub.s32 %v390, %v392
      %v394 = vrot.slane %v307, %v393
      %v396 = vunpack.c.l.s4 1966171168
      %v397 = vunpack.c.0.s8 %v396
      %v398 = vlaneseq
      %v399 = vshrl.u32 %v398, 7
      %v400 = vsub.s32 %v397, %v399
      %v401 = vrot.slane %v387, %v400
      %v402 = vcombine.high %v394, %v394
      %v403 = vcombine.high %v401, %v401
      %v405 = vunpack.c.l.s4 1966171168
      %v406 = vunpack.c.0.s8 %v405
      %v407 = vlaneseq
      %v408 = vshrl.u32 %v407, 7
      %v409 = vsub.s32 %v406, %v408
      %v410 = vrot.slane %v394, %v409
      %v412 = vunpack.c.l.s4 1966171168
      %v413 = vunpack.c.0.s8 %v412
      %v414 = vlaneseq
      %v415 = vshrl.u32 %v414, 7
      %v416 = vsub.s32 %v413, %v415
      %v417 = vrot.slane %v401, %v416
      %v419 = vunpack.c.l.s4 1966171168
      %v420 = vunpack.c.0.s8 %v419
      %v421 = vlaneseq
      %v422 = vshrl.u32 %v421, 7
      %v423 = vsub.s32 %v420, %v422
      %v424 = vrot.slane %v402, %v423
      %v426 = vunpack.c.l.s4 1966171168
      %v427 = vunpack.c.0.s8 %v426
      %v428 = vlaneseq
      %v429 = vshrl.u32 %v428, 7
      %v430 = vsub.s32 %v427, %v429
      %v431 = vrot.slane %v403, %v430
      %v432 = vcombine.high %v410, %v410
      %v433 = vcombine.high %v417, %v417
      %v434 = vcombine.high %v424, %v424
      %v435 = vcombine.high %v431, %v431
      %v436 = vcombine.high %v308, %v308
      %v438 = vunpack.c.l.s4 1966171168
      %v439 = vunpack.c.0.s8 %v438
      %v440 = vlaneseq
      %v441 = vshrl.u32 %v440, 7
      %v442 = vsub.s32 %v439, %v441
      %v443 = vrot.slane %v308, %v442
      %v445 = vunpack.c.l.s4 1966171168
      %v446 = vunpack.c.0.s8 %v445
      %v447 = vlaneseq
      %v448 = vshrl.u32 %v447, 7
      %v449 = vsub.s32 %v446, %v448
      %v450 = vrot.slane %v436, %v449
      %v451 = vcombine.high %v443, %v443
      %v452 = vcombine.high %v450, %v450
      %v454 = vunpack.c.l.s4 1966171168
      %v455 = vunpack.c.0.s8 %v454
      %v456 = vlaneseq
      %v457 = vshrl.u32 %v456, 7
      %v458 = vsub.s32 %v455, %v457
      %v459 = vrot.slane %v443, %v458
      %v461 = vunpack.c.l.s4 1966171168
      %v462 = vunpack.c.0.s8 %v461
      %v463 = vlaneseq
      %v464 = vshrl.u32 %v463, 7
      %v465 = vsub.s32 %v462, %v464
      %v466 = vrot.slane %v450, %v465
      %v468 = vunpack.c.l.s4 1966171168
      %v469 = vunpack.c.0.s8 %v468
      %v470 = vlaneseq
      %v471 = vshrl.u32 %v470, 7
      %v472 = vsub.s32 %v469, %v471
      %v473 = vrot.slane %v451, %v472
      %v475 = vunpack.c.l.s4 1966171168
      %v476 = vunpack.c.0.s8 %v475
      %v477 = vlaneseq
      %v478 = vshrl.u32 %v477, 7
      %v479 = vsub.s32 %v476, %v478
      %v480 = vrot.slane %v452, %v479
      %v481 = vcombine.high %v459, %v459
      %v482 = vcombine.high %v466, %v466
      %v483 = vcombine.high %v473, %v473
      %v484 = vcombine.high %v480, %v480
      %v485 = vcombine.high %v309, %v309
      %v487 = vunpack.c.l.s4 1966171168
      %v488 = vunpack.c.0.s8 %v487
      %v489 = vlaneseq
      %v490 = vshrl.u32 %v489, 7
      %v491 = vsub.s32 %v488, %v490
      %v492 = vrot.slane %v309, %v491
      %v494 = vunpack.c.l.s4 1966171168
      %v495 = vunpack.c.0.s8 %v494
      %v496 = vlaneseq
      %v497 = vshrl.u32 %v496, 7
      %v498 = vsub.s32 %v495, %v497
      %v499 = vrot.slane %v485, %v498
      %v500 = vcombine.high %v492, %v492
      %v501 = vcombine.high %v499, %v499
      %v503 = vunpack.c.l.s4 1966171168
      %v504 = vunpack.c.0.s8 %v503
      %v505 = vlaneseq
      %v506 = vshrl.u32 %v505, 7
      %v507 = vsub.s32 %v504, %v506
      %v508 = vrot.slane %v492, %v507
      %v510 = vunpack.c.l.s4 1966171168
      %v511 = vunpack.c.0.s8 %v510
      %v512 = vlaneseq
      %v513 = vshrl.u32 %v512, 7
      %v514 = vsub.s32 %v511, %v513
      %v515 = vrot.slane %v499, %v514
      %v517 = vunpack.c.l.s4 1966171168
      %v518 = vunpack.c.0.s8 %v517
      %v519 = vlaneseq
      %v520 = vshrl.u32 %v519, 7
      %v521 = vsub.s32 %v518, %v520
      %v522 = vrot.slane %v500, %v521
      %v524 = vunpack.c.l.s4 1966171168
      %v525 = vunpack.c.0.s8 %v524
      %v526 = vlaneseq
      %v527 = vshrl.u32 %v526, 7
      %v528 = vsub.s32 %v525, %v527
      %v529 = vrot.slane %v501, %v528
      %v530 = vcombine.high %v508, %v508
      %v531 = vcombine.high %v515, %v515
      %v532 = vcombine.high %v522, %v522
      %v533 = vcombine.high %v529, %v529
      %v534 = vcombine.high %v310, %v310
      %v536 = vunpack.c.l.s4 1966171168
      %v537 = vunpack.c.0.s8 %v536
      %v538 = vlaneseq
      %v539 = vshrl.u32 %v538, 7
      %v540 = vsub.s32 %v537, %v539
      %v541 = vrot.slane %v310, %v540
      %v543 = vunpack.c.l.s4 1966171168
      %v544 = vunpack.c.0.s8 %v543
      %v545 = vlaneseq
      %v546 = vshrl.u32 %v545, 7
      %v547 = vsub.s32 %v544, %v546
      %v548 = vrot.slane %v534, %v547
      %v549 = vcombine.high %v541, %v541
      %v550 = vcombine.high %v548, %v548
      %v552 = vunpack.c.l.s4 1966171168
      %v553 = vunpack.c.0.s8 %v552
      %v554 = vlaneseq
      %v555 = vshrl.u32 %v554, 7
      %v556 = vsub.s32 %v553, %v555
      %v557 = vrot.slane %v541, %v556
      %v559 = vunpack.c.l.s4 1966171168
      %v560 = vunpack.c.0.s8 %v559
      %v561 = vlaneseq
      %v562 = vshrl.u32 %v561, 7
      %v563 = vsub.s32 %v560, %v562
      %v564 = vrot.slane %v548, %v563
      %v566 = vunpack.c.l.s4 1966171168
      %v567 = vunpack.c.0.s8 %v566
      %v568 = vlaneseq
      %v569 = vshrl.u32 %v568, 7
      %v570 = vsub.s32 %v567, %v569
      %v571 = vrot.slane %v549, %v570
      %v573 = vunpack.c.l.s4 1966171168
      %v574 = vunpack.c.0.s8 %v573
      %v575 = vlaneseq
      %v576 = vshrl.u32 %v575, 7
      %v577 = vsub.s32 %v574, %v576
      %v578 = vrot.slane %v550, %v577
      %v579 = vcombine.high %v557, %v557
      %v580 = vcombine.high %v564, %v564
      %v581 = vcombine.high %v571, %v571
      %v582 = vcombine.high %v578, %v578
      %v583 = vcombine.high %v311, %v311
      %v585 = vunpack.c.l.s4 1966171168
      %v586 = vunpack.c.0.s8 %v585
      %v587 = vlaneseq
      %v588 = vshrl.u32 %v587, 7
      %v589 = vsub.s32 %v586, %v588
      %v590 = vrot.slane %v311, %v589
      %v592 = vunpack.c.l.s4 1966171168
      %v593 = vunpack.c.0.s8 %v592
      %v594 = vlaneseq
      %v595 = vshrl.u32 %v594, 7
      %v596 = vsub.s32 %v593, %v595
      %v597 = vrot.slane %v583, %v596
      %v598 = vcombine.high %v590, %v590
      %v599 = vcombine.high %v597, %v597
      %v601 = vunpack.c.l.s4 1966171168
      %v602 = vunpack.c.0.s8 %v601
      %v603 = vlaneseq
      %v604 = vshrl.u32 %v603, 7
      %v605 = vsub.s32 %v602, %v604
      %v606 = vrot.slane %v590, %v605
      %v608 = vunpack.c.l.s4 1966171168
      %v609 = vunpack.c.0.s8 %v608
      %v610 = vlaneseq
      %v611 = vshrl.u32 %v610, 7
      %v612 = vsub.s32 %v609, %v611
      %v613 = vrot.slane %v597, %v612
      %v615 = vunpack.c.l.s4 1966171168
      %v616 = vunpack.c.0.s8 %v615
      %v617 = vlaneseq
      %v618 = vshrl.u32 %v617, 7
      %v619 = vsub.s32 %v616, %v618
      %v620 = vrot.slane %v598, %v619
      %v622 = vunpack.c.l.s4 1966171168
      %v623 = vunpack.c.0.s8 %v622
      %v624 = vlaneseq
      %v625 = vshrl.u32 %v624, 7
      %v626 = vsub.s32 %v623, %v625
      %v627 = vrot.slane %v599, %v626
      %v628 = vcombine.high %v606, %v606
      %v629 = vcombine.high %v613, %v613
      %v630 = vcombine.high %v620, %v620
      %v631 = vcombine.high %v627, %v627
      %v632 = vcombine.high %v312, %v312
      %v634 = vunpack.c.l.s4 1966171168
      %v635 = vunpack.c.0.s8 %v634
      %v636 = vlaneseq
      %v637 = vshrl.u32 %v636, 7
      %v638 = vsub.s32 %v635, %v637
      %v639 = vrot.slane %v312, %v638
      %v641 = vunpack.c.l.s4 1966171168
      %v642 = vunpack.c.0.s8 %v641
      %v643 = vlaneseq
      %v644 = vshrl.u32 %v643, 7
      %v645 = vsub.s32 %v642, %v644
      %v646 = vrot.slane %v632, %v645
      %v647 = vcombine.high %v639, %v639
      %v648 = vcombine.high %v646, %v646
      %v650 = vunpack.c.l.s4 1966171168
      %v651 = vunpack.c.0.s8 %v650
      %v652 = vlaneseq
      %v653 = vshrl.u32 %v652, 7
      %v654 = vsub.s32 %v651, %v653
      %v655 = vrot.slane %v639, %v654
      %v657 = vunpack.c.l.s4 1966171168
      %v658 = vunpack.c.0.s8 %v657
      %v659 = vlaneseq
      %v660 = vshrl.u32 %v659, 7
      %v661 = vsub.s32 %v658, %v660
      %v662 = vrot.slane %v646, %v661
      %v664 = vunpack.c.l.s4 1966171168
      %v665 = vunpack.c.0.s8 %v664
      %v666 = vlaneseq
      %v667 = vshrl.u32 %v666, 7
      %v668 = vsub.s32 %v665, %v667
      %v669 = vrot.slane %v647, %v668
      %v671 = vunpack.c.l.s4 1966171168
      %v672 = vunpack.c.0.s8 %v671
      %v673 = vlaneseq
      %v674 = vshrl.u32 %v673, 7
      %v675 = vsub.s32 %v672, %v674
      %v676 = vrot.slane %v648, %v675
      %v677 = vcombine.high %v655, %v655
      %v678 = vcombine.high %v662, %v662
      %v679 = vcombine.high %v669, %v669
      %v680 = vcombine.high %v676, %v676
      %v681 = vcombine.high %v313, %v313
      %v683 = vunpack.c.l.s4 1966171168
      %v684 = vunpack.c.0.s8 %v683
      %v685 = vlaneseq
      %v686 = vshrl.u32 %v685, 7
      %v687 = vsub.s32 %v684, %v686
      %v688 = vrot.slane %v313, %v687
      %v690 = vunpack.c.l.s4 1966171168
      %v691 = vunpack.c.0.s8 %v690
      %v692 = vlaneseq
      %v693 = vshrl.u32 %v692, 7
      %v694 = vsub.s32 %v691, %v693
      %v695 = vrot.slane %v681, %v694
      %v696 = vcombine.high %v688, %v688
      %v697 = vcombine.high %v695, %v695
      %v699 = vunpack.c.l.s4 1966171168
      %v700 = vunpack.c.0.s8 %v699
      %v701 = vlaneseq
      %v702 = vshrl.u32 %v701, 7
      %v703 = vsub.s32 %v700, %v702
      %v704 = vrot.slane %v688, %v703
      %v706 = vunpack.c.l.s4 1966171168
      %v707 = vunpack.c.0.s8 %v706
      %v708 = vlaneseq
      %v709 = vshrl.u32 %v708, 7
      %v710 = vsub.s32 %v707, %v709
      %v711 = vrot.slane %v695, %v710
      %v713 = vunpack.c.l.s4 1966171168
      %v714 = vunpack.c.0.s8 %v713
      %v715 = vlaneseq
      %v716 = vshrl.u32 %v715, 7
      %v717 = vsub.s32 %v714, %v716
      %v718 = vrot.slane %v696, %v717
      %v720 = vunpack.c.l.s4 1966171168
      %v721 = vunpack.c.0.s8 %v720
      %v722 = vlaneseq
      %v723 = vshrl.u32 %v722, 7
      %v724 = vsub.s32 %v721, %v723
      %v725 = vrot.slane %v697, %v724
      %v726 = vcombine.high %v704, %v704
      %v727 = vcombine.high %v711, %v711
      %v728 = vcombine.high %v718, %v718
      %v729 = vcombine.high %v725, %v725
      %v730 = vcombine.high %v314, %v314
      %v732 = vunpack.c.l.s4 1966171168
      %v733 = vunpack.c.0.s8 %v732
      %v734 = vlaneseq
      %v735 = vshrl.u32 %v734, 7
      %v736 = vsub.s32 %v733, %v735
      %v737 = vrot.slane %v314, %v736
      %v739 = vunpack.c.l.s4 1966171168
      %v740 = vunpack.c.0.s8 %v739
      %v741 = vlaneseq
      %v742 = vshrl.u32 %v741, 7
      %v743 = vsub.s32 %v740, %v742
      %v744 = vrot.slane %v730, %v743
      %v745 = vcombine.high %v737, %v737
      %v746 = vcombine.high %v744, %v744
      %v748 = vunpack.c.l.s4 1966171168
      %v749 = vunpack.c.0.s8 %v748
      %v750 = vlaneseq
      %v751 = vshrl.u32 %v750, 7
      %v752 = vsub.s32 %v749, %v751
      %v753 = vrot.slane %v737, %v752
      %v755 = vunpack.c.l.s4 1966171168
      %v756 = vunpack.c.0.s8 %v755
      %v757 = vlaneseq
      %v758 = vshrl.u32 %v757, 7
      %v759 = vsub.s32 %v756, %v758
      %v760 = vrot.slane %v744, %v759
      %v762 = vunpack.c.l.s4 1966171168
      %v763 = vunpack.c.0.s8 %v762
      %v764 = vlaneseq
      %v765 = vshrl.u32 %v764, 7
      %v766 = vsub.s32 %v763, %v765
      %v767 = vrot.slane %v745, %v766
      %v769 = vunpack.c.l.s4 1966171168
      %v770 = vunpack.c.0.s8 %v769
      %v771 = vlaneseq
      %v772 = vshrl.u32 %v771, 7
      %v773 = vsub.s32 %v770, %v772
      %v774 = vrot.slane %v746, %v773
      %v775 = vcombine.high %v753, %v753
      %v776 = vcombine.high %v760, %v760
      %v777 = vcombine.high %v767, %v767
      %v778 = vcombine.high %v774, %v774
      %v779 = vcombine.high %v315, %v315
      %v781 = vunpack.c.l.s4 1966171168
      %v782 = vunpack.c.0.s8 %v781
      %v783 = vlaneseq
      %v784 = vshrl.u32 %v783, 7
      %v785 = vsub.s32 %v782, %v784
      %v786 = vrot.slane %v315, %v785
      %v788 = vunpack.c.l.s4 1966171168
      %v789 = vunpack.c.0.s8 %v788
      %v790 = vlaneseq
      %v791 = vshrl.u32 %v790, 7
      %v792 = vsub.s32 %v789, %v791
      %v793 = vrot.slane %v779, %v792
      %v794 = vcombine.high %v786, %v786
      %v795 = vcombine.high %v793, %v793
      %v797 = vunpack.c.l.s4 1966171168
      %v798 = vunpack.c.0.s8 %v797
      %v799 = vlaneseq
      %v800 = vshrl.u32 %v799, 7
      %v801 = vsub.s32 %v798, %v800
      %v802 = vrot.slane %v786, %v801
      %v804 = vunpack.c.l.s4 1966171168
      %v805 = vunpack.c.0.s8 %v804
      %v806 = vlaneseq
      %v807 = vshrl.u32 %v806, 7
      %v808 = vsub.s32 %v805, %v807
      %v809 = vrot.slane %v793, %v808
      %v811 = vunpack.c.l.s4 1966171168
      %v812 = vunpack.c.0.s8 %v811
      %v813 = vlaneseq
      %v814 = vshrl.u32 %v813, 7
      %v815 = vsub.s32 %v812, %v814
      %v816 = vrot.slane %v794, %v815
      %v818 = vunpack.c.l.s4 1966171168
      %v819 = vunpack.c.0.s8 %v818
      %v820 = vlaneseq
      %v821 = vshrl.u32 %v820, 7
      %v822 = vsub.s32 %v819, %v821
      %v823 = vrot.slane %v795, %v822
      %v824 = vcombine.high %v802, %v802
      %v825 = vcombine.high %v809, %v809
      %v826 = vcombine.high %v816, %v816
      %v827 = vcombine.high %v823, %v823
      %v828 = vcombine.high %v316, %v316
      %v830 = vunpack.c.l.s4 1966171168
      %v831 = vunpack.c.0.s8 %v830
      %v832 = vlaneseq
      %v833 = vshrl.u32 %v832, 7
      %v834 = vsub.s32 %v831, %v833
      %v835 = vrot.slane %v316, %v834
      %v837 = vunpack.c.l.s4 1966171168
      %v838 = vunpack.c.0.s8 %v837
      %v839 = vlaneseq
      %v840 = vshrl.u32 %v839, 7
      %v841 = vsub.s32 %v838, %v840
      %v842 = vrot.slane %v828, %v841
      %v843 = vcombine.high %v835, %v835
      %v844 = vcombine.high %v842, %v842
      %v846 = vunpack.c.l.s4 1966171168
      %v847 = vunpack.c.0.s8 %v846
      %v848 = vlaneseq
      %v849 = vshrl.u32 %v848, 7
      %v850 = vsub.s32 %v847, %v849
      %v851 = vrot.slane %v835, %v850
      %v853 = vunpack.c.l.s4 1966171168
      %v854 = vunpack.c.0.s8 %v853
      %v855 = vlaneseq
      %v856 = vshrl.u32 %v855, 7
      %v857 = vsub.s32 %v854, %v856
      %v858 = vrot.slane %v842, %v857
      %v860 = vunpack.c.l.s4 1966171168
      %v861 = vunpack.c.0.s8 %v860
      %v862 = vlaneseq
      %v863 = vshrl.u32 %v862, 7
      %v864 = vsub.s32 %v861, %v863
      %v865 = vrot.slane %v843, %v864
      %v867 = vunpack.c.l.s4 1966171168
      %v868 = vunpack.c.0.s8 %v867
      %v869 = vlaneseq
      %v870 = vshrl.u32 %v869, 7
      %v871 = vsub.s32 %v868, %v870
      %v872 = vrot.slane %v844, %v871
      %v873 = vcombine.high %v851, %v851
      %v874 = vcombine.high %v858, %v858
      %v875 = vcombine.high %v865, %v865
      %v876 = vcombine.high %v872, %v872
      %v877 = vcombine.high %v317, %v317
      %v879 = vunpack.c.l.s4 1966171168
      %v880 = vunpack.c.0.s8 %v879
      %v881 = vlaneseq
      %v882 = vshrl.u32 %v881, 7
      %v883 = vsub.s32 %v880, %v882
      %v884 = vrot.slane %v317, %v883
      %v886 = vunpack.c.l.s4 1966171168
      %v887 = vunpack.c.0.s8 %v886
      %v888 = vlaneseq
      %v889 = vshrl.u32 %v888, 7
      %v890 = vsub.s32 %v887, %v889
      %v891 = vrot.slane %v877, %v890
      %v892 = vcombine.high %v884, %v884
      %v893 = vcombine.high %v891, %v891
      %v895 = vunpack.c.l.s4 1966171168
      %v896 = vunpack.c.0.s8 %v895
      %v897 = vlaneseq
      %v898 = vshrl.u32 %v897, 7
      %v899 = vsub.s32 %v896, %v898
      %v900 = vrot.slane %v884, %v899
      %v902 = vunpack.c.l.s4 1966171168
      %v903 = vunpack.c.0.s8 %v902
      %v904 = vlaneseq
      %v905 = vshrl.u32 %v904, 7
      %v906 = vsub.s32 %v903, %v905
      %v907 = vrot.slane %v891, %v906
      %v909 = vunpack.c.l.s4 1966171168
      %v910 = vunpack.c.0.s8 %v909
      %v911 = vlaneseq
      %v912 = vshrl.u32 %v911, 7
      %v913 = vsub.s32 %v910, %v912
      %v914 = vrot.slane %v892, %v913
      %v916 = vunpack.c.l.s4 1966171168
      %v917 = vunpack.c.0.s8 %v916
      %v918 = vlaneseq
      %v919 = vshrl.u32 %v918, 7
      %v920 = vsub.s32 %v917, %v919
      %v921 = vrot.slane %v893, %v920
      %v922 = vcombine.high %v900, %v900
      %v923 = vcombine.high %v907, %v907
      %v924 = vcombine.high %v914, %v914
      %v925 = vcombine.high %v921, %v921
      %v926 = vcombine.high %v318, %v318
      %v928 = vunpack.c.l.s4 1966171168
      %v929 = vunpack.c.0.s8 %v928
      %v930 = vlaneseq
      %v931 = vshrl.u32 %v930, 7
      %v932 = vsub.s32 %v929, %v931
      %v933 = vrot.slane %v318, %v932
      %v935 = vunpack.c.l.s4 1966171168
      %v936 = vunpack.c.0.s8 %v935
      %v937 = vlaneseq
      %v938 = vshrl.u32 %v937, 7
      %v939 = vsub.s32 %v936, %v938
      %v940 = vrot.slane %v926, %v939
      %v941 = vcombine.high %v933, %v933
      %v942 = vcombine.high %v940, %v940
      %v944 = vunpack.c.l.s4 1966171168
      %v945 = vunpack.c.0.s8 %v944
      %v946 = vlaneseq
      %v947 = vshrl.u32 %v946, 7
      %v948 = vsub.s32 %v945, %v947
      %v949 = vrot.slane %v933, %v948
      %v951 = vunpack.c.l.s4 1966171168
      %v952 = vunpack.c.0.s8 %v951
      %v953 = vlaneseq
      %v954 = vshrl.u32 %v953, 7
      %v955 = vsub.s32 %v952, %v954
      %v956 = vrot.slane %v940, %v955
      %v958 = vunpack.c.l.s4 1966171168
      %v959 = vunpack.c.0.s8 %v958
      %v960 = vlaneseq
      %v961 = vshrl.u32 %v960, 7
      %v962 = vsub.s32 %v959, %v961
      %v963 = vrot.slane %v941, %v962
      %v965 = vunpack.c.l.s4 1966171168
      %v966 = vunpack.c.0.s8 %v965
      %v967 = vlaneseq
      %v968 = vshrl.u32 %v967, 7
      %v969 = vsub.s32 %v966, %v968
      %v970 = vrot.slane %v942, %v969
      %v971 = vcombine.high %v949, %v949
      %v972 = vcombine.high %v956, %v956
      %v973 = vcombine.high %v963, %v963
      %v974 = vcombine.high %v970, %v970
      %v975 = vcombine.high %v319, %v319
      %v977 = vunpack.c.l.s4 1966171168
      %v978 = vunpack.c.0.s8 %v977
      %v979 = vlaneseq
      %v980 = vshrl.u32 %v979, 7
      %v981 = vsub.s32 %v978, %v980
      %v982 = vrot.slane %v319, %v981
      %v984 = vunpack.c.l.s4 1966171168
      %v985 = vunpack.c.0.s8 %v984
      %v986 = vlaneseq
      %v987 = vshrl.u32 %v986, 7
      %v988 = vsub.s32 %v985, %v987
      %v989 = vrot.slane %v975, %v988
      %v990 = vcombine.high %v982, %v982
      %v991 = vcombine.high %v989, %v989
      %v993 = vunpack.c.l.s4 1966171168
      %v994 = vunpack.c.0.s8 %v993
      %v995 = vlaneseq
      %v996 = vshrl.u32 %v995, 7
      %v997 = vsub.s32 %v994, %v996
      %v998 = vrot.slane %v982, %v997
      %v1000 = vunpack.c.l.s4 1966171168
      %v1001 = vunpack.c.0.s8 %v1000
      %v1002 = vlaneseq
      %v1003 = vshrl.u32 %v1002, 7
      %v1004 = vsub.s32 %v1001, %v1003
      %v1005 = vrot.slane %v989, %v1004
      %v1007 = vunpack.c.l.s4 1966171168
      %v1008 = vunpack.c.0.s8 %v1007
      %v1009 = vlaneseq
      %v1010 = vshrl.u32 %v1009, 7
      %v1011 = vsub.s32 %v1008, %v1010
      %v1012 = vrot.slane %v990, %v1011
      %v1014 = vunpack.c.l.s4 1966171168
      %v1015 = vunpack.c.0.s8 %v1014
      %v1016 = vlaneseq
      %v1017 = vshrl.u32 %v1016, 7
      %v1018 = vsub.s32 %v1015, %v1017
      %v1019 = vrot.slane %v991, %v1018
      %v1020 = vcombine.high %v998, %v998
      %v1021 = vcombine.high %v1005, %v1005
      %v1022 = vcombine.high %v1012, %v1012
      %v1023 = vcombine.high %v1019, %v1019
      %v1024 = vcombine.high %v320, %v320
      %v1026 = vunpack.c.l.s4 1966171168
      %v1027 = vunpack.c.0.s8 %v1026
      %v1028 = vlaneseq
      %v1029 = vshrl.u32 %v1028, 7
      %v1030 = vsub.s32 %v1027, %v1029
      %v1031 = vrot.slane %v320, %v1030
      %v1033 = vunpack.c.l.s4 1966171168
      %v1034 = vunpack.c.0.s8 %v1033
      %v1035 = vlaneseq
      %v1036 = vshrl.u32 %v1035, 7
      %v1037 = vsub.s32 %v1034, %v1036
      %v1038 = vrot.slane %v1024, %v1037
      %v1039 = vcombine.high %v1031, %v1031
      %v1040 = vcombine.high %v1038, %v1038
      %v1042 = vunpack.c.l.s4 1966171168
      %v1043 = vunpack.c.0.s8 %v1042
      %v1044 = vlaneseq
      %v1045 = vshrl.u32 %v1044, 7
      %v1046 = vsub.s32 %v1043, %v1045
      %v1047 = vrot.slane %v1031, %v1046
      %v1049 = vunpack.c.l.s4 1966171168
      %v1050 = vunpack.c.0.s8 %v1049
      %v1051 = vlaneseq
      %v1052 = vshrl.u32 %v1051, 7
      %v1053 = vsub.s32 %v1050, %v1052
      %v1054 = vrot.slane %v1038, %v1053
      %v1056 = vunpack.c.l.s4 1966171168
      %v1057 = vunpack.c.0.s8 %v1056
      %v1058 = vlaneseq
      %v1059 = vshrl.u32 %v1058, 7
      %v1060 = vsub.s32 %v1057, %v1059
      %v1061 = vrot.slane %v1039, %v1060
      %v1063 = vunpack.c.l.s4 1966171168
      %v1064 = vunpack.c.0.s8 %v1063
      %v1065 = vlaneseq
      %v1066 = vshrl.u32 %v1065, 7
      %v1067 = vsub.s32 %v1064, %v1066
      %v1068 = vrot.slane %v1040, %v1067
      %v1069 = vcombine.high %v1047, %v1047
      %v1070 = vcombine.high %v1054, %v1054
      %v1071 = vcombine.high %v1061, %v1061
      %v1072 = vcombine.high %v1068, %v1068
      %v1073 = vcombine.high %v321, %v321
      %v1075 = vunpack.c.l.s4 1966171168
      %v1076 = vunpack.c.0.s8 %v1075
      %v1077 = vlaneseq
      %v1078 = vshrl.u32 %v1077, 7
      %v1079 = vsub.s32 %v1076, %v1078
      %v1080 = vrot.slane %v321, %v1079
      %v1082 = vunpack.c.l.s4 1966171168
      %v1083 = vunpack.c.0.s8 %v1082
      %v1084 = vlaneseq
      %v1085 = vshrl.u32 %v1084, 7
      %v1086 = vsub.s32 %v1083, %v1085
      %v1087 = vrot.slane %v1073, %v1086
      %v1088 = vcombine.high %v1080, %v1080
      %v1089 = vcombine.high %v1087, %v1087
      %v1091 = vunpack.c.l.s4 1966171168
      %v1092 = vunpack.c.0.s8 %v1091
      %v1093 = vlaneseq
      %v1094 = vshrl.u32 %v1093, 7
      %v1095 = vsub.s32 %v1092, %v1094
      %v1096 = vrot.slane %v1080, %v1095
      %v1098 = vunpack.c.l.s4 1966171168
      %v1099 = vunpack.c.0.s8 %v1098
      %v1100 = vlaneseq
      %v1101 = vshrl.u32 %v1100, 7
      %v1102 = vsub.s32 %v1099, %v1101
      %v1103 = vrot.slane %v1087, %v1102
      %v1105 = vunpack.c.l.s4 1966171168
      %v1106 = vunpack.c.0.s8 %v1105
      %v1107 = vlaneseq
      %v1108 = vshrl.u32 %v1107, 7
      %v1109 = vsub.s32 %v1106, %v1108
      %v1110 = vrot.slane %v1088, %v1109
      %v1112 = vunpack.c.l.s4 1966171168
      %v1113 = vunpack.c.0.s8 %v1112
      %v1114 = vlaneseq
      %v1115 = vshrl.u32 %v1114, 7
      %v1116 = vsub.s32 %v1113, %v1115
      %v1117 = vrot.slane %v1089, %v1116
      %v1118 = vcombine.high %v1096, %v1096
      %v1119 = vcombine.high %v1103, %v1103
      %v1120 = vcombine.high %v1110, %v1110
      %v1121 = vcombine.high %v1117, %v1117
      %v1122 = vld [vmem:[%s2] sm:$0xff]
      %v1123 = vld [vmem:[%s2 + $0x8] sm:$0xff]
      %v1124 = vlaneseq
      %v1125 = vshrl.u32 %v1124, 7
      %v1126 = vsub.s32 0, %v1125
      %v1127 = vrot.slane %v361, %v1126
      %v1128 = vlaneseq
      %v1129 = vshrl.u32 %v1128, 7
      %v1130 = vsub.s32 0, %v1129
      %v1131 = vrot.slane %v375, %v1130
      %v1132 = vlaneseq
      %v1133 = vshrl.u32 %v1132, 7
      %v1134 = vsub.s32 0, %v1133
      %v1135 = vrot.slane %v383, %v1134
      %v1136 = vlaneseq
      %v1137 = vshrl.u32 %v1136, 7
      %v1138 = vsub.s32 0, %v1137
      %v1139 = vrot.slane %v385, %v1138
      %v1140 = vlaneseq
      %v1141 = vshrl.u32 %v1140, 7
      %v1142 = vsub.s32 0, %v1141
      %v1143 = vrot.slane %v368, %v1142
      %v1144 = vlaneseq
      %v1145 = vshrl.u32 %v1144, 7
      %v1146 = vsub.s32 0, %v1145
      %v1147 = vrot.slane %v382, %v1146
      %v1148 = vlaneseq
      %v1149 = vshrl.u32 %v1148, 7
      %v1150 = vsub.s32 0, %v1149
      %v1151 = vrot.slane %v384, %v1150
      %v1152 = vlaneseq
      %v1153 = vshrl.u32 %v1152, 7
      %v1154 = vsub.s32 0, %v1153
      %v1155 = vrot.slane %v386, %v1154
      %v1156 = vlaneseq
      %v1157 = vshrl.u32 %v1156, 7
      %v1158 = vsub.s32 0, %v1157
      %v1159 = vrot.slane %v410, %v1158
      %v1160 = vlaneseq
      %v1161 = vshrl.u32 %v1160, 7
      %v1162 = vsub.s32 0, %v1161
      %v1163 = vrot.slane %v424, %v1162
      %v1164 = vlaneseq
      %v1165 = vshrl.u32 %v1164, 7
      %v1166 = vsub.s32 0, %v1165
      %v1167 = vrot.slane %v432, %v1166
      %v1168 = vlaneseq
      %v1169 = vshrl.u32 %v1168, 7
      %v1170 = vsub.s32 0, %v1169
      %v1171 = vrot.slane %v434, %v1170
      %v1172 = vlaneseq
      %v1173 = vshrl.u32 %v1172, 7
      %v1174 = vsub.s32 0, %v1173
      %v1175 = vrot.slane %v417, %v1174
      %v1176 = vlaneseq
      %v1177 = vshrl.u32 %v1176, 7
      %v1178 = vsub.s32 0, %v1177
      %v1179 = vrot.slane %v431, %v1178
      %v1180 = vlaneseq
      %v1181 = vshrl.u32 %v1180, 7
      %v1182 = vsub.s32 0, %v1181
      %v1183 = vrot.slane %v433, %v1182
      %v1184 = vlaneseq
      %v1185 = vshrl.u32 %v1184, 7
      %v1186 = vsub.s32 0, %v1185
      %v1187 = vrot.slane %v435, %v1186
      %v1188 = vlaneseq
      %v1189 = vshrl.u32 %v1188, 7
      %v1190 = vsub.s32 0, %v1189
      %v1191 = vrot.slane %v459, %v1190
      %v1192 = vlaneseq
      %v1193 = vshrl.u32 %v1192, 7
      %v1194 = vsub.s32 0, %v1193
      %v1195 = vrot.slane %v473, %v1194
      %v1196 = vlaneseq
      %v1197 = vshrl.u32 %v1196, 7
      %v1198 = vsub.s32 0, %v1197
      %v1199 = vrot.slane %v481, %v1198
      %v1200 = vlaneseq
      %v1201 = vshrl.u32 %v1200, 7
      %v1202 = vsub.s32 0, %v1201
      %v1203 = vrot.slane %v483, %v1202
      %v1204 = vlaneseq
      %v1205 = vshrl.u32 %v1204, 7
      %v1206 = vsub.s32 0, %v1205
      %v1207 = vrot.slane %v466, %v1206
      %v1208 = vlaneseq
      %v1209 = vshrl.u32 %v1208, 7
      %v1210 = vsub.s32 0, %v1209
      %v1211 = vrot.slane %v480, %v1210
      %v1212 = vlaneseq
      %v1213 = vshrl.u32 %v1212, 7
      %v1214 = vsub.s32 0, %v1213
      %v1215 = vrot.slane %v482, %v1214
      %v1216 = vlaneseq
      %v1217 = vshrl.u32 %v1216, 7
      %v1218 = vsub.s32 0, %v1217
      %v1219 = vrot.slane %v484, %v1218
      %v1220 = vlaneseq
      %v1221 = vshrl.u32 %v1220, 7
      %v1222 = vsub.s32 0, %v1221
      %v1223 = vrot.slane %v508, %v1222
      %v1224 = vlaneseq
      %v1225 = vshrl.u32 %v1224, 7
      %v1226 = vsub.s32 0, %v1225
      %v1227 = vrot.slane %v522, %v1226
      %v1228 = vlaneseq
      %v1229 = vshrl.u32 %v1228, 7
      %v1230 = vsub.s32 0, %v1229
      %v1231 = vrot.slane %v530, %v1230
      %v1232 = vlaneseq
      %v1233 = vshrl.u32 %v1232, 7
      %v1234 = vsub.s32 0, %v1233
      %v1235 = vrot.slane %v532, %v1234
      %v1236 = vlaneseq
      %v1237 = vshrl.u32 %v1236, 7
      %v1238 = vsub.s32 0, %v1237
      %v1239 = vrot.slane %v515, %v1238
      %v1240 = vlaneseq
      %v1241 = vshrl.u32 %v1240, 7
      %v1242 = vsub.s32 0, %v1241
      %v1243 = vrot.slane %v529, %v1242
      %v1244 = vlaneseq
      %v1245 = vshrl.u32 %v1244, 7
      %v1246 = vsub.s32 0, %v1245
      %v1247 = vrot.slane %v531, %v1246
      %v1248 = vlaneseq
      %v1249 = vshrl.u32 %v1248, 7
      %v1250 = vsub.s32 0, %v1249
      %v1251 = vrot.slane %v533, %v1250
      %v1252 = vlaneseq
      %v1253 = vshrl.u32 %v1252, 7
      %v1254 = vsub.s32 0, %v1253
      %v1255 = vrot.slane %v557, %v1254
      %v1256 = vlaneseq
      %v1257 = vshrl.u32 %v1256, 7
      %v1258 = vsub.s32 0, %v1257
      %v1259 = vrot.slane %v571, %v1258
      %v1260 = vlaneseq
      %v1261 = vshrl.u32 %v1260, 7
      %v1262 = vsub.s32 0, %v1261
      %v1263 = vrot.slane %v579, %v1262
      %v1264 = vlaneseq
      %v1265 = vshrl.u32 %v1264, 7
      %v1266 = vsub.s32 0, %v1265
      %v1267 = vrot.slane %v581, %v1266
      %v1268 = vlaneseq
      %v1269 = vshrl.u32 %v1268, 7
      %v1270 = vsub.s32 0, %v1269
      %v1271 = vrot.slane %v564, %v1270
      %v1272 = vlaneseq
      %v1273 = vshrl.u32 %v1272, 7
      %v1274 = vsub.s32 0, %v1273
      %v1275 = vrot.slane %v578, %v1274
      %v1276 = vlaneseq
      %v1277 = vshrl.u32 %v1276, 7
      %v1278 = vsub.s32 0, %v1277
      %v1279 = vrot.slane %v580, %v1278
      %v1280 = vlaneseq
      %v1281 = vshrl.u32 %v1280, 7
      %v1282 = vsub.s32 0, %v1281
      %v1283 = vrot.slane %v582, %v1282
      %v1284 = vlaneseq
      %v1285 = vshrl.u32 %v1284, 7
      %v1286 = vsub.s32 0, %v1285
      %v1287 = vrot.slane %v606, %v1286
      %v1288 = vlaneseq
      %v1289 = vshrl.u32 %v1288, 7
      %v1290 = vsub.s32 0, %v1289
      %v1291 = vrot.slane %v620, %v1290
      %v1292 = vlaneseq
      %v1293 = vshrl.u32 %v1292, 7
      %v1294 = vsub.s32 0, %v1293
      %v1295 = vrot.slane %v628, %v1294
      %v1296 = vlaneseq
      %v1297 = vshrl.u32 %v1296, 7
      %v1298 = vsub.s32 0, %v1297
      %v1299 = vrot.slane %v630, %v1298
      %v1300 = vlaneseq
      %v1301 = vshrl.u32 %v1300, 7
      %v1302 = vsub.s32 0, %v1301
      %v1303 = vrot.slane %v613, %v1302
      %v1304 = vlaneseq
      %v1305 = vshrl.u32 %v1304, 7
      %v1306 = vsub.s32 0, %v1305
      %v1307 = vrot.slane %v627, %v1306
      %v1308 = vlaneseq
      %v1309 = vshrl.u32 %v1308, 7
      %v1310 = vsub.s32 0, %v1309
      %v1311 = vrot.slane %v629, %v1310
      %v1312 = vlaneseq
      %v1313 = vshrl.u32 %v1312, 7
      %v1314 = vsub.s32 0, %v1313
      %v1315 = vrot.slane %v631, %v1314
      %v1316 = vlaneseq
      %v1317 = vshrl.u32 %v1316, 7
      %v1318 = vsub.s32 0, %v1317
      %v1319 = vrot.slane %v655, %v1318
      %v1320 = vlaneseq
      %v1321 = vshrl.u32 %v1320, 7
      %v1322 = vsub.s32 0, %v1321
      %v1323 = vrot.slane %v669, %v1322
      %v1324 = vlaneseq
      %v1325 = vshrl.u32 %v1324, 7
      %v1326 = vsub.s32 0, %v1325
      %v1327 = vrot.slane %v677, %v1326
      %v1328 = vlaneseq
      %v1329 = vshrl.u32 %v1328, 7
      %v1330 = vsub.s32 0, %v1329
      %v1331 = vrot.slane %v679, %v1330
      %v1332 = vlaneseq
      %v1333 = vshrl.u32 %v1332, 7
      %v1334 = vsub.s32 0, %v1333
      %v1335 = vrot.slane %v662, %v1334
      %v1336 = vlaneseq
      %v1337 = vshrl.u32 %v1336, 7
      %v1338 = vsub.s32 0, %v1337
      %v1339 = vrot.slane %v676, %v1338
      %v1340 = vlaneseq
      %v1341 = vshrl.u32 %v1340, 7
      %v1342 = vsub.s32 0, %v1341
      %v1343 = vrot.slane %v678, %v1342
      %v1344 = vlaneseq
      %v1345 = vshrl.u32 %v1344, 7
      %v1346 = vsub.s32 0, %v1345
      %v1347 = vrot.slane %v680, %v1346
      %v1348 = vlaneseq
      %v1349 = vshrl.u32 %v1348, 7
      %v1350 = vsub.s32 0, %v1349
      %v1351 = vrot.slane %v704, %v1350
      %v1352 = vlaneseq
      %v1353 = vshrl.u32 %v1352, 7
      %v1354 = vsub.s32 0, %v1353
      %v1355 = vrot.slane %v718, %v1354
      %v1356 = vlaneseq
      %v1357 = vshrl.u32 %v1356, 7
      %v1358 = vsub.s32 0, %v1357
      %v1359 = vrot.slane %v726, %v1358
      %v1360 = vlaneseq
      %v1361 = vshrl.u32 %v1360, 7
      %v1362 = vsub.s32 0, %v1361
      %v1363 = vrot.slane %v728, %v1362
      %v1364 = vlaneseq
      %v1365 = vshrl.u32 %v1364, 7
      %v1366 = vsub.s32 0, %v1365
      %v1367 = vrot.slane %v711, %v1366
      %v1368 = vlaneseq
      %v1369 = vshrl.u32 %v1368, 7
      %v1370 = vsub.s32 0, %v1369
      %v1371 = vrot.slane %v725, %v1370
      %v1372 = vlaneseq
      %v1373 = vshrl.u32 %v1372, 7
      %v1374 = vsub.s32 0, %v1373
      %v1375 = vrot.slane %v727, %v1374
      %v1376 = vlaneseq
      %v1377 = vshrl.u32 %v1376, 7
      %v1378 = vsub.s32 0, %v1377
      %v1379 = vrot.slane %v729, %v1378
      %v1380 = vlaneseq
      %v1381 = vshrl.u32 %v1380, 7
      %v1382 = vsub.s32 0, %v1381
      %v1383 = vrot.slane %v753, %v1382
      %v1384 = vlaneseq
      %v1385 = vshrl.u32 %v1384, 7
      %v1386 = vsub.s32 0, %v1385
      %v1387 = vrot.slane %v767, %v1386
      %v1388 = vlaneseq
      %v1389 = vshrl.u32 %v1388, 7
      %v1390 = vsub.s32 0, %v1389
      %v1391 = vrot.slane %v775, %v1390
      %v1392 = vlaneseq
      %v1393 = vshrl.u32 %v1392, 7
      %v1394 = vsub.s32 0, %v1393
      %v1395 = vrot.slane %v777, %v1394
      %v1396 = vlaneseq
      %v1397 = vshrl.u32 %v1396, 7
      %v1398 = vsub.s32 0, %v1397
      %v1399 = vrot.slane %v760, %v1398
      %v1400 = vlaneseq
      %v1401 = vshrl.u32 %v1400, 7
      %v1402 = vsub.s32 0, %v1401
      %v1403 = vrot.slane %v774, %v1402
      %v1404 = vlaneseq
      %v1405 = vshrl.u32 %v1404, 7
      %v1406 = vsub.s32 0, %v1405
      %v1407 = vrot.slane %v776, %v1406
      %v1408 = vlaneseq
      %v1409 = vshrl.u32 %v1408, 7
      %v1410 = vsub.s32 0, %v1409
      %v1411 = vrot.slane %v778, %v1410
      %v1412 = vlaneseq
      %v1413 = vshrl.u32 %v1412, 7
      %v1414 = vsub.s32 0, %v1413
      %v1415 = vrot.slane %v802, %v1414
      %v1416 = vlaneseq
      %v1417 = vshrl.u32 %v1416, 7
      %v1418 = vsub.s32 0, %v1417
      %v1419 = vrot.slane %v816, %v1418
      %v1420 = vlaneseq
      %v1421 = vshrl.u32 %v1420, 7
      %v1422 = vsub.s32 0, %v1421
      %v1423 = vrot.slane %v824, %v1422
      %v1424 = vlaneseq
      %v1425 = vshrl.u32 %v1424, 7
      %v1426 = vsub.s32 0, %v1425
      %v1427 = vrot.slane %v826, %v1426
      %v1428 = vlaneseq
      %v1429 = vshrl.u32 %v1428, 7
      %v1430 = vsub.s32 0, %v1429
      %v1431 = vrot.slane %v809, %v1430
      %v1432 = vlaneseq
      %v1433 = vshrl.u32 %v1432, 7
      %v1434 = vsub.s32 0, %v1433
      %v1435 = vrot.slane %v823, %v1434
      %v1436 = vlaneseq
      %v1437 = vshrl.u32 %v1436, 7
      %v1438 = vsub.s32 0, %v1437
      %v1439 = vrot.slane %v825, %v1438
      %v1440 = vlaneseq
      %v1441 = vshrl.u32 %v1440, 7
      %v1442 = vsub.s32 0, %v1441
      %v1443 = vrot.slane %v827, %v1442
      %v1444 = vlaneseq
      %v1445 = vshrl.u32 %v1444, 7
      %v1446 = vsub.s32 0, %v1445
      %v1447 = vrot.slane %v851, %v1446
      %v1448 = vlaneseq
      %v1449 = vshrl.u32 %v1448, 7
      %v1450 = vsub.s32 0, %v1449
      %v1451 = vrot.slane %v865, %v1450
      %v1452 = vlaneseq
      %v1453 = vshrl.u32 %v1452, 7
      %v1454 = vsub.s32 0, %v1453
      %v1455 = vrot.slane %v873, %v1454
      %v1456 = vlaneseq
      %v1457 = vshrl.u32 %v1456, 7
      %v1458 = vsub.s32 0, %v1457
      %v1459 = vrot.slane %v875, %v1458
      %v1460 = vlaneseq
      %v1461 = vshrl.u32 %v1460, 7
      %v1462 = vsub.s32 0, %v1461
      %v1463 = vrot.slane %v858, %v1462
      %v1464 = vlaneseq
      %v1465 = vshrl.u32 %v1464, 7
      %v1466 = vsub.s32 0, %v1465
      %v1467 = vrot.slane %v872, %v1466
      %v1468 = vlaneseq
      %v1469 = vshrl.u32 %v1468, 7
      %v1470 = vsub.s32 0, %v1469
      %v1471 = vrot.slane %v874, %v1470
      %v1472 = vlaneseq
      %v1473 = vshrl.u32 %v1472, 7
      %v1474 = vsub.s32 0, %v1473
      %v1475 = vrot.slane %v876, %v1474
      %v1476 = vlaneseq
      %v1477 = vshrl.u32 %v1476, 7
      %v1478 = vsub.s32 0, %v1477
      %v1479 = vrot.slane %v900, %v1478
      %v1480 = vlaneseq
      %v1481 = vshrl.u32 %v1480, 7
      %v1482 = vsub.s32 0, %v1481
      %v1483 = vrot.slane %v914, %v1482
      %v1484 = vlaneseq
      %v1485 = vshrl.u32 %v1484, 7
      %v1486 = vsub.s32 0, %v1485
      %v1487 = vrot.slane %v922, %v1486
      %v1488 = vlaneseq
      %v1489 = vshrl.u32 %v1488, 7
      %v1490 = vsub.s32 0, %v1489
      %v1491 = vrot.slane %v924, %v1490
      %v1492 = vlaneseq
      %v1493 = vshrl.u32 %v1492, 7
      %v1494 = vsub.s32 0, %v1493
      %v1495 = vrot.slane %v907, %v1494
      %v1496 = vlaneseq
      %v1497 = vshrl.u32 %v1496, 7
      %v1498 = vsub.s32 0, %v1497
      %v1499 = vrot.slane %v921, %v1498
      %v1500 = vlaneseq
      %v1501 = vshrl.u32 %v1500, 7
      %v1502 = vsub.s32 0, %v1501
      %v1503 = vrot.slane %v923, %v1502
      %v1504 = vlaneseq
      %v1505 = vshrl.u32 %v1504, 7
      %v1506 = vsub.s32 0, %v1505
      %v1507 = vrot.slane %v925, %v1506
      %v1508 = vlaneseq
      %v1509 = vshrl.u32 %v1508, 7
      %v1510 = vsub.s32 0, %v1509
      %v1511 = vrot.slane %v949, %v1510
      %v1512 = vlaneseq
      %v1513 = vshrl.u32 %v1512, 7
      %v1514 = vsub.s32 0, %v1513
      %v1515 = vrot.slane %v963, %v1514
      %v1516 = vlaneseq
      %v1517 = vshrl.u32 %v1516, 7
      %v1518 = vsub.s32 0, %v1517
      %v1519 = vrot.slane %v971, %v1518
      %v1520 = vlaneseq
      %v1521 = vshrl.u32 %v1520, 7
      %v1522 = vsub.s32 0, %v1521
      %v1523 = vrot.slane %v973, %v1522
      %v1524 = vlaneseq
      %v1525 = vshrl.u32 %v1524, 7
      %v1526 = vsub.s32 0, %v1525
      %v1527 = vrot.slane %v956, %v1526
      %v1528 = vlaneseq
      %v1529 = vshrl.u32 %v1528, 7
      %v1530 = vsub.s32 0, %v1529
      %v1531 = vrot.slane %v970, %v1530
      %v1532 = vlaneseq
      %v1533 = vshrl.u32 %v1532, 7
      %v1534 = vsub.s32 0, %v1533
      %v1535 = vrot.slane %v972, %v1534
      %v1536 = vlaneseq
      %v1537 = vshrl.u32 %v1536, 7
      %v1538 = vsub.s32 0, %v1537
      %v1539 = vrot.slane %v974, %v1538
      %v1540 = vlaneseq
      %v1541 = vshrl.u32 %v1540, 7
      %v1542 = vsub.s32 0, %v1541
      %v1543 = vrot.slane %v998, %v1542
      %v1544 = vlaneseq
      %v1545 = vshrl.u32 %v1544, 7
      %v1546 = vsub.s32 0, %v1545
      %v1547 = vrot.slane %v1012, %v1546
      %v1548 = vlaneseq
      %v1549 = vshrl.u32 %v1548, 7
      %v1550 = vsub.s32 0, %v1549
      %v1551 = vrot.slane %v1020, %v1550
      %v1552 = vlaneseq
      %v1553 = vshrl.u32 %v1552, 7
      %v1554 = vsub.s32 0, %v1553
      %v1555 = vrot.slane %v1022, %v1554
      %v1556 = vlaneseq
      %v1557 = vshrl.u32 %v1556, 7
      %v1558 = vsub.s32 0, %v1557
      %v1559 = vrot.slane %v1005, %v1558
      %v1560 = vlaneseq
      %v1561 = vshrl.u32 %v1560, 7
      %v1562 = vsub.s32 0, %v1561
      %v1563 = vrot.slane %v1019, %v1562
      %v1564 = vlaneseq
      %v1565 = vshrl.u32 %v1564, 7
      %v1566 = vsub.s32 0, %v1565
      %v1567 = vrot.slane %v1021, %v1566
      %v1568 = vlaneseq
      %v1569 = vshrl.u32 %v1568, 7
      %v1570 = vsub.s32 0, %v1569
      %v1571 = vrot.slane %v1023, %v1570
      %v1572 = vlaneseq
      %v1573 = vshrl.u32 %v1572, 7
      %v1574 = vsub.s32 0, %v1573
      %v1575 = vrot.slane %v1047, %v1574
      %v1576 = vlaneseq
      %v1577 = vshrl.u32 %v1576, 7
      %v1578 = vsub.s32 0, %v1577
      %v1579 = vrot.slane %v1061, %v1578
      %v1580 = vlaneseq
      %v1581 = vshrl.u32 %v1580, 7
      %v1582 = vsub.s32 0, %v1581
      %v1583 = vrot.slane %v1069, %v1582
      %v1584 = vlaneseq
      %v1585 = vshrl.u32 %v1584, 7
      %v1586 = vsub.s32 0, %v1585
      %v1587 = vrot.slane %v1071, %v1586
      %v1588 = vlaneseq
      %v1589 = vshrl.u32 %v1588, 7
      %v1590 = vsub.s32 0, %v1589
      %v1591 = vrot.slane %v1054, %v1590
      %v1592 = vlaneseq
      %v1593 = vshrl.u32 %v1592, 7
      %v1594 = vsub.s32 0, %v1593
      %v1595 = vrot.slane %v1068, %v1594
      %v1596 = vlaneseq
      %v1597 = vshrl.u32 %v1596, 7
      %v1598 = vsub.s32 0, %v1597
      %v1599 = vrot.slane %v1070, %v1598
      %v1600 = vlaneseq
      %v1601 = vshrl.u32 %v1600, 7
      %v1602 = vsub.s32 0, %v1601
      %v1603 = vrot.slane %v1072, %v1602
      %v1604 = vlaneseq
      %v1605 = vshrl.u32 %v1604, 7
      %v1606 = vsub.s32 0, %v1605
      %v1607 = vrot.slane %v1096, %v1606
      %v1608 = vlaneseq
      %v1609 = vshrl.u32 %v1608, 7
      %v1610 = vsub.s32 0, %v1609
      %v1611 = vrot.slane %v1110, %v1610
      %v1612 = vlaneseq
      %v1613 = vshrl.u32 %v1612, 7
      %v1614 = vsub.s32 0, %v1613
      %v1615 = vrot.slane %v1118, %v1614
      %v1616 = vlaneseq
      %v1617 = vshrl.u32 %v1616, 7
      %v1618 = vsub.s32 0, %v1617
      %v1619 = vrot.slane %v1120, %v1618
      %v1620 = vlaneseq
      %v1621 = vshrl.u32 %v1620, 7
      %v1622 = vsub.s32 0, %v1621
      %v1623 = vrot.slane %v1103, %v1622
      %v1624 = vlaneseq
      %v1625 = vshrl.u32 %v1624, 7
      %v1626 = vsub.s32 0, %v1625
      %v1627 = vrot.slane %v1117, %v1626
      %v1628 = vlaneseq
      %v1629 = vshrl.u32 %v1628, 7
      %v1630 = vsub.s32 0, %v1629
      %v1631 = vrot.slane %v1119, %v1630
      %v1632 = vlaneseq
      %v1633 = vshrl.u32 %v1632, 7
      %v1634 = vsub.s32 0, %v1633
      %v1635 = vrot.slane %v1121, %v1634
      %v1764 = vmul.f32 %v1127, %v1122
      %v1765 = vmul.f32 %v1127, %v1123
      %v1766 = vmul.f32 %v1131, %v1122
      %v1767 = vmul.f32 %v1131, %v1123
      %v1768 = vmul.f32 %v1135, %v1122
      %v1769 = vmul.f32 %v1135, %v1123
      %v1770 = vmul.f32 %v1139, %v1122
      %v1771 = vmul.f32 %v1139, %v1123
      %v1772 = vmul.f32 %v1143, %v1122
      %v1773 = vmul.f32 %v1143, %v1123
      %v1774 = vmul.f32 %v1147, %v1122
      %v1775 = vmul.f32 %v1147, %v1123
      %v1776 = vmul.f32 %v1151, %v1122
      %v1777 = vmul.f32 %v1151, %v1123
      %v1778 = vmul.f32 %v1155, %v1122
      %v1779 = vmul.f32 %v1155, %v1123
      %v1780 = vmul.f32 %v1159, %v1122
      %v1781 = vmul.f32 %v1159, %v1123
      %v1782 = vmul.f32 %v1163, %v1122
      %v1783 = vmul.f32 %v1163, %v1123
      %v1784 = vmul.f32 %v1167, %v1122
      %v1785 = vmul.f32 %v1167, %v1123
      %v1786 = vmul.f32 %v1171, %v1122
      %v1787 = vmul.f32 %v1171, %v1123
      %v1788 = vmul.f32 %v1175, %v1122
      %v1789 = vmul.f32 %v1175, %v1123
      %v1790 = vmul.f32 %v1179, %v1122
      %v1791 = vmul.f32 %v1179, %v1123
      %v1792 = vmul.f32 %v1183, %v1122
      %v1793 = vmul.f32 %v1183, %v1123
      %v1794 = vmul.f32 %v1187, %v1122
      %v1795 = vmul.f32 %v1187, %v1123
      %v1796 = vmul.f32 %v1191, %v1122
      %v1797 = vmul.f32 %v1191, %v1123
      %v1798 = vmul.f32 %v1195, %v1122
      %v1799 = vmul.f32 %v1195, %v1123
      %v1800 = vmul.f32 %v1199, %v1122
      %v1801 = vmul.f32 %v1199, %v1123
      %v1802 = vmul.f32 %v1203, %v1122
      %v1803 = vmul.f32 %v1203, %v1123
      %v1804 = vmul.f32 %v1207, %v1122
      %v1805 = vmul.f32 %v1207, %v1123
      %v1806 = vmul.f32 %v1211, %v1122
      %v1807 = vmul.f32 %v1211, %v1123
      %v1808 = vmul.f32 %v1215, %v1122
      %v1809 = vmul.f32 %v1215, %v1123
      %v1810 = vmul.f32 %v1219, %v1122
      %v1811 = vmul.f32 %v1219, %v1123
      %v1812 = vmul.f32 %v1223, %v1122
      %v1813 = vmul.f32 %v1223, %v1123
      %v1814 = vmul.f32 %v1227, %v1122
      %v1815 = vmul.f32 %v1227, %v1123
      %v1816 = vmul.f32 %v1231, %v1122
      %v1817 = vmul.f32 %v1231, %v1123
      %v1818 = vmul.f32 %v1235, %v1122
      %v1819 = vmul.f32 %v1235, %v1123
      %v1820 = vmul.f32 %v1239, %v1122
      %v1821 = vmul.f32 %v1239, %v1123
      %v1822 = vmul.f32 %v1243, %v1122
      %v1823 = vmul.f32 %v1243, %v1123
      %v1824 = vmul.f32 %v1247, %v1122
      %v1825 = vmul.f32 %v1247, %v1123
      %v1826 = vmul.f32 %v1251, %v1122
      %v1827 = vmul.f32 %v1251, %v1123
      %v1828 = vmul.f32 %v1255, %v1122
      %v1829 = vmul.f32 %v1255, %v1123
      %v1830 = vmul.f32 %v1259, %v1122
      %v1831 = vmul.f32 %v1259, %v1123
      %v1832 = vmul.f32 %v1263, %v1122
      %v1833 = vmul.f32 %v1263, %v1123
      %v1834 = vmul.f32 %v1267, %v1122
      %v1835 = vmul.f32 %v1267, %v1123
      %v1836 = vmul.f32 %v1271, %v1122
      %v1837 = vmul.f32 %v1271, %v1123
      %v1838 = vmul.f32 %v1275, %v1122
      %v1839 = vmul.f32 %v1275, %v1123
      %v1840 = vmul.f32 %v1279, %v1122
      %v1841 = vmul.f32 %v1279, %v1123
      %v1842 = vmul.f32 %v1283, %v1122
      %v1843 = vmul.f32 %v1283, %v1123
      %v1844 = vmul.f32 %v1287, %v1122
      %v1845 = vmul.f32 %v1287, %v1123
      %v1846 = vmul.f32 %v1291, %v1122
      %v1847 = vmul.f32 %v1291, %v1123
      %v1848 = vmul.f32 %v1295, %v1122
      %v1849 = vmul.f32 %v1295, %v1123
      %v1850 = vmul.f32 %v1299, %v1122
      %v1851 = vmul.f32 %v1299, %v1123
      %v1852 = vmul.f32 %v1303, %v1122
      %v1853 = vmul.f32 %v1303, %v1123
      %v1854 = vmul.f32 %v1307, %v1122
      %v1855 = vmul.f32 %v1307, %v1123
      %v1856 = vmul.f32 %v1311, %v1122
      %v1857 = vmul.f32 %v1311, %v1123
      %v1858 = vmul.f32 %v1315, %v1122
      %v1859 = vmul.f32 %v1315, %v1123
      %v1860 = vmul.f32 %v1319, %v1122
      %v1861 = vmul.f32 %v1319, %v1123
      %v1862 = vmul.f32 %v1323, %v1122
      %v1863 = vmul.f32 %v1323, %v1123
      %v1864 = vmul.f32 %v1327, %v1122
      %v1865 = vmul.f32 %v1327, %v1123
      %v1866 = vmul.f32 %v1331, %v1122
      %v1867 = vmul.f32 %v1331, %v1123
      %v1868 = vmul.f32 %v1335, %v1122
      %v1869 = vmul.f32 %v1335, %v1123
      %v1870 = vmul.f32 %v1339, %v1122
      %v1871 = vmul.f32 %v1339, %v1123
      %v1872 = vmul.f32 %v1343, %v1122
      %v1873 = vmul.f32 %v1343, %v1123
      %v1874 = vmul.f32 %v1347, %v1122
      %v1875 = vmul.f32 %v1347, %v1123
      %v1876 = vmul.f32 %v1351, %v1122
      %v1877 = vmul.f32 %v1351, %v1123
      %v1878 = vmul.f32 %v1355, %v1122
      %v1879 = vmul.f32 %v1355, %v1123
      %v1880 = vmul.f32 %v1359, %v1122
      %v1881 = vmul.f32 %v1359, %v1123
      %v1882 = vmul.f32 %v1363, %v1122
      %v1883 = vmul.f32 %v1363, %v1123
      %v1884 = vmul.f32 %v1367, %v1122
      %v1885 = vmul.f32 %v1367, %v1123
      %v1886 = vmul.f32 %v1371, %v1122
      %v1887 = vmul.f32 %v1371, %v1123
      %v1888 = vmul.f32 %v1375, %v1122
      %v1889 = vmul.f32 %v1375, %v1123
      %v1890 = vmul.f32 %v1379, %v1122
      %v1891 = vmul.f32 %v1379, %v1123
      %v1892 = vmul.f32 %v1383, %v1122
      %v1893 = vmul.f32 %v1383, %v1123
      %v1894 = vmul.f32 %v1387, %v1122
      %v1895 = vmul.f32 %v1387, %v1123
      %v1896 = vmul.f32 %v1391, %v1122
      %v1897 = vmul.f32 %v1391, %v1123
      %v1898 = vmul.f32 %v1395, %v1122
      %v1899 = vmul.f32 %v1395, %v1123
      %v1900 = vmul.f32 %v1399, %v1122
      %v1901 = vmul.f32 %v1399, %v1123
      %v1902 = vmul.f32 %v1403, %v1122
      %v1903 = vmul.f32 %v1403, %v1123
      %v1904 = vmul.f32 %v1407, %v1122
      %v1905 = vmul.f32 %v1407, %v1123
      %v1906 = vmul.f32 %v1411, %v1122
      %v1907 = vmul.f32 %v1411, %v1123
      %v1908 = vmul.f32 %v1415, %v1122
      %v1909 = vmul.f32 %v1415, %v1123
      %v1910 = vmul.f32 %v1419, %v1122
      %v1911 = vmul.f32 %v1419, %v1123
      %v1912 = vmul.f32 %v1423, %v1122
      %v1913 = vmul.f32 %v1423, %v1123
      %v1914 = vmul.f32 %v1427, %v1122
      %v1915 = vmul.f32 %v1427, %v1123
      %v1916 = vmul.f32 %v1431, %v1122
      %v1917 = vmul.f32 %v1431, %v1123
      %v1918 = vmul.f32 %v1435, %v1122
      %v1919 = vmul.f32 %v1435, %v1123
      %v1920 = vmul.f32 %v1439, %v1122
      %v1921 = vmul.f32 %v1439, %v1123
      %v1922 = vmul.f32 %v1443, %v1122
      %v1923 = vmul.f32 %v1443, %v1123
      %v1924 = vmul.f32 %v1447, %v1122
      %v1925 = vmul.f32 %v1447, %v1123
      %v1926 = vmul.f32 %v1451, %v1122
      %v1927 = vmul.f32 %v1451, %v1123
      %v1928 = vmul.f32 %v1455, %v1122
      %v1929 = vmul.f32 %v1455, %v1123
      %v1930 = vmul.f32 %v1459, %v1122
      %v1931 = vmul.f32 %v1459, %v1123
      %v1932 = vmul.f32 %v1463, %v1122
      %v1933 = vmul.f32 %v1463, %v1123
      %v1934 = vmul.f32 %v1467, %v1122
      %v1935 = vmul.f32 %v1467, %v1123
      %v1936 = vmul.f32 %v1471, %v1122
      %v1937 = vmul.f32 %v1471, %v1123
      %v1938 = vmul.f32 %v1475, %v1122
      %v1939 = vmul.f32 %v1475, %v1123
      %v1940 = vmul.f32 %v1479, %v1122
      %v1941 = vmul.f32 %v1479, %v1123
      %v1942 = vmul.f32 %v1483, %v1122
      %v1943 = vmul.f32 %v1483, %v1123
      %v1944 = vmul.f32 %v1487, %v1122
      %v1945 = vmul.f32 %v1487, %v1123
      %v1946 = vmul.f32 %v1491, %v1122
      %v1947 = vmul.f32 %v1491, %v1123
      %v1948 = vmul.f32 %v1495, %v1122
      %v1949 = vmul.f32 %v1495, %v1123
      %v1950 = vmul.f32 %v1499, %v1122
      %v1951 = vmul.f32 %v1499, %v1123
      %v1952 = vmul.f32 %v1503, %v1122
      %v1953 = vmul.f32 %v1503, %v1123
      %v1954 = vmul.f32 %v1507, %v1122
      %v1955 = vmul.f32 %v1507, %v1123
      %v1956 = vmul.f32 %v1511, %v1122
      %v1957 = vmul.f32 %v1511, %v1123
      %v1958 = vmul.f32 %v1515, %v1122
      %v1959 = vmul.f32 %v1515, %v1123
      %v1960 = vmul.f32 %v1519, %v1122
      %v1961 = vmul.f32 %v1519, %v1123
      %v1962 = vmul.f32 %v1523, %v1122
      %v1963 = vmul.f32 %v1523, %v1123
      %v1964 = vmul.f32 %v1527, %v1122
      %v1965 = vmul.f32 %v1527, %v1123
      %v1966 = vmul.f32 %v1531, %v1122
      %v1967 = vmul.f32 %v1531, %v1123
      %v1968 = vmul.f32 %v1535, %v1122
      %v1969 = vmul.f32 %v1535, %v1123
      %v1970 = vmul.f32 %v1539, %v1122
      %v1971 = vmul.f32 %v1539, %v1123
      %v1972 = vmul.f32 %v1543, %v1122
      %v1973 = vmul.f32 %v1543, %v1123
      %v1974 = vmul.f32 %v1547, %v1122
      %v1975 = vmul.f32 %v1547, %v1123
      %v1976 = vmul.f32 %v1551, %v1122
      %v1977 = vmul.f32 %v1551, %v1123
      %v1978 = vmul.f32 %v1555, %v1122
      %v1979 = vmul.f32 %v1555, %v1123
      %v1980 = vmul.f32 %v1559, %v1122
      %v1981 = vmul.f32 %v1559, %v1123
      %v1982 = vmul.f32 %v1563, %v1122
      %v1983 = vmul.f32 %v1563, %v1123
      %v1984 = vmul.f32 %v1567, %v1122
      %v1985 = vmul.f32 %v1567, %v1123
      %v1986 = vmul.f32 %v1571, %v1122
      %v1987 = vmul.f32 %v1571, %v1123
      %v1988 = vmul.f32 %v1575, %v1122
      %v1989 = vmul.f32 %v1575, %v1123
      %v1990 = vmul.f32 %v1579, %v1122
      %v1991 = vmul.f32 %v1579, %v1123
      %v1992 = vmul.f32 %v1583, %v1122
      %v1993 = vmul.f32 %v1583, %v1123
      %v1994 = vmul.f32 %v1587, %v1122
      %v1995 = vmul.f32 %v1587, %v1123
      %v1996 = vmul.f32 %v1591, %v1122
      %v1997 = vmul.f32 %v1591, %v1123
      %v1998 = vmul.f32 %v1595, %v1122
      %v1999 = vmul.f32 %v1595, %v1123
      %v2000 = vmul.f32 %v1599, %v1122
      %v2001 = vmul.f32 %v1599, %v1123
      %v2002 = vmul.f32 %v1603, %v1122
      %v2003 = vmul.f32 %v1603, %v1123
      %v2004 = vmul.f32 %v1607, %v1122
      %v2005 = vmul.f32 %v1607, %v1123
      %v2006 = vmul.f32 %v1611, %v1122
      %v2007 = vmul.f32 %v1611, %v1123
      %v2008 = vmul.f32 %v1615, %v1122
      %v2009 = vmul.f32 %v1615, %v1123
      %v2010 = vmul.f32 %v1619, %v1122
      %v2011 = vmul.f32 %v1619, %v1123
      %v2012 = vmul.f32 %v1623, %v1122
      %v2013 = vmul.f32 %v1623, %v1123
      %v2014 = vmul.f32 %v1627, %v1122
      %v2015 = vmul.f32 %v1627, %v1123
      %v2016 = vmul.f32 %v1631, %v1122
      %v2017 = vmul.f32 %v1631, %v1123
      %v2018 = vmul.f32 %v1635, %v1122
      %v2019 = vmul.f32 %v1635, %v1123
      %v2020 = vmul.f32 %v1764, 1.442695
      %v2021 = vpow.pop %v2020
      %v2022 = vmul.f32 %v1765, 1.442695
      %v2023 = vpow.pop %v2022
      %v2024 = vmul.f32 %v1766, 1.442695
      %v2025 = vpow.pop %v2024
      %v2026 = vmul.f32 %v1767, 1.442695
      %v2027 = vpow.pop %v2026
      %v2028 = vmul.f32 %v1768, 1.442695
      %v2029 = vpow.pop %v2028
      %v2030 = vmul.f32 %v1769, 1.442695
      %v2031 = vpow.pop %v2030
      %v2032 = vmul.f32 %v1770, 1.442695
      %v2033 = vpow.pop %v2032
      %v2034 = vmul.f32 %v1771, 1.442695
      %v2035 = vpow.pop %v2034
      %v2036 = vmul.f32 %v1772, 1.442695
      %v2037 = vpow.pop %v2036
      %v2038 = vmul.f32 %v1773, 1.442695
      %v2039 = vpow.pop %v2038
      %v2040 = vmul.f32 %v1774, 1.442695
      %v2041 = vpow.pop %v2040
      %v2042 = vmul.f32 %v1775, 1.442695
      %v2043 = vpow.pop %v2042
      %v2044 = vmul.f32 %v1776, 1.442695
      %v2045 = vpow.pop %v2044
      %v2046 = vmul.f32 %v1777, 1.442695
      %v2047 = vpow.pop %v2046
      %v2048 = vmul.f32 %v1778, 1.442695
      %v2049 = vpow.pop %v2048
      %v2050 = vmul.f32 %v1779, 1.442695
      %v2051 = vpow.pop %v2050
      %v2052 = vmul.f32 %v1780, 1.442695
      %v2053 = vpow.pop %v2052
      %v2054 = vmul.f32 %v1781, 1.442695
      %v2055 = vpow.pop %v2054
      %v2056 = vmul.f32 %v1782, 1.442695
      %v2057 = vpow.pop %v2056
      %v2058 = vmul.f32 %v1783, 1.442695
      %v2059 = vpow.pop %v2058
      %v2060 = vmul.f32 %v1784, 1.442695
      %v2061 = vpow.pop %v2060
      %v2062 = vmul.f32 %v1785, 1.442695
      %v2063 = vpow.pop %v2062
      %v2064 = vmul.f32 %v1786, 1.442695
      %v2065 = vpow.pop %v2064
      %v2066 = vmul.f32 %v1787, 1.442695
      %v2067 = vpow.pop %v2066
      %v2068 = vmul.f32 %v1788, 1.442695
      %v2069 = vpow.pop %v2068
      %v2070 = vmul.f32 %v1789, 1.442695
      %v2071 = vpow.pop %v2070
      %v2072 = vmul.f32 %v1790, 1.442695
      %v2073 = vpow.pop %v2072
      %v2074 = vmul.f32 %v1791, 1.442695
      %v2075 = vpow.pop %v2074
      %v2076 = vmul.f32 %v1792, 1.442695
      %v2077 = vpow.pop %v2076
      %v2078 = vmul.f32 %v1793, 1.442695
      %v2079 = vpow.pop %v2078
      %v2080 = vmul.f32 %v1794, 1.442695
      %v2081 = vpow.pop %v2080
      %v2082 = vmul.f32 %v1795, 1.442695
      %v2083 = vpow.pop %v2082
      %v2084 = vmul.f32 %v1796, 1.442695
      %v2085 = vpow.pop %v2084
      %v2086 = vmul.f32 %v1797, 1.442695
      %v2087 = vpow.pop %v2086
      %v2088 = vmul.f32 %v1798, 1.442695
      %v2089 = vpow.pop %v2088
      %v2090 = vmul.f32 %v1799, 1.442695
      %v2091 = vpow.pop %v2090
      %v2092 = vmul.f32 %v1800, 1.442695
      %v2093 = vpow.pop %v2092
      %v2094 = vmul.f32 %v1801, 1.442695
      %v2095 = vpow.pop %v2094
      %v2096 = vmul.f32 %v1802, 1.442695
      %v2097 = vpow.pop %v2096
      %v2098 = vmul.f32 %v1803, 1.442695
      %v2099 = vpow.pop %v2098
      %v2100 = vmul.f32 %v1804, 1.442695
      %v2101 = vpow.pop %v2100
      %v2102 = vmul.f32 %v1805, 1.442695
      %v2103 = vpow.pop %v2102
      %v2104 = vmul.f32 %v1806, 1.442695
      %v2105 = vpow.pop %v2104
      %v2106 = vmul.f32 %v1807, 1.442695
      %v2107 = vpow.pop %v2106
      %v2108 = vmul.f32 %v1808, 1.442695
      %v2109 = vpow.pop %v2108
      %v2110 = vmul.f32 %v1809, 1.442695
      %v2111 = vpow.pop %v2110
      %v2112 = vmul.f32 %v1810, 1.442695
      %v2113 = vpow.pop %v2112
      %v2114 = vmul.f32 %v1811, 1.442695
      %v2115 = vpow.pop %v2114
      %v2116 = vmul.f32 %v1812, 1.442695
      %v2117 = vpow.pop %v2116
      %v2118 = vmul.f32 %v1813, 1.442695
      %v2119 = vpow.pop %v2118
      %v2120 = vmul.f32 %v1814, 1.442695
      %v2121 = vpow.pop %v2120
      %v2122 = vmul.f32 %v1815, 1.442695
      %v2123 = vpow.pop %v2122
      %v2124 = vmul.f32 %v1816, 1.442695
      %v2125 = vpow.pop %v2124
      %v2126 = vmul.f32 %v1817, 1.442695
      %v2127 = vpow.pop %v2126
      %v2128 = vmul.f32 %v1818, 1.442695
      %v2129 = vpow.pop %v2128
      %v2130 = vmul.f32 %v1819, 1.442695
      %v2131 = vpow.pop %v2130
      %v2132 = vmul.f32 %v1820, 1.442695
      %v2133 = vpow.pop %v2132
      %v2134 = vmul.f32 %v1821, 1.442695
      %v2135 = vpow.pop %v2134
      %v2136 = vmul.f32 %v1822, 1.442695
      %v2137 = vpow.pop %v2136
      %v2138 = vmul.f32 %v1823, 1.442695
      %v2139 = vpow.pop %v2138
      %v2140 = vmul.f32 %v1824, 1.442695
      %v2141 = vpow.pop %v2140
      %v2142 = vmul.f32 %v1825, 1.442695
      %v2143 = vpow.pop %v2142
      %v2144 = vmul.f32 %v1826, 1.442695
      %v2145 = vpow.pop %v2144
      %v2146 = vmul.f32 %v1827, 1.442695
      %v2147 = vpow.pop %v2146
      %v2148 = vmul.f32 %v1828, 1.442695
      %v2149 = vpow.pop %v2148
      %v2150 = vmul.f32 %v1829, 1.442695
      %v2151 = vpow.pop %v2150
      %v2152 = vmul.f32 %v1830, 1.442695
      %v2153 = vpow.pop %v2152
      %v2154 = vmul.f32 %v1831, 1.442695
      %v2155 = vpow.pop %v2154
      %v2156 = vmul.f32 %v1832, 1.442695
      %v2157 = vpow.pop %v2156
      %v2158 = vmul.f32 %v1833, 1.442695
      %v2159 = vpow.pop %v2158
      %v2160 = vmul.f32 %v1834, 1.442695
      %v2161 = vpow.pop %v2160
      %v2162 = vmul.f32 %v1835, 1.442695
      %v2163 = vpow.pop %v2162
      %v2164 = vmul.f32 %v1836, 1.442695
      %v2165 = vpow.pop %v2164
      %v2166 = vmul.f32 %v1837, 1.442695
      %v2167 = vpow.pop %v2166
      %v2168 = vmul.f32 %v1838, 1.442695
      %v2169 = vpow.pop %v2168
      %v2170 = vmul.f32 %v1839, 1.442695
      %v2171 = vpow.pop %v2170
      %v2172 = vmul.f32 %v1840, 1.442695
      %v2173 = vpow.pop %v2172
      %v2174 = vmul.f32 %v1841, 1.442695
      %v2175 = vpow.pop %v2174
      %v2176 = vmul.f32 %v1842, 1.442695
      %v2177 = vpow.pop %v2176
      %v2178 = vmul.f32 %v1843, 1.442695
      %v2179 = vpow.pop %v2178
      %v2180 = vmul.f32 %v1844, 1.442695
      %v2181 = vpow.pop %v2180
      %v2182 = vmul.f32 %v1845, 1.442695
      %v2183 = vpow.pop %v2182
      %v2184 = vmul.f32 %v1846, 1.442695
      %v2185 = vpow.pop %v2184
      %v2186 = vmul.f32 %v1847, 1.442695
      %v2187 = vpow.pop %v2186
      %v2188 = vmul.f32 %v1848, 1.442695
      %v2189 = vpow.pop %v2188
      %v2190 = vmul.f32 %v1849, 1.442695
      %v2191 = vpow.pop %v2190
      %v2192 = vmul.f32 %v1850, 1.442695
      %v2193 = vpow.pop %v2192
      %v2194 = vmul.f32 %v1851, 1.442695
      %v2195 = vpow.pop %v2194
      %v2196 = vmul.f32 %v1852, 1.442695
      %v2197 = vpow.pop %v2196
      %v2198 = vmul.f32 %v1853, 1.442695
      %v2199 = vpow.pop %v2198
      %v2200 = vmul.f32 %v1854, 1.442695
      %v2201 = vpow.pop %v2200
      %v2202 = vmul.f32 %v1855, 1.442695
      %v2203 = vpow.pop %v2202
      %v2204 = vmul.f32 %v1856, 1.442695
      %v2205 = vpow.pop %v2204
      %v2206 = vmul.f32 %v1857, 1.442695
      %v2207 = vpow.pop %v2206
      %v2208 = vmul.f32 %v1858, 1.442695
      %v2209 = vpow.pop %v2208
      %v2210 = vmul.f32 %v1859, 1.442695
      %v2211 = vpow.pop %v2210
      %v2212 = vmul.f32 %v1860, 1.442695
      %v2213 = vpow.pop %v2212
      %v2214 = vmul.f32 %v1861, 1.442695
      %v2215 = vpow.pop %v2214
      %v2216 = vmul.f32 %v1862, 1.442695
      %v2217 = vpow.pop %v2216
      %v2218 = vmul.f32 %v1863, 1.442695
      %v2219 = vpow.pop %v2218
      %v2220 = vmul.f32 %v1864, 1.442695
      %v2221 = vpow.pop %v2220
      %v2222 = vmul.f32 %v1865, 1.442695
      %v2223 = vpow.pop %v2222
      %v2224 = vmul.f32 %v1866, 1.442695
      %v2225 = vpow.pop %v2224
      %v2226 = vmul.f32 %v1867, 1.442695
      %v2227 = vpow.pop %v2226
      %v2228 = vmul.f32 %v1868, 1.442695
      %v2229 = vpow.pop %v2228
      %v2230 = vmul.f32 %v1869, 1.442695
      %v2231 = vpow.pop %v2230
      %v2232 = vmul.f32 %v1870, 1.442695
      %v2233 = vpow.pop %v2232
      %v2234 = vmul.f32 %v1871, 1.442695
      %v2235 = vpow.pop %v2234
      %v2236 = vmul.f32 %v1872, 1.442695
      %v2237 = vpow.pop %v2236
      %v2238 = vmul.f32 %v1873, 1.442695
      %v2239 = vpow.pop %v2238
      %v2240 = vmul.f32 %v1874, 1.442695
      %v2241 = vpow.pop %v2240
      %v2242 = vmul.f32 %v1875, 1.442695
      %v2243 = vpow.pop %v2242
      %v2244 = vmul.f32 %v1876, 1.442695
      %v2245 = vpow.pop %v2244
      %v2246 = vmul.f32 %v1877, 1.442695
      %v2247 = vpow.pop %v2246
      %v2248 = vmul.f32 %v1878, 1.442695
      %v2249 = vpow.pop %v2248
      %v2250 = vmul.f32 %v1879, 1.442695
      %v2251 = vpow.pop %v2250
      %v2252 = vmul.f32 %v1880, 1.442695
      %v2253 = vpow.pop %v2252
      %v2254 = vmul.f32 %v1881, 1.442695
      %v2255 = vpow.pop %v2254
      %v2256 = vmul.f32 %v1882, 1.442695
      %v2257 = vpow.pop %v2256
      %v2258 = vmul.f32 %v1883, 1.442695
      %v2259 = vpow.pop %v2258
      %v2260 = vmul.f32 %v1884, 1.442695
      %v2261 = vpow.pop %v2260
      %v2262 = vmul.f32 %v1885, 1.442695
      %v2263 = vpow.pop %v2262
      %v2264 = vmul.f32 %v1886, 1.442695
      %v2265 = vpow.pop %v2264
      %v2266 = vmul.f32 %v1887, 1.442695
      %v2267 = vpow.pop %v2266
      %v2268 = vmul.f32 %v1888, 1.442695
      %v2269 = vpow.pop %v2268
      %v2270 = vmul.f32 %v1889, 1.442695
      %v2271 = vpow.pop %v2270
      %v2272 = vmul.f32 %v1890, 1.442695
      %v2273 = vpow.pop %v2272
      %v2274 = vmul.f32 %v1891, 1.442695
      %v2275 = vpow.pop %v2274
      %v2276 = vmul.f32 %v1892, 1.442695
      %v2277 = vpow.pop %v2276
      %v2278 = vmul.f32 %v1893, 1.442695
      %v2279 = vpow.pop %v2278
      %v2280 = vmul.f32 %v1894, 1.442695
      %v2281 = vpow.pop %v2280
      %v2282 = vmul.f32 %v1895, 1.442695
      %v2283 = vpow.pop %v2282
      %v2284 = vmul.f32 %v1896, 1.442695
      %v2285 = vpow.pop %v2284
      %v2286 = vmul.f32 %v1897, 1.442695
      %v2287 = vpow.pop %v2286
      %v2288 = vmul.f32 %v1898, 1.442695
      %v2289 = vpow.pop %v2288
      %v2290 = vmul.f32 %v1899, 1.442695
      %v2291 = vpow.pop %v2290
      %v2292 = vmul.f32 %v1900, 1.442695
      %v2293 = vpow.pop %v2292
      %v2294 = vmul.f32 %v1901, 1.442695
      %v2295 = vpow.pop %v2294
      %v2296 = vmul.f32 %v1902, 1.442695
      %v2297 = vpow.pop %v2296
      %v2298 = vmul.f32 %v1903, 1.442695
      %v2299 = vpow.pop %v2298
      %v2300 = vmul.f32 %v1904, 1.442695
      %v2301 = vpow.pop %v2300
      %v2302 = vmul.f32 %v1905, 1.442695
      %v2303 = vpow.pop %v2302
      %v2304 = vmul.f32 %v1906, 1.442695
      %v2305 = vpow.pop %v2304
      %v2306 = vmul.f32 %v1907, 1.442695
      %v2307 = vpow.pop %v2306
      %v2308 = vmul.f32 %v1908, 1.442695
      %v2309 = vpow.pop %v2308
      %v2310 = vmul.f32 %v1909, 1.442695
      %v2311 = vpow.pop %v2310
      %v2312 = vmul.f32 %v1910, 1.442695
      %v2313 = vpow.pop %v2312
      %v2314 = vmul.f32 %v1911, 1.442695
      %v2315 = vpow.pop %v2314
      %v2316 = vmul.f32 %v1912, 1.442695
      %v2317 = vpow.pop %v2316
      %v2318 = vmul.f32 %v1913, 1.442695
      %v2319 = vpow.pop %v2318
      %v2320 = vmul.f32 %v1914, 1.442695
      %v2321 = vpow.pop %v2320
      %v2322 = vmul.f32 %v1915, 1.442695
      %v2323 = vpow.pop %v2322
      %v2324 = vmul.f32 %v1916, 1.442695
      %v2325 = vpow.pop %v2324
      %v2326 = vmul.f32 %v1917, 1.442695
      %v2327 = vpow.pop %v2326
      %v2328 = vmul.f32 %v1918, 1.442695
      %v2329 = vpow.pop %v2328
      %v2330 = vmul.f32 %v1919, 1.442695
      %v2331 = vpow.pop %v2330
      %v2332 = vmul.f32 %v1920, 1.442695
      %v2333 = vpow.pop %v2332
      %v2334 = vmul.f32 %v1921, 1.442695
      %v2335 = vpow.pop %v2334
      %v2336 = vmul.f32 %v1922, 1.442695
      %v2337 = vpow.pop %v2336
      %v2338 = vmul.f32 %v1923, 1.442695
      %v2339 = vpow.pop %v2338
      %v2340 = vmul.f32 %v1924, 1.442695
      %v2341 = vpow.pop %v2340
      %v2342 = vmul.f32 %v1925, 1.442695
      %v2343 = vpow.pop %v2342
      %v2344 = vmul.f32 %v1926, 1.442695
      %v2345 = vpow.pop %v2344
      %v2346 = vmul.f32 %v1927, 1.442695
      %v2347 = vpow.pop %v2346
      %v2348 = vmul.f32 %v1928, 1.442695
      %v2349 = vpow.pop %v2348
      %v2350 = vmul.f32 %v1929, 1.442695
      %v2351 = vpow.pop %v2350
      %v2352 = vmul.f32 %v1930, 1.442695
      %v2353 = vpow.pop %v2352
      %v2354 = vmul.f32 %v1931, 1.442695
      %v2355 = vpow.pop %v2354
      %v2356 = vmul.f32 %v1932, 1.442695
      %v2357 = vpow.pop %v2356
      %v2358 = vmul.f32 %v1933, 1.442695
      %v2359 = vpow.pop %v2358
      %v2360 = vmul.f32 %v1934, 1.442695
      %v2361 = vpow.pop %v2360
      %v2362 = vmul.f32 %v1935, 1.442695
      %v2363 = vpow.pop %v2362
      %v2364 = vmul.f32 %v1936, 1.442695
      %v2365 = vpow.pop %v2364
      %v2366 = vmul.f32 %v1937, 1.442695
      %v2367 = vpow.pop %v2366
      %v2368 = vmul.f32 %v1938, 1.442695
      %v2369 = vpow.pop %v2368
      %v2370 = vmul.f32 %v1939, 1.442695
      %v2371 = vpow.pop %v2370
      %v2372 = vmul.f32 %v1940, 1.442695
      %v2373 = vpow.pop %v2372
      %v2374 = vmul.f32 %v1941, 1.442695
      %v2375 = vpow.pop %v2374
      %v2376 = vmul.f32 %v1942, 1.442695
      %v2377 = vpow.pop %v2376
      %v2378 = vmul.f32 %v1943, 1.442695
      %v2379 = vpow.pop %v2378
      %v2380 = vmul.f32 %v1944, 1.442695
      %v2381 = vpow.pop %v2380
      %v2382 = vmul.f32 %v1945, 1.442695
      %v2383 = vpow.pop %v2382
      %v2384 = vmul.f32 %v1946, 1.442695
      %v2385 = vpow.pop %v2384
      %v2386 = vmul.f32 %v1947, 1.442695
      %v2387 = vpow.pop %v2386
      %v2388 = vmul.f32 %v1948, 1.442695
      %v2389 = vpow.pop %v2388
      %v2390 = vmul.f32 %v1949, 1.442695
      %v2391 = vpow.pop %v2390
      %v2392 = vmul.f32 %v1950, 1.442695
      %v2393 = vpow.pop %v2392
      %v2394 = vmul.f32 %v1951, 1.442695
      %v2395 = vpow.pop %v2394
      %v2396 = vmul.f32 %v1952, 1.442695
      %v2397 = vpow.pop %v2396
      %v2398 = vmul.f32 %v1953, 1.442695
      %v2399 = vpow.pop %v2398
      %v2400 = vmul.f32 %v1954, 1.442695
      %v2401 = vpow.pop %v2400
      %v2402 = vmul.f32 %v1955, 1.442695
      %v2403 = vpow.pop %v2402
      %v2404 = vmul.f32 %v1956, 1.442695
      %v2405 = vpow.pop %v2404
      %v2406 = vmul.f32 %v1957, 1.442695
      %v2407 = vpow.pop %v2406
      %v2408 = vmul.f32 %v1958, 1.442695
      %v2409 = vpow.pop %v2408
      %v2410 = vmul.f32 %v1959, 1.442695
      %v2411 = vpow.pop %v2410
      %v2412 = vmul.f32 %v1960, 1.442695
      %v2413 = vpow.pop %v2412
      %v2414 = vmul.f32 %v1961, 1.442695
      %v2415 = vpow.pop %v2414
      %v2416 = vmul.f32 %v1962, 1.442695
      %v2417 = vpow.pop %v2416
      %v2418 = vmul.f32 %v1963, 1.442695
      %v2419 = vpow.pop %v2418
      %v2420 = vmul.f32 %v1964, 1.442695
      %v2421 = vpow.pop %v2420
      %v2422 = vmul.f32 %v1965, 1.442695
      %v2423 = vpow.pop %v2422
      %v2424 = vmul.f32 %v1966, 1.442695
      %v2425 = vpow.pop %v2424
      %v2426 = vmul.f32 %v1967, 1.442695
      %v2427 = vpow.pop %v2426
      %v2428 = vmul.f32 %v1968, 1.442695
      %v2429 = vpow.pop %v2428
      %v2430 = vmul.f32 %v1969, 1.442695
      %v2431 = vpow.pop %v2430
      %v2432 = vmul.f32 %v1970, 1.442695
      %v2433 = vpow.pop %v2432
      %v2434 = vmul.f32 %v1971, 1.442695
      %v2435 = vpow.pop %v2434
      %v2436 = vmul.f32 %v1972, 1.442695
      %v2437 = vpow.pop %v2436
      %v2438 = vmul.f32 %v1973, 1.442695
      %v2439 = vpow.pop %v2438
      %v2440 = vmul.f32 %v1974, 1.442695
      %v2441 = vpow.pop %v2440
      %v2442 = vmul.f32 %v1975, 1.442695
      %v2443 = vpow.pop %v2442
      %v2444 = vmul.f32 %v1976, 1.442695
      %v2445 = vpow.pop %v2444
      %v2446 = vmul.f32 %v1977, 1.442695
      %v2447 = vpow.pop %v2446
      %v2448 = vmul.f32 %v1978, 1.442695
      %v2449 = vpow.pop %v2448
      %v2450 = vmul.f32 %v1979, 1.442695
      %v2451 = vpow.pop %v2450
      %v2452 = vmul.f32 %v1980, 1.442695
      %v2453 = vpow.pop %v2452
      %v2454 = vmul.f32 %v1981, 1.442695
      %v2455 = vpow.pop %v2454
      %v2456 = vmul.f32 %v1982, 1.442695
      %v2457 = vpow.pop %v2456
      %v2458 = vmul.f32 %v1983, 1.442695
      %v2459 = vpow.pop %v2458
      %v2460 = vmul.f32 %v1984, 1.442695
      %v2461 = vpow.pop %v2460
      %v2462 = vmul.f32 %v1985, 1.442695
      %v2463 = vpow.pop %v2462
      %v2464 = vmul.f32 %v1986, 1.442695
      %v2465 = vpow.pop %v2464
      %v2466 = vmul.f32 %v1987, 1.442695
      %v2467 = vpow.pop %v2466
      %v2468 = vmul.f32 %v1988, 1.442695
      %v2469 = vpow.pop %v2468
      %v2470 = vmul.f32 %v1989, 1.442695
      %v2471 = vpow.pop %v2470
      %v2472 = vmul.f32 %v1990, 1.442695
      %v2473 = vpow.pop %v2472
      %v2474 = vmul.f32 %v1991, 1.442695
      %v2475 = vpow.pop %v2474
      %v2476 = vmul.f32 %v1992, 1.442695
      %v2477 = vpow.pop %v2476
      %v2478 = vmul.f32 %v1993, 1.442695
      %v2479 = vpow.pop %v2478
      %v2480 = vmul.f32 %v1994, 1.442695
      %v2481 = vpow.pop %v2480
      %v2482 = vmul.f32 %v1995, 1.442695
      %v2483 = vpow.pop %v2482
      %v2484 = vmul.f32 %v1996, 1.442695
      %v2485 = vpow.pop %v2484
      %v2486 = vmul.f32 %v1997, 1.442695
      %v2487 = vpow.pop %v2486
      %v2488 = vmul.f32 %v1998, 1.442695
      %v2489 = vpow.pop %v2488
      %v2490 = vmul.f32 %v1999, 1.442695
      %v2491 = vpow.pop %v2490
      %v2492 = vmul.f32 %v2000, 1.442695
      %v2493 = vpow.pop %v2492
      %v2494 = vmul.f32 %v2001, 1.442695
      %v2495 = vpow.pop %v2494
      %v2496 = vmul.f32 %v2002, 1.442695
      %v2497 = vpow.pop %v2496
      %v2498 = vmul.f32 %v2003, 1.442695
      %v2499 = vpow.pop %v2498
      %v2500 = vmul.f32 %v2004, 1.442695
      %v2501 = vpow.pop %v2500
      %v2502 = vmul.f32 %v2005, 1.442695
      %v2503 = vpow.pop %v2502
      %v2504 = vmul.f32 %v2006, 1.442695
      %v2505 = vpow.pop %v2504
      %v2506 = vmul.f32 %v2007, 1.442695
      %v2507 = vpow.pop %v2506
      %v2508 = vmul.f32 %v2008, 1.442695
      %v2509 = vpow.pop %v2508
      %v2510 = vmul.f32 %v2009, 1.442695
      %v2511 = vpow.pop %v2510
      %v2512 = vmul.f32 %v2010, 1.442695
      %v2513 = vpow.pop %v2512
      %v2514 = vmul.f32 %v2011, 1.442695
      %v2515 = vpow.pop %v2514
      %v2516 = vmul.f32 %v2012, 1.442695
      %v2517 = vpow.pop %v2516
      %v2518 = vmul.f32 %v2013, 1.442695
      %v2519 = vpow.pop %v2518
      %v2520 = vmul.f32 %v2014, 1.442695
      %v2521 = vpow.pop %v2520
      %v2522 = vmul.f32 %v2015, 1.442695
      %v2523 = vpow.pop %v2522
      %v2524 = vmul.f32 %v2016, 1.442695
      %v2525 = vpow.pop %v2524
      %v2526 = vmul.f32 %v2017, 1.442695
      %v2527 = vpow.pop %v2526
      %v2528 = vmul.f32 %v2018, 1.442695
      %v2529 = vpow.pop %v2528
      %v2530 = vmul.f32 %v2019, 1.442695
      %v2531 = vpow.pop %v2530
      %2532 = vst [vmem:[#allocation3] sm:$0xff] %v2021
      %2533 = vst [vmem:[#allocation3 + $0x8] sm:$0xff] %v2023
      %2534 = vst [vmem:[#allocation3 + $0x10] sm:$0xff] %v2025
      %2535 = vst [vmem:[#allocation3 + $0x18] sm:$0xff] %v2027
      %2536 = vst [vmem:[#allocation3 + $0x20] sm:$0xff] %v2029
      %2537 = vst [vmem:[#allocation3 + $0x28] sm:$0xff] %v2031
      %2538 = vst [vmem:[#allocation3 + $0x30] sm:$0xff] %v2033
      %2539 = vst [vmem:[#allocation3 + $0x38] sm:$0xff] %v2035
      %2540 = vst [vmem:[#allocation3 + $0x40] sm:$0xff] %v2037
      %2541 = vst [vmem:[#allocation3 + $0x48] sm:$0xff] %v2039
      %2542 = vst [vmem:[#allocation3 + $0x50] sm:$0xff] %v2041
      %2543 = vst [vmem:[#allocation3 + $0x58] sm:$0xff] %v2043
      %2544 = vst [vmem:[#allocation3 + $0x60] sm:$0xff] %v2045
      %2545 = vst [vmem:[#allocation3 + $0x68] sm:$0xff] %v2047
      %2546 = vst [vmem:[#allocation3 + $0x70] sm:$0xff] %v2049
      %2547 = vst [vmem:[#allocation3 + $0x78] sm:$0xff] %v2051
      %2548 = vst [vmem:[#allocation3 + $0x80] sm:$0xff] %v2053
      %2549 = vst [vmem:[#allocation3 + $0x88] sm:$0xff] %v2055
      %2550 = vst [vmem:[#allocation3 + $0x90] sm:$0xff] %v2057
      %2551 = vst [vmem:[#allocation3 + $0x98] sm:$0xff] %v2059
      %2552 = vst [vmem:[#allocation3 + $0xa0] sm:$0xff] %v2061
      %2553 = vst [vmem:[#allocation3 + $0xa8] sm:$0xff] %v2063
      %2554 = vst [vmem:[#allocation3 + $0xb0] sm:$0xff] %v2065
      %2555 = vst [vmem:[#allocation3 + $0xb8] sm:$0xff] %v2067
      %2556 = vst [vmem:[#allocation3 + $0xc0] sm:$0xff] %v2069
      %2557 = vst [vmem:[#allocation3 + $0xc8] sm:$0xff] %v2071
      %2558 = vst [vmem:[#allocation3 + $0xd0] sm:$0xff] %v2073
      %2559 = vst [vmem:[#allocation3 + $0xd8] sm:$0xff] %v2075
      %2560 = vst [vmem:[#allocation3 + $0xe0] sm:$0xff] %v2077
      %2561 = vst [vmem:[#allocation3 + $0xe8] sm:$0xff] %v2079
      %2562 = vst [vmem:[#allocation3 + $0xf0] sm:$0xff] %v2081
      %2563 = vst [vmem:[#allocation3 + $0xf8] sm:$0xff] %v2083
      %2564 = vst [vmem:[#allocation3 + $0x100] sm:$0xff] %v2085
      %2565 = vst [vmem:[#allocation3 + $0x108] sm:$0xff] %v2087
      %2566 = vst [vmem:[#allocation3 + $0x110] sm:$0xff] %v2089
      %2567 = vst [vmem:[#allocation3 + $0x118] sm:$0xff] %v2091
      %2568 = vst [vmem:[#allocation3 + $0x120] sm:$0xff] %v2093
      %2569 = vst [vmem:[#allocation3 + $0x128] sm:$0xff] %v2095
      %2570 = vst [vmem:[#allocation3 + $0x130] sm:$0xff] %v2097
      %2571 = vst [vmem:[#allocation3 + $0x138] sm:$0xff] %v2099
      %2572 = vst [vmem:[#allocation3 + $0x140] sm:$0xff] %v2101
      %2573 = vst [vmem:[#allocation3 + $0x148] sm:$0xff] %v2103
      %2574 = vst [vmem:[#allocation3 + $0x150] sm:$0xff] %v2105
      %2575 = vst [vmem:[#allocation3 + $0x158] sm:$0xff] %v2107
      %2576 = vst [vmem:[#allocation3 + $0x160] sm:$0xff] %v2109
      %2577 = vst [vmem:[#allocation3 + $0x168] sm:$0xff] %v2111
      %2578 = vst [vmem:[#allocation3 + $0x170] sm:$0xff] %v2113
      %2579 = vst [vmem:[#allocation3 + $0x178] sm:$0xff] %v2115
      %2580 = vst [vmem:[#allocation3 + $0x180] sm:$0xff] %v2117
      %2581 = vst [vmem:[#allocation3 + $0x188] sm:$0xff] %v2119
      %2582 = vst [vmem:[#allocation3 + $0x190] sm:$0xff] %v2121
      %2583 = vst [vmem:[#allocation3 + $0x198] sm:$0xff] %v2123
      %2584 = vst [vmem:[#allocation3 + $0x1a0] sm:$0xff] %v2125
      %2585 = vst [vmem:[#allocation3 + $0x1a8] sm:$0xff] %v2127
      %2586 = vst [vmem:[#allocation3 + $0x1b0] sm:$0xff] %v2129
      %2587 = vst [vmem:[#allocation3 + $0x1b8] sm:$0xff] %v2131
      %2588 = vst [vmem:[#allocation3 + $0x1c0] sm:$0xff] %v2133
      %2589 = vst [vmem:[#allocation3 + $0x1c8] sm:$0xff] %v2135
      %2590 = vst [vmem:[#allocation3 + $0x1d0] sm:$0xff] %v2137
      %2591 = vst [vmem:[#allocation3 + $0x1d8] sm:$0xff] %v2139
      %2592 = vst [vmem:[#allocation3 + $0x1e0] sm:$0xff] %v2141
      %2593 = vst [vmem:[#allocation3 + $0x1e8] sm:$0xff] %v2143
      %2594 = vst [vmem:[#allocation3 + $0x1f0] sm:$0xff] %v2145
      %2595 = vst [vmem:[#allocation3 + $0x1f8] sm:$0xff] %v2147
      %2596 = vst [vmem:[#allocation3 + $0x200] sm:$0xff] %v2149
      %2597 = vst [vmem:[#allocation3 + $0x208] sm:$0xff] %v2151
      %2598 = vst [vmem:[#allocation3 + $0x210] sm:$0xff] %v2153
      %2599 = vst [vmem:[#allocation3 + $0x218] sm:$0xff] %v2155
      %2600 = vst [vmem:[#allocation3 + $0x220] sm:$0xff] %v2157
      %2601 = vst [vmem:[#allocation3 + $0x228] sm:$0xff] %v2159
      %2602 = vst [vmem:[#allocation3 + $0x230] sm:$0xff] %v2161
      %2603 = vst [vmem:[#allocation3 + $0x238] sm:$0xff] %v2163
      %2604 = vst [vmem:[#allocation3 + $0x240] sm:$0xff] %v2165
      %2605 = vst [vmem:[#allocation3 + $0x248] sm:$0xff] %v2167
      %2606 = vst [vmem:[#allocation3 + $0x250] sm:$0xff] %v2169
      %2607 = vst [vmem:[#allocation3 + $0x258] sm:$0xff] %v2171
      %2608 = vst [vmem:[#allocation3 + $0x260] sm:$0xff] %v2173
      %2609 = vst [vmem:[#allocation3 + $0x268] sm:$0xff] %v2175
      %2610 = vst [vmem:[#allocation3 + $0x270] sm:$0xff] %v2177
      %2611 = vst [vmem:[#allocation3 + $0x278] sm:$0xff] %v2179
      %2612 = vst [vmem:[#allocation3 + $0x280] sm:$0xff] %v2181
      %2613 = vst [vmem:[#allocation3 + $0x288] sm:$0xff] %v2183
      %2614 = vst [vmem:[#allocation3 + $0x290] sm:$0xff] %v2185
      %2615 = vst [vmem:[#allocation3 + $0x298] sm:$0xff] %v2187
      %2616 = vst [vmem:[#allocation3 + $0x2a0] sm:$0xff] %v2189
      %2617 = vst [vmem:[#allocation3 + $0x2a8] sm:$0xff] %v2191
      %2618 = vst [vmem:[#allocation3 + $0x2b0] sm:$0xff] %v2193
      %2619 = vst [vmem:[#allocation3 + $0x2b8] sm:$0xff] %v2195
      %2620 = vst [vmem:[#allocation3 + $0x2c0] sm:$0xff] %v2197
      %2621 = vst [vmem:[#allocation3 + $0x2c8] sm:$0xff] %v2199
      %2622 = vst [vmem:[#allocation3 + $0x2d0] sm:$0xff] %v2201
      %2623 = vst [vmem:[#allocation3 + $0x2d8] sm:$0xff] %v2203
      %2624 = vst [vmem:[#allocation3 + $0x2e0] sm:$0xff] %v2205
      %2625 = vst [vmem:[#allocation3 + $0x2e8] sm:$0xff] %v2207
      %2626 = vst [vmem:[#allocation3 + $0x2f0] sm:$0xff] %v2209
      %2627 = vst [vmem:[#allocation3 + $0x2f8] sm:$0xff] %v2211
      %2628 = vst [vmem:[#allocation3 + $0x300] sm:$0xff] %v2213
      %2629 = vst [vmem:[#allocation3 + $0x308] sm:$0xff] %v2215
      %2630 = vst [vmem:[#allocation3 + $0x310] sm:$0xff] %v2217
      %2631 = vst [vmem:[#allocation3 + $0x318] sm:$0xff] %v2219
      %2632 = vst [vmem:[#allocation3 + $0x320] sm:$0xff] %v2221
      %2633 = vst [vmem:[#allocation3 + $0x328] sm:$0xff] %v2223
      %2634 = vst [vmem:[#allocation3 + $0x330] sm:$0xff] %v2225
      %2635 = vst [vmem:[#allocation3 + $0x338] sm:$0xff] %v2227
      %2636 = vst [vmem:[#allocation3 + $0x340] sm:$0xff] %v2229
      %2637 = vst [vmem:[#allocation3 + $0x348] sm:$0xff] %v2231
      %2638 = vst [vmem:[#allocation3 + $0x350] sm:$0xff] %v2233
      %2639 = vst [vmem:[#allocation3 + $0x358] sm:$0xff] %v2235
      %2640 = vst [vmem:[#allocation3 + $0x360] sm:$0xff] %v2237
      %2641 = vst [vmem:[#allocation3 + $0x368] sm:$0xff] %v2239
      %2642 = vst [vmem:[#allocation3 + $0x370] sm:$0xff] %v2241
      %2643 = vst [vmem:[#allocation3 + $0x378] sm:$0xff] %v2243
      %2644 = vst [vmem:[#allocation3 + $0x380] sm:$0xff] %v2245
      %2645 = vst [vmem:[#allocation3 + $0x388] sm:$0xff] %v2247
      %2646 = vst [vmem:[#allocation3 + $0x390] sm:$0xff] %v2249
      %2647 = vst [vmem:[#allocation3 + $0x398] sm:$0xff] %v2251
      %2648 = vst [vmem:[#allocation3 + $0x3a0] sm:$0xff] %v2253
      %2649 = vst [vmem:[#allocation3 + $0x3a8] sm:$0xff] %v2255
      %2650 = vst [vmem:[#allocation3 + $0x3b0] sm:$0xff] %v2257
      %2651 = vst [vmem:[#allocation3 + $0x3b8] sm:$0xff] %v2259
      %2652 = vst [vmem:[#allocation3 + $0x3c0] sm:$0xff] %v2261
      %2653 = vst [vmem:[#allocation3 + $0x3c8] sm:$0xff] %v2263
      %2654 = vst [vmem:[#allocation3 + $0x3d0] sm:$0xff] %v2265
      %2655 = vst [vmem:[#allocation3 + $0x3d8] sm:$0xff] %v2267
      %2656 = vst [vmem:[#allocation3 + $0x3e0] sm:$0xff] %v2269
      %2657 = vst [vmem:[#allocation3 + $0x3e8] sm:$0xff] %v2271
      %2658 = vst [vmem:[#allocation3 + $0x3f0] sm:$0xff] %v2273
      %2659 = vst [vmem:[#allocation3 + $0x3f8] sm:$0xff] %v2275
      %2660 = vst [vmem:[#allocation3 + $0x400] sm:$0xff] %v2277
      %2661 = vst [vmem:[#allocation3 + $0x408] sm:$0xff] %v2279
      %2662 = vst [vmem:[#allocation3 + $0x410] sm:$0xff] %v2281
      %2663 = vst [vmem:[#allocation3 + $0x418] sm:$0xff] %v2283
      %2664 = vst [vmem:[#allocation3 + $0x420] sm:$0xff] %v2285
      %2665 = vst [vmem:[#allocation3 + $0x428] sm:$0xff] %v2287
      %2666 = vst [vmem:[#allocation3 + $0x430] sm:$0xff] %v2289
      %2667 = vst [vmem:[#allocation3 + $0x438] sm:$0xff] %v2291
      %2668 = vst [vmem:[#allocation3 + $0x440] sm:$0xff] %v2293
      %2669 = vst [vmem:[#allocation3 + $0x448] sm:$0xff] %v2295
      %2670 = vst [vmem:[#allocation3 + $0x450] sm:$0xff] %v2297
      %2671 = vst [vmem:[#allocation3 + $0x458] sm:$0xff] %v2299
      %2672 = vst [vmem:[#allocation3 + $0x460] sm:$0xff] %v2301
      %2673 = vst [vmem:[#allocation3 + $0x468] sm:$0xff] %v2303
      %2674 = vst [vmem:[#allocation3 + $0x470] sm:$0xff] %v2305
      %2675 = vst [vmem:[#allocation3 + $0x478] sm:$0xff] %v2307
      %2676 = vst [vmem:[#allocation3 + $0x480] sm:$0xff] %v2309
      %2677 = vst [vmem:[#allocation3 + $0x488] sm:$0xff] %v2311
      %2678 = vst [vmem:[#allocation3 + $0x490] sm:$0xff] %v2313
      %2679 = vst [vmem:[#allocation3 + $0x498] sm:$0xff] %v2315
      %2680 = vst [vmem:[#allocation3 + $0x4a0] sm:$0xff] %v2317
      %2681 = vst [vmem:[#allocation3 + $0x4a8] sm:$0xff] %v2319
      %2682 = vst [vmem:[#allocation3 + $0x4b0] sm:$0xff] %v2321
      %2683 = vst [vmem:[#allocation3 + $0x4b8] sm:$0xff] %v2323
      %2684 = vst [vmem:[#allocation3 + $0x4c0] sm:$0xff] %v2325
      %2685 = vst [vmem:[#allocation3 + $0x4c8] sm:$0xff] %v2327
      %2686 = vst [vmem:[#allocation3 + $0x4d0] sm:$0xff] %v2329
      %2687 = vst [vmem:[#allocation3 + $0x4d8] sm:$0xff] %v2331
      %2688 = vst [vmem:[#allocation3 + $0x4e0] sm:$0xff] %v2333
      %2689 = vst [vmem:[#allocation3 + $0x4e8] sm:$0xff] %v2335
      %2690 = vst [vmem:[#allocation3 + $0x4f0] sm:$0xff] %v2337
      %2691 = vst [vmem:[#allocation3 + $0x4f8] sm:$0xff] %v2339
      %2692 = vst [vmem:[#allocation3 + $0x500] sm:$0xff] %v2341
      %2693 = vst [vmem:[#allocation3 + $0x508] sm:$0xff] %v2343
      %2694 = vst [vmem:[#allocation3 + $0x510] sm:$0xff] %v2345
      %2695 = vst [vmem:[#allocation3 + $0x518] sm:$0xff] %v2347
      %2696 = vst [vmem:[#allocation3 + $0x520] sm:$0xff] %v2349
      %2697 = vst [vmem:[#allocation3 + $0x528] sm:$0xff] %v2351
      %2698 = vst [vmem:[#allocation3 + $0x530] sm:$0xff] %v2353
      %2699 = vst [vmem:[#allocation3 + $0x538] sm:$0xff] %v2355
      %2700 = vst [vmem:[#allocation3 + $0x540] sm:$0xff] %v2357
      %2701 = vst [vmem:[#allocation3 + $0x548] sm:$0xff] %v2359
      %2702 = vst [vmem:[#allocation3 + $0x550] sm:$0xff] %v2361
      %2703 = vst [vmem:[#allocation3 + $0x558] sm:$0xff] %v2363
      %2704 = vst [vmem:[#allocation3 + $0x560] sm:$0xff] %v2365
      %2705 = vst [vmem:[#allocation3 + $0x568] sm:$0xff] %v2367
      %2706 = vst [vmem:[#allocation3 + $0x570] sm:$0xff] %v2369
      %2707 = vst [vmem:[#allocation3 + $0x578] sm:$0xff] %v2371
      %2708 = vst [vmem:[#allocation3 + $0x580] sm:$0xff] %v2373
      %2709 = vst [vmem:[#allocation3 + $0x588] sm:$0xff] %v2375
      %2710 = vst [vmem:[#allocation3 + $0x590] sm:$0xff] %v2377
      %2711 = vst [vmem:[#allocation3 + $0x598] sm:$0xff] %v2379
      %2712 = vst [vmem:[#allocation3 + $0x5a0] sm:$0xff] %v2381
      %2713 = vst [vmem:[#allocation3 + $0x5a8] sm:$0xff] %v2383
      %2714 = vst [vmem:[#allocation3 + $0x5b0] sm:$0xff] %v2385
      %2715 = vst [vmem:[#allocation3 + $0x5b8] sm:$0xff] %v2387
      %2716 = vst [vmem:[#allocation3 + $0x5c0] sm:$0xff] %v2389
      %2717 = vst [vmem:[#allocation3 + $0x5c8] sm:$0xff] %v2391
      %2718 = vst [vmem:[#allocation3 + $0x5d0] sm:$0xff] %v2393
      %2719 = vst [vmem:[#allocation3 + $0x5d8] sm:$0xff] %v2395
      %2720 = vst [vmem:[#allocation3 + $0x5e0] sm:$0xff] %v2397
      %2721 = vst [vmem:[#allocation3 + $0x5e8] sm:$0xff] %v2399
      %2722 = vst [vmem:[#allocation3 + $0x5f0] sm:$0xff] %v2401
      %2723 = vst [vmem:[#allocation3 + $0x5f8] sm:$0xff] %v2403
      %2724 = vst [vmem:[#allocation3 + $0x600] sm:$0xff] %v2405
      %2725 = vst [vmem:[#allocation3 + $0x608] sm:$0xff] %v2407
      %2726 = vst [vmem:[#allocation3 + $0x610] sm:$0xff] %v2409
      %2727 = vst [vmem:[#allocation3 + $0x618] sm:$0xff] %v2411
      %2728 = vst [vmem:[#allocation3 + $0x620] sm:$0xff] %v2413
      %2729 = vst [vmem:[#allocation3 + $0x628] sm:$0xff] %v2415
      %2730 = vst [vmem:[#allocation3 + $0x630] sm:$0xff] %v2417
      %2731 = vst [vmem:[#allocation3 + $0x638] sm:$0xff] %v2419
      %2732 = vst [vmem:[#allocation3 + $0x640] sm:$0xff] %v2421
      %2733 = vst [vmem:[#allocation3 + $0x648] sm:$0xff] %v2423
      %2734 = vst [vmem:[#allocation3 + $0x650] sm:$0xff] %v2425
      %2735 = vst [vmem:[#allocation3 + $0x658] sm:$0xff] %v2427
      %2736 = vst [vmem:[#allocation3 + $0x660] sm:$0xff] %v2429
      %2737 = vst [vmem:[#allocation3 + $0x668] sm:$0xff] %v2431
      %2738 = vst [vmem:[#allocation3 + $0x670] sm:$0xff] %v2433
      %2739 = vst [vmem:[#allocation3 + $0x678] sm:$0xff] %v2435
      %2740 = vst [vmem:[#allocation3 + $0x680] sm:$0xff] %v2437
      %2741 = vst [vmem:[#allocation3 + $0x688] sm:$0xff] %v2439
      %2742 = vst [vmem:[#allocation3 + $0x690] sm:$0xff] %v2441
      %2743 = vst [vmem:[#allocation3 + $0x698] sm:$0xff] %v2443
      %2744 = vst [vmem:[#allocation3 + $0x6a0] sm:$0xff] %v2445
      %2745 = vst [vmem:[#allocation3 + $0x6a8] sm:$0xff] %v2447
      %2746 = vst [vmem:[#allocation3 + $0x6b0] sm:$0xff] %v2449
      %2747 = vst [vmem:[#allocation3 + $0x6b8] sm:$0xff] %v2451
      %2748 = vst [vmem:[#allocation3 + $0x6c0] sm:$0xff] %v2453
      %2749 = vst [vmem:[#allocation3 + $0x6c8] sm:$0xff] %v2455
      %2750 = vst [vmem:[#allocation3 + $0x6d0] sm:$0xff] %v2457
      %2751 = vst [vmem:[#allocation3 + $0x6d8] sm:$0xff] %v2459
      %2752 = vst [vmem:[#allocation3 + $0x6e0] sm:$0xff] %v2461
      %2753 = vst [vmem:[#allocation3 + $0x6e8] sm:$0xff] %v2463
      %2754 = vst [vmem:[#allocation3 + $0x6f0] sm:$0xff] %v2465
      %2755 = vst [vmem:[#allocation3 + $0x6f8] sm:$0xff] %v2467
      %2756 = vst [vmem:[#allocation3 + $0x700] sm:$0xff] %v2469
      %2757 = vst [vmem:[#allocation3 + $0x708] sm:$0xff] %v2471
      %2758 = vst [vmem:[#allocation3 + $0x710] sm:$0xff] %v2473
      %2759 = vst [vmem:[#allocation3 + $0x718] sm:$0xff] %v2475
      %2760 = vst [vmem:[#allocation3 + $0x720] sm:$0xff] %v2477
      %2761 = vst [vmem:[#allocation3 + $0x728] sm:$0xff] %v2479
      %2762 = vst [vmem:[#allocation3 + $0x730] sm:$0xff] %v2481
      %2763 = vst [vmem:[#allocation3 + $0x738] sm:$0xff] %v2483
      %2764 = vst [vmem:[#allocation3 + $0x740] sm:$0xff] %v2485
      %2765 = vst [vmem:[#allocation3 + $0x748] sm:$0xff] %v2487
      %2766 = vst [vmem:[#allocation3 + $0x750] sm:$0xff] %v2489
      %2767 = vst [vmem:[#allocation3 + $0x758] sm:$0xff] %v2491
      %2768 = vst [vmem:[#allocation3 + $0x760] sm:$0xff] %v2493
      %2769 = vst [vmem:[#allocation3 + $0x768] sm:$0xff] %v2495
      %2770 = vst [vmem:[#allocation3 + $0x770] sm:$0xff] %v2497
      %2771 = vst [vmem:[#allocation3 + $0x778] sm:$0xff] %v2499
      %2772 = vst [vmem:[#allocation3 + $0x780] sm:$0xff] %v2501
      %2773 = vst [vmem:[#allocation3 + $0x788] sm:$0xff] %v2503
      %2774 = vst [vmem:[#allocation3 + $0x790] sm:$0xff] %v2505
      %2775 = vst [vmem:[#allocation3 + $0x798] sm:$0xff] %v2507
      %2776 = vst [vmem:[#allocation3 + $0x7a0] sm:$0xff] %v2509
      %2777 = vst [vmem:[#allocation3 + $0x7a8] sm:$0xff] %v2511
      %2778 = vst [vmem:[#allocation3 + $0x7b0] sm:$0xff] %v2513
      %2779 = vst [vmem:[#allocation3 + $0x7b8] sm:$0xff] %v2515
      %2780 = vst [vmem:[#allocation3 + $0x7c0] sm:$0xff] %v2517
      %2781 = vst [vmem:[#allocation3 + $0x7c8] sm:$0xff] %v2519
      %2782 = vst [vmem:[#allocation3 + $0x7d0] sm:$0xff] %v2521
      %2783 = vst [vmem:[#allocation3 + $0x7d8] sm:$0xff] %v2523
      %2784 = vst [vmem:[#allocation3 + $0x7e0] sm:$0xff] %v2525
      %2785 = vst [vmem:[#allocation3 + $0x7e8] sm:$0xff] %v2527
      %2786 = vst [vmem:[#allocation3 + $0x7f0] sm:$0xff] %v2529
      %2787 = vst [vmem:[#allocation3 + $0x7f8] sm:$0xff] %v2531
      %v2788 = vld [vmem:[%s272] sm:$0xff]
      %v2789 = vld [vmem:[%s272 + $0x8] sm:$0xff]
      %v2790 = vld [vmem:[%s272 + $0x10] sm:$0xff]
      %v2791 = vld [vmem:[%s272 + $0x18] sm:$0xff]
      %v2792 = vld [vmem:[%s272 + $0x20] sm:$0xff]
      %v2793 = vld [vmem:[%s272 + $0x28] sm:$0xff]
      %v2794 = vld [vmem:[%s272 + $0x30] sm:$0xff]
      %v2795 = vld [vmem:[%s272 + $0x38] sm:$0xff]
      %v2796 = vld [vmem:[%s272 + $0x40] sm:$0xff]
      %v2797 = vld [vmem:[%s272 + $0x48] sm:$0xff]
      %v2798 = vld [vmem:[%s272 + $0x50] sm:$0xff]
      %v2799 = vld [vmem:[%s272 + $0x58] sm:$0xff]
      %v2800 = vld [vmem:[%s272 + $0x60] sm:$0xff]
      %v2801 = vld [vmem:[%s272 + $0x68] sm:$0xff]
      %v2802 = vld [vmem:[%s272 + $0x70] sm:$0xff]
      %v2803 = vld [vmem:[%s272 + $0x78] sm:$0xff]
      %v2804 = vmul.f32 %v306, %v2788
      %v2805 = vmul.f32 %v307, %v2789
      %v2806 = vmul.f32 %v308, %v2790
      %v2807 = vmul.f32 %v309, %v2791
      %v2808 = vmul.f32 %v310, %v2792
      %v2809 = vmul.f32 %v311, %v2793
      %v2810 = vmul.f32 %v312, %v2794
      %v2811 = vmul.f32 %v313, %v2795
      %v2812 = vmul.f32 %v314, %v2796
      %v2813 = vmul.f32 %v315, %v2797
      %v2814 = vmul.f32 %v316, %v2798
      %v2815 = vmul.f32 %v317, %v2799
      %v2816 = vmul.f32 %v318, %v2800
      %v2817 = vmul.f32 %v319, %v2801
      %v2818 = vmul.f32 %v320, %v2802
      %v2819 = vmul.f32 %v321, %v2803
      %v2836 = vcombine.high %v2804, %v2804
      %v2838 = vunpack.c.l.s4 1966171168
      %v2839 = vunpack.c.0.s8 %v2838
      %v2840 = vlaneseq
      %v2841 = vshrl.u32 %v2840, 7
      %v2842 = vsub.s32 %v2839, %v2841
      %v2843 = vrot.slane %v2804, %v2842
      %v2845 = vunpack.c.l.s4 1966171168
      %v2846 = vunpack.c.0.s8 %v2845
      %v2847 = vlaneseq
      %v2848 = vshrl.u32 %v2847, 7
      %v2849 = vsub.s32 %v2846, %v2848
      %v2850 = vrot.slane %v2836, %v2849
      %v2851 = vcombine.high %v2843, %v2843
      %v2852 = vcombine.high %v2850, %v2850
      %v2854 = vunpack.c.l.s4 1966171168
      %v2855 = vunpack.c.0.s8 %v2854
      %v2856 = vlaneseq
      %v2857 = vshrl.u32 %v2856, 7
      %v2858 = vsub.s32 %v2855, %v2857
      %v2859 = vrot.slane %v2843, %v2858
      %v2861 = vunpack.c.l.s4 1966171168
      %v2862 = vunpack.c.0.s8 %v2861
      %v2863 = vlaneseq
      %v2864 = vshrl.u32 %v2863, 7
      %v2865 = vsub.s32 %v2862, %v2864
      %v2866 = vrot.slane %v2850, %v2865
      %v2868 = vunpack.c.l.s4 1966171168
      %v2869 = vunpack.c.0.s8 %v2868
      %v2870 = vlaneseq
      %v2871 = vshrl.u32 %v2870, 7
      %v2872 = vsub.s32 %v2869, %v2871
      %v2873 = vrot.slane %v2851, %v2872
      %v2875 = vunpack.c.l.s4 1966171168
      %v2876 = vunpack.c.0.s8 %v2875
      %v2877 = vlaneseq
      %v2878 = vshrl.u32 %v2877, 7
      %v2879 = vsub.s32 %v2876, %v2878
      %v2880 = vrot.slane %v2852, %v2879
      %v2881 = vcombine.high %v2859, %v2859
      %v2882 = vcombine.high %v2866, %v2866
      %v2883 = vcombine.high %v2873, %v2873
      %v2884 = vcombine.high %v2880, %v2880
      %v2885 = vcombine.high %v2805, %v2805
      %v2887 = vunpack.c.l.s4 1966171168
      %v2888 = vunpack.c.0.s8 %v2887
      %v2889 = vlaneseq
      %v2890 = vshrl.u32 %v2889, 7
      %v2891 = vsub.s32 %v2888, %v2890
      %v2892 = vrot.slane %v2805, %v2891
      %v2894 = vunpack.c.l.s4 1966171168
      %v2895 = vunpack.c.0.s8 %v2894
      %v2896 = vlaneseq
      %v2897 = vshrl.u32 %v2896, 7
      %v2898 = vsub.s32 %v2895, %v2897
      %v2899 = vrot.slane %v2885, %v2898
      %v2900 = vcombine.high %v2892, %v2892
      %v2901 = vcombine.high %v2899, %v2899
      %v2903 = vunpack.c.l.s4 1966171168
      %v2904 = vunpack.c.0.s8 %v2903
      %v2905 = vlaneseq
      %v2906 = vshrl.u32 %v2905, 7
      %v2907 = vsub.s32 %v2904, %v2906
      %v2908 = vrot.slane %v2892, %v2907
      %v2910 = vunpack.c.l.s4 1966171168
      %v2911 = vunpack.c.0.s8 %v2910
      %v2912 = vlaneseq
      %v2913 = vshrl.u32 %v2912, 7
      %v2914 = vsub.s32 %v2911, %v2913
      %v2915 = vrot.slane %v2899, %v2914
      %v2917 = vunpack.c.l.s4 1966171168
      %v2918 = vunpack.c.0.s8 %v2917
      %v2919 = vlaneseq
      %v2920 = vshrl.u32 %v2919, 7
      %v2921 = vsub.s32 %v2918, %v2920
      %v2922 = vrot.slane %v2900, %v2921
      %v2924 = vunpack.c.l.s4 1966171168
      %v2925 = vunpack.c.0.s8 %v2924
      %v2926 = vlaneseq
      %v2927 = vshrl.u32 %v2926, 7
      %v2928 = vsub.s32 %v2925, %v2927
      %v2929 = vrot.slane %v2901, %v2928
      %v2930 = vcombine.high %v2908, %v2908
      %v2931 = vcombine.high %v2915, %v2915
      %v2932 = vcombine.high %v2922, %v2922
      %v2933 = vcombine.high %v2929, %v2929
      %v2934 = vcombine.high %v2806, %v2806
      %v2936 = vunpack.c.l.s4 1966171168
      %v2937 = vunpack.c.0.s8 %v2936
      %v2938 = vlaneseq
      %v2939 = vshrl.u32 %v2938, 7
      %v2940 = vsub.s32 %v2937, %v2939
      %v2941 = vrot.slane %v2806, %v2940
      %v2943 = vunpack.c.l.s4 1966171168
      %v2944 = vunpack.c.0.s8 %v2943
      %v2945 = vlaneseq
      %v2946 = vshrl.u32 %v2945, 7
      %v2947 = vsub.s32 %v2944, %v2946
      %v2948 = vrot.slane %v2934, %v2947
      %v2949 = vcombine.high %v2941, %v2941
      %v2950 = vcombine.high %v2948, %v2948
      %v2952 = vunpack.c.l.s4 1966171168
      %v2953 = vunpack.c.0.s8 %v2952
      %v2954 = vlaneseq
      %v2955 = vshrl.u32 %v2954, 7
      %v2956 = vsub.s32 %v2953, %v2955
      %v2957 = vrot.slane %v2941, %v2956
      %v2959 = vunpack.c.l.s4 1966171168
      %v2960 = vunpack.c.0.s8 %v2959
      %v2961 = vlaneseq
      %v2962 = vshrl.u32 %v2961, 7
      %v2963 = vsub.s32 %v2960, %v2962
      %v2964 = vrot.slane %v2948, %v2963
      %v2966 = vunpack.c.l.s4 1966171168
      %v2967 = vunpack.c.0.s8 %v2966
      %v2968 = vlaneseq
      %v2969 = vshrl.u32 %v2968, 7
      %v2970 = vsub.s32 %v2967, %v2969
      %v2971 = vrot.slane %v2949, %v2970
      %v2973 = vunpack.c.l.s4 1966171168
      %v2974 = vunpack.c.0.s8 %v2973
      %v2975 = vlaneseq
      %v2976 = vshrl.u32 %v2975, 7
      %v2977 = vsub.s32 %v2974, %v2976
      %v2978 = vrot.slane %v2950, %v2977
      %v2979 = vcombine.high %v2957, %v2957
      %v2980 = vcombine.high %v2964, %v2964
      %v2981 = vcombine.high %v2971, %v2971
      %v2982 = vcombine.high %v2978, %v2978
      %v2983 = vcombine.high %v2807, %v2807
      %v2985 = vunpack.c.l.s4 1966171168
      %v2986 = vunpack.c.0.s8 %v2985
      %v2987 = vlaneseq
      %v2988 = vshrl.u32 %v2987, 7
      %v2989 = vsub.s32 %v2986, %v2988
      %v2990 = vrot.slane %v2807, %v2989
      %v2992 = vunpack.c.l.s4 1966171168
      %v2993 = vunpack.c.0.s8 %v2992
      %v2994 = vlaneseq
      %v2995 = vshrl.u32 %v2994, 7
      %v2996 = vsub.s32 %v2993, %v2995
      %v2997 = vrot.slane %v2983, %v2996
      %v2998 = vcombine.high %v2990, %v2990
      %v2999 = vcombine.high %v2997, %v2997
      %v3001 = vunpack.c.l.s4 1966171168
      %v3002 = vunpack.c.0.s8 %v3001
      %v3003 = vlaneseq
      %v3004 = vshrl.u32 %v3003, 7
      %v3005 = vsub.s32 %v3002, %v3004
      %v3006 = vrot.slane %v2990, %v3005
      %v3008 = vunpack.c.l.s4 1966171168
      %v3009 = vunpack.c.0.s8 %v3008
      %v3010 = vlaneseq
      %v3011 = vshrl.u32 %v3010, 7
      %v3012 = vsub.s32 %v3009, %v3011
      %v3013 = vrot.slane %v2997, %v3012
      %v3015 = vunpack.c.l.s4 1966171168
      %v3016 = vunpack.c.0.s8 %v3015
      %v3017 = vlaneseq
      %v3018 = vshrl.u32 %v3017, 7
      %v3019 = vsub.s32 %v3016, %v3018
      %v3020 = vrot.slane %v2998, %v3019
      %v3022 = vunpack.c.l.s4 1966171168
      %v3023 = vunpack.c.0.s8 %v3022
      %v3024 = vlaneseq
      %v3025 = vshrl.u32 %v3024, 7
      %v3026 = vsub.s32 %v3023, %v3025
      %v3027 = vrot.slane %v2999, %v3026
      %v3028 = vcombine.high %v3006, %v3006
      %v3029 = vcombine.high %v3013, %v3013
      %v3030 = vcombine.high %v3020, %v3020
      %v3031 = vcombine.high %v3027, %v3027
      %v3032 = vcombine.high %v2808, %v2808
      %v3034 = vunpack.c.l.s4 1966171168
      %v3035 = vunpack.c.0.s8 %v3034
      %v3036 = vlaneseq
      %v3037 = vshrl.u32 %v3036, 7
      %v3038 = vsub.s32 %v3035, %v3037
      %v3039 = vrot.slane %v2808, %v3038
      %v3041 = vunpack.c.l.s4 1966171168
      %v3042 = vunpack.c.0.s8 %v3041
      %v3043 = vlaneseq
      %v3044 = vshrl.u32 %v3043, 7
      %v3045 = vsub.s32 %v3042, %v3044
      %v3046 = vrot.slane %v3032, %v3045
      %v3047 = vcombine.high %v3039, %v3039
      %v3048 = vcombine.high %v3046, %v3046
      %v3050 = vunpack.c.l.s4 1966171168
      %v3051 = vunpack.c.0.s8 %v3050
      %v3052 = vlaneseq
      %v3053 = vshrl.u32 %v3052, 7
      %v3054 = vsub.s32 %v3051, %v3053
      %v3055 = vrot.slane %v3039, %v3054
      %v3057 = vunpack.c.l.s4 1966171168
      %v3058 = vunpack.c.0.s8 %v3057
      %v3059 = vlaneseq
      %v3060 = vshrl.u32 %v3059, 7
      %v3061 = vsub.s32 %v3058, %v3060
      %v3062 = vrot.slane %v3046, %v3061
      %v3064 = vunpack.c.l.s4 1966171168
      %v3065 = vunpack.c.0.s8 %v3064
      %v3066 = vlaneseq
      %v3067 = vshrl.u32 %v3066, 7
      %v3068 = vsub.s32 %v3065, %v3067
      %v3069 = vrot.slane %v3047, %v3068
      %v3071 = vunpack.c.l.s4 1966171168
      %v3072 = vunpack.c.0.s8 %v3071
      %v3073 = vlaneseq
      %v3074 = vshrl.u32 %v3073, 7
      %v3075 = vsub.s32 %v3072, %v3074
      %v3076 = vrot.slane %v3048, %v3075
      %v3077 = vcombine.high %v3055, %v3055
      %v3078 = vcombine.high %v3062, %v3062
      %v3079 = vcombine.high %v3069, %v3069
      %v3080 = vcombine.high %v3076, %v3076
      %v3081 = vcombine.high %v2809, %v2809
      %v3083 = vunpack.c.l.s4 1966171168
      %v3084 = vunpack.c.0.s8 %v3083
      %v3085 = vlaneseq
      %v3086 = vshrl.u32 %v3085, 7
      %v3087 = vsub.s32 %v3084, %v3086
      %v3088 = vrot.slane %v2809, %v3087
      %v3090 = vunpack.c.l.s4 1966171168
      %v3091 = vunpack.c.0.s8 %v3090
      %v3092 = vlaneseq
      %v3093 = vshrl.u32 %v3092, 7
      %v3094 = vsub.s32 %v3091, %v3093
      %v3095 = vrot.slane %v3081, %v3094
      %v3096 = vcombine.high %v3088, %v3088
      %v3097 = vcombine.high %v3095, %v3095
      %v3099 = vunpack.c.l.s4 1966171168
      %v3100 = vunpack.c.0.s8 %v3099
      %v3101 = vlaneseq
      %v3102 = vshrl.u32 %v3101, 7
      %v3103 = vsub.s32 %v3100, %v3102
      %v3104 = vrot.slane %v3088, %v3103
      %v3106 = vunpack.c.l.s4 1966171168
      %v3107 = vunpack.c.0.s8 %v3106
      %v3108 = vlaneseq
      %v3109 = vshrl.u32 %v3108, 7
      %v3110 = vsub.s32 %v3107, %v3109
      %v3111 = vrot.slane %v3095, %v3110
      %v3113 = vunpack.c.l.s4 1966171168
      %v3114 = vunpack.c.0.s8 %v3113
      %v3115 = vlaneseq
      %v3116 = vshrl.u32 %v3115, 7
      %v3117 = vsub.s32 %v3114, %v3116
      %v3118 = vrot.slane %v3096, %v3117
      %v3120 = vunpack.c.l.s4 1966171168
      %v3121 = vunpack.c.0.s8 %v3120
      %v3122 = vlaneseq
      %v3123 = vshrl.u32 %v3122, 7
      %v3124 = vsub.s32 %v3121, %v3123
      %v3125 = vrot.slane %v3097, %v3124
      %v3126 = vcombine.high %v3104, %v3104
      %v3127 = vcombine.high %v3111, %v3111
      %v3128 = vcombine.high %v3118, %v3118
      %v3129 = vcombine.high %v3125, %v3125
      %v3130 = vcombine.high %v2810, %v2810
      %v3132 = vunpack.c.l.s4 1966171168
      %v3133 = vunpack.c.0.s8 %v3132
      %v3134 = vlaneseq
      %v3135 = vshrl.u32 %v3134, 7
      %v3136 = vsub.s32 %v3133, %v3135
      %v3137 = vrot.slane %v2810, %v3136
      %v3139 = vunpack.c.l.s4 1966171168
      %v3140 = vunpack.c.0.s8 %v3139
      %v3141 = vlaneseq
      %v3142 = vshrl.u32 %v3141, 7
      %v3143 = vsub.s32 %v3140, %v3142
      %v3144 = vrot.slane %v3130, %v3143
      %v3145 = vcombine.high %v3137, %v3137
      %v3146 = vcombine.high %v3144, %v3144
      %v3148 = vunpack.c.l.s4 1966171168
      %v3149 = vunpack.c.0.s8 %v3148
      %v3150 = vlaneseq
      %v3151 = vshrl.u32 %v3150, 7
      %v3152 = vsub.s32 %v3149, %v3151
      %v3153 = vrot.slane %v3137, %v3152
      %v3155 = vunpack.c.l.s4 1966171168
      %v3156 = vunpack.c.0.s8 %v3155
      %v3157 = vlaneseq
      %v3158 = vshrl.u32 %v3157, 7
      %v3159 = vsub.s32 %v3156, %v3158
      %v3160 = vrot.slane %v3144, %v3159
      %v3162 = vunpack.c.l.s4 1966171168
      %v3163 = vunpack.c.0.s8 %v3162
      %v3164 = vlaneseq
      %v3165 = vshrl.u32 %v3164, 7
      %v3166 = vsub.s32 %v3163, %v3165
      %v3167 = vrot.slane %v3145, %v3166
      %v3169 = vunpack.c.l.s4 1966171168
      %v3170 = vunpack.c.0.s8 %v3169
      %v3171 = vlaneseq
      %v3172 = vshrl.u32 %v3171, 7
      %v3173 = vsub.s32 %v3170, %v3172
      %v3174 = vrot.slane %v3146, %v3173
      %v3175 = vcombine.high %v3153, %v3153
      %v3176 = vcombine.high %v3160, %v3160
      %v3177 = vcombine.high %v3167, %v3167
      %v3178 = vcombine.high %v3174, %v3174
      %v3179 = vcombine.high %v2811, %v2811
      %v3181 = vunpack.c.l.s4 1966171168
      %v3182 = vunpack.c.0.s8 %v3181
      %v3183 = vlaneseq
      %v3184 = vshrl.u32 %v3183, 7
      %v3185 = vsub.s32 %v3182, %v3184
      %v3186 = vrot.slane %v2811, %v3185
      %v3188 = vunpack.c.l.s4 1966171168
      %v3189 = vunpack.c.0.s8 %v3188
      %v3190 = vlaneseq
      %v3191 = vshrl.u32 %v3190, 7
      %v3192 = vsub.s32 %v3189, %v3191
      %v3193 = vrot.slane %v3179, %v3192
      %v3194 = vcombine.high %v3186, %v3186
      %v3195 = vcombine.high %v3193, %v3193
      %v3197 = vunpack.c.l.s4 1966171168
      %v3198 = vunpack.c.0.s8 %v3197
      %v3199 = vlaneseq
      %v3200 = vshrl.u32 %v3199, 7
      %v3201 = vsub.s32 %v3198, %v3200
      %v3202 = vrot.slane %v3186, %v3201
      %v3204 = vunpack.c.l.s4 1966171168
      %v3205 = vunpack.c.0.s8 %v3204
      %v3206 = vlaneseq
      %v3207 = vshrl.u32 %v3206, 7
      %v3208 = vsub.s32 %v3205, %v3207
      %v3209 = vrot.slane %v3193, %v3208
      %v3211 = vunpack.c.l.s4 1966171168
      %v3212 = vunpack.c.0.s8 %v3211
      %v3213 = vlaneseq
      %v3214 = vshrl.u32 %v3213, 7
      %v3215 = vsub.s32 %v3212, %v3214
      %v3216 = vrot.slane %v3194, %v3215
      %v3218 = vunpack.c.l.s4 1966171168
      %v3219 = vunpack.c.0.s8 %v3218
      %v3220 = vlaneseq
      %v3221 = vshrl.u32 %v3220, 7
      %v3222 = vsub.s32 %v3219, %v3221
      %v3223 = vrot.slane %v3195, %v3222
      %v3224 = vcombine.high %v3202, %v3202
      %v3225 = vcombine.high %v3209, %v3209
      %v3226 = vcombine.high %v3216, %v3216
      %v3227 = vcombine.high %v3223, %v3223
      %v3228 = vcombine.high %v2812, %v2812
      %v3230 = vunpack.c.l.s4 1966171168
      %v3231 = vunpack.c.0.s8 %v3230
      %v3232 = vlaneseq
      %v3233 = vshrl.u32 %v3232, 7
      %v3234 = vsub.s32 %v3231, %v3233
      %v3235 = vrot.slane %v2812, %v3234
      %v3237 = vunpack.c.l.s4 1966171168
      %v3238 = vunpack.c.0.s8 %v3237
      %v3239 = vlaneseq
      %v3240 = vshrl.u32 %v3239, 7
      %v3241 = vsub.s32 %v3238, %v3240
      %v3242 = vrot.slane %v3228, %v3241
      %v3243 = vcombine.high %v3235, %v3235
      %v3244 = vcombine.high %v3242, %v3242
      %v3246 = vunpack.c.l.s4 1966171168
      %v3247 = vunpack.c.0.s8 %v3246
      %v3248 = vlaneseq
      %v3249 = vshrl.u32 %v3248, 7
      %v3250 = vsub.s32 %v3247, %v3249
      %v3251 = vrot.slane %v3235, %v3250
      %v3253 = vunpack.c.l.s4 1966171168
      %v3254 = vunpack.c.0.s8 %v3253
      %v3255 = vlaneseq
      %v3256 = vshrl.u32 %v3255, 7
      %v3257 = vsub.s32 %v3254, %v3256
      %v3258 = vrot.slane %v3242, %v3257
      %v3260 = vunpack.c.l.s4 1966171168
      %v3261 = vunpack.c.0.s8 %v3260
      %v3262 = vlaneseq
      %v3263 = vshrl.u32 %v3262, 7
      %v3264 = vsub.s32 %v3261, %v3263
      %v3265 = vrot.slane %v3243, %v3264
      %v3267 = vunpack.c.l.s4 1966171168
      %v3268 = vunpack.c.0.s8 %v3267
      %v3269 = vlaneseq
      %v3270 = vshrl.u32 %v3269, 7
      %v3271 = vsub.s32 %v3268, %v3270
      %v3272 = vrot.slane %v3244, %v3271
      %v3273 = vcombine.high %v3251, %v3251
      %v3274 = vcombine.high %v3258, %v3258
      %v3275 = vcombine.high %v3265, %v3265
      %v3276 = vcombine.high %v3272, %v3272
      %v3277 = vcombine.high %v2813, %v2813
      %v3279 = vunpack.c.l.s4 1966171168
      %v3280 = vunpack.c.0.s8 %v3279
      %v3281 = vlaneseq
      %v3282 = vshrl.u32 %v3281, 7
      %v3283 = vsub.s32 %v3280, %v3282
      %v3284 = vrot.slane %v2813, %v3283
      %v3286 = vunpack.c.l.s4 1966171168
      %v3287 = vunpack.c.0.s8 %v3286
      %v3288 = vlaneseq
      %v3289 = vshrl.u32 %v3288, 7
      %v3290 = vsub.s32 %v3287, %v3289
      %v3291 = vrot.slane %v3277, %v3290
      %v3292 = vcombine.high %v3284, %v3284
      %v3293 = vcombine.high %v3291, %v3291
      %v3295 = vunpack.c.l.s4 1966171168
      %v3296 = vunpack.c.0.s8 %v3295
      %v3297 = vlaneseq
      %v3298 = vshrl.u32 %v3297, 7
      %v3299 = vsub.s32 %v3296, %v3298
      %v3300 = vrot.slane %v3284, %v3299
      %v3302 = vunpack.c.l.s4 1966171168
      %v3303 = vunpack.c.0.s8 %v3302
      %v3304 = vlaneseq
      %v3305 = vshrl.u32 %v3304, 7
      %v3306 = vsub.s32 %v3303, %v3305
      %v3307 = vrot.slane %v3291, %v3306
      %v3309 = vunpack.c.l.s4 1966171168
      %v3310 = vunpack.c.0.s8 %v3309
      %v3311 = vlaneseq
      %v3312 = vshrl.u32 %v3311, 7
      %v3313 = vsub.s32 %v3310, %v3312
      %v3314 = vrot.slane %v3292, %v3313
      %v3316 = vunpack.c.l.s4 1966171168
      %v3317 = vunpack.c.0.s8 %v3316
      %v3318 = vlaneseq
      %v3319 = vshrl.u32 %v3318, 7
      %v3320 = vsub.s32 %v3317, %v3319
      %v3321 = vrot.slane %v3293, %v3320
      %v3322 = vcombine.high %v3300, %v3300
      %v3323 = vcombine.high %v3307, %v3307
      %v3324 = vcombine.high %v3314, %v3314
      %v3325 = vcombine.high %v3321, %v3321
      %v3326 = vcombine.high %v2814, %v2814
      %v3328 = vunpack.c.l.s4 1966171168
      %v3329 = vunpack.c.0.s8 %v3328
      %v3330 = vlaneseq
      %v3331 = vshrl.u32 %v3330, 7
      %v3332 = vsub.s32 %v3329, %v3331
      %v3333 = vrot.slane %v2814, %v3332
      %v3335 = vunpack.c.l.s4 1966171168
      %v3336 = vunpack.c.0.s8 %v3335
      %v3337 = vlaneseq
      %v3338 = vshrl.u32 %v3337, 7
      %v3339 = vsub.s32 %v3336, %v3338
      %v3340 = vrot.slane %v3326, %v3339
      %v3341 = vcombine.high %v3333, %v3333
      %v3342 = vcombine.high %v3340, %v3340
      %v3344 = vunpack.c.l.s4 1966171168
      %v3345 = vunpack.c.0.s8 %v3344
      %v3346 = vlaneseq
      %v3347 = vshrl.u32 %v3346, 7
      %v3348 = vsub.s32 %v3345, %v3347
      %v3349 = vrot.slane %v3333, %v3348
      %v3351 = vunpack.c.l.s4 1966171168
      %v3352 = vunpack.c.0.s8 %v3351
      %v3353 = vlaneseq
      %v3354 = vshrl.u32 %v3353, 7
      %v3355 = vsub.s32 %v3352, %v3354
      %v3356 = vrot.slane %v3340, %v3355
      %v3358 = vunpack.c.l.s4 1966171168
      %v3359 = vunpack.c.0.s8 %v3358
      %v3360 = vlaneseq
      %v3361 = vshrl.u32 %v3360, 7
      %v3362 = vsub.s32 %v3359, %v3361
      %v3363 = vrot.slane %v3341, %v3362
      %v3365 = vunpack.c.l.s4 1966171168
      %v3366 = vunpack.c.0.s8 %v3365
      %v3367 = vlaneseq
      %v3368 = vshrl.u32 %v3367, 7
      %v3369 = vsub.s32 %v3366, %v3368
      %v3370 = vrot.slane %v3342, %v3369
      %v3371 = vcombine.high %v3349, %v3349
      %v3372 = vcombine.high %v3356, %v3356
      %v3373 = vcombine.high %v3363, %v3363
      %v3374 = vcombine.high %v3370, %v3370
      %v3375 = vcombine.high %v2815, %v2815
      %v3377 = vunpack.c.l.s4 1966171168
      %v3378 = vunpack.c.0.s8 %v3377
      %v3379 = vlaneseq
      %v3380 = vshrl.u32 %v3379, 7
      %v3381 = vsub.s32 %v3378, %v3380
      %v3382 = vrot.slane %v2815, %v3381
      %v3384 = vunpack.c.l.s4 1966171168
      %v3385 = vunpack.c.0.s8 %v3384
      %v3386 = vlaneseq
      %v3387 = vshrl.u32 %v3386, 7
      %v3388 = vsub.s32 %v3385, %v3387
      %v3389 = vrot.slane %v3375, %v3388
      %v3390 = vcombine.high %v3382, %v3382
      %v3391 = vcombine.high %v3389, %v3389
      %v3393 = vunpack.c.l.s4 1966171168
      %v3394 = vunpack.c.0.s8 %v3393
      %v3395 = vlaneseq
      %v3396 = vshrl.u32 %v3395, 7
      %v3397 = vsub.s32 %v3394, %v3396
      %v3398 = vrot.slane %v3382, %v3397
      %v3400 = vunpack.c.l.s4 1966171168
      %v3401 = vunpack.c.0.s8 %v3400
      %v3402 = vlaneseq
      %v3403 = vshrl.u32 %v3402, 7
      %v3404 = vsub.s32 %v3401, %v3403
      %v3405 = vrot.slane %v3389, %v3404
      %v3407 = vunpack.c.l.s4 1966171168
      %v3408 = vunpack.c.0.s8 %v3407
      %v3409 = vlaneseq
      %v3410 = vshrl.u32 %v3409, 7
      %v3411 = vsub.s32 %v3408, %v3410
      %v3412 = vrot.slane %v3390, %v3411
      %v3414 = vunpack.c.l.s4 1966171168
      %v3415 = vunpack.c.0.s8 %v3414
      %v3416 = vlaneseq
      %v3417 = vshrl.u32 %v3416, 7
      %v3418 = vsub.s32 %v3415, %v3417
      %v3419 = vrot.slane %v3391, %v3418
      %v3420 = vcombine.high %v3398, %v3398
      %v3421 = vcombine.high %v3405, %v3405
      %v3422 = vcombine.high %v3412, %v3412
      %v3423 = vcombine.high %v3419, %v3419
      %v3424 = vcombine.high %v2816, %v2816
      %v3426 = vunpack.c.l.s4 1966171168
      %v3427 = vunpack.c.0.s8 %v3426
      %v3428 = vlaneseq
      %v3429 = vshrl.u32 %v3428, 7
      %v3430 = vsub.s32 %v3427, %v3429
      %v3431 = vrot.slane %v2816, %v3430
      %v3433 = vunpack.c.l.s4 1966171168
      %v3434 = vunpack.c.0.s8 %v3433
      %v3435 = vlaneseq
      %v3436 = vshrl.u32 %v3435, 7
      %v3437 = vsub.s32 %v3434, %v3436
      %v3438 = vrot.slane %v3424, %v3437
      %v3439 = vcombine.high %v3431, %v3431
      %v3440 = vcombine.high %v3438, %v3438
      %v3442 = vunpack.c.l.s4 1966171168
      %v3443 = vunpack.c.0.s8 %v3442
      %v3444 = vlaneseq
      %v3445 = vshrl.u32 %v3444, 7
      %v3446 = vsub.s32 %v3443, %v3445
      %v3447 = vrot.slane %v3431, %v3446
      %v3449 = vunpack.c.l.s4 1966171168
      %v3450 = vunpack.c.0.s8 %v3449
      %v3451 = vlaneseq
      %v3452 = vshrl.u32 %v3451, 7
      %v3453 = vsub.s32 %v3450, %v3452
      %v3454 = vrot.slane %v3438, %v3453
      %v3456 = vunpack.c.l.s4 1966171168
      %v3457 = vunpack.c.0.s8 %v3456
      %v3458 = vlaneseq
      %v3459 = vshrl.u32 %v3458, 7
      %v3460 = vsub.s32 %v3457, %v3459
      %v3461 = vrot.slane %v3439, %v3460
      %v3463 = vunpack.c.l.s4 1966171168
      %v3464 = vunpack.c.0.s8 %v3463
      %v3465 = vlaneseq
      %v3466 = vshrl.u32 %v3465, 7
      %v3467 = vsub.s32 %v3464, %v3466
      %v3468 = vrot.slane %v3440, %v3467
      %v3469 = vcombine.high %v3447, %v3447
      %v3470 = vcombine.high %v3454, %v3454
      %v3471 = vcombine.high %v3461, %v3461
      %v3472 = vcombine.high %v3468, %v3468
      %v3473 = vcombine.high %v2817, %v2817
      %v3475 = vunpack.c.l.s4 1966171168
      %v3476 = vunpack.c.0.s8 %v3475
      %v3477 = vlaneseq
      %v3478 = vshrl.u32 %v3477, 7
      %v3479 = vsub.s32 %v3476, %v3478
      %v3480 = vrot.slane %v2817, %v3479
      %v3482 = vunpack.c.l.s4 1966171168
      %v3483 = vunpack.c.0.s8 %v3482
      %v3484 = vlaneseq
      %v3485 = vshrl.u32 %v3484, 7
      %v3486 = vsub.s32 %v3483, %v3485
      %v3487 = vrot.slane %v3473, %v3486
      %v3488 = vcombine.high %v3480, %v3480
      %v3489 = vcombine.high %v3487, %v3487
      %v3491 = vunpack.c.l.s4 1966171168
      %v3492 = vunpack.c.0.s8 %v3491
      %v3493 = vlaneseq
      %v3494 = vshrl.u32 %v3493, 7
      %v3495 = vsub.s32 %v3492, %v3494
      %v3496 = vrot.slane %v3480, %v3495
      %v3498 = vunpack.c.l.s4 1966171168
      %v3499 = vunpack.c.0.s8 %v3498
      %v3500 = vlaneseq
      %v3501 = vshrl.u32 %v3500, 7
      %v3502 = vsub.s32 %v3499, %v3501
      %v3503 = vrot.slane %v3487, %v3502
      %v3505 = vunpack.c.l.s4 1966171168
      %v3506 = vunpack.c.0.s8 %v3505
      %v3507 = vlaneseq
      %v3508 = vshrl.u32 %v3507, 7
      %v3509 = vsub.s32 %v3506, %v3508
      %v3510 = vrot.slane %v3488, %v3509
      %v3512 = vunpack.c.l.s4 1966171168
      %v3513 = vunpack.c.0.s8 %v3512
      %v3514 = vlaneseq
      %v3515 = vshrl.u32 %v3514, 7
      %v3516 = vsub.s32 %v3513, %v3515
      %v3517 = vrot.slane %v3489, %v3516
      %v3518 = vcombine.high %v3496, %v3496
      %v3519 = vcombine.high %v3503, %v3503
      %v3520 = vcombine.high %v3510, %v3510
      %v3521 = vcombine.high %v3517, %v3517
      %v3522 = vcombine.high %v2818, %v2818
      %v3524 = vunpack.c.l.s4 1966171168
      %v3525 = vunpack.c.0.s8 %v3524
      %v3526 = vlaneseq
      %v3527 = vshrl.u32 %v3526, 7
      %v3528 = vsub.s32 %v3525, %v3527
      %v3529 = vrot.slane %v2818, %v3528
      %v3531 = vunpack.c.l.s4 1966171168
      %v3532 = vunpack.c.0.s8 %v3531
      %v3533 = vlaneseq
      %v3534 = vshrl.u32 %v3533, 7
      %v3535 = vsub.s32 %v3532, %v3534
      %v3536 = vrot.slane %v3522, %v3535
      %v3537 = vcombine.high %v3529, %v3529
      %v3538 = vcombine.high %v3536, %v3536
      %v3540 = vunpack.c.l.s4 1966171168
      %v3541 = vunpack.c.0.s8 %v3540
      %v3542 = vlaneseq
      %v3543 = vshrl.u32 %v3542, 7
      %v3544 = vsub.s32 %v3541, %v3543
      %v3545 = vrot.slane %v3529, %v3544
      %v3547 = vunpack.c.l.s4 1966171168
      %v3548 = vunpack.c.0.s8 %v3547
      %v3549 = vlaneseq
      %v3550 = vshrl.u32 %v3549, 7
      %v3551 = vsub.s32 %v3548, %v3550
      %v3552 = vrot.slane %v3536, %v3551
      %v3554 = vunpack.c.l.s4 1966171168
      %v3555 = vunpack.c.0.s8 %v3554
      %v3556 = vlaneseq
      %v3557 = vshrl.u32 %v3556, 7
      %v3558 = vsub.s32 %v3555, %v3557
      %v3559 = vrot.slane %v3537, %v3558
      %v3561 = vunpack.c.l.s4 1966171168
      %v3562 = vunpack.c.0.s8 %v3561
      %v3563 = vlaneseq
      %v3564 = vshrl.u32 %v3563, 7
      %v3565 = vsub.s32 %v3562, %v3564
      %v3566 = vrot.slane %v3538, %v3565
      %v3567 = vcombine.high %v3545, %v3545
      %v3568 = vcombine.high %v3552, %v3552
      %v3569 = vcombine.high %v3559, %v3559
      %v3570 = vcombine.high %v3566, %v3566
      %v3571 = vcombine.high %v2819, %v2819
      %v3573 = vunpack.c.l.s4 1966171168
      %v3574 = vunpack.c.0.s8 %v3573
      %v3575 = vlaneseq
      %v3576 = vshrl.u32 %v3575, 7
      %v3577 = vsub.s32 %v3574, %v3576
      %v3578 = vrot.slane %v2819, %v3577
      %v3580 = vunpack.c.l.s4 1966171168
      %v3581 = vunpack.c.0.s8 %v3580
      %v3582 = vlaneseq
      %v3583 = vshrl.u32 %v3582, 7
      %v3584 = vsub.s32 %v3581, %v3583
      %v3585 = vrot.slane %v3571, %v3584
      %v3586 = vcombine.high %v3578, %v3578
      %v3587 = vcombine.high %v3585, %v3585
      %v3589 = vunpack.c.l.s4 1966171168
      %v3590 = vunpack.c.0.s8 %v3589
      %v3591 = vlaneseq
      %v3592 = vshrl.u32 %v3591, 7
      %v3593 = vsub.s32 %v3590, %v3592
      %v3594 = vrot.slane %v3578, %v3593
      %v3596 = vunpack.c.l.s4 1966171168
      %v3597 = vunpack.c.0.s8 %v3596
      %v3598 = vlaneseq
      %v3599 = vshrl.u32 %v3598, 7
      %v3600 = vsub.s32 %v3597, %v3599
      %v3601 = vrot.slane %v3585, %v3600
      %v3603 = vunpack.c.l.s4 1966171168
      %v3604 = vunpack.c.0.s8 %v3603
      %v3605 = vlaneseq
      %v3606 = vshrl.u32 %v3605, 7
      %v3607 = vsub.s32 %v3604, %v3606
      %v3608 = vrot.slane %v3586, %v3607
      %v3610 = vunpack.c.l.s4 1966171168
      %v3611 = vunpack.c.0.s8 %v3610
      %v3612 = vlaneseq
      %v3613 = vshrl.u32 %v3612, 7
      %v3614 = vsub.s32 %v3611, %v3613
      %v3615 = vrot.slane %v3587, %v3614
      %v3616 = vcombine.high %v3594, %v3594
      %v3617 = vcombine.high %v3601, %v3601
      %v3618 = vcombine.high %v3608, %v3608
      %v3619 = vcombine.high %v3615, %v3615
      %v3620 = vld [vmem:[%s285] sm:$0xff]
      %v3621 = vld [vmem:[%s285 + $0x8] sm:$0xff]
      %v3622 = vld [vmem:[%s285 + $0x10] sm:$0xff]
      %v3623 = vld [vmem:[%s285 + $0x18] sm:$0xff]
      %v3624 = vld [vmem:[%s285 + $0x20] sm:$0xff]
      %v3625 = vld [vmem:[%s285 + $0x28] sm:$0xff]
      %v3626 = vld [vmem:[%s285 + $0x30] sm:$0xff]
      %v3627 = vld [vmem:[%s285 + $0x38] sm:$0xff]
      %v3628 = vld [vmem:[%s285 + $0x40] sm:$0xff]
      %v3629 = vld [vmem:[%s285 + $0x48] sm:$0xff]
      %v3630 = vld [vmem:[%s285 + $0x50] sm:$0xff]
      %v3631 = vld [vmem:[%s285 + $0x58] sm:$0xff]
      %v3632 = vld [vmem:[%s285 + $0x60] sm:$0xff]
      %v3633 = vld [vmem:[%s285 + $0x68] sm:$0xff]
      %v3634 = vld [vmem:[%s285 + $0x70] sm:$0xff]
      %v3635 = vld [vmem:[%s285 + $0x78] sm:$0xff]
      %v3636 = vld [vmem:[%s285 + $0x80] sm:$0xff]
      %v3637 = vld [vmem:[%s285 + $0x88] sm:$0xff]
      %v3638 = vld [vmem:[%s285 + $0x90] sm:$0xff]
      %v3639 = vld [vmem:[%s285 + $0x98] sm:$0xff]
      %v3640 = vld [vmem:[%s285 + $0xa0] sm:$0xff]
      %v3641 = vld [vmem:[%s285 + $0xa8] sm:$0xff]
      %v3642 = vld [vmem:[%s285 + $0xb0] sm:$0xff]
      %v3643 = vld [vmem:[%s285 + $0xb8] sm:$0xff]
      %v3644 = vld [vmem:[%s285 + $0xc0] sm:$0xff]
      %v3645 = vld [vmem:[%s285 + $0xc8] sm:$0xff]
      %v3646 = vld [vmem:[%s285 + $0xd0] sm:$0xff]
      %v3647 = vld [vmem:[%s285 + $0xd8] sm:$0xff]
      %v3648 = vld [vmem:[%s285 + $0xe0] sm:$0xff]
      %v3649 = vld [vmem:[%s285 + $0xe8] sm:$0xff]
      %v3650 = vld [vmem:[%s285 + $0xf0] sm:$0xff]
      %v3651 = vld [vmem:[%s285 + $0xf8] sm:$0xff]
      %v3652 = vld [vmem:[%s285 + $0x100] sm:$0xff]
      %v3653 = vld [vmem:[%s285 + $0x108] sm:$0xff]
      %v3654 = vld [vmem:[%s285 + $0x110] sm:$0xff]
      %v3655 = vld [vmem:[%s285 + $0x118] sm:$0xff]
      %v3656 = vld [vmem:[%s285 + $0x120] sm:$0xff]
      %v3657 = vld [vmem:[%s285 + $0x128] sm:$0xff]
      %v3658 = vld [vmem:[%s285 + $0x130] sm:$0xff]
      %v3659 = vld [vmem:[%s285 + $0x138] sm:$0xff]
      %v3660 = vld [vmem:[%s285 + $0x140] sm:$0xff]
      %v3661 = vld [vmem:[%s285 + $0x148] sm:$0xff]
      %v3662 = vld [vmem:[%s285 + $0x150] sm:$0xff]
      %v3663 = vld [vmem:[%s285 + $0x158] sm:$0xff]
      %v3664 = vld [vmem:[%s285 + $0x160] sm:$0xff]
      %v3665 = vld [vmem:[%s285 + $0x168] sm:$0xff]
      %v3666 = vld [vmem:[%s285 + $0x170] sm:$0xff]
      %v3667 = vld [vmem:[%s285 + $0x178] sm:$0xff]
      %v3668 = vld [vmem:[%s285 + $0x180] sm:$0xff]
      %v3669 = vld [vmem:[%s285 + $0x188] sm:$0xff]
      %v3670 = vld [vmem:[%s285 + $0x190] sm:$0xff]
      %v3671 = vld [vmem:[%s285 + $0x198] sm:$0xff]
      %v3672 = vld [vmem:[%s285 + $0x1a0] sm:$0xff]
      %v3673 = vld [vmem:[%s285 + $0x1a8] sm:$0xff]
      %v3674 = vld [vmem:[%s285 + $0x1b0] sm:$0xff]
      %v3675 = vld [vmem:[%s285 + $0x1b8] sm:$0xff]
      %v3676 = vld [vmem:[%s285 + $0x1c0] sm:$0xff]
      %v3677 = vld [vmem:[%s285 + $0x1c8] sm:$0xff]
      %v3678 = vld [vmem:[%s285 + $0x1d0] sm:$0xff]
      %v3679 = vld [vmem:[%s285 + $0x1d8] sm:$0xff]
      %v3680 = vld [vmem:[%s285 + $0x1e0] sm:$0xff]
      %v3681 = vld [vmem:[%s285 + $0x1e8] sm:$0xff]
      %v3682 = vld [vmem:[%s285 + $0x1f0] sm:$0xff]
      %v3683 = vld [vmem:[%s285 + $0x1f8] sm:$0xff]
      %v3684 = vld [vmem:[%s285 + $0x200] sm:$0xff]
      %v3685 = vld [vmem:[%s285 + $0x208] sm:$0xff]
      %v3686 = vld [vmem:[%s285 + $0x210] sm:$0xff]
      %v3687 = vld [vmem:[%s285 + $0x218] sm:$0xff]
      %v3688 = vld [vmem:[%s285 + $0x220] sm:$0xff]
      %v3689 = vld [vmem:[%s285 + $0x228] sm:$0xff]
      %v3690 = vld [vmem:[%s285 + $0x230] sm:$0xff]
      %v3691 = vld [vmem:[%s285 + $0x238] sm:$0xff]
      %v3692 = vld [vmem:[%s285 + $0x240] sm:$0xff]
      %v3693 = vld [vmem:[%s285 + $0x248] sm:$0xff]
      %v3694 = vld [vmem:[%s285 + $0x250] sm:$0xff]
      %v3695 = vld [vmem:[%s285 + $0x258] sm:$0xff]
      %v3696 = vld [vmem:[%s285 + $0x260] sm:$0xff]
      %v3697 = vld [vmem:[%s285 + $0x268] sm:$0xff]
      %v3698 = vld [vmem:[%s285 + $0x270] sm:$0xff]
      %v3699 = vld [vmem:[%s285 + $0x278] sm:$0xff]
      %v3700 = vld [vmem:[%s285 + $0x280] sm:$0xff]
      %v3701 = vld [vmem:[%s285 + $0x288] sm:$0xff]
      %v3702 = vld [vmem:[%s285 + $0x290] sm:$0xff]
      %v3703 = vld [vmem:[%s285 + $0x298] sm:$0xff]
      %v3704 = vld [vmem:[%s285 + $0x2a0] sm:$0xff]
      %v3705 = vld [vmem:[%s285 + $0x2a8] sm:$0xff]
      %v3706 = vld [vmem:[%s285 + $0x2b0] sm:$0xff]
      %v3707 = vld [vmem:[%s285 + $0x2b8] sm:$0xff]
      %v3708 = vld [vmem:[%s285 + $0x2c0] sm:$0xff]
      %v3709 = vld [vmem:[%s285 + $0x2c8] sm:$0xff]
      %v3710 = vld [vmem:[%s285 + $0x2d0] sm:$0xff]
      %v3711 = vld [vmem:[%s285 + $0x2d8] sm:$0xff]
      %v3712 = vld [vmem:[%s285 + $0x2e0] sm:$0xff]
      %v3713 = vld [vmem:[%s285 + $0x2e8] sm:$0xff]
      %v3714 = vld [vmem:[%s285 + $0x2f0] sm:$0xff]
      %v3715 = vld [vmem:[%s285 + $0x2f8] sm:$0xff]
      %v3716 = vld [vmem:[%s285 + $0x300] sm:$0xff]
      %v3717 = vld [vmem:[%s285 + $0x308] sm:$0xff]
      %v3718 = vld [vmem:[%s285 + $0x310] sm:$0xff]
      %v3719 = vld [vmem:[%s285 + $0x318] sm:$0xff]
      %v3720 = vld [vmem:[%s285 + $0x320] sm:$0xff]
      %v3721 = vld [vmem:[%s285 + $0x328] sm:$0xff]
      %v3722 = vld [vmem:[%s285 + $0x330] sm:$0xff]
      %v3723 = vld [vmem:[%s285 + $0x338] sm:$0xff]
      %v3724 = vld [vmem:[%s285 + $0x340] sm:$0xff]
      %v3725 = vld [vmem:[%s285 + $0x348] sm:$0xff]
      %v3726 = vld [vmem:[%s285 + $0x350] sm:$0xff]
      %v3727 = vld [vmem:[%s285 + $0x358] sm:$0xff]
      %v3728 = vld [vmem:[%s285 + $0x360] sm:$0xff]
      %v3729 = vld [vmem:[%s285 + $0x368] sm:$0xff]
      %v3730 = vld [vmem:[%s285 + $0x370] sm:$0xff]
      %v3731 = vld [vmem:[%s285 + $0x378] sm:$0xff]
      %v3732 = vld [vmem:[%s285 + $0x380] sm:$0xff]
      %v3733 = vld [vmem:[%s285 + $0x388] sm:$0xff]
      %v3734 = vld [vmem:[%s285 + $0x390] sm:$0xff]
      %v3735 = vld [vmem:[%s285 + $0x398] sm:$0xff]
      %v3736 = vld [vmem:[%s285 + $0x3a0] sm:$0xff]
      %v3737 = vld [vmem:[%s285 + $0x3a8] sm:$0xff]
      %v3738 = vld [vmem:[%s285 + $0x3b0] sm:$0xff]
      %v3739 = vld [vmem:[%s285 + $0x3b8] sm:$0xff]
      %v3740 = vld [vmem:[%s285 + $0x3c0] sm:$0xff]
      %v3741 = vld [vmem:[%s285 + $0x3c8] sm:$0xff]
      %v3742 = vld [vmem:[%s285 + $0x3d0] sm:$0xff]
      %v3743 = vld [vmem:[%s285 + $0x3d8] sm:$0xff]
      %v3744 = vld [vmem:[%s285 + $0x3e0] sm:$0xff]
      %v3745 = vld [vmem:[%s285 + $0x3e8] sm:$0xff]
      %v3746 = vld [vmem:[%s285 + $0x3f0] sm:$0xff]
      %v3747 = vld [vmem:[%s285 + $0x3f8] sm:$0xff]
      %v3748 = vld [vmem:[%s285 + $0x400] sm:$0xff]
      %v3749 = vld [vmem:[%s285 + $0x408] sm:$0xff]
      %v3750 = vld [vmem:[%s285 + $0x410] sm:$0xff]
      %v3751 = vld [vmem:[%s285 + $0x418] sm:$0xff]
      %v3752 = vld [vmem:[%s285 + $0x420] sm:$0xff]
      %v3753 = vld [vmem:[%s285 + $0x428] sm:$0xff]
      %v3754 = vld [vmem:[%s285 + $0x430] sm:$0xff]
      %v3755 = vld [vmem:[%s285 + $0x438] sm:$0xff]
      %v3756 = vld [vmem:[%s285 + $0x440] sm:$0xff]
      %v3757 = vld [vmem:[%s285 + $0x448] sm:$0xff]
      %v3758 = vld [vmem:[%s285 + $0x450] sm:$0xff]
      %v3759 = vld [vmem:[%s285 + $0x458] sm:$0xff]
      %v3760 = vld [vmem:[%s285 + $0x460] sm:$0xff]
      %v3761 = vld [vmem:[%s285 + $0x468] sm:$0xff]
      %v3762 = vld [vmem:[%s285 + $0x470] sm:$0xff]
      %v3763 = vld [vmem:[%s285 + $0x478] sm:$0xff]
      %v3764 = vld [vmem:[%s285 + $0x480] sm:$0xff]
      %v3765 = vld [vmem:[%s285 + $0x488] sm:$0xff]
      %v3766 = vld [vmem:[%s285 + $0x490] sm:$0xff]
      %v3767 = vld [vmem:[%s285 + $0x498] sm:$0xff]
      %v3768 = vld [vmem:[%s285 + $0x4a0] sm:$0xff]
      %v3769 = vld [vmem:[%s285 + $0x4a8] sm:$0xff]
      %v3770 = vld [vmem:[%s285 + $0x4b0] sm:$0xff]
      %v3771 = vld [vmem:[%s285 + $0x4b8] sm:$0xff]
      %v3772 = vld [vmem:[%s285 + $0x4c0] sm:$0xff]
      %v3773 = vld [vmem:[%s285 + $0x4c8] sm:$0xff]
      %v3774 = vld [vmem:[%s285 + $0x4d0] sm:$0xff]
      %v3775 = vld [vmem:[%s285 + $0x4d8] sm:$0xff]
      %v3776 = vld [vmem:[%s285 + $0x4e0] sm:$0xff]
      %v3777 = vld [vmem:[%s285 + $0x4e8] sm:$0xff]
      %v3778 = vld [vmem:[%s285 + $0x4f0] sm:$0xff]
      %v3779 = vld [vmem:[%s285 + $0x4f8] sm:$0xff]
      %v3780 = vld [vmem:[%s285 + $0x500] sm:$0xff]
      %v3781 = vld [vmem:[%s285 + $0x508] sm:$0xff]
      %v3782 = vld [vmem:[%s285 + $0x510] sm:$0xff]
      %v3783 = vld [vmem:[%s285 + $0x518] sm:$0xff]
      %v3784 = vld [vmem:[%s285 + $0x520] sm:$0xff]
      %v3785 = vld [vmem:[%s285 + $0x528] sm:$0xff]
      %v3786 = vld [vmem:[%s285 + $0x530] sm:$0xff]
      %v3787 = vld [vmem:[%s285 + $0x538] sm:$0xff]
      %v3788 = vld [vmem:[%s285 + $0x540] sm:$0xff]
      %v3789 = vld [vmem:[%s285 + $0x548] sm:$0xff]
      %v3790 = vld [vmem:[%s285 + $0x550] sm:$0xff]
      %v3791 = vld [vmem:[%s285 + $0x558] sm:$0xff]
      %v3792 = vld [vmem:[%s285 + $0x560] sm:$0xff]
      %v3793 = vld [vmem:[%s285 + $0x568] sm:$0xff]
      %v3794 = vld [vmem:[%s285 + $0x570] sm:$0xff]
      %v3795 = vld [vmem:[%s285 + $0x578] sm:$0xff]
      %v3796 = vld [vmem:[%s285 + $0x580] sm:$0xff]
      %v3797 = vld [vmem:[%s285 + $0x588] sm:$0xff]
      %v3798 = vld [vmem:[%s285 + $0x590] sm:$0xff]
      %v3799 = vld [vmem:[%s285 + $0x598] sm:$0xff]
      %v3800 = vld [vmem:[%s285 + $0x5a0] sm:$0xff]
      %v3801 = vld [vmem:[%s285 + $0x5a8] sm:$0xff]
      %v3802 = vld [vmem:[%s285 + $0x5b0] sm:$0xff]
      %v3803 = vld [vmem:[%s285 + $0x5b8] sm:$0xff]
      %v3804 = vld [vmem:[%s285 + $0x5c0] sm:$0xff]
      %v3805 = vld [vmem:[%s285 + $0x5c8] sm:$0xff]
      %v3806 = vld [vmem:[%s285 + $0x5d0] sm:$0xff]
      %v3807 = vld [vmem:[%s285 + $0x5d8] sm:$0xff]
      %v3808 = vld [vmem:[%s285 + $0x5e0] sm:$0xff]
      %v3809 = vld [vmem:[%s285 + $0x5e8] sm:$0xff]
      %v3810 = vld [vmem:[%s285 + $0x5f0] sm:$0xff]
      %v3811 = vld [vmem:[%s285 + $0x5f8] sm:$0xff]
      %v3812 = vld [vmem:[%s285 + $0x600] sm:$0xff]
      %v3813 = vld [vmem:[%s285 + $0x608] sm:$0xff]
      %v3814 = vld [vmem:[%s285 + $0x610] sm:$0xff]
      %v3815 = vld [vmem:[%s285 + $0x618] sm:$0xff]
      %v3816 = vld [vmem:[%s285 + $0x620] sm:$0xff]
      %v3817 = vld [vmem:[%s285 + $0x628] sm:$0xff]
      %v3818 = vld [vmem:[%s285 + $0x630] sm:$0xff]
      %v3819 = vld [vmem:[%s285 + $0x638] sm:$0xff]
      %v3820 = vld [vmem:[%s285 + $0x640] sm:$0xff]
      %v3821 = vld [vmem:[%s285 + $0x648] sm:$0xff]
      %v3822 = vld [vmem:[%s285 + $0x650] sm:$0xff]
      %v3823 = vld [vmem:[%s285 + $0x658] sm:$0xff]
      %v3824 = vld [vmem:[%s285 + $0x660] sm:$0xff]
      %v3825 = vld [vmem:[%s285 + $0x668] sm:$0xff]
      %v3826 = vld [vmem:[%s285 + $0x670] sm:$0xff]
      %v3827 = vld [vmem:[%s285 + $0x678] sm:$0xff]
      %v3828 = vld [vmem:[%s285 + $0x680] sm:$0xff]
      %v3829 = vld [vmem:[%s285 + $0x688] sm:$0xff]
      %v3830 = vld [vmem:[%s285 + $0x690] sm:$0xff]
      %v3831 = vld [vmem:[%s285 + $0x698] sm:$0xff]
      %v3832 = vld [vmem:[%s285 + $0x6a0] sm:$0xff]
      %v3833 = vld [vmem:[%s285 + $0x6a8] sm:$0xff]
      %v3834 = vld [vmem:[%s285 + $0x6b0] sm:$0xff]
      %v3835 = vld [vmem:[%s285 + $0x6b8] sm:$0xff]
      %v3836 = vld [vmem:[%s285 + $0x6c0] sm:$0xff]
      %v3837 = vld [vmem:[%s285 + $0x6c8] sm:$0xff]
      %v3838 = vld [vmem:[%s285 + $0x6d0] sm:$0xff]
      %v3839 = vld [vmem:[%s285 + $0x6d8] sm:$0xff]
      %v3840 = vld [vmem:[%s285 + $0x6e0] sm:$0xff]
      %v3841 = vld [vmem:[%s285 + $0x6e8] sm:$0xff]
      %v3842 = vld [vmem:[%s285 + $0x6f0] sm:$0xff]
      %v3843 = vld [vmem:[%s285 + $0x6f8] sm:$0xff]
      %v3844 = vld [vmem:[%s285 + $0x700] sm:$0xff]
      %v3845 = vld [vmem:[%s285 + $0x708] sm:$0xff]
      %v3846 = vld [vmem:[%s285 + $0x710] sm:$0xff]
      %v3847 = vld [vmem:[%s285 + $0x718] sm:$0xff]
      %v3848 = vld [vmem:[%s285 + $0x720] sm:$0xff]
      %v3849 = vld [vmem:[%s285 + $0x728] sm:$0xff]
      %v3850 = vld [vmem:[%s285 + $0x730] sm:$0xff]
      %v3851 = vld [vmem:[%s285 + $0x738] sm:$0xff]
      %v3852 = vld [vmem:[%s285 + $0x740] sm:$0xff]
      %v3853 = vld [vmem:[%s285 + $0x748] sm:$0xff]
      %v3854 = vld [vmem:[%s285 + $0x750] sm:$0xff]
      %v3855 = vld [vmem:[%s285 + $0x758] sm:$0xff]
      %v3856 = vld [vmem:[%s285 + $0x760] sm:$0xff]
      %v3857 = vld [vmem:[%s285 + $0x768] sm:$0xff]
      %v3858 = vld [vmem:[%s285 + $0x770] sm:$0xff]
      %v3859 = vld [vmem:[%s285 + $0x778] sm:$0xff]
      %v3860 = vld [vmem:[%s285 + $0x780] sm:$0xff]
      %v3861 = vld [vmem:[%s285 + $0x788] sm:$0xff]
      %v3862 = vld [vmem:[%s285 + $0x790] sm:$0xff]
      %v3863 = vld [vmem:[%s285 + $0x798] sm:$0xff]
      %v3864 = vld [vmem:[%s285 + $0x7a0] sm:$0xff]
      %v3865 = vld [vmem:[%s285 + $0x7a8] sm:$0xff]
      %v3866 = vld [vmem:[%s285 + $0x7b0] sm:$0xff]
      %v3867 = vld [vmem:[%s285 + $0x7b8] sm:$0xff]
      %v3868 = vld [vmem:[%s285 + $0x7c0] sm:$0xff]
      %v3869 = vld [vmem:[%s285 + $0x7c8] sm:$0xff]
      %v3870 = vld [vmem:[%s285 + $0x7d0] sm:$0xff]
      %v3871 = vld [vmem:[%s285 + $0x7d8] sm:$0xff]
      %v3872 = vld [vmem:[%s285 + $0x7e0] sm:$0xff]
      %v3873 = vld [vmem:[%s285 + $0x7e8] sm:$0xff]
      %v3874 = vld [vmem:[%s285 + $0x7f0] sm:$0xff]
      %v3875 = vld [vmem:[%s285 + $0x7f8] sm:$0xff]
      %v3876 = vlaneseq
      %v3877 = vshrl.u32 %v3876, 7
      %v3878 = vsub.s32 0, %v3877
      %v3879 = vrot.slane %v2859, %v3878
      %v3880 = vlaneseq
      %v3881 = vshrl.u32 %v3880, 7
      %v3882 = vsub.s32 0, %v3881
      %v3883 = vrot.slane %v2873, %v3882
      %v3884 = vlaneseq
      %v3885 = vshrl.u32 %v3884, 7
      %v3886 = vsub.s32 0, %v3885
      %v3887 = vrot.slane %v2881, %v3886
      %v3888 = vlaneseq
      %v3889 = vshrl.u32 %v3888, 7
      %v3890 = vsub.s32 0, %v3889
      %v3891 = vrot.slane %v2883, %v3890
      %v3892 = vlaneseq
      %v3893 = vshrl.u32 %v3892, 7
      %v3894 = vsub.s32 0, %v3893
      %v3895 = vrot.slane %v2866, %v3894
      %v3896 = vlaneseq
      %v3897 = vshrl.u32 %v3896, 7
      %v3898 = vsub.s32 0, %v3897
      %v3899 = vrot.slane %v2880, %v3898
      %v3900 = vlaneseq
      %v3901 = vshrl.u32 %v3900, 7
      %v3902 = vsub.s32 0, %v3901
      %v3903 = vrot.slane %v2882, %v3902
      %v3904 = vlaneseq
      %v3905 = vshrl.u32 %v3904, 7
      %v3906 = vsub.s32 0, %v3905
      %v3907 = vrot.slane %v2884, %v3906
      %v3908 = vlaneseq
      %v3909 = vshrl.u32 %v3908, 7
      %v3910 = vsub.s32 0, %v3909
      %v3911 = vrot.slane %v2908, %v3910
      %v3912 = vlaneseq
      %v3913 = vshrl.u32 %v3912, 7
      %v3914 = vsub.s32 0, %v3913
      %v3915 = vrot.slane %v2922, %v3914
      %v3916 = vlaneseq
      %v3917 = vshrl.u32 %v3916, 7
      %v3918 = vsub.s32 0, %v3917
      %v3919 = vrot.slane %v2930, %v3918
      %v3920 = vlaneseq
      %v3921 = vshrl.u32 %v3920, 7
      %v3922 = vsub.s32 0, %v3921
      %v3923 = vrot.slane %v2932, %v3922
      %v3924 = vlaneseq
      %v3925 = vshrl.u32 %v3924, 7
      %v3926 = vsub.s32 0, %v3925
      %v3927 = vrot.slane %v2915, %v3926
      %v3928 = vlaneseq
      %v3929 = vshrl.u32 %v3928, 7
      %v3930 = vsub.s32 0, %v3929
      %v3931 = vrot.slane %v2929, %v3930
      %v3932 = vlaneseq
      %v3933 = vshrl.u32 %v3932, 7
      %v3934 = vsub.s32 0, %v3933
      %v3935 = vrot.slane %v2931, %v3934
      %v3936 = vlaneseq
      %v3937 = vshrl.u32 %v3936, 7
      %v3938 = vsub.s32 0, %v3937
      %v3939 = vrot.slane %v2933, %v3938
      %v3940 = vlaneseq
      %v3941 = vshrl.u32 %v3940, 7
      %v3942 = vsub.s32 0, %v3941
      %v3943 = vrot.slane %v2957, %v3942
      %v3944 = vlaneseq
      %v3945 = vshrl.u32 %v3944, 7
      %v3946 = vsub.s32 0, %v3945
      %v3947 = vrot.slane %v2971, %v3946
      %v3948 = vlaneseq
      %v3949 = vshrl.u32 %v3948, 7
      %v3950 = vsub.s32 0, %v3949
      %v3951 = vrot.slane %v2979, %v3950
      %v3952 = vlaneseq
      %v3953 = vshrl.u32 %v3952, 7
      %v3954 = vsub.s32 0, %v3953
      %v3955 = vrot.slane %v2981, %v3954
      %v3956 = vlaneseq
      %v3957 = vshrl.u32 %v3956, 7
      %v3958 = vsub.s32 0, %v3957
      %v3959 = vrot.slane %v2964, %v3958
      %v3960 = vlaneseq
      %v3961 = vshrl.u32 %v3960, 7
      %v3962 = vsub.s32 0, %v3961
      %v3963 = vrot.slane %v2978, %v3962
      %v3964 = vlaneseq
      %v3965 = vshrl.u32 %v3964, 7
      %v3966 = vsub.s32 0, %v3965
      %v3967 = vrot.slane %v2980, %v3966
      %v3968 = vlaneseq
      %v3969 = vshrl.u32 %v3968, 7
      %v3970 = vsub.s32 0, %v3969
      %v3971 = vrot.slane %v2982, %v3970
      %v3972 = vlaneseq
      %v3973 = vshrl.u32 %v3972, 7
      %v3974 = vsub.s32 0, %v3973
      %v3975 = vrot.slane %v3006, %v3974
      %v3976 = vlaneseq
      %v3977 = vshrl.u32 %v3976, 7
      %v3978 = vsub.s32 0, %v3977
      %v3979 = vrot.slane %v3020, %v3978
      %v3980 = vlaneseq
      %v3981 = vshrl.u32 %v3980, 7
      %v3982 = vsub.s32 0, %v3981
      %v3983 = vrot.slane %v3028, %v3982
      %v3984 = vlaneseq
      %v3985 = vshrl.u32 %v3984, 7
      %v3986 = vsub.s32 0, %v3985
      %v3987 = vrot.slane %v3030, %v3986
      %v3988 = vlaneseq
      %v3989 = vshrl.u32 %v3988, 7
      %v3990 = vsub.s32 0, %v3989
      %v3991 = vrot.slane %v3013, %v3990
      %v3992 = vlaneseq
      %v3993 = vshrl.u32 %v3992, 7
      %v3994 = vsub.s32 0, %v3993
      %v3995 = vrot.slane %v3027, %v3994
      %v3996 = vlaneseq
      %v3997 = vshrl.u32 %v3996, 7
      %v3998 = vsub.s32 0, %v3997
      %v3999 = vrot.slane %v3029, %v3998
      %v4000 = vlaneseq
      %v4001 = vshrl.u32 %v4000, 7
      %v4002 = vsub.s32 0, %v4001
      %v4003 = vrot.slane %v3031, %v4002
      %v4004 = vlaneseq
      %v4005 = vshrl.u32 %v4004, 7
      %v4006 = vsub.s32 0, %v4005
      %v4007 = vrot.slane %v3055, %v4006
      %v4008 = vlaneseq
      %v4009 = vshrl.u32 %v4008, 7
      %v4010 = vsub.s32 0, %v4009
      %v4011 = vrot.slane %v3069, %v4010
      %v4012 = vlaneseq
      %v4013 = vshrl.u32 %v4012, 7
      %v4014 = vsub.s32 0, %v4013
      %v4015 = vrot.slane %v3077, %v4014
      %v4016 = vlaneseq
      %v4017 = vshrl.u32 %v4016, 7
      %v4018 = vsub.s32 0, %v4017
      %v4019 = vrot.slane %v3079, %v4018
      %v4020 = vlaneseq
      %v4021 = vshrl.u32 %v4020, 7
      %v4022 = vsub.s32 0, %v4021
      %v4023 = vrot.slane %v3062, %v4022
      %v4024 = vlaneseq
      %v4025 = vshrl.u32 %v4024, 7
      %v4026 = vsub.s32 0, %v4025
      %v4027 = vrot.slane %v3076, %v4026
      %v4028 = vlaneseq
      %v4029 = vshrl.u32 %v4028, 7
      %v4030 = vsub.s32 0, %v4029
      %v4031 = vrot.slane %v3078, %v4030
      %v4032 = vlaneseq
      %v4033 = vshrl.u32 %v4032, 7
      %v4034 = vsub.s32 0, %v4033
      %v4035 = vrot.slane %v3080, %v4034
      %v4036 = vlaneseq
      %v4037 = vshrl.u32 %v4036, 7
      %v4038 = vsub.s32 0, %v4037
      %v4039 = vrot.slane %v3104, %v4038
      %v4040 = vlaneseq
      %v4041 = vshrl.u32 %v4040, 7
      %v4042 = vsub.s32 0, %v4041
      %v4043 = vrot.slane %v3118, %v4042
      %v4044 = vlaneseq
      %v4045 = vshrl.u32 %v4044, 7
      %v4046 = vsub.s32 0, %v4045
      %v4047 = vrot.slane %v3126, %v4046
      %v4048 = vlaneseq
      %v4049 = vshrl.u32 %v4048, 7
      %v4050 = vsub.s32 0, %v4049
      %v4051 = vrot.slane %v3128, %v4050
      %v4052 = vlaneseq
      %v4053 = vshrl.u32 %v4052, 7
      %v4054 = vsub.s32 0, %v4053
      %v4055 = vrot.slane %v3111, %v4054
      %v4056 = vlaneseq
      %v4057 = vshrl.u32 %v4056, 7
      %v4058 = vsub.s32 0, %v4057
      %v4059 = vrot.slane %v3125, %v4058
      %v4060 = vlaneseq
      %v4061 = vshrl.u32 %v4060, 7
      %v4062 = vsub.s32 0, %v4061
      %v4063 = vrot.slane %v3127, %v4062
      %v4064 = vlaneseq
      %v4065 = vshrl.u32 %v4064, 7
      %v4066 = vsub.s32 0, %v4065
      %v4067 = vrot.slane %v3129, %v4066
      %v4068 = vlaneseq
      %v4069 = vshrl.u32 %v4068, 7
      %v4070 = vsub.s32 0, %v4069
      %v4071 = vrot.slane %v3153, %v4070
      %v4072 = vlaneseq
      %v4073 = vshrl.u32 %v4072, 7
      %v4074 = vsub.s32 0, %v4073
      %v4075 = vrot.slane %v3167, %v4074
      %v4076 = vlaneseq
      %v4077 = vshrl.u32 %v4076, 7
      %v4078 = vsub.s32 0, %v4077
      %v4079 = vrot.slane %v3175, %v4078
      %v4080 = vlaneseq
      %v4081 = vshrl.u32 %v4080, 7
      %v4082 = vsub.s32 0, %v4081
      %v4083 = vrot.slane %v3177, %v4082
      %v4084 = vlaneseq
      %v4085 = vshrl.u32 %v4084, 7
      %v4086 = vsub.s32 0, %v4085
      %v4087 = vrot.slane %v3160, %v4086
      %v4088 = vlaneseq
      %v4089 = vshrl.u32 %v4088, 7
      %v4090 = vsub.s32 0, %v4089
      %v4091 = vrot.slane %v3174, %v4090
      %v4092 = vlaneseq
      %v4093 = vshrl.u32 %v4092, 7
      %v4094 = vsub.s32 0, %v4093
      %v4095 = vrot.slane %v3176, %v4094
      %v4096 = vlaneseq
      %v4097 = vshrl.u32 %v4096, 7
      %v4098 = vsub.s32 0, %v4097
      %v4099 = vrot.slane %v3178, %v4098
      %v4100 = vlaneseq
      %v4101 = vshrl.u32 %v4100, 7
      %v4102 = vsub.s32 0, %v4101
      %v4103 = vrot.slane %v3202, %v4102
      %v4104 = vlaneseq
      %v4105 = vshrl.u32 %v4104, 7
      %v4106 = vsub.s32 0, %v4105
      %v4107 = vrot.slane %v3216, %v4106
      %v4108 = vlaneseq
      %v4109 = vshrl.u32 %v4108, 7
      %v4110 = vsub.s32 0, %v4109
      %v4111 = vrot.slane %v3224, %v4110
      %v4112 = vlaneseq
      %v4113 = vshrl.u32 %v4112, 7
      %v4114 = vsub.s32 0, %v4113
      %v4115 = vrot.slane %v3226, %v4114
      %v4116 = vlaneseq
      %v4117 = vshrl.u32 %v4116, 7
      %v4118 = vsub.s32 0, %v4117
      %v4119 = vrot.slane %v3209, %v4118
      %v4120 = vlaneseq
      %v4121 = vshrl.u32 %v4120, 7
      %v4122 = vsub.s32 0, %v4121
      %v4123 = vrot.slane %v3223, %v4122
      %v4124 = vlaneseq
      %v4125 = vshrl.u32 %v4124, 7
      %v4126 = vsub.s32 0, %v4125
      %v4127 = vrot.slane %v3225, %v4126
      %v4128 = vlaneseq
      %v4129 = vshrl.u32 %v4128, 7
      %v4130 = vsub.s32 0, %v4129
      %v4131 = vrot.slane %v3227, %v4130
      %v4132 = vlaneseq
      %v4133 = vshrl.u32 %v4132, 7
      %v4134 = vsub.s32 0, %v4133
      %v4135 = vrot.slane %v3251, %v4134
      %v4136 = vlaneseq
      %v4137 = vshrl.u32 %v4136, 7
      %v4138 = vsub.s32 0, %v4137
      %v4139 = vrot.slane %v3265, %v4138
      %v4140 = vlaneseq
      %v4141 = vshrl.u32 %v4140, 7
      %v4142 = vsub.s32 0, %v4141
      %v4143 = vrot.slane %v3273, %v4142
      %v4144 = vlaneseq
      %v4145 = vshrl.u32 %v4144, 7
      %v4146 = vsub.s32 0, %v4145
      %v4147 = vrot.slane %v3275, %v4146
      %v4148 = vlaneseq
      %v4149 = vshrl.u32 %v4148, 7
      %v4150 = vsub.s32 0, %v4149
      %v4151 = vrot.slane %v3258, %v4150
      %v4152 = vlaneseq
      %v4153 = vshrl.u32 %v4152, 7
      %v4154 = vsub.s32 0, %v4153
      %v4155 = vrot.slane %v3272, %v4154
      %v4156 = vlaneseq
      %v4157 = vshrl.u32 %v4156, 7
      %v4158 = vsub.s32 0, %v4157
      %v4159 = vrot.slane %v3274, %v4158
      %v4160 = vlaneseq
      %v4161 = vshrl.u32 %v4160, 7
      %v4162 = vsub.s32 0, %v4161
      %v4163 = vrot.slane %v3276, %v4162
      %v4164 = vlaneseq
      %v4165 = vshrl.u32 %v4164, 7
      %v4166 = vsub.s32 0, %v4165
      %v4167 = vrot.slane %v3300, %v4166
      %v4168 = vlaneseq
      %v4169 = vshrl.u32 %v4168, 7
      %v4170 = vsub.s32 0, %v4169
      %v4171 = vrot.slane %v3314, %v4170
      %v4172 = vlaneseq
      %v4173 = vshrl.u32 %v4172, 7
      %v4174 = vsub.s32 0, %v4173
      %v4175 = vrot.slane %v3322, %v4174
      %v4176 = vlaneseq
      %v4177 = vshrl.u32 %v4176, 7
      %v4178 = vsub.s32 0, %v4177
      %v4179 = vrot.slane %v3324, %v4178
      %v4180 = vlaneseq
      %v4181 = vshrl.u32 %v4180, 7
      %v4182 = vsub.s32 0, %v4181
      %v4183 = vrot.slane %v3307, %v4182
      %v4184 = vlaneseq
      %v4185 = vshrl.u32 %v4184, 7
      %v4186 = vsub.s32 0, %v4185
      %v4187 = vrot.slane %v3321, %v4186
      %v4188 = vlaneseq
      %v4189 = vshrl.u32 %v4188, 7
      %v4190 = vsub.s32 0, %v4189
      %v4191 = vrot.slane %v3323, %v4190
      %v4192 = vlaneseq
      %v4193 = vshrl.u32 %v4192, 7
      %v4194 = vsub.s32 0, %v4193
      %v4195 = vrot.slane %v3325, %v4194
      %v4196 = vlaneseq
      %v4197 = vshrl.u32 %v4196, 7
      %v4198 = vsub.s32 0, %v4197
      %v4199 = vrot.slane %v3349, %v4198
      %v4200 = vlaneseq
      %v4201 = vshrl.u32 %v4200, 7
      %v4202 = vsub.s32 0, %v4201
      %v4203 = vrot.slane %v3363, %v4202
      %v4204 = vlaneseq
      %v4205 = vshrl.u32 %v4204, 7
      %v4206 = vsub.s32 0, %v4205
      %v4207 = vrot.slane %v3371, %v4206
      %v4208 = vlaneseq
      %v4209 = vshrl.u32 %v4208, 7
      %v4210 = vsub.s32 0, %v4209
      %v4211 = vrot.slane %v3373, %v4210
      %v4212 = vlaneseq
      %v4213 = vshrl.u32 %v4212, 7
      %v4214 = vsub.s32 0, %v4213
      %v4215 = vrot.slane %v3356, %v4214
      %v4216 = vlaneseq
      %v4217 = vshrl.u32 %v4216, 7
      %v4218 = vsub.s32 0, %v4217
      %v4219 = vrot.slane %v3370, %v4218
      %v4220 = vlaneseq
      %v4221 = vshrl.u32 %v4220, 7
      %v4222 = vsub.s32 0, %v4221
      %v4223 = vrot.slane %v3372, %v4222
      %v4224 = vlaneseq
      %v4225 = vshrl.u32 %v4224, 7
      %v4226 = vsub.s32 0, %v4225
      %v4227 = vrot.slane %v3374, %v4226
      %v4228 = vlaneseq
      %v4229 = vshrl.u32 %v4228, 7
      %v4230 = vsub.s32 0, %v4229
      %v4231 = vrot.slane %v3398, %v4230
      %v4232 = vlaneseq
      %v4233 = vshrl.u32 %v4232, 7
      %v4234 = vsub.s32 0, %v4233
      %v4235 = vrot.slane %v3412, %v4234
      %v4236 = vlaneseq
      %v4237 = vshrl.u32 %v4236, 7
      %v4238 = vsub.s32 0, %v4237
      %v4239 = vrot.slane %v3420, %v4238
      %v4240 = vlaneseq
      %v4241 = vshrl.u32 %v4240, 7
      %v4242 = vsub.s32 0, %v4241
      %v4243 = vrot.slane %v3422, %v4242
      %v4244 = vlaneseq
      %v4245 = vshrl.u32 %v4244, 7
      %v4246 = vsub.s32 0, %v4245
      %v4247 = vrot.slane %v3405, %v4246
      %v4248 = vlaneseq
      %v4249 = vshrl.u32 %v4248, 7
      %v4250 = vsub.s32 0, %v4249
      %v4251 = vrot.slane %v3419, %v4250
      %v4252 = vlaneseq
      %v4253 = vshrl.u32 %v4252, 7
      %v4254 = vsub.s32 0, %v4253
      %v4255 = vrot.slane %v3421, %v4254
      %v4256 = vlaneseq
      %v4257 = vshrl.u32 %v4256, 7
      %v4258 = vsub.s32 0, %v4257
      %v4259 = vrot.slane %v3423, %v4258
      %v4260 = vlaneseq
      %v4261 = vshrl.u32 %v4260, 7
      %v4262 = vsub.s32 0, %v4261
      %v4263 = vrot.slane %v3447, %v4262
      %v4264 = vlaneseq
      %v4265 = vshrl.u32 %v4264, 7
      %v4266 = vsub.s32 0, %v4265
      %v4267 = vrot.slane %v3461, %v4266
      %v4268 = vlaneseq
      %v4269 = vshrl.u32 %v4268, 7
      %v4270 = vsub.s32 0, %v4269
      %v4271 = vrot.slane %v3469, %v4270
      %v4272 = vlaneseq
      %v4273 = vshrl.u32 %v4272, 7
      %v4274 = vsub.s32 0, %v4273
      %v4275 = vrot.slane %v3471, %v4274
      %v4276 = vlaneseq
      %v4277 = vshrl.u32 %v4276, 7
      %v4278 = vsub.s32 0, %v4277
      %v4279 = vrot.slane %v3454, %v4278
      %v4280 = vlaneseq
      %v4281 = vshrl.u32 %v4280, 7
      %v4282 = vsub.s32 0, %v4281
      %v4283 = vrot.slane %v3468, %v4282
      %v4284 = vlaneseq
      %v4285 = vshrl.u32 %v4284, 7
      %v4286 = vsub.s32 0, %v4285
      %v4287 = vrot.slane %v3470, %v4286
      %v4288 = vlaneseq
      %v4289 = vshrl.u32 %v4288, 7
      %v4290 = vsub.s32 0, %v4289
      %v4291 = vrot.slane %v3472, %v4290
      %v4292 = vlaneseq
      %v4293 = vshrl.u32 %v4292, 7
      %v4294 = vsub.s32 0, %v4293
      %v4295 = vrot.slane %v3496, %v4294
      %v4296 = vlaneseq
      %v4297 = vshrl.u32 %v4296, 7
      %v4298 = vsub.s32 0, %v4297
      %v4299 = vrot.slane %v3510, %v4298
      %v4300 = vlaneseq
      %v4301 = vshrl.u32 %v4300, 7
      %v4302 = vsub.s32 0, %v4301
      %v4303 = vrot.slane %v3518, %v4302
      %v4304 = vlaneseq
      %v4305 = vshrl.u32 %v4304, 7
      %v4306 = vsub.s32 0, %v4305
      %v4307 = vrot.slane %v3520, %v4306
      %v4308 = vlaneseq
      %v4309 = vshrl.u32 %v4308, 7
      %v4310 = vsub.s32 0, %v4309
      %v4311 = vrot.slane %v3503, %v4310
      %v4312 = vlaneseq
      %v4313 = vshrl.u32 %v4312, 7
      %v4314 = vsub.s32 0, %v4313
      %v4315 = vrot.slane %v3517, %v4314
      %v4316 = vlaneseq
      %v4317 = vshrl.u32 %v4316, 7
      %v4318 = vsub.s32 0, %v4317
      %v4319 = vrot.slane %v3519, %v4318
      %v4320 = vlaneseq
      %v4321 = vshrl.u32 %v4320, 7
      %v4322 = vsub.s32 0, %v4321
      %v4323 = vrot.slane %v3521, %v4322
      %v4324 = vlaneseq
      %v4325 = vshrl.u32 %v4324, 7
      %v4326 = vsub.s32 0, %v4325
      %v4327 = vrot.slane %v3545, %v4326
      %v4328 = vlaneseq
      %v4329 = vshrl.u32 %v4328, 7
      %v4330 = vsub.s32 0, %v4329
      %v4331 = vrot.slane %v3559, %v4330
      %v4332 = vlaneseq
      %v4333 = vshrl.u32 %v4332, 7
      %v4334 = vsub.s32 0, %v4333
      %v4335 = vrot.slane %v3567, %v4334
      %v4336 = vlaneseq
      %v4337 = vshrl.u32 %v4336, 7
      %v4338 = vsub.s32 0, %v4337
      %v4339 = vrot.slane %v3569, %v4338
      %v4340 = vlaneseq
      %v4341 = vshrl.u32 %v4340, 7
      %v4342 = vsub.s32 0, %v4341
      %v4343 = vrot.slane %v3552, %v4342
      %v4344 = vlaneseq
      %v4345 = vshrl.u32 %v4344, 7
      %v4346 = vsub.s32 0, %v4345
      %v4347 = vrot.slane %v3566, %v4346
      %v4348 = vlaneseq
      %v4349 = vshrl.u32 %v4348, 7
      %v4350 = vsub.s32 0, %v4349
      %v4351 = vrot.slane %v3568, %v4350
      %v4352 = vlaneseq
      %v4353 = vshrl.u32 %v4352, 7
      %v4354 = vsub.s32 0, %v4353
      %v4355 = vrot.slane %v3570, %v4354
      %v4356 = vlaneseq
      %v4357 = vshrl.u32 %v4356, 7
      %v4358 = vsub.s32 0, %v4357
      %v4359 = vrot.slane %v3594, %v4358
      %v4360 = vlaneseq
      %v4361 = vshrl.u32 %v4360, 7
      %v4362 = vsub.s32 0, %v4361
      %v4363 = vrot.slane %v3608, %v4362
      %v4364 = vlaneseq
      %v4365 = vshrl.u32 %v4364, 7
      %v4366 = vsub.s32 0, %v4365
      %v4367 = vrot.slane %v3616, %v4366
      %v4368 = vlaneseq
      %v4369 = vshrl.u32 %v4368, 7
      %v4370 = vsub.s32 0, %v4369
      %v4371 = vrot.slane %v3618, %v4370
      %v4372 = vlaneseq
      %v4373 = vshrl.u32 %v4372, 7
      %v4374 = vsub.s32 0, %v4373
      %v4375 = vrot.slane %v3601, %v4374
      %v4376 = vlaneseq
      %v4377 = vshrl.u32 %v4376, 7
      %v4378 = vsub.s32 0, %v4377
      %v4379 = vrot.slane %v3615, %v4378
      %v4380 = vlaneseq
      %v4381 = vshrl.u32 %v4380, 7
      %v4382 = vsub.s32 0, %v4381
      %v4383 = vrot.slane %v3617, %v4382
      %v4384 = vlaneseq
      %v4385 = vshrl.u32 %v4384, 7
      %v4386 = vsub.s32 0, %v4385
      %v4387 = vrot.slane %v3619, %v4386
      %v4516 = vmul.f32 %v3879, %v3620
      %v4517 = vmul.f32 %v3879, %v3621
      %v4518 = vmul.f32 %v3883, %v3622
      %v4519 = vmul.f32 %v3883, %v3623
      %v4520 = vmul.f32 %v3887, %v3624
      %v4521 = vmul.f32 %v3887, %v3625
      %v4522 = vmul.f32 %v3891, %v3626
      %v4523 = vmul.f32 %v3891, %v3627
      %v4524 = vmul.f32 %v3895, %v3628
      %v4525 = vmul.f32 %v3895, %v3629
      %v4526 = vmul.f32 %v3899, %v3630
      %v4527 = vmul.f32 %v3899, %v3631
      %v4528 = vmul.f32 %v3903, %v3632
      %v4529 = vmul.f32 %v3903, %v3633
      %v4530 = vmul.f32 %v3907, %v3634
      %v4531 = vmul.f32 %v3907, %v3635
      %v4532 = vmul.f32 %v3911, %v3636
      %v4533 = vmul.f32 %v3911, %v3637
      %v4534 = vmul.f32 %v3915, %v3638
      %v4535 = vmul.f32 %v3915, %v3639
      %v4536 = vmul.f32 %v3919, %v3640
      %v4537 = vmul.f32 %v3919, %v3641
      %v4538 = vmul.f32 %v3923, %v3642
      %v4539 = vmul.f32 %v3923, %v3643
      %v4540 = vmul.f32 %v3927, %v3644
      %v4541 = vmul.f32 %v3927, %v3645
      %v4542 = vmul.f32 %v3931, %v3646
      %v4543 = vmul.f32 %v3931, %v3647
      %v4544 = vmul.f32 %v3935, %v3648
      %v4545 = vmul.f32 %v3935, %v3649
      %v4546 = vmul.f32 %v3939, %v3650
      %v4547 = vmul.f32 %v3939, %v3651
      %v4548 = vmul.f32 %v3943, %v3652
      %v4549 = vmul.f32 %v3943, %v3653
      %v4550 = vmul.f32 %v3947, %v3654
      %v4551 = vmul.f32 %v3947, %v3655
      %v4552 = vmul.f32 %v3951, %v3656
      %v4553 = vmul.f32 %v3951, %v3657
      %v4554 = vmul.f32 %v3955, %v3658
      %v4555 = vmul.f32 %v3955, %v3659
      %v4556 = vmul.f32 %v3959, %v3660
      %v4557 = vmul.f32 %v3959, %v3661
      %v4558 = vmul.f32 %v3963, %v3662
      %v4559 = vmul.f32 %v3963, %v3663
      %v4560 = vmul.f32 %v3967, %v3664
      %v4561 = vmul.f32 %v3967, %v3665
      %v4562 = vmul.f32 %v3971, %v3666
      %v4563 = vmul.f32 %v3971, %v3667
      %v4564 = vmul.f32 %v3975, %v3668
      %v4565 = vmul.f32 %v3975, %v3669
      %v4566 = vmul.f32 %v3979, %v3670
      %v4567 = vmul.f32 %v3979, %v3671
      %v4568 = vmul.f32 %v3983, %v3672
      %v4569 = vmul.f32 %v3983, %v3673
      %v4570 = vmul.f32 %v3987, %v3674
      %v4571 = vmul.f32 %v3987, %v3675
      %v4572 = vmul.f32 %v3991, %v3676
      %v4573 = vmul.f32 %v3991, %v3677
      %v4574 = vmul.f32 %v3995, %v3678
      %v4575 = vmul.f32 %v3995, %v3679
      %v4576 = vmul.f32 %v3999, %v3680
      %v4577 = vmul.f32 %v3999, %v3681
      %v4578 = vmul.f32 %v4003, %v3682
      %v4579 = vmul.f32 %v4003, %v3683
      %v4580 = vmul.f32 %v4007, %v3684
      %v4581 = vmul.f32 %v4007, %v3685
      %v4582 = vmul.f32 %v4011, %v3686
      %v4583 = vmul.f32 %v4011, %v3687
      %v4584 = vmul.f32 %v4015, %v3688
      %v4585 = vmul.f32 %v4015, %v3689
      %v4586 = vmul.f32 %v4019, %v3690
      %v4587 = vmul.f32 %v4019, %v3691
      %v4588 = vmul.f32 %v4023, %v3692
      %v4589 = vmul.f32 %v4023, %v3693
      %v4590 = vmul.f32 %v4027, %v3694
      %v4591 = vmul.f32 %v4027, %v3695
      %v4592 = vmul.f32 %v4031, %v3696
      %v4593 = vmul.f32 %v4031, %v3697
      %v4594 = vmul.f32 %v4035, %v3698
      %v4595 = vmul.f32 %v4035, %v3699
      %v4596 = vmul.f32 %v4039, %v3700
      %v4597 = vmul.f32 %v4039, %v3701
      %v4598 = vmul.f32 %v4043, %v3702
      %v4599 = vmul.f32 %v4043, %v3703
      %v4600 = vmul.f32 %v4047, %v3704
      %v4601 = vmul.f32 %v4047, %v3705
      %v4602 = vmul.f32 %v4051, %v3706
      %v4603 = vmul.f32 %v4051, %v3707
      %v4604 = vmul.f32 %v4055, %v3708
      %v4605 = vmul.f32 %v4055, %v3709
      %v4606 = vmul.f32 %v4059, %v3710
      %v4607 = vmul.f32 %v4059, %v3711
      %v4608 = vmul.f32 %v4063, %v3712
      %v4609 = vmul.f32 %v4063, %v3713
      %v4610 = vmul.f32 %v4067, %v3714
      %v4611 = vmul.f32 %v4067, %v3715
      %v4612 = vmul.f32 %v4071, %v3716
      %v4613 = vmul.f32 %v4071, %v3717
      %v4614 = vmul.f32 %v4075, %v3718
      %v4615 = vmul.f32 %v4075, %v3719
      %v4616 = vmul.f32 %v4079, %v3720
      %v4617 = vmul.f32 %v4079, %v3721
      %v4618 = vmul.f32 %v4083, %v3722
      %v4619 = vmul.f32 %v4083, %v3723
      %v4620 = vmul.f32 %v4087, %v3724
      %v4621 = vmul.f32 %v4087, %v3725
      %v4622 = vmul.f32 %v4091, %v3726
      %v4623 = vmul.f32 %v4091, %v3727
      %v4624 = vmul.f32 %v4095, %v3728
      %v4625 = vmul.f32 %v4095, %v3729
      %v4626 = vmul.f32 %v4099, %v3730
      %v4627 = vmul.f32 %v4099, %v3731
      %v4628 = vmul.f32 %v4103, %v3732
      %v4629 = vmul.f32 %v4103, %v3733
      %v4630 = vmul.f32 %v4107, %v3734
      %v4631 = vmul.f32 %v4107, %v3735
      %v4632 = vmul.f32 %v4111, %v3736
      %v4633 = vmul.f32 %v4111, %v3737
      %v4634 = vmul.f32 %v4115, %v3738
      %v4635 = vmul.f32 %v4115, %v3739
      %v4636 = vmul.f32 %v4119, %v3740
      %v4637 = vmul.f32 %v4119, %v3741
      %v4638 = vmul.f32 %v4123, %v3742
      %v4639 = vmul.f32 %v4123, %v3743
      %v4640 = vmul.f32 %v4127, %v3744
      %v4641 = vmul.f32 %v4127, %v3745
      %v4642 = vmul.f32 %v4131, %v3746
      %v4643 = vmul.f32 %v4131, %v3747
      %v4644 = vmul.f32 %v4135, %v3748
      %v4645 = vmul.f32 %v4135, %v3749
      %v4646 = vmul.f32 %v4139, %v3750
      %v4647 = vmul.f32 %v4139, %v3751
      %v4648 = vmul.f32 %v4143, %v3752
      %v4649 = vmul.f32 %v4143, %v3753
      %v4650 = vmul.f32 %v4147, %v3754
      %v4651 = vmul.f32 %v4147, %v3755
      %v4652 = vmul.f32 %v4151, %v3756
      %v4653 = vmul.f32 %v4151, %v3757
      %v4654 = vmul.f32 %v4155, %v3758
      %v4655 = vmul.f32 %v4155, %v3759
      %v4656 = vmul.f32 %v4159, %v3760
      %v4657 = vmul.f32 %v4159, %v3761
      %v4658 = vmul.f32 %v4163, %v3762
      %v4659 = vmul.f32 %v4163, %v3763
      %v4660 = vmul.f32 %v4167, %v3764
      %v4661 = vmul.f32 %v4167, %v3765
      %v4662 = vmul.f32 %v4171, %v3766
      %v4663 = vmul.f32 %v4171, %v3767
      %v4664 = vmul.f32 %v4175, %v3768
      %v4665 = vmul.f32 %v4175, %v3769
      %v4666 = vmul.f32 %v4179, %v3770
      %v4667 = vmul.f32 %v4179, %v3771
      %v4668 = vmul.f32 %v4183, %v3772
      %v4669 = vmul.f32 %v4183, %v3773
      %v4670 = vmul.f32 %v4187, %v3774
      %v4671 = vmul.f32 %v4187, %v3775
      %v4672 = vmul.f32 %v4191, %v3776
      %v4673 = vmul.f32 %v4191, %v3777
      %v4674 = vmul.f32 %v4195, %v3778
      %v4675 = vmul.f32 %v4195, %v3779
      %v4676 = vmul.f32 %v4199, %v3780
      %v4677 = vmul.f32 %v4199, %v3781
      %v4678 = vmul.f32 %v4203, %v3782
      %v4679 = vmul.f32 %v4203, %v3783
      %v4680 = vmul.f32 %v4207, %v3784
      %v4681 = vmul.f32 %v4207, %v3785
      %v4682 = vmul.f32 %v4211, %v3786
      %v4683 = vmul.f32 %v4211, %v3787
      %v4684 = vmul.f32 %v4215, %v3788
      %v4685 = vmul.f32 %v4215, %v3789
      %v4686 = vmul.f32 %v4219, %v3790
      %v4687 = vmul.f32 %v4219, %v3791
      %v4688 = vmul.f32 %v4223, %v3792
      %v4689 = vmul.f32 %v4223, %v3793
      %v4690 = vmul.f32 %v4227, %v3794
      %v4691 = vmul.f32 %v4227, %v3795
      %v4692 = vmul.f32 %v4231, %v3796
      %v4693 = vmul.f32 %v4231, %v3797
      %v4694 = vmul.f32 %v4235, %v3798
      %v4695 = vmul.f32 %v4235, %v3799
      %v4696 = vmul.f32 %v4239, %v3800
      %v4697 = vmul.f32 %v4239, %v3801
      %v4698 = vmul.f32 %v4243, %v3802
      %v4699 = vmul.f32 %v4243, %v3803
      %v4700 = vmul.f32 %v4247, %v3804
      %v4701 = vmul.f32 %v4247, %v3805
      %v4702 = vmul.f32 %v4251, %v3806
      %v4703 = vmul.f32 %v4251, %v3807
      %v4704 = vmul.f32 %v4255, %v3808
      %v4705 = vmul.f32 %v4255, %v3809
      %v4706 = vmul.f32 %v4259, %v3810
      %v4707 = vmul.f32 %v4259, %v3811
      %v4708 = vmul.f32 %v4263, %v3812
      %v4709 = vmul.f32 %v4263, %v3813
      %v4710 = vmul.f32 %v4267, %v3814
      %v4711 = vmul.f32 %v4267, %v3815
      %v4712 = vmul.f32 %v4271, %v3816
      %v4713 = vmul.f32 %v4271, %v3817
      %v4714 = vmul.f32 %v4275, %v3818
      %v4715 = vmul.f32 %v4275, %v3819
      %v4716 = vmul.f32 %v4279, %v3820
      %v4717 = vmul.f32 %v4279, %v3821
      %v4718 = vmul.f32 %v4283, %v3822
      %v4719 = vmul.f32 %v4283, %v3823
      %v4720 = vmul.f32 %v4287, %v3824
      %v4721 = vmul.f32 %v4287, %v3825
      %v4722 = vmul.f32 %v4291, %v3826
      %v4723 = vmul.f32 %v4291, %v3827
      %v4724 = vmul.f32 %v4295, %v3828
      %v4725 = vmul.f32 %v4295, %v3829
      %v4726 = vmul.f32 %v4299, %v3830
      %v4727 = vmul.f32 %v4299, %v3831
      %v4728 = vmul.f32 %v4303, %v3832
      %v4729 = vmul.f32 %v4303, %v3833
      %v4730 = vmul.f32 %v4307, %v3834
      %v4731 = vmul.f32 %v4307, %v3835
      %v4732 = vmul.f32 %v4311, %v3836
      %v4733 = vmul.f32 %v4311, %v3837
      %v4734 = vmul.f32 %v4315, %v3838
      %v4735 = vmul.f32 %v4315, %v3839
      %v4736 = vmul.f32 %v4319, %v3840
      %v4737 = vmul.f32 %v4319, %v3841
      %v4738 = vmul.f32 %v4323, %v3842
      %v4739 = vmul.f32 %v4323, %v3843
      %v4740 = vmul.f32 %v4327, %v3844
      %v4741 = vmul.f32 %v4327, %v3845
      %v4742 = vmul.f32 %v4331, %v3846
      %v4743 = vmul.f32 %v4331, %v3847
      %v4744 = vmul.f32 %v4335, %v3848
      %v4745 = vmul.f32 %v4335, %v3849
      %v4746 = vmul.f32 %v4339, %v3850
      %v4747 = vmul.f32 %v4339, %v3851
      %v4748 = vmul.f32 %v4343, %v3852
      %v4749 = vmul.f32 %v4343, %v3853
      %v4750 = vmul.f32 %v4347, %v3854
      %v4751 = vmul.f32 %v4347, %v3855
      %v4752 = vmul.f32 %v4351, %v3856
      %v4753 = vmul.f32 %v4351, %v3857
      %v4754 = vmul.f32 %v4355, %v3858
      %v4755 = vmul.f32 %v4355, %v3859
      %v4756 = vmul.f32 %v4359, %v3860
      %v4757 = vmul.f32 %v4359, %v3861
      %v4758 = vmul.f32 %v4363, %v3862
      %v4759 = vmul.f32 %v4363, %v3863
      %v4760 = vmul.f32 %v4367, %v3864
      %v4761 = vmul.f32 %v4367, %v3865
      %v4762 = vmul.f32 %v4371, %v3866
      %v4763 = vmul.f32 %v4371, %v3867
      %v4764 = vmul.f32 %v4375, %v3868
      %v4765 = vmul.f32 %v4375, %v3869
      %v4766 = vmul.f32 %v4379, %v3870
      %v4767 = vmul.f32 %v4379, %v3871
      %v4768 = vmul.f32 %v4383, %v3872
      %v4769 = vmul.f32 %v4383, %v3873
      %v4770 = vmul.f32 %v4387, %v3874
      %v4771 = vmul.f32 %v4387, %v3875
      %4772 = vst [vmem:[#allocation4] sm:$0xff] %v4516
      %4773 = vst [vmem:[#allocation4 + $0x8] sm:$0xff] %v4517
      %4774 = vst [vmem:[#allocation4 + $0x10] sm:$0xff] %v4518
      %4775 = vst [vmem:[#allocation4 + $0x18] sm:$0xff] %v4519
      %4776 = vst [vmem:[#allocation4 + $0x20] sm:$0xff] %v4520
      %4777 = vst [vmem:[#allocation4 + $0x28] sm:$0xff] %v4521
      %4778 = vst [vmem:[#allocation4 + $0x30] sm:$0xff] %v4522
      %4779 = vst [vmem:[#allocation4 + $0x38] sm:$0xff] %v4523
      %4780 = vst [vmem:[#allocation4 + $0x40] sm:$0xff] %v4524
      %4781 = vst [vmem:[#allocation4 + $0x48] sm:$0xff] %v4525
      %4782 = vst [vmem:[#allocation4 + $0x50] sm:$0xff] %v4526
      %4783 = vst [vmem:[#allocation4 + $0x58] sm:$0xff] %v4527
      %4784 = vst [vmem:[#allocation4 + $0x60] sm:$0xff] %v4528
      %4785 = vst [vmem:[#allocation4 + $0x68] sm:$0xff] %v4529
      %4786 = vst [vmem:[#allocation4 + $0x70] sm:$0xff] %v4530
      %4787 = vst [vmem:[#allocation4 + $0x78] sm:$0xff] %v4531
      %4788 = vst [vmem:[#allocation4 + $0x80] sm:$0xff] %v4532
      %4789 = vst [vmem:[#allocation4 + $0x88] sm:$0xff] %v4533
      %4790 = vst [vmem:[#allocation4 + $0x90] sm:$0xff] %v4534
      %4791 = vst [vmem:[#allocation4 + $0x98] sm:$0xff] %v4535
      %4792 = vst [vmem:[#allocation4 + $0xa0] sm:$0xff] %v4536
      %4793 = vst [vmem:[#allocation4 + $0xa8] sm:$0xff] %v4537
      %4794 = vst [vmem:[#allocation4 + $0xb0] sm:$0xff] %v4538
      %4795 = vst [vmem:[#allocation4 + $0xb8] sm:$0xff] %v4539
      %4796 = vst [vmem:[#allocation4 + $0xc0] sm:$0xff] %v4540
      %4797 = vst [vmem:[#allocation4 + $0xc8] sm:$0xff] %v4541
      %4798 = vst [vmem:[#allocation4 + $0xd0] sm:$0xff] %v4542
      %4799 = vst [vmem:[#allocation4 + $0xd8] sm:$0xff] %v4543
      %4800 = vst [vmem:[#allocation4 + $0xe0] sm:$0xff] %v4544
      %4801 = vst [vmem:[#allocation4 + $0xe8] sm:$0xff] %v4545
      %4802 = vst [vmem:[#allocation4 + $0xf0] sm:$0xff] %v4546
      %4803 = vst [vmem:[#allocation4 + $0xf8] sm:$0xff] %v4547
      %4804 = vst [vmem:[#allocation4 + $0x100] sm:$0xff] %v4548
      %4805 = vst [vmem:[#allocation4 + $0x108] sm:$0xff] %v4549
      %4806 = vst [vmem:[#allocation4 + $0x110] sm:$0xff] %v4550
      %4807 = vst [vmem:[#allocation4 + $0x118] sm:$0xff] %v4551
      %4808 = vst [vmem:[#allocation4 + $0x120] sm:$0xff] %v4552
      %4809 = vst [vmem:[#allocation4 + $0x128] sm:$0xff] %v4553
      %4810 = vst [vmem:[#allocation4 + $0x130] sm:$0xff] %v4554
      %4811 = vst [vmem:[#allocation4 + $0x138] sm:$0xff] %v4555
      %4812 = vst [vmem:[#allocation4 + $0x140] sm:$0xff] %v4556
      %4813 = vst [vmem:[#allocation4 + $0x148] sm:$0xff] %v4557
      %4814 = vst [vmem:[#allocation4 + $0x150] sm:$0xff] %v4558
      %4815 = vst [vmem:[#allocation4 + $0x158] sm:$0xff] %v4559
      %4816 = vst [vmem:[#allocation4 + $0x160] sm:$0xff] %v4560
      %4817 = vst [vmem:[#allocation4 + $0x168] sm:$0xff] %v4561
      %4818 = vst [vmem:[#allocation4 + $0x170] sm:$0xff] %v4562
      %4819 = vst [vmem:[#allocation4 + $0x178] sm:$0xff] %v4563
      %4820 = vst [vmem:[#allocation4 + $0x180] sm:$0xff] %v4564
      %4821 = vst [vmem:[#allocation4 + $0x188] sm:$0xff] %v4565
      %4822 = vst [vmem:[#allocation4 + $0x190] sm:$0xff] %v4566
      %4823 = vst [vmem:[#allocation4 + $0x198] sm:$0xff] %v4567
      %4824 = vst [vmem:[#allocation4 + $0x1a0] sm:$0xff] %v4568
      %4825 = vst [vmem:[#allocation4 + $0x1a8] sm:$0xff] %v4569
      %4826 = vst [vmem:[#allocation4 + $0x1b0] sm:$0xff] %v4570
      %4827 = vst [vmem:[#allocation4 + $0x1b8] sm:$0xff] %v4571
      %4828 = vst [vmem:[#allocation4 + $0x1c0] sm:$0xff] %v4572
      %4829 = vst [vmem:[#allocation4 + $0x1c8] sm:$0xff] %v4573
      %4830 = vst [vmem:[#allocation4 + $0x1d0] sm:$0xff] %v4574
      %4831 = vst [vmem:[#allocation4 + $0x1d8] sm:$0xff] %v4575
      %4832 = vst [vmem:[#allocation4 + $0x1e0] sm:$0xff] %v4576
      %4833 = vst [vmem:[#allocation4 + $0x1e8] sm:$0xff] %v4577
      %4834 = vst [vmem:[#allocation4 + $0x1f0] sm:$0xff] %v4578
      %4835 = vst [vmem:[#allocation4 + $0x1f8] sm:$0xff] %v4579
      %4836 = vst [vmem:[#allocation4 + $0x200] sm:$0xff] %v4580
      %4837 = vst [vmem:[#allocation4 + $0x208] sm:$0xff] %v4581
      %4838 = vst [vmem:[#allocation4 + $0x210] sm:$0xff] %v4582
      %4839 = vst [vmem:[#allocation4 + $0x218] sm:$0xff] %v4583
      %4840 = vst [vmem:[#allocation4 + $0x220] sm:$0xff] %v4584
      %4841 = vst [vmem:[#allocation4 + $0x228] sm:$0xff] %v4585
      %4842 = vst [vmem:[#allocation4 + $0x230] sm:$0xff] %v4586
      %4843 = vst [vmem:[#allocation4 + $0x238] sm:$0xff] %v4587
      %4844 = vst [vmem:[#allocation4 + $0x240] sm:$0xff] %v4588
      %4845 = vst [vmem:[#allocation4 + $0x248] sm:$0xff] %v4589
      %4846 = vst [vmem:[#allocation4 + $0x250] sm:$0xff] %v4590
      %4847 = vst [vmem:[#allocation4 + $0x258] sm:$0xff] %v4591
      %4848 = vst [vmem:[#allocation4 + $0x260] sm:$0xff] %v4592
      %4849 = vst [vmem:[#allocation4 + $0x268] sm:$0xff] %v4593
      %4850 = vst [vmem:[#allocation4 + $0x270] sm:$0xff] %v4594
      %4851 = vst [vmem:[#allocation4 + $0x278] sm:$0xff] %v4595
      %4852 = vst [vmem:[#allocation4 + $0x280] sm:$0xff] %v4596
      %4853 = vst [vmem:[#allocation4 + $0x288] sm:$0xff] %v4597
      %4854 = vst [vmem:[#allocation4 + $0x290] sm:$0xff] %v4598
      %4855 = vst [vmem:[#allocation4 + $0x298] sm:$0xff] %v4599
      %4856 = vst [vmem:[#allocation4 + $0x2a0] sm:$0xff] %v4600
      %4857 = vst [vmem:[#allocation4 + $0x2a8] sm:$0xff] %v4601
      %4858 = vst [vmem:[#allocation4 + $0x2b0] sm:$0xff] %v4602
      %4859 = vst [vmem:[#allocation4 + $0x2b8] sm:$0xff] %v4603
      %4860 = vst [vmem:[#allocation4 + $0x2c0] sm:$0xff] %v4604
      %4861 = vst [vmem:[#allocation4 + $0x2c8] sm:$0xff] %v4605
      %4862 = vst [vmem:[#allocation4 + $0x2d0] sm:$0xff] %v4606
      %4863 = vst [vmem:[#allocation4 + $0x2d8] sm:$0xff] %v4607
      %4864 = vst [vmem:[#allocation4 + $0x2e0] sm:$0xff] %v4608
      %4865 = vst [vmem:[#allocation4 + $0x2e8] sm:$0xff] %v4609
      %4866 = vst [vmem:[#allocation4 + $0x2f0] sm:$0xff] %v4610
      %4867 = vst [vmem:[#allocation4 + $0x2f8] sm:$0xff] %v4611
      %4868 = vst [vmem:[#allocation4 + $0x300] sm:$0xff] %v4612
      %4869 = vst [vmem:[#allocation4 + $0x308] sm:$0xff] %v4613
      %4870 = vst [vmem:[#allocation4 + $0x310] sm:$0xff] %v4614
      %4871 = vst [vmem:[#allocation4 + $0x318] sm:$0xff] %v4615
      %4872 = vst [vmem:[#allocation4 + $0x320] sm:$0xff] %v4616
      %4873 = vst [vmem:[#allocation4 + $0x328] sm:$0xff] %v4617
      %4874 = vst [vmem:[#allocation4 + $0x330] sm:$0xff] %v4618
      %4875 = vst [vmem:[#allocation4 + $0x338] sm:$0xff] %v4619
      %4876 = vst [vmem:[#allocation4 + $0x340] sm:$0xff] %v4620
      %4877 = vst [vmem:[#allocation4 + $0x348] sm:$0xff] %v4621
      %4878 = vst [vmem:[#allocation4 + $0x350] sm:$0xff] %v4622
      %4879 = vst [vmem:[#allocation4 + $0x358] sm:$0xff] %v4623
      %4880 = vst [vmem:[#allocation4 + $0x360] sm:$0xff] %v4624
      %4881 = vst [vmem:[#allocation4 + $0x368] sm:$0xff] %v4625
      %4882 = vst [vmem:[#allocation4 + $0x370] sm:$0xff] %v4626
      %4883 = vst [vmem:[#allocation4 + $0x378] sm:$0xff] %v4627
      %4884 = vst [vmem:[#allocation4 + $0x380] sm:$0xff] %v4628
      %4885 = vst [vmem:[#allocation4 + $0x388] sm:$0xff] %v4629
      %4886 = vst [vmem:[#allocation4 + $0x390] sm:$0xff] %v4630
      %4887 = vst [vmem:[#allocation4 + $0x398] sm:$0xff] %v4631
      %4888 = vst [vmem:[#allocation4 + $0x3a0] sm:$0xff] %v4632
      %4889 = vst [vmem:[#allocation4 + $0x3a8] sm:$0xff] %v4633
      %4890 = vst [vmem:[#allocation4 + $0x3b0] sm:$0xff] %v4634
      %4891 = vst [vmem:[#allocation4 + $0x3b8] sm:$0xff] %v4635
      %4892 = vst [vmem:[#allocation4 + $0x3c0] sm:$0xff] %v4636
      %4893 = vst [vmem:[#allocation4 + $0x3c8] sm:$0xff] %v4637
      %4894 = vst [vmem:[#allocation4 + $0x3d0] sm:$0xff] %v4638
      %4895 = vst [vmem:[#allocation4 + $0x3d8] sm:$0xff] %v4639
      %4896 = vst [vmem:[#allocation4 + $0x3e0] sm:$0xff] %v4640
      %4897 = vst [vmem:[#allocation4 + $0x3e8] sm:$0xff] %v4641
      %4898 = vst [vmem:[#allocation4 + $0x3f0] sm:$0xff] %v4642
      %4899 = vst [vmem:[#allocation4 + $0x3f8] sm:$0xff] %v4643
      %4900 = vst [vmem:[#allocation4 + $0x400] sm:$0xff] %v4644
      %4901 = vst [vmem:[#allocation4 + $0x408] sm:$0xff] %v4645
      %4902 = vst [vmem:[#allocation4 + $0x410] sm:$0xff] %v4646
      %4903 = vst [vmem:[#allocation4 + $0x418] sm:$0xff] %v4647
      %4904 = vst [vmem:[#allocation4 + $0x420] sm:$0xff] %v4648
      %4905 = vst [vmem:[#allocation4 + $0x428] sm:$0xff] %v4649
      %4906 = vst [vmem:[#allocation4 + $0x430] sm:$0xff] %v4650
      %4907 = vst [vmem:[#allocation4 + $0x438] sm:$0xff] %v4651
      %4908 = vst [vmem:[#allocation4 + $0x440] sm:$0xff] %v4652
      %4909 = vst [vmem:[#allocation4 + $0x448] sm:$0xff] %v4653
      %4910 = vst [vmem:[#allocation4 + $0x450] sm:$0xff] %v4654
      %4911 = vst [vmem:[#allocation4 + $0x458] sm:$0xff] %v4655
      %4912 = vst [vmem:[#allocation4 + $0x460] sm:$0xff] %v4656
      %4913 = vst [vmem:[#allocation4 + $0x468] sm:$0xff] %v4657
      %4914 = vst [vmem:[#allocation4 + $0x470] sm:$0xff] %v4658
      %4915 = vst [vmem:[#allocation4 + $0x478] sm:$0xff] %v4659
      %4916 = vst [vmem:[#allocation4 + $0x480] sm:$0xff] %v4660
      %4917 = vst [vmem:[#allocation4 + $0x488] sm:$0xff] %v4661
      %4918 = vst [vmem:[#allocation4 + $0x490] sm:$0xff] %v4662
      %4919 = vst [vmem:[#allocation4 + $0x498] sm:$0xff] %v4663
      %4920 = vst [vmem:[#allocation4 + $0x4a0] sm:$0xff] %v4664
      %4921 = vst [vmem:[#allocation4 + $0x4a8] sm:$0xff] %v4665
      %4922 = vst [vmem:[#allocation4 + $0x4b0] sm:$0xff] %v4666
      %4923 = vst [vmem:[#allocation4 + $0x4b8] sm:$0xff] %v4667
      %4924 = vst [vmem:[#allocation4 + $0x4c0] sm:$0xff] %v4668
      %4925 = vst [vmem:[#allocation4 + $0x4c8] sm:$0xff] %v4669
      %4926 = vst [vmem:[#allocation4 + $0x4d0] sm:$0xff] %v4670
      %4927 = vst [vmem:[#allocation4 + $0x4d8] sm:$0xff] %v4671
      %4928 = vst [vmem:[#allocation4 + $0x4e0] sm:$0xff] %v4672
      %4929 = vst [vmem:[#allocation4 + $0x4e8] sm:$0xff] %v4673
      %4930 = vst [vmem:[#allocation4 + $0x4f0] sm:$0xff] %v4674
      %4931 = vst [vmem:[#allocation4 + $0x4f8] sm:$0xff] %v4675
      %4932 = vst [vmem:[#allocation4 + $0x500] sm:$0xff] %v4676
      %4933 = vst [vmem:[#allocation4 + $0x508] sm:$0xff] %v4677
      %4934 = vst [vmem:[#allocation4 + $0x510] sm:$0xff] %v4678
      %4935 = vst [vmem:[#allocation4 + $0x518] sm:$0xff] %v4679
      %4936 = vst [vmem:[#allocation4 + $0x520] sm:$0xff] %v4680
      %4937 = vst [vmem:[#allocation4 + $0x528] sm:$0xff] %v4681
      %4938 = vst [vmem:[#allocation4 + $0x530] sm:$0xff] %v4682
      %4939 = vst [vmem:[#allocation4 + $0x538] sm:$0xff] %v4683
      %4940 = vst [vmem:[#allocation4 + $0x540] sm:$0xff] %v4684
      %4941 = vst [vmem:[#allocation4 + $0x548] sm:$0xff] %v4685
      %4942 = vst [vmem:[#allocation4 + $0x550] sm:$0xff] %v4686
      %4943 = vst [vmem:[#allocation4 + $0x558] sm:$0xff] %v4687
      %4944 = vst [vmem:[#allocation4 + $0x560] sm:$0xff] %v4688
      %4945 = vst [vmem:[#allocation4 + $0x568] sm:$0xff] %v4689
      %4946 = vst [vmem:[#allocation4 + $0x570] sm:$0xff] %v4690
      %4947 = vst [vmem:[#allocation4 + $0x578] sm:$0xff] %v4691
      %4948 = vst [vmem:[#allocation4 + $0x580] sm:$0xff] %v4692
      %4949 = vst [vmem:[#allocation4 + $0x588] sm:$0xff] %v4693
      %4950 = vst [vmem:[#allocation4 + $0x590] sm:$0xff] %v4694
      %4951 = vst [vmem:[#allocation4 + $0x598] sm:$0xff] %v4695
      %4952 = vst [vmem:[#allocation4 + $0x5a0] sm:$0xff] %v4696
      %4953 = vst [vmem:[#allocation4 + $0x5a8] sm:$0xff] %v4697
      %4954 = vst [vmem:[#allocation4 + $0x5b0] sm:$0xff] %v4698
      %4955 = vst [vmem:[#allocation4 + $0x5b8] sm:$0xff] %v4699
      %4956 = vst [vmem:[#allocation4 + $0x5c0] sm:$0xff] %v4700
      %4957 = vst [vmem:[#allocation4 + $0x5c8] sm:$0xff] %v4701
      %4958 = vst [vmem:[#allocation4 + $0x5d0] sm:$0xff] %v4702
      %4959 = vst [vmem:[#allocation4 + $0x5d8] sm:$0xff] %v4703
      %4960 = vst [vmem:[#allocation4 + $0x5e0] sm:$0xff] %v4704
      %4961 = vst [vmem:[#allocation4 + $0x5e8] sm:$0xff] %v4705
      %4962 = vst [vmem:[#allocation4 + $0x5f0] sm:$0xff] %v4706
      %4963 = vst [vmem:[#allocation4 + $0x5f8] sm:$0xff] %v4707
      %4964 = vst [vmem:[#allocation4 + $0x600] sm:$0xff] %v4708
      %4965 = vst [vmem:[#allocation4 + $0x608] sm:$0xff] %v4709
      %4966 = vst [vmem:[#allocation4 + $0x610] sm:$0xff] %v4710
      %4967 = vst [vmem:[#allocation4 + $0x618] sm:$0xff] %v4711
      %4968 = vst [vmem:[#allocation4 + $0x620] sm:$0xff] %v4712
      %4969 = vst [vmem:[#allocation4 + $0x628] sm:$0xff] %v4713
      %4970 = vst [vmem:[#allocation4 + $0x630] sm:$0xff] %v4714
      %4971 = vst [vmem:[#allocation4 + $0x638] sm:$0xff] %v4715
      %4972 = vst [vmem:[#allocation4 + $0x640] sm:$0xff] %v4716
      %4973 = vst [vmem:[#allocation4 + $0x648] sm:$0xff] %v4717
      %4974 = vst [vmem:[#allocation4 + $0x650] sm:$0xff] %v4718
      %4975 = vst [vmem:[#allocation4 + $0x658] sm:$0xff] %v4719
      %4976 = vst [vmem:[#allocation4 + $0x660] sm:$0xff] %v4720
      %4977 = vst [vmem:[#allocation4 + $0x668] sm:$0xff] %v4721
      %4978 = vst [vmem:[#allocation4 + $0x670] sm:$0xff] %v4722
      %4979 = vst [vmem:[#allocation4 + $0x678] sm:$0xff] %v4723
      %4980 = vst [vmem:[#allocation4 + $0x680] sm:$0xff] %v4724
      %4981 = vst [vmem:[#allocation4 + $0x688] sm:$0xff] %v4725
      %4982 = vst [vmem:[#allocation4 + $0x690] sm:$0xff] %v4726
      %4983 = vst [vmem:[#allocation4 + $0x698] sm:$0xff] %v4727
      %4984 = vst [vmem:[#allocation4 + $0x6a0] sm:$0xff] %v4728
      %4985 = vst [vmem:[#allocation4 + $0x6a8] sm:$0xff] %v4729
      %4986 = vst [vmem:[#allocation4 + $0x6b0] sm:$0xff] %v4730
      %4987 = vst [vmem:[#allocation4 + $0x6b8] sm:$0xff] %v4731
      %4988 = vst [vmem:[#allocation4 + $0x6c0] sm:$0xff] %v4732
      %4989 = vst [vmem:[#allocation4 + $0x6c8] sm:$0xff] %v4733
      %4990 = vst [vmem:[#allocation4 + $0x6d0] sm:$0xff] %v4734
      %4991 = vst [vmem:[#allocation4 + $0x6d8] sm:$0xff] %v4735
      %4992 = vst [vmem:[#allocation4 + $0x6e0] sm:$0xff] %v4736
      %4993 = vst [vmem:[#allocation4 + $0x6e8] sm:$0xff] %v4737
      %4994 = vst [vmem:[#allocation4 + $0x6f0] sm:$0xff] %v4738
      %4995 = vst [vmem:[#allocation4 + $0x6f8] sm:$0xff] %v4739
      %4996 = vst [vmem:[#allocation4 + $0x700] sm:$0xff] %v4740
      %4997 = vst [vmem:[#allocation4 + $0x708] sm:$0xff] %v4741
      %4998 = vst [vmem:[#allocation4 + $0x710] sm:$0xff] %v4742
      %4999 = vst [vmem:[#allocation4 + $0x718] sm:$0xff] %v4743
      %5000 = vst [vmem:[#allocation4 + $0x720] sm:$0xff] %v4744
      %5001 = vst [vmem:[#allocation4 + $0x728] sm:$0xff] %v4745
      %5002 = vst [vmem:[#allocation4 + $0x730] sm:$0xff] %v4746
      %5003 = vst [vmem:[#allocation4 + $0x738] sm:$0xff] %v4747
      %5004 = vst [vmem:[#allocation4 + $0x740] sm:$0xff] %v4748
      %5005 = vst [vmem:[#allocation4 + $0x748] sm:$0xff] %v4749
      %5006 = vst [vmem:[#allocation4 + $0x750] sm:$0xff] %v4750
      %5007 = vst [vmem:[#allocation4 + $0x758] sm:$0xff] %v4751
      %5008 = vst [vmem:[#allocation4 + $0x760] sm:$0xff] %v4752
      %5009 = vst [vmem:[#allocation4 + $0x768] sm:$0xff] %v4753
      %5010 = vst [vmem:[#allocation4 + $0x770] sm:$0xff] %v4754
      %5011 = vst [vmem:[#allocation4 + $0x778] sm:$0xff] %v4755
      %5012 = vst [vmem:[#allocation4 + $0x780] sm:$0xff] %v4756
      %5013 = vst [vmem:[#allocation4 + $0x788] sm:$0xff] %v4757
      %5014 = vst [vmem:[#allocation4 + $0x790] sm:$0xff] %v4758
      %5015 = vst [vmem:[#allocation4 + $0x798] sm:$0xff] %v4759
      %5016 = vst [vmem:[#allocation4 + $0x7a0] sm:$0xff] %v4760
      %5017 = vst [vmem:[#allocation4 + $0x7a8] sm:$0xff] %v4761
      %5018 = vst [vmem:[#allocation4 + $0x7b0] sm:$0xff] %v4762
      %5019 = vst [vmem:[#allocation4 + $0x7b8] sm:$0xff] %v4763
      %5020 = vst [vmem:[#allocation4 + $0x7c0] sm:$0xff] %v4764
      %5021 = vst [vmem:[#allocation4 + $0x7c8] sm:$0xff] %v4765
      %5022 = vst [vmem:[#allocation4 + $0x7d0] sm:$0xff] %v4766
      %5023 = vst [vmem:[#allocation4 + $0x7d8] sm:$0xff] %v4767
      %5024 = vst [vmem:[#allocation4 + $0x7e0] sm:$0xff] %v4768
      %5025 = vst [vmem:[#allocation4 + $0x7e8] sm:$0xff] %v4769
      %5026 = vst [vmem:[#allocation4 + $0x7f0] sm:$0xff] %v4770
      %5027 = vst [vmem:[#allocation4 + $0x7f8] sm:$0xff] %v4771
      %v5028 = vld [vmem:[#allocation2] sm:$0xff]
      %v5029 = vld [vmem:[#allocation2 + $0x8] sm:$0xff]
      loop: start=0, step=1, limit=16
      $region45: #{dual_resnet_block_forward.5} parent=39 // loop_pre_header
        _
      $region46: #{dual_resnet_block_forward.5} parent=39 // loop_header
        %s5031 = sphi 0, %s5035
        %p5032 = scmp.ge.s32.totalorder %s5031, 16
        %v5036 = vphi %v5028, %v5184
        %v5037 = vphi %v5029, %v5185
      $region47: #{dual_resnet_block_forward.5} parent=39 // loop_header_branch
        %5034 = sbr.rel (%p5032) target = $region51
      $region48: #{dual_resnet_block_forward.5} parent=39 // loop_body
        %s5038 = smul.u32 %s5031, 8
        %s5039 = smul.u32 %s5038, 16
        %s5040 = scalar_lea.vmem [#allocation3], %s5039
        %v5041 = vld [vmem:[%s5040] sm:$0xff]
        %v5042 = vld [vmem:[%s5040 + $0x8] sm:$0xff]
        %v5043 = vld [vmem:[%s5040 + $0x10] sm:$0xff]
        %v5044 = vld [vmem:[%s5040 + $0x18] sm:$0xff]
        %v5045 = vld [vmem:[%s5040 + $0x20] sm:$0xff]
        %v5046 = vld [vmem:[%s5040 + $0x28] sm:$0xff]
        %v5047 = vld [vmem:[%s5040 + $0x30] sm:$0xff]
        %v5048 = vld [vmem:[%s5040 + $0x38] sm:$0xff]
        %v5049 = vld [vmem:[%s5040 + $0x40] sm:$0xff]
        %v5050 = vld [vmem:[%s5040 + $0x48] sm:$0xff]
        %v5051 = vld [vmem:[%s5040 + $0x50] sm:$0xff]
        %v5052 = vld [vmem:[%s5040 + $0x58] sm:$0xff]
        %v5053 = vld [vmem:[%s5040 + $0x60] sm:$0xff]
        %v5054 = vld [vmem:[%s5040 + $0x68] sm:$0xff]
        %v5055 = vld [vmem:[%s5040 + $0x70] sm:$0xff]
        %v5056 = vld [vmem:[%s5040 + $0x78] sm:$0xff]
        %s5057 = scalar_lea.vmem [#allocation4], %s5039
        %v5058 = vld [vmem:[%s5057] sm:$0xff]
        %v5059 = vld [vmem:[%s5057 + $0x8] sm:$0xff]
        %v5060 = vld [vmem:[%s5057 + $0x10] sm:$0xff]
        %v5061 = vld [vmem:[%s5057 + $0x18] sm:$0xff]
        %v5062 = vld [vmem:[%s5057 + $0x20] sm:$0xff]
        %v5063 = vld [vmem:[%s5057 + $0x28] sm:$0xff]
        %v5064 = vld [vmem:[%s5057 + $0x30] sm:$0xff]
        %v5065 = vld [vmem:[%s5057 + $0x38] sm:$0xff]
        %v5066 = vld [vmem:[%s5057 + $0x40] sm:$0xff]
        %v5067 = vld [vmem:[%s5057 + $0x48] sm:$0xff]
        %v5068 = vld [vmem:[%s5057 + $0x50] sm:$0xff]
        %v5069 = vld [vmem:[%s5057 + $0x58] sm:$0xff]
        %v5070 = vld [vmem:[%s5057 + $0x60] sm:$0xff]
        %v5071 = vld [vmem:[%s5057 + $0x68] sm:$0xff]
        %v5072 = vld [vmem:[%s5057 + $0x70] sm:$0xff]
        %v5073 = vld [vmem:[%s5057 + $0x78] sm:$0xff]
        %s5074 = scalar_lea.vmem %s292, %s5039
        %v5075 = vld [vmem:[%s5074] sm:$0xff]
        %v5076 = vld [vmem:[%s5074 + $0x8] sm:$0xff]
        %v5077 = vld [vmem:[%s5074 + $0x10] sm:$0xff]
        %v5078 = vld [vmem:[%s5074 + $0x18] sm:$0xff]
        %v5079 = vld [vmem:[%s5074 + $0x20] sm:$0xff]
        %v5080 = vld [vmem:[%s5074 + $0x28] sm:$0xff]
        %v5081 = vld [vmem:[%s5074 + $0x30] sm:$0xff]
        %v5082 = vld [vmem:[%s5074 + $0x38] sm:$0xff]
        %v5083 = vld [vmem:[%s5074 + $0x40] sm:$0xff]
        %v5084 = vld [vmem:[%s5074 + $0x48] sm:$0xff]
        %v5085 = vld [vmem:[%s5074 + $0x50] sm:$0xff]
        %v5086 = vld [vmem:[%s5074 + $0x58] sm:$0xff]
        %v5087 = vld [vmem:[%s5074 + $0x60] sm:$0xff]
        %v5088 = vld [vmem:[%s5074 + $0x68] sm:$0xff]
        %v5089 = vld [vmem:[%s5074 + $0x70] sm:$0xff]
        %v5090 = vld [vmem:[%s5074 + $0x78] sm:$0xff]
        %v5091 = vmul.f32 %v5041, %v5036
        %v5092 = vmul.f32 %v5042, %v5037
        %v5093 = vadd.f32 %v5091, %v5058
        %v5094 = vadd.f32 %v5092, %v5059
        %v5095 = vmul.f32 %v5093, %v5075
        %v5096 = vmul.f32 %v5094, %v5076
        %v5097 = vadd.f32 %v5095, %v5096
        %v5098 = vrot.slane %v5097, 4
        %v5099 = vadd.f32 %v5097, %v5098
        %v5100 = vrot.slane %v5099, 2
        %v5101 = vadd.f32 %v5099, %v5100
        %v5102 = vrot.slane %v5101, 1
        %v5103 = vadd.f32 %v5101, %v5102
        %v5104 = vmul.f32 %v5043, %v5093
        %v5105 = vmul.f32 %v5044, %v5094
        %v5106 = vadd.f32 %v5104, %v5060
        %v5107 = vadd.f32 %v5105, %v5061
        %v5108 = vmul.f32 %v5106, %v5077
        %v5109 = vmul.f32 %v5107, %v5078
        %v5110 = vadd.f32 %v5108, %v5109
        %v5111 = vrot.slane %v5110, 4
        %v5112 = vadd.f32 %v5110, %v5111
        %v5113 = vrot.slane %v5112, 2
        %v5114 = vadd.f32 %v5112, %v5113
        %v5115 = vrot.slane %v5114, 1
        %v5116 = vadd.f32 %v5114, %v5115
        %v5117 = vmul.f32 %v5045, %v5106
        %v5118 = vmul.f32 %v5046, %v5107
        %v5119 = vadd.f32 %v5117, %v5062
        %v5120 = vadd.f32 %v5118, %v5063
        %v5121 = vmul.f32 %v5119, %v5079
        %v5122 = vmul.f32 %v5120, %v5080
        %v5123 = vadd.f32 %v5121, %v5122
        %v5124 = vrot.slane %v5123, 4
        %v5125 = vadd.f32 %v5123, %v5124
        %v5126 = vrot.slane %v5125, 2
        %v5127 = vadd.f32 %v5125, %v5126
        %v5128 = vrot.slane %v5127, 1
        %v5129 = vadd.f32 %v5127, %v5128
        %v5130 = vmul.f32 %v5047, %v5119
        %v5131 = vmul.f32 %v5048, %v5120
        %v5132 = vadd.f32 %v5130, %v5064
        %v5133 = vadd.f32 %v5131, %v5065
        %v5134 = vmul.f32 %v5132, %v5081
        %v5135 = vmul.f32 %v5133, %v5082
        %v5136 = vadd.f32 %v5134, %v5135
        %v5137 = vrot.slane %v5136, 4
        %v5138 = vadd.f32 %v5136, %v5137
        %v5139 = vrot.slane %v5138, 2
        %v5140 = vadd.f32 %v5138, %v5139
        %v5141 = vrot.slane %v5140, 1
        %v5142 = vadd.f32 %v5140, %v5141
        %v5143 = vmul.f32 %v5049, %v5132
        %v5144 = vmul.f32 %v5050, %v5133
        %v5145 = vadd.f32 %v5143, %v5066
        %v5146 = vadd.f32 %v5144, %v5067
        %v5147 = vmul.f32 %v5145, %v5083
        %v5148 = vmul.f32 %v5146, %v5084
        %v5149 = vadd.f32 %v5147, %v5148
        %v5150 = vrot.slane %v5149, 4
        %v5151 = vadd.f32 %v5149, %v5150
        %v5152 = vrot.slane %v5151, 2
        %v5153 = vadd.f32 %v5151, %v5152
        %v5154 = vrot.slane %v5153, 1
        %v5155 = vadd.f32 %v5153, %v5154
        %v5156 = vmul.f32 %v5051, %v5145
        %v5157 = vmul.f32 %v5052, %v5146
        %v5158 = vadd.f32 %v5156, %v5068
        %v5159 = vadd.f32 %v5157, %v5069
        %v5160 = vmul.f32 %v5158, %v5085
        %v5161 = vmul.f32 %v5159, %v5086
        %v5162 = vadd.f32 %v5160, %v5161
        %v5163 = vrot.slane %v5162, 4
        %v5164 = vadd.f32 %v5162, %v5163
        %v5165 = vrot.slane %v5164, 2
        %v5166 = vadd.f32 %v5164, %v5165
        %v5167 = vrot.slane %v5166, 1
        %v5168 = vadd.f32 %v5166, %v5167
        %v5169 = vmul.f32 %v5053, %v5158
        %v5170 = vmul.f32 %v5054, %v5159
        %v5171 = vadd.f32 %v5169, %v5070
        %v5172 = vadd.f32 %v5170, %v5071
        %v5173 = vmul.f32 %v5171, %v5087
        %v5174 = vmul.f32 %v5172, %v5088
        %v5175 = vadd.f32 %v5173, %v5174
        %v5176 = vrot.slane %v5175, 4
        %v5177 = vadd.f32 %v5175, %v5176
        %v5178 = vrot.slane %v5177, 2
        %v5179 = vadd.f32 %v5177, %v5178
        %v5180 = vrot.slane %v5179, 1
        %v5181 = vadd.f32 %v5179, %v5180
        %v5182 = vmul.f32 %v5055, %v5171
        %v5183 = vmul.f32 %v5056, %v5172
        %v5184 = vadd.f32 %v5182, %v5072
        %v5185 = vadd.f32 %v5183, %v5073
        %v5186 = vmul.f32 %v5184, %v5089
        %v5187 = vmul.f32 %v5185, %v5090
        %v5188 = vadd.f32 %v5186, %v5187
        %v5189 = vrot.slane %v5188, 4
        %v5190 = vadd.f32 %v5188, %v5189
        %v5191 = vrot.slane %v5190, 2
        %v5192 = vadd.f32 %v5190, %v5191
        %v5193 = vrot.slane %v5192, 1
        %v5194 = vadd.f32 %v5192, %v5193
        %vm5195 = vcmask 1040384
        %v5196 = vsel %vm5195, %v5103, %v5116
        %vm5197 = vcmask 1041408
        %v5198 = vsel %vm5197, %v5196, %v5129
        %vm5199 = vcmask 1042432
        %v5200 = vsel %vm5199, %v5198, %v5142
        %vm5201 = vcmask 1043456
        %v5202 = vsel %vm5201, %v5200, %v5155
        %vm5203 = vcmask 1044480
        %v5204 = vsel %vm5203, %v5202, %v5168
        %vm5205 = vcmask 1045504
        %v5206 = vsel %vm5205, %v5204, %v5181
        %vm5207 = vcmask 1046528
        %v5208 = vsel %vm5207, %v5206, %v5194
        %s5209 = scalar_lea.vmem %s298, %s5038
        %5210 = vst [vmem:[%s5209] sm:$0xff] %v5208
      $region49: #{dual_resnet_block_forward.5} parent=39 // loop_footer
        %s5035 = sadd.s32 1, %s5031
      $region50: #{dual_resnet_block_forward.5} parent=39 // loop_footer_branch
        %5030 = sbr.rel target = $region46
      $region51: #{dual_resnet_block_forward.5} parent=39 // loop_exit
        _
      %5211 = vst [vmem:[#allocation2] sm:$0xff] %v5036
      %5212 = vst [vmem:[#allocation2 + $0x8] sm:$0xff] %v5037
      %s5213 = smul.u32 16, %s16
      %p5214 = scmp.lt.s32.totalorder %s5213, 31
      %s5215 = scalar_select %p5214, %s5213, 31
      %s5216 = smul.addr %s5215, 8
      %s5217 = scalar_lea.vmem %s5, %s5216
      // Predicated region
      $region52: #{dual_resnet_block_forward.5} parent=39 // pred_check
        %p5218 = pneg %p159
      $region53: #{dual_resnet_block_forward.5} parent=39 // pred_check_branch
        %5220 = sbr.rel (%p5218) target = $region55
      $region54: #{dual_resnet_block_forward.5} parent=39 // pred_region
        %s5221 = smul.u32 16, %s16
      $region55: #{dual_resnet_block_forward.5} parent=39 // pred_fallthru
        _
    $region40: #{dual_resnet_block_forward.5} parent=5 // pred_fallthru
      _
    %p5222 = scmp.le.s32.totalorder 2, %s11
    // Predicated region
    $region56: #{dual_resnet_block_forward.5} parent=5 // pred_check
      %p5223 = pneg %p5222
    $region57: #{dual_resnet_block_forward.5} parent=5 // pred_check_branch
      %5225 = sbr.rel (%p5223) target = $region59
    $region58: #{dual_resnet_block_forward.5} parent=5 // pred_region
      %s5226 = ssub.s32 %s11, 2
      // Predicated region
      $region60: #{dual_resnet_block_forward.5} parent=58 // pred_check
        %p5227 = pneg %p165
      $region61: #{dual_resnet_block_forward.5} parent=58 // pred_check_branch
        %5229 = sbr.rel (%p5227) target = $region63
      $region62: #{dual_resnet_block_forward.5} parent=58 // pred_region
        %s5230 = smul.u32 16, %s17
        %p5231 = scmp.lt.s32.totalorder %s5230, 31
        %s5232 = scalar_select %p5231, %s5230, 31
        %s5233 = smul.addr %s5232, 8
        %s5234 = scalar_lea.vmem %s5, %s5233
      $region63: #{dual_resnet_block_forward.5} parent=58 // pred_fallthru
        _
    $region59: #{dual_resnet_block_forward.5} parent=5 // pred_fallthru
      _
  $region6: #{dual_resnet_block_forward.5} parent=0 // loop_footer
    %s15 = sadd.s32 1, %s11
  $region7: #{dual_resnet_block_forward.5} parent=0 // loop_footer_branch
    %10 = sbr.rel target = $region3
  $region8: #{dual_resnet_block_forward.5} parent=0 // loop_exit
    _

// kernel: reverse.1
$region0: #{reverse.1}
  %s0 = inlined_call_operand.vmem [shape: f32[2,1,12,256], index: 0, kind: input, shape index: {}]
  %s1 = inlined_call_operand.vmem [shape: f32[2,1,12,256], index: 1, kind: output, shape index: {}]
  %v2 = vlaneseq
  %v3 = vsub.s32 127, %v2
  %4 = vset.pattern.permute.xlu0 %v3
  $region1: #{reverse.1} parent=0
    #allocation0 [shape = 'u8[49152]{0}', space=vmem, size = 0xc000, scoped, tag = 'operand span for operand 0']
    #allocation1 [shape = 'u8[24576]{0}', space=vmem, size = 0x6000, scoped, tag = 'packed  for operand 0']
    #allocation2 [shape = 'u8[49152]{0}', space=vmem, size = 0xc000, scoped, tag = 'operand span for operand 1']
    #allocation3 [shape = 'u8[24576]{0}', space=vmem, size = 0x6000, scoped, tag = 'packed  for operand 1']
    loop: start=0, step=1, limit=4
    $region2: #{reverse.1} parent=1 // loop_pre_header
      _
    $region3: #{reverse.1} parent=1 // loop_header
      %s6 = sphi 0, %s10
      %p7 = scmp.ge.s32.totalorder %s6, 4
      %s13 = sphi 0, %s39
      %s14 = sphi 0, %s35
      %s15 = sphi 0, %s31
      %s16 = sphi 0, %s27
      %s17 = sphi 0, %s13
      %s18 = sphi 0, %s14
      %s19 = sphi 0, %s15
      %s20 = sphi 0, %s16
      %s21 = sphi 0, %s17
      %s22 = sphi 0, %s18
      %s23 = sphi 0, %s19
      %s24 = sphi 0, %s20
    $region4: #{reverse.1} parent=1 // loop_header_branch
      %9 = sbr.rel (%p7) target = $region8
    $region5: #{reverse.1} parent=1 // loop_body
      %s11 = ssub.s32 %s6, 1
      %s12 = ssub.s32 %s6, 2
      %s25 = sadd.s32 1, %s16
      %p26 = scmp.ge.s32.totalorder %s25, 2
      %s27 = scalar_select %p26, 0, %s25
      %s28 = sadd.s32 1, %s15
      %s29 = scalar_select %p26, %s28, %s15
      %p30 = scmp.ge.s32.totalorder %s29, 1
      %s31 = scalar_select %p30, 0, %s29
      %s32 = sadd.s32 1, %s14
      %s33 = scalar_select %p30, %s32, %s14
      %p34 = scmp.ge.s32.totalorder %s33, 1
      %s35 = scalar_select %p34, 0, %s33
      %s36 = sadd.s32 1, %s13
      %s37 = scalar_select %p34, %s36, %s13
      %p38 = scmp.ge.s32.totalorder %s37, 1
      %s39 = scalar_select %p38, 0, %s37
      %p40 = scmp.le.s32.totalorder 1, %s6
      %p41 = scmp.lt.s32.totalorder %s6, 3
      %p42 = pnand %p40, %p41
      %p43 = pneg %p42
      // Predicated region
      $region9: #{reverse.1} parent=5 // pred_check
        _
      $region10: #{reverse.1} parent=5 // pred_check_branch
        %45 = sbr.rel (%p42) target = $region12
      $region11: #{reverse.1} parent=5 // pred_region
        %s46 = ssub.s32 %s6, 1
      $region12: #{reverse.1} parent=5 // pred_fallthru
        _
      %p47 = scmp.lt.s32.totalorder %s6, 2
      // Predicated region
      $region13: #{reverse.1} parent=5 // pred_check
        %p48 = pneg %p47
      $region14: #{reverse.1} parent=5 // pred_check_branch
        %50 = sbr.rel (%p48) target = $region16
      $region15: #{reverse.1} parent=5 // pred_region
        %s51 = sand.u32 %s6, 1
        %s52 = sand.u32 %s6, 1
        %s53 = smul.addr %s52, 24
        %s54 = scalar_lea.vmem [#allocation1], %s53
        %s55 = ssub.s32 1, %s16
        %s56 = smul.u32 12, %s14
        %s57 = smul.addr %s15, 2
        %s58 = sadd.s32 %s55, %s57
        %s59 = smul.addr %s56, 2
        %s60 = sadd.s32 %s58, %s59
        %s61 = smul.addr %s13, 24
        %s62 = sadd.s32 %s60, %s61
        %s63 = smul.addr %s62, 2
        %s64 = scalar_lea.vmem %s0, %s63
        // Predicated region
        $region17: #{reverse.1} parent=15 // pred_check
          _
        $region18: #{reverse.1} parent=15 // pred_check_branch
          %66 = sbr.rel (0) target = $region20
        $region19: #{reverse.1} parent=15 // pred_region
          // Predicated region
          $region21: #{reverse.1} parent=19 // pred_check
            _
          $region22: #{reverse.1} parent=19 // pred_check_branch
            %68 = sbr.rel target = $region24
          $region23: #{reverse.1} parent=19 // pred_region
            // Predicated region
            $region36: #{reverse.1} parent=23 // pred_check
              _
            $region37: #{reverse.1} parent=23 // pred_check_branch
              %105 = sbr.rel (0) target = $region39
            $region38: #{reverse.1} parent=23 // pred_region
              loop: start=0, step=1, limit=1
              $region40: #{reverse.1} parent=38 // loop_pre_header
                _
              $region41: #{reverse.1} parent=38 // loop_header
                %s107 = sphi 0, %s111
                %p108 = scmp.ge.s32.totalorder %s107, 1
                %s112 = sphi %s64, %s64
                %s113 = sphi %s54, %s54
              $region42: #{reverse.1} parent=38 // loop_header_branch
                %110 = sbr.rel (%p108) target = $region46
              $region43: #{reverse.1} parent=38 // loop_body
                _
              $region44: #{reverse.1} parent=38 // loop_footer
                %s111 = sadd.s32 1, %s107
              $region45: #{reverse.1} parent=38 // loop_footer_branch
                %106 = sbr.rel target = $region41
              $region46: #{reverse.1} parent=38 // loop_exit
                _
              loop: start=0, step=1, limit=1
              $region47: #{reverse.1} parent=38 // loop_pre_header
                _
              $region48: #{reverse.1} parent=38 // loop_header
                %s116 = sphi 0, %s120
                %p117 = scmp.ge.s32.totalorder %s116, 1
                %s121 = sphi %s64, %s64
                %s122 = sphi %s54, %s54
              $region49: #{reverse.1} parent=38 // loop_header_branch
                %119 = sbr.rel (%p117) target = $region53
              $region50: #{reverse.1} parent=38 // loop_body
                %v123 = vld [vmem:[%s121] sm:$0x3]
                %124 = vst [vmem:[%s122] sm:$0x3] %v123
                %v125 = vld [vmem:[%s121 + $0x4] sm:$0x3]
                %126 = vst [vmem:[%s122 + $0x2] sm:$0x3] %v125
                %v127 = vld [vmem:[%s121 + $0x8] sm:$0x3]
                %128 = vst [vmem:[%s122 + $0x4] sm:$0x3] %v127
                %v129 = vld [vmem:[%s121 + $0xc] sm:$0x3]
                %130 = vst [vmem:[%s122 + $0x6] sm:$0x3] %v129
                %v131 = vld [vmem:[%s121 + $0x10] sm:$0x3]
                %132 = vst [vmem:[%s122 + $0x8] sm:$0x3] %v131
                %v133 = vld [vmem:[%s121 + $0x14] sm:$0x3]
                %134 = vst [vmem:[%s122 + $0xa] sm:$0x3] %v133
                %v135 = vld [vmem:[%s121 + $0x18] sm:$0x3]
                %136 = vst [vmem:[%s122 + $0xc] sm:$0x3] %v135
                %v137 = vld [vmem:[%s121 + $0x1c] sm:$0x3]
                %138 = vst [vmem:[%s122 + $0xe] sm:$0x3] %v137
                %v139 = vld [vmem:[%s121 + $0x20] sm:$0x3]
                %140 = vst [vmem:[%s122 + $0x10] sm:$0x3] %v139
                %v141 = vld [vmem:[%s121 + $0x24] sm:$0x3]
                %142 = vst [vmem:[%s122 + $0x12] sm:$0x3] %v141
                %v143 = vld [vmem:[%s121 + $0x28] sm:$0x3]
                %144 = vst [vmem:[%s122 + $0x14] sm:$0x3] %v143
                %v145 = vld [vmem:[%s121 + $0x2c] sm:$0x3]
                %146 = vst [vmem:[%s122 + $0x16] sm:$0x3] %v145
              $region51: #{reverse.1} parent=38 // loop_footer
                %s120 = sadd.s32 1, %s116
              $region52: #{reverse.1} parent=38 // loop_footer_branch
                %115 = sbr.rel target = $region48
              $region53: #{reverse.1} parent=38 // loop_exit
                _
            $region39: #{reverse.1} parent=23 // pred_fallthru
              _
          $region24: #{reverse.1} parent=19 // pred_fallthru
            _
          // Predicated region
          $region25: #{reverse.1} parent=19 // pred_check
            _
          $region26: #{reverse.1} parent=19 // pred_check_branch
            %70 = sbr.rel (0) target = $region28
          $region27: #{reverse.1} parent=19 // pred_region
            loop: start=0, step=1, limit=1
            $region29: #{reverse.1} parent=27 // loop_pre_header
              _
            $region30: #{reverse.1} parent=27 // loop_header
              %s73 = sphi 0, %s77
              %p74 = scmp.ge.s32.totalorder %s73, 1
              %s78 = sphi %s64, %s64
              %s79 = sphi %s54, %s54
            $region31: #{reverse.1} parent=27 // loop_header_branch
              %76 = sbr.rel (%p74) target = $region35
            $region32: #{reverse.1} parent=27 // loop_body
              %v80 = vld [vmem:[%s78] sm:$0x3]
              %81 = vst [vmem:[%s79] sm:$0x3] %v80
              %v82 = vld [vmem:[%s78 + $0x4] sm:$0x3]
              %83 = vst [vmem:[%s79 + $0x2] sm:$0x3] %v82
              %v84 = vld [vmem:[%s78 + $0x8] sm:$0x3]
              %85 = vst [vmem:[%s79 + $0x4] sm:$0x3] %v84
              %v86 = vld [vmem:[%s78 + $0xc] sm:$0x3]
              %87 = vst [vmem:[%s79 + $0x6] sm:$0x3] %v86
              %v88 = vld [vmem:[%s78 + $0x10] sm:$0x3]
              %89 = vst [vmem:[%s79 + $0x8] sm:$0x3] %v88
              %v90 = vld [vmem:[%s78 + $0x14] sm:$0x3]
              %91 = vst [vmem:[%s79 + $0xa] sm:$0x3] %v90
              %v92 = vld [vmem:[%s78 + $0x18] sm:$0x3]
              %93 = vst [vmem:[%s79 + $0xc] sm:$0x3] %v92
              %v94 = vld [vmem:[%s78 + $0x1c] sm:$0x3]
              %95 = vst [vmem:[%s79 + $0xe] sm:$0x3] %v94
              %v96 = vld [vmem:[%s78 + $0x20] sm:$0x3]
              %97 = vst [vmem:[%s79 + $0x10] sm:$0x3] %v96
              %v98 = vld [vmem:[%s78 + $0x24] sm:$0x3]
              %99 = vst [vmem:[%s79 + $0x12] sm:$0x3] %v98
              %v100 = vld [vmem:[%s78 + $0x28] sm:$0x3]
              %101 = vst [vmem:[%s79 + $0x14] sm:$0x3] %v100
              %v102 = vld [vmem:[%s78 + $0x2c] sm:$0x3]
              %103 = vst [vmem:[%s79 + $0x16] sm:$0x3] %v102
            $region33: #{reverse.1} parent=27 // loop_footer
              %s77 = sadd.s32 1, %s73
            $region34: #{reverse.1} parent=27 // loop_footer_branch
              %72 = sbr.rel target = $region30
            $region35: #{reverse.1} parent=27 // loop_exit
              _
          $region28: #{reverse.1} parent=19 // pred_fallthru
            _
        $region20: #{reverse.1} parent=15 // pred_fallthru
          _
        %147 = vnop
      $region16: #{reverse.1} parent=5 // pred_fallthru
        _
      %p148 = scmp.le.s32.totalorder 1, %s6
      %p149 = scmp.lt.s32.totalorder %s6, 3
      %p150 = pnand %p148, %p149
      %p151 = pneg %p150
      // Predicated region
      $region54: #{reverse.1} parent=5 // pred_check
        _
      $region55: #{reverse.1} parent=5 // pred_check_branch
        %153 = sbr.rel (%p150) target = $region57
      $region56: #{reverse.1} parent=5 // pred_region
        %s154 = ssub.s32 %s6, 1
        %s155 = sand.u32 %s11, 1
        %s156 = sand.u32 %s11, 1
        %s157 = smul.addr %s156, 24
        %s158 = scalar_lea.vmem [#allocation1], %s157
        %s159 = sand.u32 %s11, 1
        %s160 = sand.u32 %s11, 1
        %s161 = smul.addr %s160, 24
        %s162 = scalar_lea.vmem [#allocation1], %s161
        %s163 = sand.u32 %s11, 1
        %s164 = sand.u32 %s11, 1
        %s165 = smul.addr %s164, 24
        %s166 = scalar_lea.vmem [#allocation3], %s165
        %s168 = sshllo.u32 0, 2
        %s169 = smul.addr 2, 11
        %s170 = scalar_lea.vmem %s162, %s169 [#allocation1]
        %v171 = vld [vmem:[%s170] sm:%s168]
        %s172 = scalar_lea.vmem [#allocation0], 88
        %173 = vst [vmem:[%s172] sm:%s168] %v171
        %s174 = smul.addr 2, 10
        %s175 = scalar_lea.vmem %s162, %s174 [#allocation1]
        %v176 = vld [vmem:[%s175] sm:%s168]
        %s177 = scalar_lea.vmem [#allocation0], 80
        %178 = vst [vmem:[%s177] sm:%s168] %v176
        %s179 = smul.addr 2, 9
        %s180 = scalar_lea.vmem %s162, %s179 [#allocation1]
        %v181 = vld [vmem:[%s180] sm:%s168]
        %s182 = scalar_lea.vmem [#allocation0], 72
        %183 = vst [vmem:[%s182] sm:%s168] %v181
        %s184 = smul.addr 2, 8
        %s185 = scalar_lea.vmem %s162, %s184 [#allocation1]
        %v186 = vld [vmem:[%s185] sm:%s168]
        %s187 = scalar_lea.vmem [#allocation0], 64
        %188 = vst [vmem:[%s187] sm:%s168] %v186
        %s189 = smul.addr 2, 7
        %s190 = scalar_lea.vmem %s162, %s189 [#allocation1]
        %v191 = vld [vmem:[%s190] sm:%s168]
        %s192 = scalar_lea.vmem [#allocation0], 56
        %193 = vst [vmem:[%s192] sm:%s168] %v191
        %s194 = smul.addr 2, 6
        %s195 = scalar_lea.vmem %s162, %s194 [#allocation1]
        %v196 = vld [vmem:[%s195] sm:%s168]
        %s197 = scalar_lea.vmem [#allocation0], 48
        %198 = vst [vmem:[%s197] sm:%s168] %v196
        %s199 = smul.addr 2, 5
        %s200 = scalar_lea.vmem %s162, %s199 [#allocation1]
        %v201 = vld [vmem:[%s200] sm:%s168]
        %s202 = scalar_lea.vmem [#allocation0], 40
        %203 = vst [vmem:[%s202] sm:%s168] %v201
        %s204 = smul.addr 2, 4
        %s205 = scalar_lea.vmem %s162, %s204 [#allocation1]
        %v206 = vld [vmem:[%s205] sm:%s168]
        %s207 = scalar_lea.vmem [#allocation0], 32
        %208 = vst [vmem:[%s207] sm:%s168] %v206
        %s209 = smul.addr 2, 3
        %s210 = scalar_lea.vmem %s162, %s209 [#allocation1]
        %v211 = vld [vmem:[%s210] sm:%s168]
        %s212 = scalar_lea.vmem [#allocation0], 24
        %213 = vst [vmem:[%s212] sm:%s168] %v211
        %s214 = smul.addr 2, 2
        %s215 = scalar_lea.vmem %s162, %s214 [#allocation1]
        %v216 = vld [vmem:[%s215] sm:%s168]
        %s217 = scalar_lea.vmem [#allocation0], 16
        %218 = vst [vmem:[%s217] sm:%s168] %v216
        %s219 = scalar_lea.vmem %s162, 2 [#allocation1]
        %v220 = vld [vmem:[%s219] sm:%s168]
        %s221 = scalar_lea.vmem [#allocation0], 8
        %222 = vst [vmem:[%s221] sm:%s168] %v220
        %v223 = vld [vmem:[%s162] sm:%s168]
        %224 = vst [vmem:[#allocation0] sm:%s168] %v223
        %s225 = ssub.s32 1, %s20
        %s226 = smul.u32 12, %s18
        %s227 = smul.u32 12, %s18
        %v228 = vld [vmem:[#allocation0] sm:$0xff]
        %229 = vperm.xlu0 %4, %v228
        %v230 = vpop.permute.xlu0 %229
        %231 = vst [vmem:[#allocation2] sm:$0xff] %v230
        %s232 = scalar_lea.vmem [#allocation2], 8
        %s233 = scalar_lea.vmem [#allocation0], 8
        %v234 = vld [vmem:[%s233] sm:$0xff]
        %235 = vperm.xlu0 %4, %v234
        %v236 = vpop.permute.xlu0 %235
        %237 = vst [vmem:[%s232] sm:$0xff] %v236
        %s238 = scalar_lea.vmem [#allocation2], 16
        %s239 = scalar_lea.vmem [#allocation0], 16
        %v240 = vld [vmem:[%s239] sm:$0xff]
        %241 = vperm.xlu0 %4, %v240
        %v242 = vpop.permute.xlu0 %241
        %243 = vst [vmem:[%s238] sm:$0xff] %v242
        %s244 = scalar_lea.vmem [#allocation2], 24
        %s245 = scalar_lea.vmem [#allocation0], 24
        %v246 = vld [vmem:[%s245] sm:$0xff]
        %247 = vperm.xlu0 %4, %v246
        %v248 = vpop.permute.xlu0 %247
        %249 = vst [vmem:[%s244] sm:$0xff] %v248
        %s250 = scalar_lea.vmem [#allocation2], 32
        %s251 = scalar_lea.vmem [#allocation0], 32
        %v252 = vld [vmem:[%s251] sm:$0xff]
        %253 = vperm.xlu0 %4, %v252
        %v254 = vpop.permute.xlu0 %253
        %255 = vst [vmem:[%s250] sm:$0xff] %v254
        %s256 = scalar_lea.vmem [#allocation2], 40
        %s257 = scalar_lea.vmem [#allocation0], 40
        %v258 = vld [vmem:[%s257] sm:$0xff]
        %259 = vperm.xlu0 %4, %v258
        %v260 = vpop.permute.xlu0 %259
        %261 = vst [vmem:[%s256] sm:$0xff] %v260
        %s262 = scalar_lea.vmem [#allocation2], 48
        %s263 = scalar_lea.vmem [#allocation0], 48
        %v264 = vld [vmem:[%s263] sm:$0xff]
        %265 = vperm.xlu0 %4, %v264
        %v266 = vpop.permute.xlu0 %265
        %267 = vst [vmem:[%s262] sm:$0xff] %v266
        %s268 = scalar_lea.vmem [#allocation2], 56
        %s269 = scalar_lea.vmem [#allocation0], 56
        %v270 = vld [vmem:[%s269] sm:$0xff]
        %271 = vperm.xlu0 %4, %v270
        %v272 = vpop.permute.xlu0 %271
        %273 = vst [vmem:[%s268] sm:$0xff] %v272
        %s274 = scalar_lea.vmem [#allocation2], 64
        %s275 = scalar_lea.vmem [#allocation0], 64
        %v276 = vld [vmem:[%s275] sm:$0xff]
        %277 = vperm.xlu0 %4, %v276
        %v278 = vpop.permute.xlu0 %277
        %279 = vst [vmem:[%s274] sm:$0xff] %v278
        %s280 = scalar_lea.vmem [#allocation2], 72
        %s281 = scalar_lea.vmem [#allocation0], 72
        %v282 = vld [vmem:[%s281] sm:$0xff]
        %283 = vperm.xlu0 %4, %v282
        %v284 = vpop.permute.xlu0 %283
        %285 = vst [vmem:[%s280] sm:$0xff] %v284
        %s286 = scalar_lea.vmem [#allocation2], 80
        %s287 = scalar_lea.vmem [#allocation0], 80
        %v288 = vld [vmem:[%s287] sm:$0xff]
        %289 = vperm.xlu0 %4, %v288
        %v290 = vpop.permute.xlu0 %289
        %291 = vst [vmem:[%s286] sm:$0xff] %v290
        %s292 = scalar_lea.vmem [#allocation2], 88
        %s293 = scalar_lea.vmem [#allocation0], 88
        %v294 = vld [vmem:[%s293] sm:$0xff]
        %295 = vperm.xlu0 %4, %v294
        %v296 = vpop.permute.xlu0 %295
        %297 = vst [vmem:[%s292] sm:$0xff] %v296
        %s299 = sshllo.u32 0, 2
        %v301 = vld [vmem:[#allocation2] sm:%s299]
        %s302 = sshllo.u32 0, 2
        %303 = vst [vmem:[%s166] sm:%s302] %v301
        %s304 = scalar_lea.vmem [#allocation2], 8
        %v305 = vld [vmem:[%s304] sm:%s299]
        %s306 = sshllo.u32 0, 2
        %s307 = scalar_lea.vmem %s166, 2 [#allocation3]
        %308 = vst [vmem:[%s307] sm:%s306] %v305
        %s309 = scalar_lea.vmem [#allocation2], 16
        %v310 = vld [vmem:[%s309] sm:%s299]
        %s311 = sshllo.u32 0, 2
        %s312 = smul.addr 2, 2
        %s313 = scalar_lea.vmem %s166, %s312 [#allocation3]
        %314 = vst [vmem:[%s313] sm:%s311] %v310
        %s315 = scalar_lea.vmem [#allocation2], 24
        %v316 = vld [vmem:[%s315] sm:%s299]
        %s317 = sshllo.u32 0, 2
        %s318 = smul.addr 2, 3
        %s319 = scalar_lea.vmem %s166, %s318 [#allocation3]
        %320 = vst [vmem:[%s319] sm:%s317] %v316
        %s321 = scalar_lea.vmem [#allocation2], 32
        %v322 = vld [vmem:[%s321] sm:%s299]
        %s323 = sshllo.u32 0, 2
        %s324 = smul.addr 2, 4
        %s325 = scalar_lea.vmem %s166, %s324 [#allocation3]
        %326 = vst [vmem:[%s325] sm:%s323] %v322
        %s327 = scalar_lea.vmem [#allocation2], 40
        %v328 = vld [vmem:[%s327] sm:%s299]
        %s329 = sshllo.u32 0, 2
        %s330 = smul.addr 2, 5
        %s331 = scalar_lea.vmem %s166, %s330 [#allocation3]
        %332 = vst [vmem:[%s331] sm:%s329] %v328
        %s333 = scalar_lea.vmem [#allocation2], 48
        %v334 = vld [vmem:[%s333] sm:%s299]
        %s335 = sshllo.u32 0, 2
        %s336 = smul.addr 2, 6
        %s337 = scalar_lea.vmem %s166, %s336 [#allocation3]
        %338 = vst [vmem:[%s337] sm:%s335] %v334
        %s339 = scalar_lea.vmem [#allocation2], 56
        %v340 = vld [vmem:[%s339] sm:%s299]
        %s341 = sshllo.u32 0, 2
        %s342 = smul.addr 2, 7
        %s343 = scalar_lea.vmem %s166, %s342 [#allocation3]
        %344 = vst [vmem:[%s343] sm:%s341] %v340
        %s345 = scalar_lea.vmem [#allocation2], 64
        %v346 = vld [vmem:[%s345] sm:%s299]
        %s347 = sshllo.u32 0, 2
        %s348 = smul.addr 2, 8
        %s349 = scalar_lea.vmem %s166, %s348 [#allocation3]
        %350 = vst [vmem:[%s349] sm:%s347] %v346
        %s351 = scalar_lea.vmem [#allocation2], 72
        %v352 = vld [vmem:[%s351] sm:%s299]
        %s353 = sshllo.u32 0, 2
        %s354 = smul.addr 2, 9
        %s355 = scalar_lea.vmem %s166, %s354 [#allocation3]
        %356 = vst [vmem:[%s355] sm:%s353] %v352
        %s357 = scalar_lea.vmem [#allocation2], 80
        %v358 = vld [vmem:[%s357] sm:%s299]
        %s359 = sshllo.u32 0, 2
        %s360 = smul.addr 2, 10
        %s361 = scalar_lea.vmem %s166, %s360 [#allocation3]
        %362 = vst [vmem:[%s361] sm:%s359] %v358
        %s363 = scalar_lea.vmem [#allocation2], 88
        %v364 = vld [vmem:[%s363] sm:%s299]
        %s365 = sshllo.u32 0, 2
        %s366 = smul.addr 2, 11
        %s367 = scalar_lea.vmem %s166, %s366 [#allocation3]
        %368 = vst [vmem:[%s367] sm:%s365] %v364
        %s369 = sand.u32 %s11, 1
        %s370 = sand.u32 %s11, 1
        %s371 = smul.addr %s370, 24
        %s372 = scalar_lea.vmem [#allocation3], %s371
        %s373 = smul.u32 12, %s18
        %s374 = smul.addr %s19, 2
        %s375 = sadd.s32 %s20, %s374
        %s376 = smul.addr %s373, 2
        %s377 = sadd.s32 %s375, %s376
        %s378 = smul.addr %s17, 24
        %s379 = sadd.s32 %s377, %s378
        %s380 = smul.addr %s379, 2
        %s381 = scalar_lea.vmem %s1, %s380
        // Predicated region
        $region58: #{reverse.1} parent=56 // pred_check
          _
        $region59: #{reverse.1} parent=56 // pred_check_branch
          %383 = sbr.rel (0) target = $region61
        $region60: #{reverse.1} parent=56 // pred_region
          // Predicated region
          $region62: #{reverse.1} parent=60 // pred_check
            _
          $region63: #{reverse.1} parent=60 // pred_check_branch
            %385 = sbr.rel target = $region65
          $region64: #{reverse.1} parent=60 // pred_region
            // Predicated region
            $region77: #{reverse.1} parent=64 // pred_check
              _
            $region78: #{reverse.1} parent=64 // pred_check_branch
              %422 = sbr.rel (0) target = $region80
            $region79: #{reverse.1} parent=64 // pred_region
              loop: start=0, step=1, limit=1
              $region81: #{reverse.1} parent=79 // loop_pre_header
                _
              $region82: #{reverse.1} parent=79 // loop_header
                %s424 = sphi 0, %s428
                %p425 = scmp.ge.s32.totalorder %s424, 1
                %s429 = sphi %s372, %s372
                %s430 = sphi %s381, %s381
              $region83: #{reverse.1} parent=79 // loop_header_branch
                %427 = sbr.rel (%p425) target = $region87
              $region84: #{reverse.1} parent=79 // loop_body
                _
              $region85: #{reverse.1} parent=79 // loop_footer
                %s428 = sadd.s32 1, %s424
              $region86: #{reverse.1} parent=79 // loop_footer_branch
                %423 = sbr.rel target = $region82
              $region87: #{reverse.1} parent=79 // loop_exit
                _
              loop: start=0, step=1, limit=1
              $region88: #{reverse.1} parent=79 // loop_pre_header
                _
              $region89: #{reverse.1} parent=79 // loop_header
                %s433 = sphi 0, %s437
                %p434 = scmp.ge.s32.totalorder %s433, 1
                %s438 = sphi %s372, %s372
                %s439 = sphi %s381, %s381
              $region90: #{reverse.1} parent=79 // loop_header_branch
                %436 = sbr.rel (%p434) target = $region94
              $region91: #{reverse.1} parent=79 // loop_body
                %v440 = vld [vmem:[%s438] sm:$0x3]
                %441 = vst [vmem:[%s439] sm:$0x3] %v440
                %v442 = vld [vmem:[%s438 + $0x2] sm:$0x3]
                %443 = vst [vmem:[%s439 + $0x4] sm:$0x3] %v442
                %v444 = vld [vmem:[%s438 + $0x4] sm:$0x3]
                %445 = vst [vmem:[%s439 + $0x8] sm:$0x3] %v444
                %v446 = vld [vmem:[%s438 + $0x6] sm:$0x3]
                %447 = vst [vmem:[%s439 + $0xc] sm:$0x3] %v446
                %v448 = vld [vmem:[%s438 + $0x8] sm:$0x3]
                %449 = vst [vmem:[%s439 + $0x10] sm:$0x3] %v448
                %v450 = vld [vmem:[%s438 + $0xa] sm:$0x3]
                %451 = vst [vmem:[%s439 + $0x14] sm:$0x3] %v450
                %v452 = vld [vmem:[%s438 + $0xc] sm:$0x3]
                %453 = vst [vmem:[%s439 + $0x18] sm:$0x3] %v452
                %v454 = vld [vmem:[%s438 + $0xe] sm:$0x3]
                %455 = vst [vmem:[%s439 + $0x1c] sm:$0x3] %v454
                %v456 = vld [vmem:[%s438 + $0x10] sm:$0x3]
                %457 = vst [vmem:[%s439 + $0x20] sm:$0x3] %v456
                %v458 = vld [vmem:[%s438 + $0x12] sm:$0x3]
                %459 = vst [vmem:[%s439 + $0x24] sm:$0x3] %v458
                %v460 = vld [vmem:[%s438 + $0x14] sm:$0x3]
                %461 = vst [vmem:[%s439 + $0x28] sm:$0x3] %v460
                %v462 = vld [vmem:[%s438 + $0x16] sm:$0x3]
                %463 = vst [vmem:[%s439 + $0x2c] sm:$0x3] %v462
              $region92: #{reverse.1} parent=79 // loop_footer
                %s437 = sadd.s32 1, %s433
              $region93: #{reverse.1} parent=79 // loop_footer_branch
                %432 = sbr.rel target = $region89
              $region94: #{reverse.1} parent=79 // loop_exit
                _
            $region80: #{reverse.1} parent=64 // pred_fallthru
              _
          $region65: #{reverse.1} parent=60 // pred_fallthru
            _
          // Predicated region
          $region66: #{reverse.1} parent=60 // pred_check
            _
          $region67: #{reverse.1} parent=60 // pred_check_branch
            %387 = sbr.rel (0) target = $region69
          $region68: #{reverse.1} parent=60 // pred_region
            loop: start=0, step=1, limit=1
            $region70: #{reverse.1} parent=68 // loop_pre_header
              _
            $region71: #{reverse.1} parent=68 // loop_header
              %s390 = sphi 0, %s394
              %p391 = scmp.ge.s32.totalorder %s390, 1
              %s395 = sphi %s372, %s372
              %s396 = sphi %s381, %s381
            $region72: #{reverse.1} parent=68 // loop_header_branch
              %393 = sbr.rel (%p391) target = $region76
            $region73: #{reverse.1} parent=68 // loop_body
              %v397 = vld [vmem:[%s395] sm:$0x3]
              %398 = vst [vmem:[%s396] sm:$0x3] %v397
              %v399 = vld [vmem:[%s395 + $0x2] sm:$0x3]
              %400 = vst [vmem:[%s396 + $0x4] sm:$0x3] %v399
              %v401 = vld [vmem:[%s395 + $0x4] sm:$0x3]
              %402 = vst [vmem:[%s396 + $0x8] sm:$0x3] %v401
              %v403 = vld [vmem:[%s395 + $0x6] sm:$0x3]
              %404 = vst [vmem:[%s396 + $0xc] sm:$0x3] %v403
              %v405 = vld [vmem:[%s395 + $0x8] sm:$0x3]
              %406 = vst [vmem:[%s396 + $0x10] sm:$0x3] %v405
              %v407 = vld [vmem:[%s395 + $0xa] sm:$0x3]
              %408 = vst [vmem:[%s396 + $0x14] sm:$0x3] %v407
              %v409 = vld [vmem:[%s395 + $0xc] sm:$0x3]
              %410 = vst [vmem:[%s396 + $0x18] sm:$0x3] %v409
              %v411 = vld [vmem:[%s395 + $0xe] sm:$0x3]
              %412 = vst [vmem:[%s396 + $0x1c] sm:$0x3] %v411
              %v413 = vld [vmem:[%s395 + $0x10] sm:$0x3]
              %414 = vst [vmem:[%s396 + $0x20] sm:$0x3] %v413
              %v415 = vld [vmem:[%s395 + $0x12] sm:$0x3]
              %416 = vst [vmem:[%s396 + $0x24] sm:$0x3] %v415
              %v417 = vld [vmem:[%s395 + $0x14] sm:$0x3]
              %418 = vst [vmem:[%s396 + $0x28] sm:$0x3] %v417
              %v419 = vld [vmem:[%s395 + $0x16] sm:$0x3]
              %420 = vst [vmem:[%s396 + $0x2c] sm:$0x3] %v419
            $region74: #{reverse.1} parent=68 // loop_footer
              %s394 = sadd.s32 1, %s390
            $region75: #{reverse.1} parent=68 // loop_footer_branch
              %389 = sbr.rel target = $region71
            $region76: #{reverse.1} parent=68 // loop_exit
              _
          $region69: #{reverse.1} parent=60 // pred_fallthru
            _
        $region61: #{reverse.1} parent=56 // pred_fallthru
          _
        %464 = vnop
      $region57: #{reverse.1} parent=5 // pred_fallthru
        _
      %p465 = scmp.le.s32.totalorder 2, %s6
      // Predicated region
      $region95: #{reverse.1} parent=5 // pred_check
        %p466 = pneg %p465
      $region96: #{reverse.1} parent=5 // pred_check_branch
        %468 = sbr.rel (%p466) target = $region98
      $region97: #{reverse.1} parent=5 // pred_region
        %s469 = ssub.s32 %s6, 2
        %s470 = sand.u32 %s12, 1
        %s471 = sand.u32 %s12, 1
        %s472 = smul.addr %s471, 24
        %s473 = scalar_lea.vmem [#allocation3], %s472
      $region98: #{reverse.1} parent=5 // pred_fallthru
        _
    $region6: #{reverse.1} parent=1 // loop_footer
      %s10 = sadd.s32 1, %s6
    $region7: #{reverse.1} parent=1 // loop_footer_branch
      %5 = sbr.rel target = $region3
    $region8: #{reverse.1} parent=1 // loop_exit
      _

// kernel: squeeze.9
$region0: #{squeeze.9}
  %s0 = inlined_call_operand.vmem [shape: f32[2,1,12,256], index: 0, kind: input, shape index: {}]
  %s1 = inlined_call_operand.vmem [shape: f32[2,12,16,16], index: 1, kind: output, shape index: {}]
  $region1: #{squeeze.9} parent=0
    #allocation0 [shape = 'u8[98304]{0}', space=vmem, size = 0x18000, scoped, tag = 'scoped mem for input reshape']
    %s3 = sshllo.u32 0, 2
    %s4 = smul.addr 2, 23
    %s5 = scalar_lea.vmem %s0, %s4
    %v6 = vld [vmem:[%s5] sm:%s3]
    %s7 = scalar_lea.vmem [#allocation0], 184
    %8 = vst [vmem:[%s7] sm:%s3] %v6
    %s9 = smul.addr 2, 22
    %s10 = scalar_lea.vmem %s0, %s9
    %v11 = vld [vmem:[%s10] sm:%s3]
    %s12 = scalar_lea.vmem [#allocation0], 176
    %13 = vst [vmem:[%s12] sm:%s3] %v11
    %s14 = smul.addr 2, 21
    %s15 = scalar_lea.vmem %s0, %s14
    %v16 = vld [vmem:[%s15] sm:%s3]
    %s17 = scalar_lea.vmem [#allocation0], 168
    %18 = vst [vmem:[%s17] sm:%s3] %v16
    %s19 = smul.addr 2, 20
    %s20 = scalar_lea.vmem %s0, %s19
    %v21 = vld [vmem:[%s20] sm:%s3]
    %s22 = scalar_lea.vmem [#allocation0], 160
    %23 = vst [vmem:[%s22] sm:%s3] %v21
    %s24 = smul.addr 2, 19
    %s25 = scalar_lea.vmem %s0, %s24
    %v26 = vld [vmem:[%s25] sm:%s3]
    %s27 = scalar_lea.vmem [#allocation0], 152
    %28 = vst [vmem:[%s27] sm:%s3] %v26
    %s29 = smul.addr 2, 18
    %s30 = scalar_lea.vmem %s0, %s29
    %v31 = vld [vmem:[%s30] sm:%s3]
    %s32 = scalar_lea.vmem [#allocation0], 144
    %33 = vst [vmem:[%s32] sm:%s3] %v31
    %s34 = smul.addr 2, 17
    %s35 = scalar_lea.vmem %s0, %s34
    %v36 = vld [vmem:[%s35] sm:%s3]
    %s37 = scalar_lea.vmem [#allocation0], 136
    %38 = vst [vmem:[%s37] sm:%s3] %v36
    %s39 = smul.addr 2, 16
    %s40 = scalar_lea.vmem %s0, %s39
    %v41 = vld [vmem:[%s40] sm:%s3]
    %s42 = scalar_lea.vmem [#allocation0], 128
    %43 = vst [vmem:[%s42] sm:%s3] %v41
    %s44 = smul.addr 2, 15
    %s45 = scalar_lea.vmem %s0, %s44
    %v46 = vld [vmem:[%s45] sm:%s3]
    %s47 = scalar_lea.vmem [#allocation0], 120
    %48 = vst [vmem:[%s47] sm:%s3] %v46
    %s49 = smul.addr 2, 14
    %s50 = scalar_lea.vmem %s0, %s49
    %v51 = vld [vmem:[%s50] sm:%s3]
    %s52 = scalar_lea.vmem [#allocation0], 112
    %53 = vst [vmem:[%s52] sm:%s3] %v51
    %s54 = smul.addr 2, 13
    %s55 = scalar_lea.vmem %s0, %s54
    %v56 = vld [vmem:[%s55] sm:%s3]
    %s57 = scalar_lea.vmem [#allocation0], 104
    %58 = vst [vmem:[%s57] sm:%s3] %v56
    %s59 = smul.addr 2, 12
    %s60 = scalar_lea.vmem %s0, %s59
    %v61 = vld [vmem:[%s60] sm:%s3]
    %s62 = scalar_lea.vmem [#allocation0], 96
    %63 = vst [vmem:[%s62] sm:%s3] %v61
    %s64 = smul.addr 2, 11
    %s65 = scalar_lea.vmem %s0, %s64
    %v66 = vld [vmem:[%s65] sm:%s3]
    %s67 = scalar_lea.vmem [#allocation0], 88
    %68 = vst [vmem:[%s67] sm:%s3] %v66
    %s69 = smul.addr 2, 10
    %s70 = scalar_lea.vmem %s0, %s69
    %v71 = vld [vmem:[%s70] sm:%s3]
    %s72 = scalar_lea.vmem [#allocation0], 80
    %73 = vst [vmem:[%s72] sm:%s3] %v71
    %s74 = smul.addr 2, 9
    %s75 = scalar_lea.vmem %s0, %s74
    %v76 = vld [vmem:[%s75] sm:%s3]
    %s77 = scalar_lea.vmem [#allocation0], 72
    %78 = vst [vmem:[%s77] sm:%s3] %v76
    %s79 = smul.addr 2, 8
    %s80 = scalar_lea.vmem %s0, %s79
    %v81 = vld [vmem:[%s80] sm:%s3]
    %s82 = scalar_lea.vmem [#allocation0], 64
    %83 = vst [vmem:[%s82] sm:%s3] %v81
    %s84 = smul.addr 2, 7
    %s85 = scalar_lea.vmem %s0, %s84
    %v86 = vld [vmem:[%s85] sm:%s3]
    %s87 = scalar_lea.vmem [#allocation0], 56
    %88 = vst [vmem:[%s87] sm:%s3] %v86
    %s89 = smul.addr 2, 6
    %s90 = scalar_lea.vmem %s0, %s89
    %v91 = vld [vmem:[%s90] sm:%s3]
    %s92 = scalar_lea.vmem [#allocation0], 48
    %93 = vst [vmem:[%s92] sm:%s3] %v91
    %s94 = smul.addr 2, 5
    %s95 = scalar_lea.vmem %s0, %s94
    %v96 = vld [vmem:[%s95] sm:%s3]
    %s97 = scalar_lea.vmem [#allocation0], 40
    %98 = vst [vmem:[%s97] sm:%s3] %v96
    %s99 = smul.addr 2, 4
    %s100 = scalar_lea.vmem %s0, %s99
    %v101 = vld [vmem:[%s100] sm:%s3]
    %s102 = scalar_lea.vmem [#allocation0], 32
    %103 = vst [vmem:[%s102] sm:%s3] %v101
    %s104 = smul.addr 2, 3
    %s105 = scalar_lea.vmem %s0, %s104
    %v106 = vld [vmem:[%s105] sm:%s3]
    %s107 = scalar_lea.vmem [#allocation0], 24
    %108 = vst [vmem:[%s107] sm:%s3] %v106
    %s109 = smul.addr 2, 2
    %s110 = scalar_lea.vmem %s0, %s109
    %v111 = vld [vmem:[%s110] sm:%s3]
    %s112 = scalar_lea.vmem [#allocation0], 16
    %113 = vst [vmem:[%s112] sm:%s3] %v111
    %s114 = scalar_lea.vmem %s0, 2
    %v115 = vld [vmem:[%s114] sm:%s3]
    %s116 = scalar_lea.vmem [#allocation0], 8
    %117 = vst [vmem:[%s116] sm:%s3] %v115
    %v118 = vld [vmem:[%s0] sm:%s3]
    %119 = vst [vmem:[#allocation0] sm:%s3] %v118
    %v120 = vld [vmem:[#allocation0] sm:$0x3]
    %vm121 = vcmask 130048
    %122 = vst.msk [vmem:[%s1] ss:$16 sm:$0x3] %vm121, %v120
    %s123 = scalar_lea.vmem [#allocation0], 8
    %v124 = vld [vmem:[%s123] sm:$0x3]
    %vm125 = vcmask 130048
    %s126 = scalar_lea.vmem %s1, 8
    %127 = vst.msk [vmem:[%s126] ss:$16 sm:$0x3] %vm125, %v124
    %s128 = scalar_lea.vmem [#allocation0], 16
    %v129 = vld [vmem:[%s128] sm:$0x3]
    %vm130 = vcmask 130048
    %s131 = scalar_lea.vmem %s1, 32
    %132 = vst.msk [vmem:[%s131] ss:$16 sm:$0x3] %vm130, %v129
    %s133 = scalar_lea.vmem [#allocation0], 24
    %v134 = vld [vmem:[%s133] sm:$0x3]
    %vm135 = vcmask 130048
    %s136 = scalar_lea.vmem %s1, 40
    %137 = vst.msk [vmem:[%s136] ss:$16 sm:$0x3] %vm135, %v134
    %s138 = scalar_lea.vmem [#allocation0], 32
    %v139 = vld [vmem:[%s138] sm:$0x3]
    %vm140 = vcmask 130048
    %s141 = scalar_lea.vmem %s1, 64
    %142 = vst.msk [vmem:[%s141] ss:$16 sm:$0x3] %vm140, %v139
    %s143 = scalar_lea.vmem [#allocation0], 40
    %v144 = vld [vmem:[%s143] sm:$0x3]
    %vm145 = vcmask 130048
    %s146 = scalar_lea.vmem %s1, 72
    %147 = vst.msk [vmem:[%s146] ss:$16 sm:$0x3] %vm145, %v144
    %s148 = scalar_lea.vmem [#allocation0], 48
    %v149 = vld [vmem:[%s148] sm:$0x3]
    %vm150 = vcmask 130048
    %s151 = scalar_lea.vmem %s1, 96
    %152 = vst.msk [vmem:[%s151] ss:$16 sm:$0x3] %vm150, %v149
    %s153 = scalar_lea.vmem [#allocation0], 56
    %v154 = vld [vmem:[%s153] sm:$0x3]
    %vm155 = vcmask 130048
    %s156 = scalar_lea.vmem %s1, 104
    %157 = vst.msk [vmem:[%s156] ss:$16 sm:$0x3] %vm155, %v154
    %s158 = scalar_lea.vmem [#allocation0], 64
    %v159 = vld [vmem:[%s158] sm:$0x3]
    %vm160 = vcmask 130048
    %s161 = scalar_lea.vmem %s1, 128
    %162 = vst.msk [vmem:[%s161] ss:$16 sm:$0x3] %vm160, %v159
    %s163 = scalar_lea.vmem [#allocation0], 72
    %v164 = vld [vmem:[%s163] sm:$0x3]
    %vm165 = vcmask 130048
    %s166 = scalar_lea.vmem %s1, 136
    %167 = vst.msk [vmem:[%s166] ss:$16 sm:$0x3] %vm165, %v164
    %s168 = scalar_lea.vmem [#allocation0], 80
    %v169 = vld [vmem:[%s168] sm:$0x3]
    %vm170 = vcmask 130048
    %s171 = scalar_lea.vmem %s1, 160
    %172 = vst.msk [vmem:[%s171] ss:$16 sm:$0x3] %vm170, %v169
    %s173 = scalar_lea.vmem [#allocation0], 88
    %v174 = vld [vmem:[%s173] sm:$0x3]
    %vm175 = vcmask 130048
    %s176 = scalar_lea.vmem %s1, 168
    %177 = vst.msk [vmem:[%s176] ss:$16 sm:$0x3] %vm175, %v174
    %s178 = scalar_lea.vmem [#allocation0], 96
    %v179 = vld [vmem:[%s178] sm:$0x3]
    %vm180 = vcmask 130048
    %s181 = scalar_lea.vmem %s1, 192
    %182 = vst.msk [vmem:[%s181] ss:$16 sm:$0x3] %vm180, %v179
    %s183 = scalar_lea.vmem [#allocation0], 104
    %v184 = vld [vmem:[%s183] sm:$0x3]
    %vm185 = vcmask 130048
    %s186 = scalar_lea.vmem %s1, 200
    %187 = vst.msk [vmem:[%s186] ss:$16 sm:$0x3] %vm185, %v184
    %s188 = scalar_lea.vmem [#allocation0], 112
    %v189 = vld [vmem:[%s188] sm:$0x3]
    %vm190 = vcmask 130048
    %s191 = scalar_lea.vmem %s1, 224
    %192 = vst.msk [vmem:[%s191] ss:$16 sm:$0x3] %vm190, %v189
    %s193 = scalar_lea.vmem [#allocation0], 120
    %v194 = vld [vmem:[%s193] sm:$0x3]
    %vm195 = vcmask 130048
    %s196 = scalar_lea.vmem %s1, 232
    %197 = vst.msk [vmem:[%s196] ss:$16 sm:$0x3] %vm195, %v194
    %s198 = scalar_lea.vmem [#allocation0], 128
    %v199 = vld [vmem:[%s198] sm:$0x3]
    %vm200 = vcmask 130048
    %s201 = scalar_lea.vmem %s1, 256
    %202 = vst.msk [vmem:[%s201] ss:$16 sm:$0x3] %vm200, %v199
    %s203 = scalar_lea.vmem [#allocation0], 136
    %v204 = vld [vmem:[%s203] sm:$0x3]
    %vm205 = vcmask 130048
    %s206 = scalar_lea.vmem %s1, 264
    %207 = vst.msk [vmem:[%s206] ss:$16 sm:$0x3] %vm205, %v204
    %s208 = scalar_lea.vmem [#allocation0], 144
    %v209 = vld [vmem:[%s208] sm:$0x3]
    %vm210 = vcmask 130048
    %s211 = scalar_lea.vmem %s1, 288
    %212 = vst.msk [vmem:[%s211] ss:$16 sm:$0x3] %vm210, %v209
    %s213 = scalar_lea.vmem [#allocation0], 152
    %v214 = vld [vmem:[%s213] sm:$0x3]
    %vm215 = vcmask 130048
    %s216 = scalar_lea.vmem %s1, 296
    %217 = vst.msk [vmem:[%s216] ss:$16 sm:$0x3] %vm215, %v214
    %s218 = scalar_lea.vmem [#allocation0], 160
    %v219 = vld [vmem:[%s218] sm:$0x3]
    %vm220 = vcmask 130048
    %s221 = scalar_lea.vmem %s1, 320
    %222 = vst.msk [vmem:[%s221] ss:$16 sm:$0x3] %vm220, %v219
    %s223 = scalar_lea.vmem [#allocation0], 168
    %v224 = vld [vmem:[%s223] sm:$0x3]
    %vm225 = vcmask 130048
    %s226 = scalar_lea.vmem %s1, 328
    %227 = vst.msk [vmem:[%s226] ss:$16 sm:$0x3] %vm225, %v224
    %s228 = scalar_lea.vmem [#allocation0], 176
    %v229 = vld [vmem:[%s228] sm:$0x3]
    %vm230 = vcmask 130048
    %s231 = scalar_lea.vmem %s1, 352
    %232 = vst.msk [vmem:[%s231] ss:$16 sm:$0x3] %vm230, %v229
    %s233 = scalar_lea.vmem [#allocation0], 184
    %v234 = vld [vmem:[%s233] sm:$0x3]
    %vm235 = vcmask 130048
    %s236 = scalar_lea.vmem %s1, 360
    %237 = vst.msk [vmem:[%s236] ss:$16 sm:$0x3] %vm235, %v234
    %v238 = vld.sshfl [vmem:[#allocation0] sm:$0xff pattern:$0x99999180]
    %s239 = scalar_lea.vmem [#allocation0], 16
    %v240 = vld.sshfl [vmem:[%s239] sm:$0xff pattern:$0x91800000]
    %vm241 = vcmask 1047556
    %v242 = vsel %vm241, %v240, %v238
    %243 = vrot.lane.b32.xlu0 %v242, 112
    %v244 = vpop.permute.xlu0 %243
    %vm245 = vcmask 130048
    %s246 = scalar_lea.vmem %s1, 1
    %247 = vst.msk [vmem:[%s246] ss:$8 sm:$0xf] %vm245, %v244
    %s248 = scalar_lea.vmem %s1, 1
    %249 = vst.msk [vmem:[%s248] ss:$8 sm:$0xf0] %vm245, %v244
    %s250 = scalar_lea.vmem [#allocation0], 32
    %v251 = vld.sshfl [vmem:[%s250] sm:$0xff pattern:$0x99999180]
    %s252 = scalar_lea.vmem [#allocation0], 48
    %v253 = vld.sshfl [vmem:[%s252] sm:$0xff pattern:$0x91800000]
    %vm254 = vcmask 1047556
    %v255 = vsel %vm254, %v253, %v251
    %256 = vrot.lane.b32.xlu0 %v255, 112
    %v257 = vpop.permute.xlu0 %256
    %vm258 = vcmask 130048
    %s259 = scalar_lea.vmem %s1, 65
    %260 = vst.msk [vmem:[%s259] ss:$8 sm:$0xf] %vm258, %v257
    %s261 = scalar_lea.vmem %s1, 65
    %262 = vst.msk [vmem:[%s261] ss:$8 sm:$0xf0] %vm258, %v257
    %s263 = scalar_lea.vmem [#allocation0], 64
    %v264 = vld.sshfl [vmem:[%s263] sm:$0xff pattern:$0x99999180]
    %s265 = scalar_lea.vmem [#allocation0], 80
    %v266 = vld.sshfl [vmem:[%s265] sm:$0xff pattern:$0x91800000]
    %vm267 = vcmask 1047556
    %v268 = vsel %vm267, %v266, %v264
    %269 = vrot.lane.b32.xlu0 %v268, 112
    %v270 = vpop.permute.xlu0 %269
    %vm271 = vcmask 130048
    %s272 = scalar_lea.vmem %s1, 129
    %273 = vst.msk [vmem:[%s272] ss:$8 sm:$0xf] %vm271, %v270
    %s274 = scalar_lea.vmem %s1, 129
    %275 = vst.msk [vmem:[%s274] ss:$8 sm:$0xf0] %vm271, %v270
    %s276 = scalar_lea.vmem [#allocation0], 96
    %v277 = vld.sshfl [vmem:[%s276] sm:$0xff pattern:$0x99999180]
    %s278 = scalar_lea.vmem [#allocation0], 112
    %v279 = vld.sshfl [vmem:[%s278] sm:$0xff pattern:$0x91800000]
    %vm280 = vcmask 1047556
    %v281 = vsel %vm280, %v279, %v277
    %282 = vrot.lane.b32.xlu0 %v281, 112
    %v283 = vpop.permute.xlu0 %282
    %vm284 = vcmask 130048
    %s285 = scalar_lea.vmem %s1, 193
    %286 = vst.msk [vmem:[%s285] ss:$8 sm:$0xf] %vm284, %v283
    %s287 = scalar_lea.vmem %s1, 193
    %288 = vst.msk [vmem:[%s287] ss:$8 sm:$0xf0] %vm284, %v283
    %s289 = scalar_lea.vmem [#allocation0], 128
    %v290 = vld.sshfl [vmem:[%s289] sm:$0xff pattern:$0x99999180]
    %s291 = scalar_lea.vmem [#allocation0], 144
    %v292 = vld.sshfl [vmem:[%s291] sm:$0xff pattern:$0x91800000]
    %vm293 = vcmask 1047556
    %v294 = vsel %vm293, %v292, %v290
    %295 = vrot.lane.b32.xlu0 %v294, 112
    %v296 = vpop.permute.xlu0 %295
    %vm297 = vcmask 130048
    %s298 = scalar_lea.vmem %s1, 257
    %299 = vst.msk [vmem:[%s298] ss:$8 sm:$0xf] %vm297, %v296
    %s300 = scalar_lea.vmem %s1, 257
    %301 = vst.msk [vmem:[%s300] ss:$8 sm:$0xf0] %vm297, %v296
    %s302 = scalar_lea.vmem [#allocation0], 160
    %v303 = vld.sshfl [vmem:[%s302] sm:$0xff pattern:$0x99999180]
    %s304 = scalar_lea.vmem [#allocation0], 176
    %v305 = vld.sshfl [vmem:[%s304] sm:$0xff pattern:$0x91800000]
    %vm306 = vcmask 1047556
    %v307 = vsel %vm306, %v305, %v303
    %308 = vrot.lane.b32.xlu0 %v307, 112
    %v309 = vpop.permute.xlu0 %308
    %vm310 = vcmask 130048
    %s311 = scalar_lea.vmem %s1, 321
    %312 = vst.msk [vmem:[%s311] ss:$8 sm:$0xf] %vm310, %v309
    %s313 = scalar_lea.vmem %s1, 321
    %314 = vst.msk [vmem:[%s313] ss:$8 sm:$0xf0] %vm310, %v309
    %v315 = vld.sshfl [vmem:[#allocation0] sm:$0xff pattern:$0x99999180]
    %s316 = scalar_lea.vmem [#allocation0], 16
    %v317 = vld.sshfl [vmem:[%s316] sm:$0xff pattern:$0x91800000]
    %vm318 = vcmask 1047556
    %v319 = vsel %vm318, %v317, %v315
    %320 = vrot.lane.b32.xlu0 %v319, 96
    %v321 = vpop.permute.xlu0 %320
    %vm322 = vcmask 130048
    %s323 = scalar_lea.vmem %s1, 2
    %324 = vst.msk [vmem:[%s323] ss:$8 sm:$0xf] %vm322, %v321
    %s325 = scalar_lea.vmem %s1, 2
    %326 = vst.msk [vmem:[%s325] ss:$8 sm:$0xf0] %vm322, %v321
    %s327 = scalar_lea.vmem [#allocation0], 32
    %v328 = vld.sshfl [vmem:[%s327] sm:$0xff pattern:$0x99999180]
    %s329 = scalar_lea.vmem [#allocation0], 48
    %v330 = vld.sshfl [vmem:[%s329] sm:$0xff pattern:$0x91800000]
    %vm331 = vcmask 1047556
    %v332 = vsel %vm331, %v330, %v328
    %333 = vrot.lane.b32.xlu0 %v332, 96
    %v334 = vpop.permute.xlu0 %333
    %vm335 = vcmask 130048
    %s336 = scalar_lea.vmem %s1, 66
    %337 = vst.msk [vmem:[%s336] ss:$8 sm:$0xf] %vm335, %v334
    %s338 = scalar_lea.vmem %s1, 66
    %339 = vst.msk [vmem:[%s338] ss:$8 sm:$0xf0] %vm335, %v334
    %s340 = scalar_lea.vmem [#allocation0], 64
    %v341 = vld.sshfl [vmem:[%s340] sm:$0xff pattern:$0x99999180]
    %s342 = scalar_lea.vmem [#allocation0], 80
    %v343 = vld.sshfl [vmem:[%s342] sm:$0xff pattern:$0x91800000]
    %vm344 = vcmask 1047556
    %v345 = vsel %vm344, %v343, %v341
    %346 = vrot.lane.b32.xlu0 %v345, 96
    %v347 = vpop.permute.xlu0 %346
    %vm348 = vcmask 130048
    %s349 = scalar_lea.vmem %s1, 130
    %350 = vst.msk [vmem:[%s349] ss:$8 sm:$0xf] %vm348, %v347
    %s351 = scalar_lea.vmem %s1, 130
    %352 = vst.msk [vmem:[%s351] ss:$8 sm:$0xf0] %vm348, %v347
    %s353 = scalar_lea.vmem [#allocation0], 96
    %v354 = vld.sshfl [vmem:[%s353] sm:$0xff pattern:$0x99999180]
    %s355 = scalar_lea.vmem [#allocation0], 112
    %v356 = vld.sshfl [vmem:[%s355] sm:$0xff pattern:$0x91800000]
    %vm357 = vcmask 1047556
    %v358 = vsel %vm357, %v356, %v354
    %359 = vrot.lane.b32.xlu0 %v358, 96
    %v360 = vpop.permute.xlu0 %359
    %vm361 = vcmask 130048
    %s362 = scalar_lea.vmem %s1, 194
    %363 = vst.msk [vmem:[%s362] ss:$8 sm:$0xf] %vm361, %v360
    %s364 = scalar_lea.vmem %s1, 194
    %365 = vst.msk [vmem:[%s364] ss:$8 sm:$0xf0] %vm361, %v360
    %s366 = scalar_lea.vmem [#allocation0], 128
    %v367 = vld.sshfl [vmem:[%s366] sm:$0xff pattern:$0x99999180]
    %s368 = scalar_lea.vmem [#allocation0], 144
    %v369 = vld.sshfl [vmem:[%s368] sm:$0xff pattern:$0x91800000]
    %vm370 = vcmask 1047556
    %v371 = vsel %vm370, %v369, %v367
    %372 = vrot.lane.b32.xlu0 %v371, 96
    %v373 = vpop.permute.xlu0 %372
    %vm374 = vcmask 130048
    %s375 = scalar_lea.vmem %s1, 258
    %376 = vst.msk [vmem:[%s375] ss:$8 sm:$0xf] %vm374, %v373
    %s377 = scalar_lea.vmem %s1, 258
    %378 = vst.msk [vmem:[%s377] ss:$8 sm:$0xf0] %vm374, %v373
    %s379 = scalar_lea.vmem [#allocation0], 160
    %v380 = vld.sshfl [vmem:[%s379] sm:$0xff pattern:$0x99999180]
    %s381 = scalar_lea.vmem [#allocation0], 176
    %v382 = vld.sshfl [vmem:[%s381] sm:$0xff pattern:$0x91800000]
    %vm383 = vcmask 1047556
    %v384 = vsel %vm383, %v382, %v380
    %385 = vrot.lane.b32.xlu0 %v384, 96
    %v386 = vpop.permute.xlu0 %385
    %vm387 = vcmask 130048
    %s388 = scalar_lea.vmem %s1, 322
    %389 = vst.msk [vmem:[%s388] ss:$8 sm:$0xf] %vm387, %v386
    %s390 = scalar_lea.vmem %s1, 322
    %391 = vst.msk [vmem:[%s390] ss:$8 sm:$0xf0] %vm387, %v386
    %v392 = vld.sshfl [vmem:[#allocation0] sm:$0xff pattern:$0x99999180]
    %s393 = scalar_lea.vmem [#allocation0], 16
    %v394 = vld.sshfl [vmem:[%s393] sm:$0xff pattern:$0x91800000]
    %vm395 = vcmask 1047556
    %v396 = vsel %vm395, %v394, %v392
    %397 = vrot.lane.b32.xlu0 %v396, 80
    %v398 = vpop.permute.xlu0 %397
    %vm399 = vcmask 130048
    %s400 = scalar_lea.vmem %s1, 3
    %401 = vst.msk [vmem:[%s400] ss:$8 sm:$0xf] %vm399, %v398
    %s402 = scalar_lea.vmem %s1, 3
    %403 = vst.msk [vmem:[%s402] ss:$8 sm:$0xf0] %vm399, %v398
    %s404 = scalar_lea.vmem [#allocation0], 32
    %v405 = vld.sshfl [vmem:[%s404] sm:$0xff pattern:$0x99999180]
    %s406 = scalar_lea.vmem [#allocation0], 48
    %v407 = vld.sshfl [vmem:[%s406] sm:$0xff pattern:$0x91800000]
    %vm408 = vcmask 1047556
    %v409 = vsel %vm408, %v407, %v405
    %410 = vrot.lane.b32.xlu0 %v409, 80
    %v411 = vpop.permute.xlu0 %410
    %vm412 = vcmask 130048
    %s413 = scalar_lea.vmem %s1, 67
    %414 = vst.msk [vmem:[%s413] ss:$8 sm:$0xf] %vm412, %v411
    %s415 = scalar_lea.vmem %s1, 67
    %416 = vst.msk [vmem:[%s415] ss:$8 sm:$0xf0] %vm412, %v411
    %s417 = scalar_lea.vmem [#allocation0], 64
    %v418 = vld.sshfl [vmem:[%s417] sm:$0xff pattern:$0x99999180]
    %s419 = scalar_lea.vmem [#allocation0], 80
    %v420 = vld.sshfl [vmem:[%s419] sm:$0xff pattern:$0x91800000]
    %vm421 = vcmask 1047556
    %v422 = vsel %vm421, %v420, %v418
    %423 = vrot.lane.b32.xlu0 %v422, 80
    %v424 = vpop.permute.xlu0 %423
    %vm425 = vcmask 130048
    %s426 = scalar_lea.vmem %s1, 131
    %427 = vst.msk [vmem:[%s426] ss:$8 sm:$0xf] %vm425, %v424
    %s428 = scalar_lea.vmem %s1, 131
    %429 = vst.msk [vmem:[%s428] ss:$8 sm:$0xf0] %vm425, %v424
    %s430 = scalar_lea.vmem [#allocation0], 96
    %v431 = vld.sshfl [vmem:[%s430] sm:$0xff pattern:$0x99999180]
    %s432 = scalar_lea.vmem [#allocation0], 112
    %v433 = vld.sshfl [vmem:[%s432] sm:$0xff pattern:$0x91800000]
    %vm434 = vcmask 1047556
    %v435 = vsel %vm434, %v433, %v431
    %436 = vrot.lane.b32.xlu0 %v435, 80
    %v437 = vpop.permute.xlu0 %436
    %vm438 = vcmask 130048
    %s439 = scalar_lea.vmem %s1, 195
    %440 = vst.msk [vmem:[%s439] ss:$8 sm:$0xf] %vm438, %v437
    %s441 = scalar_lea.vmem %s1, 195
    %442 = vst.msk [vmem:[%s441] ss:$8 sm:$0xf0] %vm438, %v437
    %s443 = scalar_lea.vmem [#allocation0], 128
    %v444 = vld.sshfl [vmem:[%s443] sm:$0xff pattern:$0x99999180]
    %s445 = scalar_lea.vmem [#allocation0], 144
    %v446 = vld.sshfl [vmem:[%s445] sm:$0xff pattern:$0x91800000]
    %vm447 = vcmask 1047556
    %v448 = vsel %vm447, %v446, %v444
    %449 = vrot.lane.b32.xlu0 %v448, 80
    %v450 = vpop.permute.xlu0 %449
    %vm451 = vcmask 130048
    %s452 = scalar_lea.vmem %s1, 259
    %453 = vst.msk [vmem:[%s452] ss:$8 sm:$0xf] %vm451, %v450
    %s454 = scalar_lea.vmem %s1, 259
    %455 = vst.msk [vmem:[%s454] ss:$8 sm:$0xf0] %vm451, %v450
    %s456 = scalar_lea.vmem [#allocation0], 160
    %v457 = vld.sshfl [vmem:[%s456] sm:$0xff pattern:$0x99999180]
    %s458 = scalar_lea.vmem [#allocation0], 176
    %v459 = vld.sshfl [vmem:[%s458] sm:$0xff pattern:$0x91800000]
    %vm460 = vcmask 1047556
    %v461 = vsel %vm460, %v459, %v457
    %462 = vrot.lane.b32.xlu0 %v461, 80
    %v463 = vpop.permute.xlu0 %462
    %vm464 = vcmask 130048
    %s465 = scalar_lea.vmem %s1, 323
    %466 = vst.msk [vmem:[%s465] ss:$8 sm:$0xf] %vm464, %v463
    %s467 = scalar_lea.vmem %s1, 323
    %468 = vst.msk [vmem:[%s467] ss:$8 sm:$0xf0] %vm464, %v463
    %v469 = vld.sshfl [vmem:[#allocation0] sm:$0xff pattern:$0x99999180]
    %s470 = scalar_lea.vmem [#allocation0], 16
    %v471 = vld.sshfl [vmem:[%s470] sm:$0xff pattern:$0x91800000]
    %vm472 = vcmask 1047556
    %v473 = vsel %vm472, %v471, %v469
    %474 = vrot.lane.b32.xlu0 %v473, 64
    %v475 = vpop.permute.xlu0 %474
    %vm476 = vcmask 130048
    %s477 = scalar_lea.vmem %s1, 4
    %478 = vst.msk [vmem:[%s477] ss:$8 sm:$0xf] %vm476, %v475
    %s479 = scalar_lea.vmem %s1, 4
    %480 = vst.msk [vmem:[%s479] ss:$8 sm:$0xf0] %vm476, %v475
    %s481 = scalar_lea.vmem [#allocation0], 32
    %v482 = vld.sshfl [vmem:[%s481] sm:$0xff pattern:$0x99999180]
    %s483 = scalar_lea.vmem [#allocation0], 48
    %v484 = vld.sshfl [vmem:[%s483] sm:$0xff pattern:$0x91800000]
    %vm485 = vcmask 1047556
    %v486 = vsel %vm485, %v484, %v482
    %487 = vrot.lane.b32.xlu0 %v486, 64
    %v488 = vpop.permute.xlu0 %487
    %vm489 = vcmask 130048
    %s490 = scalar_lea.vmem %s1, 68
    %491 = vst.msk [vmem:[%s490] ss:$8 sm:$0xf] %vm489, %v488
    %s492 = scalar_lea.vmem %s1, 68
    %493 = vst.msk [vmem:[%s492] ss:$8 sm:$0xf0] %vm489, %v488
    %s494 = scalar_lea.vmem [#allocation0], 64
    %v495 = vld.sshfl [vmem:[%s494] sm:$0xff pattern:$0x99999180]
    %s496 = scalar_lea.vmem [#allocation0], 80
    %v497 = vld.sshfl [vmem:[%s496] sm:$0xff pattern:$0x91800000]
    %vm498 = vcmask 1047556
    %v499 = vsel %vm498, %v497, %v495
    %500 = vrot.lane.b32.xlu0 %v499, 64
    %v501 = vpop.permute.xlu0 %500
    %vm502 = vcmask 130048
    %s503 = scalar_lea.vmem %s1, 132
    %504 = vst.msk [vmem:[%s503] ss:$8 sm:$0xf] %vm502, %v501
    %s505 = scalar_lea.vmem %s1, 132
    %506 = vst.msk [vmem:[%s505] ss:$8 sm:$0xf0] %vm502, %v501
    %s507 = scalar_lea.vmem [#allocation0], 96
    %v508 = vld.sshfl [vmem:[%s507] sm:$0xff pattern:$0x99999180]
    %s509 = scalar_lea.vmem [#allocation0], 112
    %v510 = vld.sshfl [vmem:[%s509] sm:$0xff pattern:$0x91800000]
    %vm511 = vcmask 1047556
    %v512 = vsel %vm511, %v510, %v508
    %513 = vrot.lane.b32.xlu0 %v512, 64
    %v514 = vpop.permute.xlu0 %513
    %vm515 = vcmask 130048
    %s516 = scalar_lea.vmem %s1, 196
    %517 = vst.msk [vmem:[%s516] ss:$8 sm:$0xf] %vm515, %v514
    %s518 = scalar_lea.vmem %s1, 196
    %519 = vst.msk [vmem:[%s518] ss:$8 sm:$0xf0] %vm515, %v514
    %s520 = scalar_lea.vmem [#allocation0], 128
    %v521 = vld.sshfl [vmem:[%s520] sm:$0xff pattern:$0x99999180]
    %s522 = scalar_lea.vmem [#allocation0], 144
    %v523 = vld.sshfl [vmem:[%s522] sm:$0xff pattern:$0x91800000]
    %vm524 = vcmask 1047556
    %v525 = vsel %vm524, %v523, %v521
    %526 = vrot.lane.b32.xlu0 %v525, 64
    %v527 = vpop.permute.xlu0 %526
    %vm528 = vcmask 130048
    %s529 = scalar_lea.vmem %s1, 260
    %530 = vst.msk [vmem:[%s529] ss:$8 sm:$0xf] %vm528, %v527
    %s531 = scalar_lea.vmem %s1, 260
    %532 = vst.msk [vmem:[%s531] ss:$8 sm:$0xf0] %vm528, %v527
    %s533 = scalar_lea.vmem [#allocation0], 160
    %v534 = vld.sshfl [vmem:[%s533] sm:$0xff pattern:$0x99999180]
    %s535 = scalar_lea.vmem [#allocation0], 176
    %v536 = vld.sshfl [vmem:[%s535] sm:$0xff pattern:$0x91800000]
    %vm537 = vcmask 1047556
    %v538 = vsel %vm537, %v536, %v534
    %539 = vrot.lane.b32.xlu0 %v538, 64
    %v540 = vpop.permute.xlu0 %539
    %vm541 = vcmask 130048
    %s542 = scalar_lea.vmem %s1, 324
    %543 = vst.msk [vmem:[%s542] ss:$8 sm:$0xf] %vm541, %v540
    %s544 = scalar_lea.vmem %s1, 324
    %545 = vst.msk [vmem:[%s544] ss:$8 sm:$0xf0] %vm541, %v540
    %v546 = vld.sshfl [vmem:[#allocation0] sm:$0xff pattern:$0x99999180]
    %s547 = scalar_lea.vmem [#allocation0], 16
    %v548 = vld.sshfl [vmem:[%s547] sm:$0xff pattern:$0x91800000]
    %vm549 = vcmask 1047556
    %v550 = vsel %vm549, %v548, %v546
    %551 = vrot.lane.b32.xlu0 %v550, 48
    %v552 = vpop.permute.xlu0 %551
    %vm553 = vcmask 130048
    %s554 = scalar_lea.vmem %s1, 5
    %555 = vst.msk [vmem:[%s554] ss:$8 sm:$0xf] %vm553, %v552
    %s556 = scalar_lea.vmem %s1, 5
    %557 = vst.msk [vmem:[%s556] ss:$8 sm:$0xf0] %vm553, %v552
    %s558 = scalar_lea.vmem [#allocation0], 32
    %v559 = vld.sshfl [vmem:[%s558] sm:$0xff pattern:$0x99999180]
    %s560 = scalar_lea.vmem [#allocation0], 48
    %v561 = vld.sshfl [vmem:[%s560] sm:$0xff pattern:$0x91800000]
    %vm562 = vcmask 1047556
    %v563 = vsel %vm562, %v561, %v559
    %564 = vrot.lane.b32.xlu0 %v563, 48
    %v565 = vpop.permute.xlu0 %564
    %vm566 = vcmask 130048
    %s567 = scalar_lea.vmem %s1, 69
    %568 = vst.msk [vmem:[%s567] ss:$8 sm:$0xf] %vm566, %v565
    %s569 = scalar_lea.vmem %s1, 69
    %570 = vst.msk [vmem:[%s569] ss:$8 sm:$0xf0] %vm566, %v565
    %s571 = scalar_lea.vmem [#allocation0], 64
    %v572 = vld.sshfl [vmem:[%s571] sm:$0xff pattern:$0x99999180]
    %s573 = scalar_lea.vmem [#allocation0], 80
    %v574 = vld.sshfl [vmem:[%s573] sm:$0xff pattern:$0x91800000]
    %vm575 = vcmask 1047556
    %v576 = vsel %vm575, %v574, %v572
    %577 = vrot.lane.b32.xlu0 %v576, 48
    %v578 = vpop.permute.xlu0 %577
    %vm579 = vcmask 130048
    %s580 = scalar_lea.vmem %s1, 133
    %581 = vst.msk [vmem:[%s580] ss:$8 sm:$0xf] %vm579, %v578
    %s582 = scalar_lea.vmem %s1, 133
    %583 = vst.msk [vmem:[%s582] ss:$8 sm:$0xf0] %vm579, %v578
    %s584 = scalar_lea.vmem [#allocation0], 96
    %v585 = vld.sshfl [vmem:[%s584] sm:$0xff pattern:$0x99999180]
    %s586 = scalar_lea.vmem [#allocation0], 112
    %v587 = vld.sshfl [vmem:[%s586] sm:$0xff pattern:$0x91800000]
    %vm588 = vcmask 1047556
    %v589 = vsel %vm588, %v587, %v585
    %590 = vrot.lane.b32.xlu0 %v589, 48
    %v591 = vpop.permute.xlu0 %590
    %vm592 = vcmask 130048
    %s593 = scalar_lea.vmem %s1, 197
    %594 = vst.msk [vmem:[%s593] ss:$8 sm:$0xf] %vm592, %v591
    %s595 = scalar_lea.vmem %s1, 197
    %596 = vst.msk [vmem:[%s595] ss:$8 sm:$0xf0] %vm592, %v591
    %s597 = scalar_lea.vmem [#allocation0], 128
    %v598 = vld.sshfl [vmem:[%s597] sm:$0xff pattern:$0x99999180]
    %s599 = scalar_lea.vmem [#allocation0], 144
    %v600 = vld.sshfl [vmem:[%s599] sm:$0xff pattern:$0x91800000]
    %vm601 = vcmask 1047556
    %v602 = vsel %vm601, %v600, %v598
    %603 = vrot.lane.b32.xlu0 %v602, 48
    %v604 = vpop.permute.xlu0 %603
    %vm605 = vcmask 130048
    %s606 = scalar_lea.vmem %s1, 261
    %607 = vst.msk [vmem:[%s606] ss:$8 sm:$0xf] %vm605, %v604
    %s608 = scalar_lea.vmem %s1, 261
    %609 = vst.msk [vmem:[%s608] ss:$8 sm:$0xf0] %vm605, %v604
    %s610 = scalar_lea.vmem [#allocation0], 160
    %v611 = vld.sshfl [vmem:[%s610] sm:$0xff pattern:$0x99999180]
    %s612 = scalar_lea.vmem [#allocation0], 176
    %v613 = vld.sshfl [vmem:[%s612] sm:$0xff pattern:$0x91800000]
    %vm614 = vcmask 1047556
    %v615 = vsel %vm614, %v613, %v611
    %616 = vrot.lane.b32.xlu0 %v615, 48
    %v617 = vpop.permute.xlu0 %616
    %vm618 = vcmask 130048
    %s619 = scalar_lea.vmem %s1, 325
    %620 = vst.msk [vmem:[%s619] ss:$8 sm:$0xf] %vm618, %v617
    %s621 = scalar_lea.vmem %s1, 325
    %622 = vst.msk [vmem:[%s621] ss:$8 sm:$0xf0] %vm618, %v617
    %v623 = vld.sshfl [vmem:[#allocation0] sm:$0xff pattern:$0x99999180]
    %s624 = scalar_lea.vmem [#allocation0], 16
    %v625 = vld.sshfl [vmem:[%s624] sm:$0xff pattern:$0x91800000]
    %vm626 = vcmask 1047556
    %v627 = vsel %vm626, %v625, %v623
    %628 = vrot.lane.b32.xlu0 %v627, 32
    %v629 = vpop.permute.xlu0 %628
    %vm630 = vcmask 130048
    %s631 = scalar_lea.vmem %s1, 6
    %632 = vst.msk [vmem:[%s631] ss:$8 sm:$0xf] %vm630, %v629
    %s633 = scalar_lea.vmem %s1, 6
    %634 = vst.msk [vmem:[%s633] ss:$8 sm:$0xf0] %vm630, %v629
    %s635 = scalar_lea.vmem [#allocation0], 32
    %v636 = vld.sshfl [vmem:[%s635] sm:$0xff pattern:$0x99999180]
    %s637 = scalar_lea.vmem [#allocation0], 48
    %v638 = vld.sshfl [vmem:[%s637] sm:$0xff pattern:$0x91800000]
    %vm639 = vcmask 1047556
    %v640 = vsel %vm639, %v638, %v636
    %641 = vrot.lane.b32.xlu0 %v640, 32
    %v642 = vpop.permute.xlu0 %641
    %vm643 = vcmask 130048
    %s644 = scalar_lea.vmem %s1, 70
    %645 = vst.msk [vmem:[%s644] ss:$8 sm:$0xf] %vm643, %v642
    %s646 = scalar_lea.vmem %s1, 70
    %647 = vst.msk [vmem:[%s646] ss:$8 sm:$0xf0] %vm643, %v642
    %s648 = scalar_lea.vmem [#allocation0], 64
    %v649 = vld.sshfl [vmem:[%s648] sm:$0xff pattern:$0x99999180]
    %s650 = scalar_lea.vmem [#allocation0], 80
    %v651 = vld.sshfl [vmem:[%s650] sm:$0xff pattern:$0x91800000]
    %vm652 = vcmask 1047556
    %v653 = vsel %vm652, %v651, %v649
    %654 = vrot.lane.b32.xlu0 %v653, 32
    %v655 = vpop.permute.xlu0 %654
    %vm656 = vcmask 130048
    %s657 = scalar_lea.vmem %s1, 134
    %658 = vst.msk [vmem:[%s657] ss:$8 sm:$0xf] %vm656, %v655
    %s659 = scalar_lea.vmem %s1, 134
    %660 = vst.msk [vmem:[%s659] ss:$8 sm:$0xf0] %vm656, %v655
    %s661 = scalar_lea.vmem [#allocation0], 96
    %v662 = vld.sshfl [vmem:[%s661] sm:$0xff pattern:$0x99999180]
    %s663 = scalar_lea.vmem [#allocation0], 112
    %v664 = vld.sshfl [vmem:[%s663] sm:$0xff pattern:$0x91800000]
    %vm665 = vcmask 1047556
    %v666 = vsel %vm665, %v664, %v662
    %667 = vrot.lane.b32.xlu0 %v666, 32
    %v668 = vpop.permute.xlu0 %667
    %vm669 = vcmask 130048
    %s670 = scalar_lea.vmem %s1, 198
    %671 = vst.msk [vmem:[%s670] ss:$8 sm:$0xf] %vm669, %v668
    %s672 = scalar_lea.vmem %s1, 198
    %673 = vst.msk [vmem:[%s672] ss:$8 sm:$0xf0] %vm669, %v668
    %s674 = scalar_lea.vmem [#allocation0], 128
    %v675 = vld.sshfl [vmem:[%s674] sm:$0xff pattern:$0x99999180]
    %s676 = scalar_lea.vmem [#allocation0], 144
    %v677 = vld.sshfl [vmem:[%s676] sm:$0xff pattern:$0x91800000]
    %vm678 = vcmask 1047556
    %v679 = vsel %vm678, %v677, %v675
    %680 = vrot.lane.b32.xlu0 %v679, 32
    %v681 = vpop.permute.xlu0 %680
    %vm682 = vcmask 130048
    %s683 = scalar_lea.vmem %s1, 262
    %684 = vst.msk [vmem:[%s683] ss:$8 sm:$0xf] %vm682, %v681
    %s685 = scalar_lea.vmem %s1, 262
    %686 = vst.msk [vmem:[%s685] ss:$8 sm:$0xf0] %vm682, %v681
    %s687 = scalar_lea.vmem [#allocation0], 160
    %v688 = vld.sshfl [vmem:[%s687] sm:$0xff pattern:$0x99999180]
    %s689 = scalar_lea.vmem [#allocation0], 176
    %v690 = vld.sshfl [vmem:[%s689] sm:$0xff pattern:$0x91800000]
    %vm691 = vcmask 1047556
    %v692 = vsel %vm691, %v690, %v688
    %693 = vrot.lane.b32.xlu0 %v692, 32
    %v694 = vpop.permute.xlu0 %693
    %vm695 = vcmask 130048
    %s696 = scalar_lea.vmem %s1, 326
    %697 = vst.msk [vmem:[%s696] ss:$8 sm:$0xf] %vm695, %v694
    %s698 = scalar_lea.vmem %s1, 326
    %699 = vst.msk [vmem:[%s698] ss:$8 sm:$0xf0] %vm695, %v694
    %v700 = vld.sshfl [vmem:[#allocation0] sm:$0xff pattern:$0x99999180]
    %s701 = scalar_lea.vmem [#allocation0], 16
    %v702 = vld.sshfl [vmem:[%s701] sm:$0xff pattern:$0x91800000]
    %vm703 = vcmask 1047556
    %v704 = vsel %vm703, %v702, %v700
    %705 = vrot.lane.b32.xlu0 %v704, 16
    %v706 = vpop.permute.xlu0 %705
    %vm707 = vcmask 130048
    %s708 = scalar_lea.vmem %s1, 7
    %709 = vst.msk [vmem:[%s708] ss:$8 sm:$0xf] %vm707, %v706
    %s710 = scalar_lea.vmem %s1, 7
    %711 = vst.msk [vmem:[%s710] ss:$8 sm:$0xf0] %vm707, %v706
    %s712 = scalar_lea.vmem [#allocation0], 32
    %v713 = vld.sshfl [vmem:[%s712] sm:$0xff pattern:$0x99999180]
    %s714 = scalar_lea.vmem [#allocation0], 48
    %v715 = vld.sshfl [vmem:[%s714] sm:$0xff pattern:$0x91800000]
    %vm716 = vcmask 1047556
    %v717 = vsel %vm716, %v715, %v713
    %718 = vrot.lane.b32.xlu0 %v717, 16
    %v719 = vpop.permute.xlu0 %718
    %vm720 = vcmask 130048
    %s721 = scalar_lea.vmem %s1, 71
    %722 = vst.msk [vmem:[%s721] ss:$8 sm:$0xf] %vm720, %v719
    %s723 = scalar_lea.vmem %s1, 71
    %724 = vst.msk [vmem:[%s723] ss:$8 sm:$0xf0] %vm720, %v719
    %s725 = scalar_lea.vmem [#allocation0], 64
    %v726 = vld.sshfl [vmem:[%s725] sm:$0xff pattern:$0x99999180]
    %s727 = scalar_lea.vmem [#allocation0], 80
    %v728 = vld.sshfl [vmem:[%s727] sm:$0xff pattern:$0x91800000]
    %vm729 = vcmask 1047556
    %v730 = vsel %vm729, %v728, %v726
    %731 = vrot.lane.b32.xlu0 %v730, 16
    %v732 = vpop.permute.xlu0 %731
    %vm733 = vcmask 130048
    %s734 = scalar_lea.vmem %s1, 135
    %735 = vst.msk [vmem:[%s734] ss:$8 sm:$0xf] %vm733, %v732
    %s736 = scalar_lea.vmem %s1, 135
    %737 = vst.msk [vmem:[%s736] ss:$8 sm:$0xf0] %vm733, %v732
    %s738 = scalar_lea.vmem [#allocation0], 96
    %v739 = vld.sshfl [vmem:[%s738] sm:$0xff pattern:$0x99999180]
    %s740 = scalar_lea.vmem [#allocation0], 112
    %v741 = vld.sshfl [vmem:[%s740] sm:$0xff pattern:$0x91800000]
    %vm742 = vcmask 1047556
    %v743 = vsel %vm742, %v741, %v739
    %744 = vrot.lane.b32.xlu0 %v743, 16
    %v745 = vpop.permute.xlu0 %744
    %vm746 = vcmask 130048
    %s747 = scalar_lea.vmem %s1, 199
    %748 = vst.msk [vmem:[%s747] ss:$8 sm:$0xf] %vm746, %v745
    %s749 = scalar_lea.vmem %s1, 199
    %750 = vst.msk [vmem:[%s749] ss:$8 sm:$0xf0] %vm746, %v745
    %s751 = scalar_lea.vmem [#allocation0], 128
    %v752 = vld.sshfl [vmem:[%s751] sm:$0xff pattern:$0x99999180]
    %s753 = scalar_lea.vmem [#allocation0], 144
    %v754 = vld.sshfl [vmem:[%s753] sm:$0xff pattern:$0x91800000]
    %vm755 = vcmask 1047556
    %v756 = vsel %vm755, %v754, %v752
    %757 = vrot.lane.b32.xlu0 %v756, 16
    %v758 = vpop.permute.xlu0 %757
    %vm759 = vcmask 130048
    %s760 = scalar_lea.vmem %s1, 263
    %761 = vst.msk [vmem:[%s760] ss:$8 sm:$0xf] %vm759, %v758
    %s762 = scalar_lea.vmem %s1, 263
    %763 = vst.msk [vmem:[%s762] ss:$8 sm:$0xf0] %vm759, %v758
    %s764 = scalar_lea.vmem [#allocation0], 160
    %v765 = vld.sshfl [vmem:[%s764] sm:$0xff pattern:$0x99999180]
    %s766 = scalar_lea.vmem [#allocation0], 176
    %v767 = vld.sshfl [vmem:[%s766] sm:$0xff pattern:$0x91800000]
    %vm768 = vcmask 1047556
    %v769 = vsel %vm768, %v767, %v765
    %770 = vrot.lane.b32.xlu0 %v769, 16
    %v771 = vpop.permute.xlu0 %770
    %vm772 = vcmask 130048
    %s773 = scalar_lea.vmem %s1, 327
    %774 = vst.msk [vmem:[%s773] ss:$8 sm:$0xf] %vm772, %v771
    %s775 = scalar_lea.vmem %s1, 327
    %776 = vst.msk [vmem:[%s775] ss:$8 sm:$0xf0] %vm772, %v771

</llo_original>
